<compile_context>
chip_gen: v7x
topology: tpu7x:2x2x1
jax: 0.10.0
libtpu: 0.0.40
codegen_flags: <defaults>
</compile_context>

<pallas_src>
import functools

import jax
import jax.numpy as jnp
from jax.experimental import pallas as pl
from jax.experimental.pallas import tpu as pltpu


_MAX_ROW_TILE = 512            # rows per M tile for the row-wise kernels
_MAX_Q_TILE = 256              # query rows per attention tile
_VMEM_LIMIT = 64 * 1024 * 1024 # explicit scoped-VMEM budget (safe on v5e/v6e/v7x)


# -----------------------------------------------------------------------------
# In-kernel helpers
# -----------------------------------------------------------------------------
def _layernorm(x, g, b):
    mu = jnp.mean(x, axis=-1, keepdims=True)
    var = jnp.mean(jnp.square(x - mu), axis=-1, keepdims=True)
    return (x - mu) * jax.lax.rsqrt(var + 1e-5) * g + b


# -----------------------------------------------------------------------------
# Row-wise Pallas kernels (operate on (tm, K) slabs, weights resident)
# -----------------------------------------------------------------------------
def _qkv_self_kernel(x_ref, pos_ref, wqk_ref, bqk_ref, wv_ref, bv_ref,
                     q_ref, k_ref, v_ref):
    """q,k = (x+pos) @ [Wq|Wk]; v = x @ Wv.  Wq is pre-scaled by 1/sqrt(dh)."""
    x = x_ref[...]                       # bf16
    xp = x + pos_ref[...]
    qk = jnp.dot(xp, wqk_ref[...], preferred_element_type=jnp.float32) + bqk_ref[...]
    v = jnp.dot(x, wv_ref[...], preferred_element_type=jnp.float32) + bv_ref[...]
    d = q_ref.shape[-1]
    q_ref[...] = qk[:, :d].astype(q_ref.dtype)
    k_ref[...] = qk[:, d:].astype(k_ref.dtype)
    v_ref[...] = v.astype(v_ref.dtype)


def _kv_cross_kernel(mem_ref, pos_ref, wk_ref, bk_ref, wv_ref, bv_ref,
                     k_ref, v_ref):
    """k = (memory+pos) @ Wk; v = memory @ Wv (cross-attention keys/values)."""
    m = mem_ref[...]                     # bf16
    mp = m + pos_ref[...]
    k = jnp.dot(mp, wk_ref[...], preferred_element_type=jnp.float32) + bk_ref[...]
    v = jnp.dot(m, wv_ref[...], preferred_element_type=jnp.float32) + bv_ref[...]
    k_ref[...] = k.astype(k_ref.dtype)
    v_ref[...] = v.astype(v_ref.dtype)


def _proj_add_ln_kernel(a_ref, res_ref, wo_ref, bo_ref, g_ref, b_ref, o_ref):
    """o = LayerNorm(residual + attn @ Wo + bo)."""
    y = jnp.dot(a_ref[...], wo_ref[...], preferred_element_type=jnp.float32)
    y = y + bo_ref[...] + res_ref[...].astype(jnp.float32)
    o_ref[...] = _layernorm(y, g_ref[...], b_ref[...]).astype(o_ref.dtype)


def _ffn_add_ln_kernel(x_ref, w1_ref, b1_ref, w2_ref, b2_ref, g_ref, b_ref, o_ref):
    """o = LayerNorm(x + relu(x@W1+b1)@W2 + b2)  (whole FFN block fused)."""
    x = x_ref[...]                       # bf16, read once
    h = jnp.dot(x, w1_ref[...], preferred_element_type=jnp.float32) + b1_ref[...]
    h = jnp.maximum(h, 0.0).astype(jnp.bfloat16)
    y = (jnp.dot(h, w2_ref[...], preferred_element_type=jnp.float32)
         + b2_ref[...] + x.astype(jnp.float32))
    o_ref[...] = _layernorm(y, g_ref[...], b_ref[...]).astype(o_ref.dtype)


def _ffn_add_ln2_kernel(x_ref, w1_ref, b1_ref, w2_ref, b2_ref,
                        g1_ref, be1_ref, g2_ref, be2_ref, o_ref, o2_ref):
    """Decoder FFN block; additionally emits dec_norm(layer output) so the
    per-layer intermediate LayerNorm does not need its own pallas_call."""
    x = x_ref[...]                       # bf16
    h = jnp.dot(x, w1_ref[...], preferred_element_type=jnp.float32) + b1_ref[...]
    h = jnp.maximum(h, 0.0).astype(jnp.bfloat16)
    y = (jnp.dot(h, w2_ref[...], preferred_element_type=jnp.float32)
         + b2_ref[...] + x.astype(jnp.float32))
    y_ln = _layernorm(y, g1_ref[...], be1_ref[...])
    o_ref[...] = y_ln.astype(o_ref.dtype)
    o2_ref[...] = _layernorm(y_ln, g2_ref[...], be2_ref[...]).astype(o2_ref.dtype)


def _linear_act_kernel(x_ref, w_ref, b_ref, o_ref, *, activation=None):
    y = jnp.dot(x_ref[...], w_ref[...], preferred_element_type=jnp.float32) + b_ref[...]
    if activation == "sigmoid":
        y = jax.nn.sigmoid(y)
    elif activation == "relu":
        y = jnp.maximum(y, 0.0)
    o_ref[...] = y.astype(o_ref.dtype)


# -----------------------------------------------------------------------------
# Attention kernel: one (batch, q-tile) per grid step; heads sliced in-kernel.
# Optional fused q projection (decoder cross-attention).
# -----------------------------------------------------------------------------
def _attn_kernel(*refs, num_heads, has_mask, fuse_q):
    idx = 0
    if fuse_q:
        x_ref, qpos_ref, wq_ref, bq_ref = refs[0:4]
        idx = 4
    else:
        q_ref = refs[0]
        idx = 1
    k_ref, v_ref = refs[idx], refs[idx + 1]
    idx += 2
    mask_ref = refs[idx] if has_mask else None
    o_ref = refs[-1]

    if fuse_q:
        # q = (tgt + query_pos) @ Wq + bq, Wq pre-scaled by 1/sqrt(dh).
        xp = x_ref[0] + qpos_ref[0]                              # bf16 (tq, D)
        q = (jnp.dot(xp, wq_ref[...], preferred_element_type=jnp.float32)
             + bq_ref[...]).astype(jnp.bfloat16)
    else:
        q = q_ref[0]                                             # bf16 (tq, D)
    k = k_ref[0]                                                 # bf16 (Lk, D)
    v = v_ref[0]
    d = q.shape[-1]
    dh = d // num_heads

    if has_mask:
        bias = mask_ref[0] * jnp.float32(-1e9)                   # (1, Lk); 1.0 == padded

    # TODO(synk): dh < 128 head slices under-utilize MXU output lanes; acceptable
    # at these sizes, pad D / group heads for lane-aligned slices if it matters.
    for h in range(num_heads):
        lo = h * dh
        qh = q[:, lo:lo + dh]
        kh = k[:, lo:lo + dh]
        vh = v[:, lo:lo + dh]
        # q @ k^T without an explicit transpose (NT dot_general); scale already in Wq.
        s = jax.lax.dot_general(qh, kh, (((1,), (1,)), ((), ())),
                                preferred_element_type=jnp.float32)
        if has_mask:
            s = s + bias
        m = jnp.max(s, axis=-1, keepdims=True)
        p = jnp.exp(s - m)
        denom = jnp.sum(p, axis=-1, keepdims=True)
        p = p * pl.reciprocal(denom, approx=True)
        oh = jnp.dot(p.astype(jnp.bfloat16), vh, preferred_element_type=jnp.float32)
        o_ref[0, :, lo:lo + dh] = oh.astype(o_ref.dtype)         # early store per head


# -----------------------------------------------------------------------------
# pallas_call wrappers
# -----------------------------------------------------------------------------
def _row_call(kernel, row_ins, const_ins, out_widths, out_dtypes):
    """Run `kernel` over (M, *) row slabs, M-tiled with a parallel grid.

    row_ins:   list of (M, K_i) arrays tiled along M (no host-side padding;
               Pallas handles a partial last block, rows are independent).
    const_ins: weights / biases / LN params kept resident (constant index maps).
    out_widths/out_dtypes: output feature widths / dtypes -> outputs (M, N_j).
    """
    if not isinstance(out_dtypes, (list, tuple)):
        out_dtypes = [out_dtypes] * len(out_widths)
    M = row_ins[0].shape[0]
    tm = M if M <= _MAX_ROW_TILE else _MAX_ROW_TILE

    in_specs = [pl.BlockSpec((tm, a.shape[1]), lambda i: (i, 0)) for a in row_ins]
    in_specs += [pl.BlockSpec(tuple(c.shape), lambda i, _nd=c.ndim: (0,) * _nd)
                 for c in const_ins]

    out_specs = [pl.BlockSpec((tm, n), lambda i: (i, 0)) for n in out_widths]
    out_shape = [jax.ShapeDtypeStruct((M, n), dt)
                 for n, dt in zip(out_widths, out_dtypes)]
    multi = len(out_widths) > 1
    if not multi:
        out_specs, out_shape = out_specs[0], out_shape[0]

    return pl.pallas_call(
        kernel,
        grid=(pl.cdiv(M, tm),),
        in_specs=in_specs,
        out_specs=out_specs,
        out_shape=out_shape,
        compiler_params=pltpu.CompilerParams(
            dimension_semantics=("parallel",),
            vmem_limit_bytes=_VMEM_LIMIT),
    )(*row_ins, *const_ins)


def attention(k, v, mask_f, num_heads, *, q=None, x=None, qpos=None, wq=None, bq=None,
              out_dtype=jnp.bfloat16):
    """k, v: (B, Lk, D).  Either q (B, Lq, D) is given, or (x, qpos, wq, bq) for a
    fused in-kernel q projection.  mask_f: (B, Lk) float (1.0 = padded) or None."""
    fuse_q = q is None
    qin = x if fuse_q else q
    B, Lq, D = qin.shape
    Lk = k.shape[1]
    tq = Lq if Lq <= _MAX_Q_TILE else _MAX_Q_TILE

    q_spec = pl.BlockSpec((1, tq, D), lambda b, qi: (b, qi, 0))
    kv_spec = pl.BlockSpec((1, Lk, D), lambda b, qi: (b, 0, 0))

    if fuse_q:
        args = [x, qpos, wq, bq, k, v]
        in_specs = [q_spec, q_spec,
                    pl.BlockSpec(tuple(wq.shape), lambda b, qi: (0, 0)),
                    pl.BlockSpec(tuple(bq.shape), lambda b, qi: (0, 0)),
                    kv_spec, kv_spec]
    else:
        args = [q, k, v]
        in_specs = [q_spec, kv_spec, kv_spec]

    has_mask = mask_f is not None
    if has_mask:
        args.append(mask_f.reshape(B, 1, Lk).astype(jnp.float32))
        in_specs.append(pl.BlockSpec((1, 1, Lk), lambda b, qi: (b, 0, 0)))

    return pl.pallas_call(
        functools.partial(_attn_kernel, num_heads=num_heads, has_mask=has_mask,
                          fuse_q=fuse_q),
        grid=(B, pl.cdiv(Lq, tq)),
        in_specs=in_specs,
        out_specs=pl.BlockSpec((1, tq, D), lambda b, qi: (b, qi, 0)),
        out_shape=jax.ShapeDtypeStruct((B, Lq, D), out_dtype),
        compiler_params=pltpu.CompilerParams(
            dimension_semantics=("parallel", "parallel"),
            vmem_limit_bytes=_VMEM_LIMIT),
    )(*args)


# -----------------------------------------------------------------------------
# Transformer building blocks (activations batch-major bf16)
# -----------------------------------------------------------------------------
def mha_self(p, ln_g, ln_b, x, pos, mask_f, num_heads):
    """Post-norm residual self-attention: LN(x + MHA(q=k=x+pos, v=x))."""
    B, L, D = x.shape
    x2 = x.reshape(B * L, D)
    pos2 = pos.reshape(B * L, D)
    q2, k2, v2 = _row_call(_qkv_self_kernel, [x2, pos2],
                           [p["w_qk"], p["b_qk"], p["w_v"], p["b_v"]],
                           [D, D, D], jnp.bfloat16)
    a = attention(k2.reshape(B, L, D), v2.reshape(B, L, D), mask_f, num_heads,
                  q=q2.reshape(B, L, D))
    out = _row_call(_proj_add_ln_kernel, [a.reshape(B * L, D), x2],
                    [p["w_o"], p["b_o"], ln_g, ln_b], [D], jnp.bfloat16)
    return out.reshape(B, L, D)


def mha_cross(p, ln_g, ln_b, x, qpos, mem, mpos, mask_f, num_heads):
    """Post-norm residual cross-attention: LN(x + MHA(q=x+qpos, k=mem+mpos, v=mem)).
    The q projection is fused into the attention kernel (saves a launch + HBM bounce)."""
    B, Lq, D = x.shape
    Lk = mem.shape[1]
    k2, v2 = _row_call(_kv_cross_kernel,
                       [mem.reshape(B * Lk, D), mpos.reshape(B * Lk, D)],
                       [p["w_k"], p["b_k"], p["w_v"], p["b_v"]], [D, D], jnp.bfloat16)
    a = attention(k2.reshape(B, Lk, D), v2.reshape(B, Lk, D), mask_f, num_heads,
                  x=x, qpos=qpos, wq=p["w_q"], bq=p["b_q"])
    out = _row_call(_proj_add_ln_kernel, [a.reshape(B * Lq, D), x.reshape(B * Lq, D)],
                    [p["w_o"], p["b_o"], ln_g, ln_b], [D], jnp.bfloat16)
    return out.reshape(B, Lq, D)


def encoder_layer_fwd(p, src, pos, mask_f, num_heads):
    src = mha_self(p["self_attn"], p["norm1_g"], p["norm1_b"], src, pos, mask_f,
                   num_heads)
    B, L, D = src.shape
    out = _row_call(_ffn_add_ln_kernel, [src.reshape(B * L, D)],
                    [p["ffn"]["w1"], p["ffn"]["b1"], p["ffn"]["w2"], p["ffn"]["b2"],
                     p["norm2_g"], p["norm2_b"]], [D], jnp.bfloat16)
    return out.reshape(B, L, D)


def decoder_layer_fwd(p, dec_g, dec_b, tgt, memory, qpos, mpos, num_heads):
    # Group-DETR group-wise self-attention with a single group (inference path).
    tgt = mha_self(p["self_attn"], p["norm1_g"], p["norm1_b"], tgt, qpos, None,
                   num_heads)
    # Reference forward() does not pass the padding mask to the decoder (mask=None).
    tgt = mha_cross(p["cross_attn"], p["norm2_g"], p["norm2_b"], tgt, qpos,
                    memory, mpos, None, num_heads)
    B, L, D = tgt.shape
    out, normed = _row_call(
        _ffn_add_ln2_kernel, [tgt.reshape(B * L, D)],
        [p["ffn"]["w1"], p["ffn"]["b1"], p["ffn"]["w2"], p["ffn"]["b2"],
         p["norm3_g"], p["norm3_b"], dec_g, dec_b],
        [D, D], [jnp.bfloat16, jnp.float32])
    return out.reshape(B, L, D), normed.reshape(B, L, D)


def group_detr_transformer_fwd(params, x, mask, query_embed, pos_embed):
    bs, c, fh, fw = x.shape
    hw = fh * fw
    nq = query_embed.shape[0]
    num_heads = params["num_heads"]

    # Batch-major bf16 activations: (bs, hw, c).
    src = jnp.transpose(x.reshape(bs, c, hw), (0, 2, 1)).astype(jnp.bfloat16)
    pos = jnp.transpose(pos_embed.reshape(bs, c, hw), (0, 2, 1)).astype(jnp.bfloat16)
    qemb = jnp.broadcast_to(query_embed.astype(jnp.bfloat16)[None], (bs, nq, c))
    mask_f = mask.reshape(bs, hw).astype(jnp.float32)   # 1.0 == padded

    memory = src
    for lp in params["encoder"]:
        memory = encoder_layer_fwd(lp, memory, pos, mask_f, num_heads)

    tgt = jnp.zeros_like(qemb)
    intermediates = []
    for lp in params["decoder"]:
        tgt, normed = decoder_layer_fwd(lp, params["dec_norm_g"], params["dec_norm_b"],
                                        tgt, memory, qemb, pos, num_heads)
        intermediates.append(normed)

    # hidden_state: (num_layers, bs, num_queries, D), f32.
    hidden_state = jnp.stack(intermediates)

    # references = sigmoid(Linear(query_embed, 2)); computed into a 128-lane padded
    # slab (lane-dense stores) then sliced to the 2 real columns.
    ref_pad = _row_call(functools.partial(_linear_act_kernel, activation="sigmoid"),
                        [qemb.reshape(bs * nq, c)],
                        [params["ref_w"], params["ref_b"]],
                        [params["ref_w"].shape[1]], jnp.float32)
    references = ref_pad[:, :2].reshape(bs, nq, 2)
    return hidden_state, references


# -----------------------------------------------------------------------------
# Deterministic parameter init (xavier_uniform for dim>1, like init_weights()).
# Weights are pre-cast to bf16; the 1/sqrt(dh) softmax scale is folded into Wq.
# -----------------------------------------------------------------------------
def xavier(key, shape):
    fan_in, fan_out = shape
    limit = (6.0 / (fan_in + fan_out)) ** 0.5
    return jax.random.uniform(key, shape, jnp.float32, -limit, limit)


def _zeros_row(n):
    return jnp.zeros((1, n), jnp.float32)


def make_self_attn_params(key, D, scale):
    ks = jax.random.split(key, 4)
    wq = xavier(ks[0], (D, D)) * scale          # fold softmax scale into Wq
    wk = xavier(ks[1], (D, D))
    return {
        "w_qk": jnp.concatenate([wq, wk], axis=1).astype(jnp.bfloat16),
        "b_qk": _zeros_row(2 * D),
        "w_v": xavier(ks[2], (D, D)).astype(jnp.bfloat16), "b_v": _zeros_row(D),
        "w_o": xavier(ks[3], (D, D)).astype(jnp.bfloat16), "b_o": _zeros_row(D),
    }


def make_cross_attn_params(key, D, scale):
    ks = jax.random.split(key, 4)
    return {
        "w_q": (xavier(ks[0], (D, D)) * scale).astype(jnp.bfloat16),
        "b_q": _zeros_row(D),
        "w_k": xavier(ks[1], (D, D)).astype(jnp.bfloat16), "b_k": _zeros_row(D),
        "w_v": xavier(ks[2], (D, D)).astype(jnp.bfloat16), "b_v": _zeros_row(D),
        "w_o": xavier(ks[3], (D, D)).astype(jnp.bfloat16), "b_o": _zeros_row(D),
    }


def make_ffn_params(key, D, F):
    k1, k2 = jax.random.split(key)
    return {"w1": xavier(k1, (D, F)).astype(jnp.bfloat16), "b1": _zeros_row(F),
            "w2": xavier(k2, (F, D)).astype(jnp.bfloat16), "b2": _zeros_row(D)}


def make_encoder_layer(key, D, F, scale):
    k1, k2 = jax.random.split(key)
    return {
        "self_attn": make_self_attn_params(k1, D, scale),
        "ffn": make_ffn_params(k2, D, F),
        "norm1_g": jnp.ones((1, D), jnp.float32), "norm1_b": _zeros_row(D),
        "norm2_g": jnp.ones((1, D), jnp.float32), "norm2_b": _zeros_row(D),
    }


def make_decoder_layer(key, D, F, scale):
    k1, k2, k3 = jax.random.split(key, 3)
    return {
        "self_attn": make_self_attn_params(k1, D, scale),
        "cross_attn": make_cross_attn_params(k2, D, scale),
        "ffn": make_ffn_params(k3, D, F),
        "norm1_g": jnp.ones((1, D), jnp.float32), "norm1_b": _zeros_row(D),
        "norm2_g": jnp.ones((1, D), jnp.float32), "norm2_b": _zeros_row(D),
        "norm3_g": jnp.ones((1, D), jnp.float32), "norm3_b": _zeros_row(D),
    }


def make_params(key, D, H, F, n_enc, n_dec):
    scale = 1.0 / float(D // H) ** 0.5
    keys = jax.random.split(key, n_enc + n_dec + 1)
    ref_w = xavier(keys[-1], (D, 2))
    ref_w_pad = jnp.pad(ref_w, ((0, 0), (0, 128 - 2)))   # lane-dense reference head
    return {
        "num_heads": H,
        "encoder": [make_encoder_layer(keys[i], D, F, scale) for i in range(n_enc)],
        "decoder": [make_decoder_layer(keys[n_enc + i], D, F, scale)
                    for i in range(n_dec)],
        "dec_norm_g": jnp.ones((1, D), jnp.float32),
        "dec_norm_b": _zeros_row(D),
        "ref_w": ref_w_pad.astype(jnp.bfloat16),
        "ref_b": _zeros_row(128),
    }


# -----------------------------------------------------------------------------
# Main
# -----------------------------------------------------------------------------
if __name__ == "__main__":
    D, H, F = 64, 4, 128          # embed_dim, heads, ffn dim
    n_enc, n_dec = 2, 2
    bs, fh, fw = 2, 4, 4          # batch, spatial feature map
    num_queries = 8

    root = jax.random.PRNGKey(0)
    kp, kx, kq, kpos = jax.random.split(root, 4)

    params = make_params(kp, D, H, F, n_enc, n_dec)

    x = jax.random.normal(kx, (bs, D, fh, fw), jnp.float32)            # NCHW features
    pos_embed = jax.random.normal(kpos, (bs, D, fh, fw), jnp.float32)  # NCHW pos enc
    query_embed = jax.random.normal(kq, (num_queries, D), jnp.float32)
    # key padding mask: True = padded (last 3 spatial positions per image).
    mask = jnp.zeros((bs, fh * fw), dtype=bool).at[:, -3:].set(True).reshape(bs, fh, fw)

    fwd = jax.jit(functools.partial(group_detr_transformer_fwd, params))
    hidden_state, references = fwd(x, mask, query_embed, pos_embed)
    jax.block_until_ready((hidden_state, references))

    assert hidden_state.shape == (n_dec, bs, num_queries, D)
    assert references.shape == (bs, num_queries, 2)
    assert bool(jnp.all(jnp.isfinite(hidden_state)))
    assert bool(jnp.all((references >= 0.0) & (references <= 1.0)))
    print("KERNEL_OK")
</pallas_src>

<mosaic_0001>
module attributes {stable_mosaic.version = 11 : i64} {
  func.func @_qkv_self_kernel(%arg0: i32, %arg1: memref<32x64xbf16, #tpu.memory_space<vmem>>, %arg2: memref<32x64xbf16, #tpu.memory_space<vmem>>, %arg3: memref<64x128xbf16, #tpu.memory_space<vmem>>, %arg4: memref<1x128xf32, #tpu.memory_space<vmem>>, %arg5: memref<64x64xbf16, #tpu.memory_space<vmem>>, %arg6: memref<1x64xf32, #tpu.memory_space<vmem>>, %arg7: memref<32x64xbf16, #tpu.memory_space<vmem>>, %arg8: memref<32x64xbf16, #tpu.memory_space<vmem>>, %arg9: memref<32x64xbf16, #tpu.memory_space<vmem>>) attributes {dimension_semantics = [#tpu.dimension_semantics<parallel>], iteration_bounds = array<i64: 1>, scalar_prefetch = 0 : i64, scratch_operands = 0 : i64, tpu.core_type = #tpu.core_type<tc>, window_params = [{transform_indices = @transform_0, window_bounds = array<i64: 32, 64>}, {transform_indices = @transform_1, window_bounds = array<i64: 32, 64>}, {pipeline_mode = #tpu.pipeline_mode<synchronous>, transform_indices = @transform_2, window_bounds = array<i64: 64, 128>}, {pipeline_mode = #tpu.pipeline_mode<synchronous>, transform_indices = @transform_3, window_bounds = array<i64: 1, 128>}, {pipeline_mode = #tpu.pipeline_mode<synchronous>, transform_indices = @transform_4, window_bounds = array<i64: 64, 64>}, {pipeline_mode = #tpu.pipeline_mode<synchronous>, transform_indices = @transform_5, window_bounds = array<i64: 1, 64>}, {transform_indices = @transform_6, window_bounds = array<i64: 32, 64>}, {transform_indices = @transform_7, window_bounds = array<i64: 32, 64>}, {transform_indices = @transform_8, window_bounds = array<i64: 32, 64>}]} {
    %c0 = arith.constant 0 : index
    %c0_0 = arith.constant 0 : index
    %0 = vector.load %arg1[%c0, %c0_0] : memref<32x64xbf16, #tpu.memory_space<vmem>>, vector<32x64xbf16>
    %c0_1 = arith.constant 0 : index
    %c0_2 = arith.constant 0 : index
    %1 = vector.load %arg2[%c0_1, %c0_2] : memref<32x64xbf16, #tpu.memory_space<vmem>>, vector<32x64xbf16>
    %2 = arith.addf %0, %1 : vector<32x64xbf16>
    %c0_3 = arith.constant 0 : index
    %c0_4 = arith.constant 0 : index
    %3 = vector.load %arg3[%c0_3, %c0_4] : memref<64x128xbf16, #tpu.memory_space<vmem>>, vector<64x128xbf16>
    %cst = arith.constant dense<0.000000e+00> : vector<32x128xf32>
    %4 = tpu.matmul %2, %3, %cst {dimension_numbers = #tpu.dot_dimension_numbers<[1], [0], [0], [1], [0, 0, 1, 1], [], []>} : vector<32x64xbf16>, vector<64x128xbf16>, vector<32x128xf32> -> vector<32x128xf32>
    %c0_5 = arith.constant 0 : index
    %c0_6 = arith.constant 0 : index
    %5 = vector.load %arg4[%c0_5, %c0_6] : memref<1x128xf32, #tpu.memory_space<vmem>>, vector<1x128xf32>
    %6 = vector.broadcast %5 : vector<1x128xf32> to vector<32x128xf32>
    %7 = arith.addf %4, %6 : vector<32x128xf32>
    %c0_7 = arith.constant 0 : index
    %c0_8 = arith.constant 0 : index
    %8 = vector.load %arg5[%c0_7, %c0_8] : memref<64x64xbf16, #tpu.memory_space<vmem>>, vector<64x64xbf16>
    %cst_9 = arith.constant dense<0.000000e+00> : vector<32x64xf32>
    %9 = tpu.matmul %0, %8, %cst_9 {dimension_numbers = #tpu.dot_dimension_numbers<[1], [0], [0], [1], [0, 0, 1, 1], [], []>} : vector<32x64xbf16>, vector<64x64xbf16>, vector<32x64xf32> -> vector<32x64xf32>
    %c0_10 = arith.constant 0 : index
    %c0_11 = arith.constant 0 : index
    %10 = vector.load %arg6[%c0_10, %c0_11] : memref<1x64xf32, #tpu.memory_space<vmem>>, vector<1x64xf32>
    %11 = vector.broadcast %10 : vector<1x64xf32> to vector<32x64xf32>
    %12 = arith.addf %9, %11 : vector<32x64xf32>
    %13 = vector.extract_strided_slice %7 {offsets = [0, 0], sizes = [32, 64], strides = [1, 1]} : vector<32x128xf32> to vector<32x64xf32>
    %14 = arith.truncf %13 : vector<32x64xf32> to vector<32x64xbf16>
    %c0_12 = arith.constant 0 : index
    %c0_13 = arith.constant 0 : index
    %15 = vector.load %arg7[%c0_12, %c0_13] : memref<32x64xbf16, #tpu.memory_space<vmem>>, vector<32x64xbf16>
    tpu.vector_store %arg7[%c0_12, %c0_13], %14 {strides = array<i32>} : memref<32x64xbf16, #tpu.memory_space<vmem>>, vector<32x64xbf16>,
    %16 = vector.extract_strided_slice %7 {offsets = [0, 64], sizes = [32, 64], strides = [1, 1]} : vector<32x128xf32> to vector<32x64xf32>
    %17 = arith.truncf %16 : vector<32x64xf32> to vector<32x64xbf16>
    %c0_14 = arith.constant 0 : index
    %c0_15 = arith.constant 0 : index
    %18 = vector.load %arg8[%c0_14, %c0_15] : memref<32x64xbf16, #tpu.memory_space<vmem>>, vector<32x64xbf16>
    tpu.vector_store %arg8[%c0_14, %c0_15], %17 {strides = array<i32>} : memref<32x64xbf16, #tpu.memory_space<vmem>>, vector<32x64xbf16>,
    %19 = arith.truncf %12 : vector<32x64xf32> to vector<32x64xbf16>
    %c0_16 = arith.constant 0 : index
    %c0_17 = arith.constant 0 : index
    %20 = vector.load %arg9[%c0_16, %c0_17] : memref<32x64xbf16, #tpu.memory_space<vmem>>, vector<32x64xbf16>
    tpu.vector_store %arg9[%c0_16, %c0_17], %19 {strides = array<i32>} : memref<32x64xbf16, #tpu.memory_space<vmem>>, vector<32x64xbf16>,
    return
  }
  func.func @transform_0(%arg0: i32) -> (i32, i32) {
    %c0_i32 = arith.constant 0 : i32
    %c0_i32_0 = arith.constant 0 : i32
    return %arg0, %c0_i32 : i32, i32
  }
  func.func @transform_1(%arg0: i32) -> (i32, i32) {
    %c0_i32 = arith.constant 0 : i32
    %c0_i32_0 = arith.constant 0 : i32
    return %arg0, %c0_i32 : i32, i32
  }
  func.func @transform_2(%arg0: i32) -> (i32, i32) {
    %c0_i32 = arith.constant 0 : i32
    %c0_i32_0 = arith.constant 0 : i32
    %c0_i32_1 = arith.constant 0 : i32
    return %c0_i32, %c0_i32_0 : i32, i32
  }
  func.func @transform_3(%arg0: i32) -> (i32, i32) {
    %c0_i32 = arith.constant 0 : i32
    %c0_i32_0 = arith.constant 0 : i32
    %c0_i32_1 = arith.constant 0 : i32
    return %c0_i32, %c0_i32_0 : i32, i32
  }
  func.func @transform_4(%arg0: i32) -> (i32, i32) {
    %c0_i32 = arith.constant 0 : i32
    %c0_i32_0 = arith.constant 0 : i32
    %c0_i32_1 = arith.constant 0 : i32
    return %c0_i32, %c0_i32_0 : i32, i32
  }
  func.func @transform_5(%arg0: i32) -> (i32, i32) {
    %c0_i32 = arith.constant 0 : i32
    %c0_i32_0 = arith.constant 0 : i32
    %c0_i32_1 = arith.constant 0 : i32
    return %c0_i32, %c0_i32_0 : i32, i32
  }
  func.func @transform_6(%arg0: i32) -> (i32, i32) {
    %c0_i32 = arith.constant 0 : i32
    %c0_i32_0 = arith.constant 0 : i32
    return %arg0, %c0_i32 : i32, i32
  }
  func.func @transform_7(%arg0: i32) -> (i32, i32) {
    %c0_i32 = arith.constant 0 : i32
    %c0_i32_0 = arith.constant 0 : i32
    return %arg0, %c0_i32 : i32, i32
  }
  func.func @transform_8(%arg0: i32) -> (i32, i32) {
    %c0_i32 = arith.constant 0 : i32
    %c0_i32_0 = arith.constant 0 : i32
    return %arg0, %c0_i32 : i32, i32
  }
}

module attributes {stable_mosaic.version = 11 : i64} {
  func.func @_attn_kernel(%arg0: i32, %arg1: i32, %arg2: memref<1x16x64xbf16, #tpu.memory_space<vmem>>, %arg3: memref<1x16x64xbf16, #tpu.memory_space<vmem>>, %arg4: memref<1x16x64xbf16, #tpu.memory_space<vmem>>, %arg5: memref<1x1x16xf32, #tpu.memory_space<vmem>>, %arg6: memref<1x16x64xbf16, #tpu.memory_space<vmem>>) attributes {dimension_semantics = [#tpu.dimension_semantics<parallel>, #tpu.dimension_semantics<parallel>], iteration_bounds = array<i64: 2, 1>, scalar_prefetch = 0 : i64, scratch_operands = 0 : i64, tpu.core_type = #tpu.core_type<tc>, window_params = [{transform_indices = @transform_0, window_bounds = array<i64: 1, 16, 64>}, {transform_indices = @transform_1, window_bounds = array<i64: 1, 16, 64>}, {transform_indices = @transform_2, window_bounds = array<i64: 1, 16, 64>}, {transform_indices = @transform_3, window_bounds = array<i64: 1, 1, 16>}, {transform_indices = @transform_4, window_bounds = array<i64: 1, 16, 64>}]} {
    %c0 = arith.constant 0 : index
    %c0_0 = arith.constant 0 : index
    %c0_1 = arith.constant 0 : index
    %0 = vector.load %arg2[%c0, %c0_0, %c0_1] : memref<1x16x64xbf16, #tpu.memory_space<vmem>>, vector<1x16x64xbf16>
    %1 = vector.shape_cast %0 : vector<1x16x64xbf16> to vector<16x64xbf16>
    %c0_2 = arith.constant 0 : index
    %c0_3 = arith.constant 0 : index
    %c0_4 = arith.constant 0 : index
    %2 = vector.load %arg3[%c0_2, %c0_3, %c0_4] : memref<1x16x64xbf16, #tpu.memory_space<vmem>>, vector<1x16x64xbf16>
    %3 = vector.shape_cast %2 : vector<1x16x64xbf16> to vector<16x64xbf16>
    %c0_5 = arith.constant 0 : index
    %c0_6 = arith.constant 0 : index
    %c0_7 = arith.constant 0 : index
    %4 = vector.load %arg4[%c0_5, %c0_6, %c0_7] : memref<1x16x64xbf16, #tpu.memory_space<vmem>>, vector<1x16x64xbf16>
    %5 = vector.shape_cast %4 : vector<1x16x64xbf16> to vector<16x64xbf16>
    %c0_8 = arith.constant 0 : index
    %c0_9 = arith.constant 0 : index
    %c0_10 = arith.constant 0 : index
    %6 = vector.load %arg5[%c0_8, %c0_9, %c0_10] : memref<1x1x16xf32, #tpu.memory_space<vmem>>, vector<1x1x16xf32>
    %7 = vector.shape_cast %6 : vector<1x1x16xf32> to vector<1x16xf32>
    %cst = arith.constant -1.000000e+09 : f32
    %8 = vector.broadcast %cst : f32 to vector<1x16xf32>
    %9 = arith.mulf %7, %8 : vector<1x16xf32>
    %10 = vector.extract_strided_slice %1 {offsets = [0, 0], sizes = [16, 16], strides = [1, 1]} : vector<16x64xbf16> to vector<16x16xbf16>
    %11 = vector.extract_strided_slice %3 {offsets = [0, 0], sizes = [16, 16], strides = [1, 1]} : vector<16x64xbf16> to vector<16x16xbf16>
    %12 = vector.extract_strided_slice %5 {offsets = [0, 0], sizes = [16, 16], strides = [1, 1]} : vector<16x64xbf16> to vector<16x16xbf16>
    %cst_11 = arith.constant dense<0.000000e+00> : vector<16x16xf32>
    %13 = tpu.matmul %10, %11, %cst_11 {dimension_numbers = #tpu.dot_dimension_numbers<[1], [1], [0], [0], [0, 0, 1, 0], [], []>} : vector<16x16xbf16>, vector<16x16xbf16>, vector<16x16xf32> -> vector<16x16xf32>
    %14 = vector.broadcast %9 : vector<1x16xf32> to vector<16x16xf32>
    %15 = arith.addf %13, %14 : vector<16x16xf32>
    %cst_12 = arith.constant dense<0xFF800000> : vector<16xf32>
    %16 = vector.multi_reduction <maximumf>, %15, %cst_12 [1] : vector<16x16xf32> to vector<16xf32>
    %17 = vector.shape_cast %16 : vector<16xf32> to vector<16x1xf32>
    %18 = vector.broadcast %17 : vector<16x1xf32> to vector<16x16xf32>
    %19 = arith.subf %15, %18 : vector<16x16xf32>
    %20 = math.exp %19 : vector<16x16xf32>
    %cst_13 = arith.constant dense<0.000000e+00> : vector<16xf32>
    %21 = vector.multi_reduction <add>, %20, %cst_13 [1] : vector<16x16xf32> to vector<16xf32>
    %22 = vector.shape_cast %21 : vector<16xf32> to vector<16x1xf32>
    %23 = tpu.reciprocal %22 {approx = true} : vector<16x1xf32> -> vector<16x1xf32>
    %24 = vector.broadcast %23 : vector<16x1xf32> to vector<16x16xf32>
    %25 = arith.mulf %20, %24 : vector<16x16xf32>
    %26 = arith.truncf %25 : vector<16x16xf32> to vector<16x16xbf16>
    %cst_14 = arith.constant dense<0.000000e+00> : vector<16x16xf32>
    %27 = tpu.matmul %26, %12, %cst_14 {dimension_numbers = #tpu.dot_dimension_numbers<[1], [0], [0], [1], [0, 0, 1, 1], [], []>} : vector<16x16xbf16>, vector<16x16xbf16>, vector<16x16xf32> -> vector<16x16xf32>
    %28 = arith.truncf %27 : vector<16x16xf32> to vector<16x16xbf16>
    %c0_15 = arith.constant 0 : index
    %c0_16 = arith.constant 0 : index
    %c0_17 = arith.constant 0 : index
    %29 = vector.load %arg6[%c0_15, %c0_16, %c0_17] : memref<1x16x64xbf16, #tpu.memory_space<vmem>>, vector<1x16x16xbf16>
    %30 = vector.shape_cast %29 : vector<1x16x16xbf16> to vector<16x16xbf16>
    %31 = vector.shape_cast %28 : vector<16x16xbf16> to vector<1x16x16xbf16>
    tpu.vector_store %arg6[%c0_15, %c0_16, %c0_17], %31 {strides = array<i32>} : memref<1x16x64xbf16, #tpu.memory_space<vmem>>, vector<1x16x16xbf16>,
    %32 = vector.extract_strided_slice %1 {offsets = [0, 16], sizes = [16, 16], strides = [1, 1]} : vector<16x64xbf16> to vector<16x16xbf16>
    %33 = vector.extract_strided_slice %3 {offsets = [0, 16], sizes = [16, 16], strides = [1, 1]} : vector<16x64xbf16> to vector<16x16xbf16>
    %34 = vector.extract_strided_slice %5 {offsets = [0, 16], sizes = [16, 16], strides = [1, 1]} : vector<16x64xbf16> to vector<16x16xbf16>
    %cst_18 = arith.constant dense<0.000000e+00> : vector<16x16xf32>
    %35 = tpu.matmul %32, %33, %cst_18 {dimension_numbers = #tpu.dot_dimension_numbers<[1], [1], [0], [0], [0, 0, 1, 0], [], []>} : vector<16x16xbf16>, vector<16x16xbf16>, vector<16x16xf32> -> vector<16x16xf32>
    %36 = vector.broadcast %9 : vector<1x16xf32> to vector<16x16xf32>
    %37 = arith.addf %35, %36 : vector<16x16xf32>
    %cst_19 = arith.constant dense<0xFF800000> : vector<16xf32>
    %38 = vector.multi_reduction <maximumf>, %37, %cst_19 [1] : vector<16x16xf32> to vector<16xf32>
    %39 = vector.shape_cast %38 : vector<16xf32> to vector<16x1xf32>
    %40 = vector.broadcast %39 : vector<16x1xf32> to vector<16x16xf32>
    %41 = arith.subf %37, %40 : vector<16x16xf32>
    %42 = math.exp %41 : vector<16x16xf32>
    %cst_20 = arith.constant dense<0.000000e+00> : vector<16xf32>
    %43 = vector.multi_reduction <add>, %42, %cst_20 [1] : vector<16x16xf32> to vector<16xf32>
    %44 = vector.shape_cast %43 : vector<16xf32> to vector<16x1xf32>
    %45 = tpu.reciprocal %44 {approx = true} : vector<16x1xf32> -> vector<16x1xf32>
    %46 = vector.broadcast %45 : vector<16x1xf32> to vector<16x16xf32>
    %47 = arith.mulf %42, %46 : vector<16x16xf32>
    %48 = arith.truncf %47 : vector<16x16xf32> to vector<16x16xbf16>
    %cst_21 = arith.constant dense<0.000000e+00> : vector<16x16xf32>
    %49 = tpu.matmul %48, %34, %cst_21 {dimension_numbers = #tpu.dot_dimension_numbers<[1], [0], [0], [1], [0, 0, 1, 1], [], []>} : vector<16x16xbf16>, vector<16x16xbf16>, vector<16x16xf32> -> vector<16x16xf32>
    %50 = arith.truncf %49 : vector<16x16xf32> to vector<16x16xbf16>
    %c0_22 = arith.constant 0 : index
    %c0_23 = arith.constant 0 : index
    %c16 = arith.constant 16 : index
    %51 = vector.load %arg6[%c0_22, %c0_23, %c16] : memref<1x16x64xbf16, #tpu.memory_space<vmem>>, vector<1x16x16xbf16>
    %52 = vector.shape_cast %51 : vector<1x16x16xbf16> to vector<16x16xbf16>
    %53 = vector.shape_cast %50 : vector<16x16xbf16> to vector<1x16x16xbf16>
    tpu.vector_store %arg6[%c0_22, %c0_23, %c16], %53 {strides = array<i32>} : memref<1x16x64xbf16, #tpu.memory_space<vmem>>, vector<1x16x16xbf16>,
    %54 = vector.extract_strided_slice %1 {offsets = [0, 32], sizes = [16, 16], strides = [1, 1]} : vector<16x64xbf16> to vector<16x16xbf16>
    %55 = vector.extract_strided_slice %3 {offsets = [0, 32], sizes = [16, 16], strides = [1, 1]} : vector<16x64xbf16> to vector<16x16xbf16>
    %56 = vector.extract_strided_slice %5 {offsets = [0, 32], sizes = [16, 16], strides = [1, 1]} : vector<16x64xbf16> to vector<16x16xbf16>
    %cst_24 = arith.constant dense<0.000000e+00> : vector<16x16xf32>
    %57 = tpu.matmul %54, %55, %cst_24 {dimension_numbers = #tpu.dot_dimension_numbers<[1], [1], [0], [0], [0, 0, 1, 0], [], []>} : vector<16x16xbf16>, vector<16x16xbf16>, vector<16x16xf32> -> vector<16x16xf32>
    %58 = vector.broadcast %9 : vector<1x16xf32> to vector<16x16xf32>
    %59 = arith.addf %57, %58 : vector<16x16xf32>
    %cst_25 = arith.constant dense<0xFF800000> : vector<16xf32>
    %60 = vector.multi_reduction <maximumf>, %59, %cst_25 [1] : vector<16x16xf32> to vector<16xf32>
    %61 = vector.shape_cast %60 : vector<16xf32> to vector<16x1xf32>
    %62 = vector.broadcast %61 : vector<16x1xf32> to vector<16x16xf32>
    %63 = arith.subf %59, %62 : vector<16x16xf32>
    %64 = math.exp %63 : vector<16x16xf32>
    %cst_26 = arith.constant dense<0.000000e+00> : vector<16xf32>
    %65 = vector.multi_reduction <add>, %64, %cst_26 [1] : vector<16x16xf32> to vector<16xf32>
    %66 = vector.shape_cast %65 : vector<16xf32> to vector<16x1xf32>
    %67 = tpu.reciprocal %66 {approx = true} : vector<16x1xf32> -> vector<16x1xf32>
    %68 = vector.broadcast %67 : vector<16x1xf32> to vector<16x16xf32>
    %69 = arith.mulf %64, %68 : vector<16x16xf32>
    %70 = arith.truncf %69 : vector<16x16xf32> to vector<16x16xbf16>
    %cst_27 = arith.constant dense<0.000000e+00> : vector<16x16xf32>
    %71 = tpu.matmul %70, %56, %cst_27 {dimension_numbers = #tpu.dot_dimension_numbers<[1], [0], [0], [1], [0, 0, 1, 1], [], []>} : vector<16x16xbf16>, vector<16x16xbf16>, vector<16x16xf32> -> vector<16x16xf32>
    %72 = arith.truncf %71 : vector<16x16xf32> to vector<16x16xbf16>
    %c0_28 = arith.constant 0 : index
    %c0_29 = arith.constant 0 : index
    %c32 = arith.constant 32 : index
    %73 = vector.load %arg6[%c0_28, %c0_29, %c32] : memref<1x16x64xbf16, #tpu.memory_space<vmem>>, vector<1x16x16xbf16>
    %74 = vector.shape_cast %73 : vector<1x16x16xbf16> to vector<16x16xbf16>
    %75 = vector.shape_cast %72 : vector<16x16xbf16> to vector<1x16x16xbf16>
    tpu.vector_store %arg6[%c0_28, %c0_29, %c32], %75 {strides = array<i32>} : memref<1x16x64xbf16, #tpu.memory_space<vmem>>, vector<1x16x16xbf16>,
    %76 = vector.extract_strided_slice %1 {offsets = [0, 48], sizes = [16, 16], strides = [1, 1]} : vector<16x64xbf16> to vector<16x16xbf16>
    %77 = vector.extract_strided_slice %3 {offsets = [0, 48], sizes = [16, 16], strides = [1, 1]} : vector<16x64xbf16> to vector<16x16xbf16>
    %78 = vector.extract_strided_slice %5 {offsets = [0, 48], sizes = [16, 16], strides = [1, 1]} : vector<16x64xbf16> to vector<16x16xbf16>
    %cst_30 = arith.constant dense<0.000000e+00> : vector<16x16xf32>
    %79 = tpu.matmul %76, %77, %cst_30 {dimension_numbers = #tpu.dot_dimension_numbers<[1], [1], [0], [0], [0, 0, 1, 0], [], []>} : vector<16x16xbf16>, vector<16x16xbf16>, vector<16x16xf32> -> vector<16x16xf32>
    %80 = vector.broadcast %9 : vector<1x16xf32> to vector<16x16xf32>
    %81 = arith.addf %79, %80 : vector<16x16xf32>
    %cst_31 = arith.constant dense<0xFF800000> : vector<16xf32>
    %82 = vector.multi_reduction <maximumf>, %81, %cst_31 [1] : vector<16x16xf32> to vector<16xf32>
    %83 = vector.shape_cast %82 : vector<16xf32> to vector<16x1xf32>
    %84 = vector.broadcast %83 : vector<16x1xf32> to vector<16x16xf32>
    %85 = arith.subf %81, %84 : vector<16x16xf32>
    %86 = math.exp %85 : vector<16x16xf32>
    %cst_32 = arith.constant dense<0.000000e+00> : vector<16xf32>
    %87 = vector.multi_reduction <add>, %86, %cst_32 [1] : vector<16x16xf32> to vector<16xf32>
    %88 = vector.shape_cast %87 : vector<16xf32> to vector<16x1xf32>
    %89 = tpu.reciprocal %88 {approx = true} : vector<16x1xf32> -> vector<16x1xf32>
    %90 = vector.broadcast %89 : vector<16x1xf32> to vector<16x16xf32>
    %91 = arith.mulf %86, %90 : vector<16x16xf32>
    %92 = arith.truncf %91 : vector<16x16xf32> to vector<16x16xbf16>
    %cst_33 = arith.constant dense<0.000000e+00> : vector<16x16xf32>
    %93 = tpu.matmul %92, %78, %cst_33 {dimension_numbers = #tpu.dot_dimension_numbers<[1], [0], [0], [1], [0, 0, 1, 1], [], []>} : vector<16x16xbf16>, vector<16x16xbf16>, vector<16x16xf32> -> vector<16x16xf32>
    %94 = arith.truncf %93 : vector<16x16xf32> to vector<16x16xbf16>
    %c0_34 = arith.constant 0 : index
    %c0_35 = arith.constant 0 : index
    %c48 = arith.constant 48 : index
    %95 = vector.load %arg6[%c0_34, %c0_35, %c48] : memref<1x16x64xbf16, #tpu.memory_space<vmem>>, vector<1x16x16xbf16>
    %96 = vector.shape_cast %95 : vector<1x16x16xbf16> to vector<16x16xbf16>
    %97 = vector.shape_cast %94 : vector<16x16xbf16> to vector<1x16x16xbf16>
    tpu.vector_store %arg6[%c0_34, %c0_35, %c48], %97 {strides = array<i32>} : memref<1x16x64xbf16, #tpu.memory_space<vmem>>, vector<1x16x16xbf16>,
    return
  }
  func.func @transform_0(%arg0: i32, %arg1: i32) -> (i32, i32, i32) {
    %c0_i32 = arith.constant 0 : i32
    %c0_i32_0 = arith.constant 0 : i32
    return %arg0, %arg1, %c0_i32 : i32, i32, i32
  }
  func.func @transform_1(%arg0: i32, %arg1: i32) -> (i32, i32, i32) {
    %c0_i32 = arith.constant 0 : i32
    %c0_i32_0 = arith.constant 0 : i32
    %c0_i32_1 = arith.constant 0 : i32
    return %arg0, %c0_i32, %c0_i32_0 : i32, i32, i32
  }
  func.func @transform_2(%arg0: i32, %arg1: i32) -> (i32, i32, i32) {
    %c0_i32 = arith.constant 0 : i32
    %c0_i32_0 = arith.constant 0 : i32
    %c0_i32_1 = arith.constant 0 : i32
    return %arg0, %c0_i32, %c0_i32_0 : i32, i32, i32
  }
  func.func @transform_3(%arg0: i32, %arg1: i32) -> (i32, i32, i32) {
    %c0_i32 = arith.constant 0 : i32
    %c0_i32_0 = arith.constant 0 : i32
    %c0_i32_1 = arith.constant 0 : i32
    return %arg0, %c0_i32, %c0_i32_0 : i32, i32, i32
  }
  func.func @transform_4(%arg0: i32, %arg1: i32) -> (i32, i32, i32) {
    %c0_i32 = arith.constant 0 : i32
    %c0_i32_0 = arith.constant 0 : i32
    return %arg0, %arg1, %c0_i32 : i32, i32, i32
  }
}

module attributes {stable_mosaic.version = 11 : i64} {
  func.func @_proj_add_ln_kernel(%arg0: i32, %arg1: memref<32x64xbf16, #tpu.memory_space<vmem>>, %arg2: memref<32x64xbf16, #tpu.memory_space<vmem>>, %arg3: memref<64x64xbf16, #tpu.memory_space<vmem>>, %arg4: memref<1x64xf32, #tpu.memory_space<vmem>>, %arg5: memref<1x64xf32, #tpu.memory_space<vmem>>, %arg6: memref<1x64xf32, #tpu.memory_space<vmem>>, %arg7: memref<32x64xbf16, #tpu.memory_space<vmem>>) attributes {dimension_semantics = [#tpu.dimension_semantics<parallel>], iteration_bounds = array<i64: 1>, scalar_prefetch = 0 : i64, scratch_operands = 0 : i64, tpu.core_type = #tpu.core_type<tc>, window_params = [{transform_indices = @transform_0, window_bounds = array<i64: 32, 64>}, {transform_indices = @transform_1, window_bounds = array<i64: 32, 64>}, {pipeline_mode = #tpu.pipeline_mode<synchronous>, transform_indices = @transform_2, window_bounds = array<i64: 64, 64>}, {pipeline_mode = #tpu.pipeline_mode<synchronous>, transform_indices = @transform_3, window_bounds = array<i64: 1, 64>}, {pipeline_mode = #tpu.pipeline_mode<synchronous>, transform_indices = @transform_4, window_bounds = array<i64: 1, 64>}, {pipeline_mode = #tpu.pipeline_mode<synchronous>, transform_indices = @transform_5, window_bounds = array<i64: 1, 64>}, {transform_indices = @transform_6, window_bounds = array<i64: 32, 64>}]} {
    %c0 = arith.constant 0 : index
    %c0_0 = arith.constant 0 : index
    %0 = vector.load %arg1[%c0, %c0_0] : memref<32x64xbf16, #tpu.memory_space<vmem>>, vector<32x64xbf16>
    %c0_1 = arith.constant 0 : index
    %c0_2 = arith.constant 0 : index
    %1 = vector.load %arg3[%c0_1, %c0_2] : memref<64x64xbf16, #tpu.memory_space<vmem>>, vector<64x64xbf16>
    %cst = arith.constant dense<0.000000e+00> : vector<32x64xf32>
    %2 = tpu.matmul %0, %1, %cst {dimension_numbers = #tpu.dot_dimension_numbers<[1], [0], [0], [1], [0, 0, 1, 1], [], []>} : vector<32x64xbf16>, vector<64x64xbf16>, vector<32x64xf32> -> vector<32x64xf32>
    %c0_3 = arith.constant 0 : index
    %c0_4 = arith.constant 0 : index
    %3 = vector.load %arg4[%c0_3, %c0_4] : memref<1x64xf32, #tpu.memory_space<vmem>>, vector<1x64xf32>
    %4 = vector.broadcast %3 : vector<1x64xf32> to vector<32x64xf32>
    %5 = arith.addf %2, %4 : vector<32x64xf32>
    %c0_5 = arith.constant 0 : index
    %c0_6 = arith.constant 0 : index
    %6 = vector.load %arg2[%c0_5, %c0_6] : memref<32x64xbf16, #tpu.memory_space<vmem>>, vector<32x64xbf16>
    %7 = arith.extf %6 : vector<32x64xbf16> to vector<32x64xf32>
    %8 = arith.addf %5, %7 : vector<32x64xf32>
    %c0_7 = arith.constant 0 : index
    %c0_8 = arith.constant 0 : index
    %9 = vector.load %arg5[%c0_7, %c0_8] : memref<1x64xf32, #tpu.memory_space<vmem>>, vector<1x64xf32>
    %c0_9 = arith.constant 0 : index
    %c0_10 = arith.constant 0 : index
    %10 = vector.load %arg6[%c0_9, %c0_10] : memref<1x64xf32, #tpu.memory_space<vmem>>, vector<1x64xf32>
    %cst_11 = arith.constant dense<0.000000e+00> : vector<32xf32>
    %11 = vector.multi_reduction <add>, %8, %cst_11 [1] : vector<32x64xf32> to vector<32xf32>
    %12 = vector.shape_cast %11 : vector<32xf32> to vector<32x1xf32>
    %cst_12 = arith.constant 6.400000e+01 : f32
    %13 = vector.broadcast %cst_12 : f32 to vector<32x1xf32>
    %14 = arith.divf %12, %13 : vector<32x1xf32>
    %15 = vector.broadcast %14 : vector<32x1xf32> to vector<32x64xf32>
    %16 = arith.subf %8, %15 : vector<32x64xf32>
    %17 = arith.mulf %16, %16 : vector<32x64xf32>
    %cst_13 = arith.constant dense<0.000000e+00> : vector<32xf32>
    %18 = vector.multi_reduction <add>, %17, %cst_13 [1] : vector<32x64xf32> to vector<32xf32>
    %19 = vector.shape_cast %18 : vector<32xf32> to vector<32x1xf32>
    %cst_14 = arith.constant 6.400000e+01 : f32
    %20 = vector.broadcast %cst_14 : f32 to vector<32x1xf32>
    %21 = arith.divf %19, %20 : vector<32x1xf32>
    %22 = vector.broadcast %14 : vector<32x1xf32> to vector<32x64xf32>
    %23 = arith.subf %8, %22 : vector<32x64xf32>
    %cst_15 = arith.constant 9.99999974E-6 : f32
    %24 = vector.broadcast %cst_15 : f32 to vector<32x1xf32>
    %25 = arith.addf %21, %24 : vector<32x1xf32>
    %26 = math.rsqrt %25 : vector<32x1xf32>
    %27 = vector.broadcast %26 : vector<32x1xf32> to vector<32x64xf32>
    %28 = arith.mulf %23, %27 : vector<32x64xf32>
    %29 = vector.broadcast %9 : vector<1x64xf32> to vector<32x64xf32>
    %30 = arith.mulf %28, %29 : vector<32x64xf32>
    %31 = vector.broadcast %10 : vector<1x64xf32> to vector<32x64xf32>
    %32 = arith.addf %30, %31 : vector<32x64xf32>
    %33 = arith.truncf %32 : vector<32x64xf32> to vector<32x64xbf16>
    %c0_16 = arith.constant 0 : index
    %c0_17 = arith.constant 0 : index
    %34 = vector.load %arg7[%c0_16, %c0_17] : memref<32x64xbf16, #tpu.memory_space<vmem>>, vector<32x64xbf16>
    tpu.vector_store %arg7[%c0_16, %c0_17], %33 {strides = array<i32>} : memref<32x64xbf16, #tpu.memory_space<vmem>>, vector<32x64xbf16>,
    return
  }
  func.func @transform_0(%arg0: i32) -> (i32, i32) {
    %c0_i32 = arith.constant 0 : i32
    %c0_i32_0 = arith.constant 0 : i32
    return %arg0, %c0_i32 : i32, i32
  }
  func.func @transform_1(%arg0: i32) -> (i32, i32) {
    %c0_i32 = arith.constant 0 : i32
    %c0_i32_0 = arith.constant 0 : i32
    return %arg0, %c0_i32 : i32, i32
  }
  func.func @transform_2(%arg0: i32) -> (i32, i32) {
    %c0_i32 = arith.constant 0 : i32
    %c0_i32_0 = arith.constant 0 : i32
    %c0_i32_1 = arith.constant 0 : i32
    return %c0_i32, %c0_i32_0 : i32, i32
  }
  func.func @transform_3(%arg0: i32) -> (i32, i32) {
    %c0_i32 = arith.constant 0 : i32
    %c0_i32_0 = arith.constant 0 : i32
    %c0_i32_1 = arith.constant 0 : i32
    return %c0_i32, %c0_i32_0 : i32, i32
  }
  func.func @transform_4(%arg0: i32) -> (i32, i32) {
    %c0_i32 = arith.constant 0 : i32
    %c0_i32_0 = arith.constant 0 : i32
    %c0_i32_1 = arith.constant 0 : i32
    return %c0_i32, %c0_i32_0 : i32, i32
  }
  func.func @transform_5(%arg0: i32) -> (i32, i32) {
    %c0_i32 = arith.constant 0 : i32
    %c0_i32_0 = arith.constant 0 : i32
    %c0_i32_1 = arith.constant 0 : i32
    return %c0_i32, %c0_i32_0 : i32, i32
  }
  func.func @transform_6(%arg0: i32) -> (i32, i32) {
    %c0_i32 = arith.constant 0 : i32
    %c0_i32_0 = arith.constant 0 : i32
    return %arg0, %c0_i32 : i32, i32
  }
}

module attributes {stable_mosaic.version = 11 : i64} {
  func.func @_ffn_add_ln_kernel(%arg0: i32, %arg1: memref<32x64xbf16, #tpu.memory_space<vmem>>, %arg2: memref<64x128xbf16, #tpu.memory_space<vmem>>, %arg3: memref<1x128xf32, #tpu.memory_space<vmem>>, %arg4: memref<128x64xbf16, #tpu.memory_space<vmem>>, %arg5: memref<1x64xf32, #tpu.memory_space<vmem>>, %arg6: memref<1x64xf32, #tpu.memory_space<vmem>>, %arg7: memref<1x64xf32, #tpu.memory_space<vmem>>, %arg8: memref<32x64xbf16, #tpu.memory_space<vmem>>) attributes {dimension_semantics = [#tpu.dimension_semantics<parallel>], iteration_bounds = array<i64: 1>, scalar_prefetch = 0 : i64, scratch_operands = 0 : i64, tpu.core_type = #tpu.core_type<tc>, window_params = [{transform_indices = @transform_0, window_bounds = array<i64: 32, 64>}, {pipeline_mode = #tpu.pipeline_mode<synchronous>, transform_indices = @transform_1, window_bounds = array<i64: 64, 128>}, {pipeline_mode = #tpu.pipeline_mode<synchronous>, transform_indices = @transform_2, window_bounds = array<i64: 1, 128>}, {pipeline_mode = #tpu.pipeline_mode<synchronous>, transform_indices = @transform_3, window_bounds = array<i64: 128, 64>}, {pipeline_mode = #tpu.pipeline_mode<synchronous>, transform_indices = @transform_4, window_bounds = array<i64: 1, 64>}, {pipeline_mode = #tpu.pipeline_mode<synchronous>, transform_indices = @transform_5, window_bounds = array<i64: 1, 64>}, {pipeline_mode = #tpu.pipeline_mode<synchronous>, transform_indices = @transform_6, window_bounds = array<i64: 1, 64>}, {transform_indices = @transform_7, window_bounds = array<i64: 32, 64>}]} {
    %c0 = arith.constant 0 : index
    %c0_0 = arith.constant 0 : index
    %0 = vector.load %arg1[%c0, %c0_0] : memref<32x64xbf16, #tpu.memory_space<vmem>>, vector<32x64xbf16>
    %c0_1 = arith.constant 0 : index
    %c0_2 = arith.constant 0 : index
    %1 = vector.load %arg2[%c0_1, %c0_2] : memref<64x128xbf16, #tpu.memory_space<vmem>>, vector<64x128xbf16>
    %cst = arith.constant dense<0.000000e+00> : vector<32x128xf32>
    %2 = tpu.matmul %0, %1, %cst {dimension_numbers = #tpu.dot_dimension_numbers<[1], [0], [0], [1], [0, 0, 1, 1], [], []>} : vector<32x64xbf16>, vector<64x128xbf16>, vector<32x128xf32> -> vector<32x128xf32>
    %c0_3 = arith.constant 0 : index
    %c0_4 = arith.constant 0 : index
    %3 = vector.load %arg3[%c0_3, %c0_4] : memref<1x128xf32, #tpu.memory_space<vmem>>, vector<1x128xf32>
    %4 = vector.broadcast %3 : vector<1x128xf32> to vector<32x128xf32>
    %5 = arith.addf %2, %4 : vector<32x128xf32>
    %cst_5 = arith.constant 0.000000e+00 : f32
    %6 = vector.broadcast %cst_5 : f32 to vector<32x128xf32>
    %7 = arith.maximumf %5, %6 : vector<32x128xf32>
    %8 = arith.truncf %7 : vector<32x128xf32> to vector<32x128xbf16>
    %c0_6 = arith.constant 0 : index
    %c0_7 = arith.constant 0 : index
    %9 = vector.load %arg4[%c0_6, %c0_7] : memref<128x64xbf16, #tpu.memory_space<vmem>>, vector<128x64xbf16>
    %cst_8 = arith.constant dense<0.000000e+00> : vector<32x64xf32>
    %10 = tpu.matmul %8, %9, %cst_8 {dimension_numbers = #tpu.dot_dimension_numbers<[1], [0], [0], [1], [0, 0, 1, 1], [], []>} : vector<32x128xbf16>, vector<128x64xbf16>, vector<32x64xf32> -> vector<32x64xf32>
    %c0_9 = arith.constant 0 : index
    %c0_10 = arith.constant 0 : index
    %11 = vector.load %arg5[%c0_9, %c0_10] : memref<1x64xf32, #tpu.memory_space<vmem>>, vector<1x64xf32>
    %12 = vector.broadcast %11 : vector<1x64xf32> to vector<32x64xf32>
    %13 = arith.addf %10, %12 : vector<32x64xf32>
    %14 = arith.extf %0 : vector<32x64xbf16> to vector<32x64xf32>
    %15 = arith.addf %13, %14 : vector<32x64xf32>
    %c0_11 = arith.constant 0 : index
    %c0_12 = arith.constant 0 : index
    %16 = vector.load %arg6[%c0_11, %c0_12] : memref<1x64xf32, #tpu.memory_space<vmem>>, vector<1x64xf32>
    %c0_13 = arith.constant 0 : index
    %c0_14 = arith.constant 0 : index
    %17 = vector.load %arg7[%c0_13, %c0_14] : memref<1x64xf32, #tpu.memory_space<vmem>>, vector<1x64xf32>
    %cst_15 = arith.constant dense<0.000000e+00> : vector<32xf32>
    %18 = vector.multi_reduction <add>, %15, %cst_15 [1] : vector<32x64xf32> to vector<32xf32>
    %19 = vector.shape_cast %18 : vector<32xf32> to vector<32x1xf32>
    %cst_16 = arith.constant 6.400000e+01 : f32
    %20 = vector.broadcast %cst_16 : f32 to vector<32x1xf32>
    %21 = arith.divf %19, %20 : vector<32x1xf32>
    %22 = vector.broadcast %21 : vector<32x1xf32> to vector<32x64xf32>
    %23 = arith.subf %15, %22 : vector<32x64xf32>
    %24 = arith.mulf %23, %23 : vector<32x64xf32>
    %cst_17 = arith.constant dense<0.000000e+00> : vector<32xf32>
    %25 = vector.multi_reduction <add>, %24, %cst_17 [1] : vector<32x64xf32> to vector<32xf32>
    %26 = vector.shape_cast %25 : vector<32xf32> to vector<32x1xf32>
    %cst_18 = arith.constant 6.400000e+01 : f32
    %27 = vector.broadcast %cst_18 : f32 to vector<32x1xf32>
    %28 = arith.divf %26, %27 : vector<32x1xf32>
    %29 = vector.broadcast %21 : vector<32x1xf32> to vector<32x64xf32>
    %30 = arith.subf %15, %29 : vector<32x64xf32>
    %cst_19 = arith.constant 9.99999974E-6 : f32
    %31 = vector.broadcast %cst_19 : f32 to vector<32x1xf32>
    %32 = arith.addf %28, %31 : vector<32x1xf32>
    %33 = math.rsqrt %32 : vector<32x1xf32>
    %34 = vector.broadcast %33 : vector<32x1xf32> to vector<32x64xf32>
    %35 = arith.mulf %30, %34 : vector<32x64xf32>
    %36 = vector.broadcast %16 : vector<1x64xf32> to vector<32x64xf32>
    %37 = arith.mulf %35, %36 : vector<32x64xf32>
    %38 = vector.broadcast %17 : vector<1x64xf32> to vector<32x64xf32>
    %39 = arith.addf %37, %38 : vector<32x64xf32>
    %40 = arith.truncf %39 : vector<32x64xf32> to vector<32x64xbf16>
    %c0_20 = arith.constant 0 : index
    %c0_21 = arith.constant 0 : index
    %41 = vector.load %arg8[%c0_20, %c0_21] : memref<32x64xbf16, #tpu.memory_space<vmem>>, vector<32x64xbf16>
    tpu.vector_store %arg8[%c0_20, %c0_21], %40 {strides = array<i32>} : memref<32x64xbf16, #tpu.memory_space<vmem>>, vector<32x64xbf16>,
    return
  }
  func.func @transform_0(%arg0: i32) -> (i32, i32) {
    %c0_i32 = arith.constant 0 : i32
    %c0_i32_0 = arith.constant 0 : i32
    return %arg0, %c0_i32 : i32, i32
  }
  func.func @transform_1(%arg0: i32) -> (i32, i32) {
    %c0_i32 = arith.constant 0 : i32
    %c0_i32_0 = arith.constant 0 : i32
    %c0_i32_1 = arith.constant 0 : i32
    return %c0_i32, %c0_i32_0 : i32, i32
  }
  func.func @transform_2(%arg0: i32) -> (i32, i32) {
    %c0_i32 = arith.constant 0 : i32
    %c0_i32_0 = arith.constant 0 : i32
    %c0_i32_1 = arith.constant 0 : i32
    return %c0_i32, %c0_i32_0 : i32, i32
  }
  func.func @transform_3(%arg0: i32) -> (i32, i32) {
    %c0_i32 = arith.constant 0 : i32
    %c0_i32_0 = arith.constant 0 : i32
    %c0_i32_1 = arith.constant 0 : i32
    return %c0_i32, %c0_i32_0 : i32, i32
  }
  func.func @transform_4(%arg0: i32) -> (i32, i32) {
    %c0_i32 = arith.constant 0 : i32
    %c0_i32_0 = arith.constant 0 : i32
    %c0_i32_1 = arith.constant 0 : i32
    return %c0_i32, %c0_i32_0 : i32, i32
  }
  func.func @transform_5(%arg0: i32) -> (i32, i32) {
    %c0_i32 = arith.constant 0 : i32
    %c0_i32_0 = arith.constant 0 : i32
    %c0_i32_1 = arith.constant 0 : i32
    return %c0_i32, %c0_i32_0 : i32, i32
  }
  func.func @transform_6(%arg0: i32) -> (i32, i32) {
    %c0_i32 = arith.constant 0 : i32
    %c0_i32_0 = arith.constant 0 : i32
    %c0_i32_1 = arith.constant 0 : i32
    return %c0_i32, %c0_i32_0 : i32, i32
  }
  func.func @transform_7(%arg0: i32) -> (i32, i32) {
    %c0_i32 = arith.constant 0 : i32
    %c0_i32_0 = arith.constant 0 : i32
    return %arg0, %c0_i32 : i32, i32
  }
}

module attributes {stable_mosaic.version = 11 : i64} {
  func.func @_qkv_self_kernel(%arg0: i32, %arg1: memref<16x64xbf16, #tpu.memory_space<vmem>>, %arg2: memref<16x64xbf16, #tpu.memory_space<vmem>>, %arg3: memref<64x128xbf16, #tpu.memory_space<vmem>>, %arg4: memref<1x128xf32, #tpu.memory_space<vmem>>, %arg5: memref<64x64xbf16, #tpu.memory_space<vmem>>, %arg6: memref<1x64xf32, #tpu.memory_space<vmem>>, %arg7: memref<16x64xbf16, #tpu.memory_space<vmem>>, %arg8: memref<16x64xbf16, #tpu.memory_space<vmem>>, %arg9: memref<16x64xbf16, #tpu.memory_space<vmem>>) attributes {dimension_semantics = [#tpu.dimension_semantics<parallel>], iteration_bounds = array<i64: 1>, scalar_prefetch = 0 : i64, scratch_operands = 0 : i64, tpu.core_type = #tpu.core_type<tc>, window_params = [{transform_indices = @transform_0, window_bounds = array<i64: 16, 64>}, {transform_indices = @transform_1, window_bounds = array<i64: 16, 64>}, {pipeline_mode = #tpu.pipeline_mode<synchronous>, transform_indices = @transform_2, window_bounds = array<i64: 64, 128>}, {pipeline_mode = #tpu.pipeline_mode<synchronous>, transform_indices = @transform_3, window_bounds = array<i64: 1, 128>}, {pipeline_mode = #tpu.pipeline_mode<synchronous>, transform_indices = @transform_4, window_bounds = array<i64: 64, 64>}, {pipeline_mode = #tpu.pipeline_mode<synchronous>, transform_indices = @transform_5, window_bounds = array<i64: 1, 64>}, {transform_indices = @transform_6, window_bounds = array<i64: 16, 64>}, {transform_indices = @transform_7, window_bounds = array<i64: 16, 64>}, {transform_indices = @transform_8, window_bounds = array<i64: 16, 64>}]} {
    %c0 = arith.constant 0 : index
    %c0_0 = arith.constant 0 : index
    %0 = vector.load %arg1[%c0, %c0_0] : memref<16x64xbf16, #tpu.memory_space<vmem>>, vector<16x64xbf16>
    %c0_1 = arith.constant 0 : index
    %c0_2 = arith.constant 0 : index
    %1 = vector.load %arg2[%c0_1, %c0_2] : memref<16x64xbf16, #tpu.memory_space<vmem>>, vector<16x64xbf16>
    %2 = arith.addf %0, %1 : vector<16x64xbf16>
    %c0_3 = arith.constant 0 : index
    %c0_4 = arith.constant 0 : index
    %3 = vector.load %arg3[%c0_3, %c0_4] : memref<64x128xbf16, #tpu.memory_space<vmem>>, vector<64x128xbf16>
    %cst = arith.constant dense<0.000000e+00> : vector<16x128xf32>
    %4 = tpu.matmul %2, %3, %cst {dimension_numbers = #tpu.dot_dimension_numbers<[1], [0], [0], [1], [0, 0, 1, 1], [], []>} : vector<16x64xbf16>, vector<64x128xbf16>, vector<16x128xf32> -> vector<16x128xf32>
    %c0_5 = arith.constant 0 : index
    %c0_6 = arith.constant 0 : index
    %5 = vector.load %arg4[%c0_5, %c0_6] : memref<1x128xf32, #tpu.memory_space<vmem>>, vector<1x128xf32>
    %6 = vector.broadcast %5 : vector<1x128xf32> to vector<16x128xf32>
    %7 = arith.addf %4, %6 : vector<16x128xf32>
    %c0_7 = arith.constant 0 : index
    %c0_8 = arith.constant 0 : index
    %8 = vector.load %arg5[%c0_7, %c0_8] : memref<64x64xbf16, #tpu.memory_space<vmem>>, vector<64x64xbf16>
    %cst_9 = arith.constant dense<0.000000e+00> : vector<16x64xf32>
    %9 = tpu.matmul %0, %8, %cst_9 {dimension_numbers = #tpu.dot_dimension_numbers<[1], [0], [0], [1], [0, 0, 1, 1], [], []>} : vector<16x64xbf16>, vector<64x64xbf16>, vector<16x64xf32> -> vector<16x64xf32>
    %c0_10 = arith.constant 0 : index
    %c0_11 = arith.constant 0 : index
    %10 = vector.load %arg6[%c0_10, %c0_11] : memref<1x64xf32, #tpu.memory_space<vmem>>, vector<1x64xf32>
    %11 = vector.broadcast %10 : vector<1x64xf32> to vector<16x64xf32>
    %12 = arith.addf %9, %11 : vector<16x64xf32>
    %13 = vector.extract_strided_slice %7 {offsets = [0, 0], sizes = [16, 64], strides = [1, 1]} : vector<16x128xf32> to vector<16x64xf32>
    %14 = arith.truncf %13 : vector<16x64xf32> to vector<16x64xbf16>
    %c0_12 = arith.constant 0 : index
    %c0_13 = arith.constant 0 : index
    %15 = vector.load %arg7[%c0_12, %c0_13] : memref<16x64xbf16, #tpu.memory_space<vmem>>, vector<16x64xbf16>
    tpu.vector_store %arg7[%c0_12, %c0_13], %14 {strides = array<i32>} : memref<16x64xbf16, #tpu.memory_space<vmem>>, vector<16x64xbf16>,
    %16 = vector.extract_strided_slice %7 {offsets = [0, 64], sizes = [16, 64], strides = [1, 1]} : vector<16x128xf32> to vector<16x64xf32>
    %17 = arith.truncf %16 : vector<16x64xf32> to vector<16x64xbf16>
    %c0_14 = arith.constant 0 : index
    %c0_15 = arith.constant 0 : index
    %18 = vector.load %arg8[%c0_14, %c0_15] : memref<16x64xbf16, #tpu.memory_space<vmem>>, vector<16x64xbf16>
    tpu.vector_store %arg8[%c0_14, %c0_15], %17 {strides = array<i32>} : memref<16x64xbf16, #tpu.memory_space<vmem>>, vector<16x64xbf16>,
    %19 = arith.truncf %12 : vector<16x64xf32> to vector<16x64xbf16>
    %c0_16 = arith.constant 0 : index
    %c0_17 = arith.constant 0 : index
    %20 = vector.load %arg9[%c0_16, %c0_17] : memref<16x64xbf16, #tpu.memory_space<vmem>>, vector<16x64xbf16>
    tpu.vector_store %arg9[%c0_16, %c0_17], %19 {strides = array<i32>} : memref<16x64xbf16, #tpu.memory_space<vmem>>, vector<16x64xbf16>,
    return
  }
  func.func @transform_0(%arg0: i32) -> (i32, i32) {
    %c0_i32 = arith.constant 0 : i32
    %c0_i32_0 = arith.constant 0 : i32
    return %arg0, %c0_i32 : i32, i32
  }
  func.func @transform_1(%arg0: i32) -> (i32, i32) {
    %c0_i32 = arith.constant 0 : i32
    %c0_i32_0 = arith.constant 0 : i32
    return %arg0, %c0_i32 : i32, i32
  }
  func.func @transform_2(%arg0: i32) -> (i32, i32) {
    %c0_i32 = arith.constant 0 : i32
    %c0_i32_0 = arith.constant 0 : i32
    %c0_i32_1 = arith.constant 0 : i32
    return %c0_i32, %c0_i32_0 : i32, i32
  }
  func.func @transform_3(%arg0: i32) -> (i32, i32) {
    %c0_i32 = arith.constant 0 : i32
    %c0_i32_0 = arith.constant 0 : i32
    %c0_i32_1 = arith.constant 0 : i32
    return %c0_i32, %c0_i32_0 : i32, i32
  }
  func.func @transform_4(%arg0: i32) -> (i32, i32) {
    %c0_i32 = arith.constant 0 : i32
    %c0_i32_0 = arith.constant 0 : i32
    %c0_i32_1 = arith.constant 0 : i32
    return %c0_i32, %c0_i32_0 : i32, i32
  }
  func.func @transform_5(%arg0: i32) -> (i32, i32) {
    %c0_i32 = arith.constant 0 : i32
    %c0_i32_0 = arith.constant 0 : i32
    %c0_i32_1 = arith.constant 0 : i32
    return %c0_i32, %c0_i32_0 : i32, i32
  }
  func.func @transform_6(%arg0: i32) -> (i32, i32) {
    %c0_i32 = arith.constant 0 : i32
    %c0_i32_0 = arith.constant 0 : i32
    return %arg0, %c0_i32 : i32, i32
  }
  func.func @transform_7(%arg0: i32) -> (i32, i32) {
    %c0_i32 = arith.constant 0 : i32
    %c0_i32_0 = arith.constant 0 : i32
    return %arg0, %c0_i32 : i32, i32
  }
  func.func @transform_8(%arg0: i32) -> (i32, i32) {
    %c0_i32 = arith.constant 0 : i32
    %c0_i32_0 = arith.constant 0 : i32
    return %arg0, %c0_i32 : i32, i32
  }
}

module attributes {stable_mosaic.version = 11 : i64} {
  func.func @_attn_kernel(%arg0: i32, %arg1: i32, %arg2: memref<1x8x64xbf16, #tpu.memory_space<vmem>>, %arg3: memref<1x8x64xbf16, #tpu.memory_space<vmem>>, %arg4: memref<1x8x64xbf16, #tpu.memory_space<vmem>>, %arg5: memref<1x8x64xbf16, #tpu.memory_space<vmem>>) attributes {dimension_semantics = [#tpu.dimension_semantics<parallel>, #tpu.dimension_semantics<parallel>], iteration_bounds = array<i64: 2, 1>, scalar_prefetch = 0 : i64, scratch_operands = 0 : i64, tpu.core_type = #tpu.core_type<tc>, window_params = [{transform_indices = @transform_0, window_bounds = array<i64: 1, 8, 64>}, {transform_indices = @transform_1, window_bounds = array<i64: 1, 8, 64>}, {transform_indices = @transform_2, window_bounds = array<i64: 1, 8, 64>}, {transform_indices = @transform_3, window_bounds = array<i64: 1, 8, 64>}]} {
    %c0 = arith.constant 0 : index
    %c0_0 = arith.constant 0 : index
    %c0_1 = arith.constant 0 : index
    %0 = vector.load %arg2[%c0, %c0_0, %c0_1] : memref<1x8x64xbf16, #tpu.memory_space<vmem>>, vector<1x8x64xbf16>
    %1 = vector.shape_cast %0 : vector<1x8x64xbf16> to vector<8x64xbf16>
    %c0_2 = arith.constant 0 : index
    %c0_3 = arith.constant 0 : index
    %c0_4 = arith.constant 0 : index
    %2 = vector.load %arg3[%c0_2, %c0_3, %c0_4] : memref<1x8x64xbf16, #tpu.memory_space<vmem>>, vector<1x8x64xbf16>
    %3 = vector.shape_cast %2 : vector<1x8x64xbf16> to vector<8x64xbf16>
    %c0_5 = arith.constant 0 : index
    %c0_6 = arith.constant 0 : index
    %c0_7 = arith.constant 0 : index
    %4 = vector.load %arg4[%c0_5, %c0_6, %c0_7] : memref<1x8x64xbf16, #tpu.memory_space<vmem>>, vector<1x8x64xbf16>
    %5 = vector.shape_cast %4 : vector<1x8x64xbf16> to vector<8x64xbf16>
    %6 = vector.extract_strided_slice %1 {offsets = [0, 0], sizes = [8, 16], strides = [1, 1]} : vector<8x64xbf16> to vector<8x16xbf16>
    %7 = vector.extract_strided_slice %3 {offsets = [0, 0], sizes = [8, 16], strides = [1, 1]} : vector<8x64xbf16> to vector<8x16xbf16>
    %8 = vector.extract_strided_slice %5 {offsets = [0, 0], sizes = [8, 16], strides = [1, 1]} : vector<8x64xbf16> to vector<8x16xbf16>
    %cst = arith.constant dense<0.000000e+00> : vector<8x8xf32>
    %9 = tpu.matmul %6, %7, %cst {dimension_numbers = #tpu.dot_dimension_numbers<[1], [1], [0], [0], [0, 0, 1, 0], [], []>} : vector<8x16xbf16>, vector<8x16xbf16>, vector<8x8xf32> -> vector<8x8xf32>
    %cst_8 = arith.constant dense<0xFF800000> : vector<8xf32>
    %10 = vector.multi_reduction <maximumf>, %9, %cst_8 [1] : vector<8x8xf32> to vector<8xf32>
    %11 = vector.shape_cast %10 : vector<8xf32> to vector<8x1xf32>
    %12 = vector.broadcast %11 : vector<8x1xf32> to vector<8x8xf32>
    %13 = arith.subf %9, %12 : vector<8x8xf32>
    %14 = math.exp %13 : vector<8x8xf32>
    %cst_9 = arith.constant dense<0.000000e+00> : vector<8xf32>
    %15 = vector.multi_reduction <add>, %14, %cst_9 [1] : vector<8x8xf32> to vector<8xf32>
    %16 = vector.shape_cast %15 : vector<8xf32> to vector<8x1xf32>
    %17 = tpu.reciprocal %16 {approx = true} : vector<8x1xf32> -> vector<8x1xf32>
    %18 = vector.broadcast %17 : vector<8x1xf32> to vector<8x8xf32>
    %19 = arith.mulf %14, %18 : vector<8x8xf32>
    %20 = arith.truncf %19 : vector<8x8xf32> to vector<8x8xbf16>
    %cst_10 = arith.constant dense<0.000000e+00> : vector<8x16xf32>
    %21 = tpu.matmul %20, %8, %cst_10 {dimension_numbers = #tpu.dot_dimension_numbers<[1], [0], [0], [1], [0, 0, 1, 1], [], []>} : vector<8x8xbf16>, vector<8x16xbf16>, vector<8x16xf32> -> vector<8x16xf32>
    %22 = arith.truncf %21 : vector<8x16xf32> to vector<8x16xbf16>
    %c0_11 = arith.constant 0 : index
    %c0_12 = arith.constant 0 : index
    %c0_13 = arith.constant 0 : index
    %23 = vector.load %arg5[%c0_11, %c0_12, %c0_13] : memref<1x8x64xbf16, #tpu.memory_space<vmem>>, vector<1x8x16xbf16>
    %24 = vector.shape_cast %23 : vector<1x8x16xbf16> to vector<8x16xbf16>
    %25 = vector.shape_cast %22 : vector<8x16xbf16> to vector<1x8x16xbf16>
    tpu.vector_store %arg5[%c0_11, %c0_12, %c0_13], %25 {strides = array<i32>} : memref<1x8x64xbf16, #tpu.memory_space<vmem>>, vector<1x8x16xbf16>,
    %26 = vector.extract_strided_slice %1 {offsets = [0, 16], sizes = [8, 16], strides = [1, 1]} : vector<8x64xbf16> to vector<8x16xbf16>
    %27 = vector.extract_strided_slice %3 {offsets = [0, 16], sizes = [8, 16], strides = [1, 1]} : vector<8x64xbf16> to vector<8x16xbf16>
    %28 = vector.extract_strided_slice %5 {offsets = [0, 16], sizes = [8, 16], strides = [1, 1]} : vector<8x64xbf16> to vector<8x16xbf16>
    %cst_14 = arith.constant dense<0.000000e+00> : vector<8x8xf32>
    %29 = tpu.matmul %26, %27, %cst_14 {dimension_numbers = #tpu.dot_dimension_numbers<[1], [1], [0], [0], [0, 0, 1, 0], [], []>} : vector<8x16xbf16>, vector<8x16xbf16>, vector<8x8xf32> -> vector<8x8xf32>
    %cst_15 = arith.constant dense<0xFF800000> : vector<8xf32>
    %30 = vector.multi_reduction <maximumf>, %29, %cst_15 [1] : vector<8x8xf32> to vector<8xf32>
    %31 = vector.shape_cast %30 : vector<8xf32> to vector<8x1xf32>
    %32 = vector.broadcast %31 : vector<8x1xf32> to vector<8x8xf32>
    %33 = arith.subf %29, %32 : vector<8x8xf32>
    %34 = math.exp %33 : vector<8x8xf32>
    %cst_16 = arith.constant dense<0.000000e+00> : vector<8xf32>
    %35 = vector.multi_reduction <add>, %34, %cst_16 [1] : vector<8x8xf32> to vector<8xf32>
    %36 = vector.shape_cast %35 : vector<8xf32> to vector<8x1xf32>
    %37 = tpu.reciprocal %36 {approx = true} : vector<8x1xf32> -> vector<8x1xf32>
    %38 = vector.broadcast %37 : vector<8x1xf32> to vector<8x8xf32>
    %39 = arith.mulf %34, %38 : vector<8x8xf32>
    %40 = arith.truncf %39 : vector<8x8xf32> to vector<8x8xbf16>
    %cst_17 = arith.constant dense<0.000000e+00> : vector<8x16xf32>
    %41 = tpu.matmul %40, %28, %cst_17 {dimension_numbers = #tpu.dot_dimension_numbers<[1], [0], [0], [1], [0, 0, 1, 1], [], []>} : vector<8x8xbf16>, vector<8x16xbf16>, vector<8x16xf32> -> vector<8x16xf32>
    %42 = arith.truncf %41 : vector<8x16xf32> to vector<8x16xbf16>
    %c0_18 = arith.constant 0 : index
    %c0_19 = arith.constant 0 : index
    %c16 = arith.constant 16 : index
    %43 = vector.load %arg5[%c0_18, %c0_19, %c16] : memref<1x8x64xbf16, #tpu.memory_space<vmem>>, vector<1x8x16xbf16>
    %44 = vector.shape_cast %43 : vector<1x8x16xbf16> to vector<8x16xbf16>
    %45 = vector.shape_cast %42 : vector<8x16xbf16> to vector<1x8x16xbf16>
    tpu.vector_store %arg5[%c0_18, %c0_19, %c16], %45 {strides = array<i32>} : memref<1x8x64xbf16, #tpu.memory_space<vmem>>, vector<1x8x16xbf16>,
    %46 = vector.extract_strided_slice %1 {offsets = [0, 32], sizes = [8, 16], strides = [1, 1]} : vector<8x64xbf16> to vector<8x16xbf16>
    %47 = vector.extract_strided_slice %3 {offsets = [0, 32], sizes = [8, 16], strides = [1, 1]} : vector<8x64xbf16> to vector<8x16xbf16>
    %48 = vector.extract_strided_slice %5 {offsets = [0, 32], sizes = [8, 16], strides = [1, 1]} : vector<8x64xbf16> to vector<8x16xbf16>
    %cst_20 = arith.constant dense<0.000000e+00> : vector<8x8xf32>
    %49 = tpu.matmul %46, %47, %cst_20 {dimension_numbers = #tpu.dot_dimension_numbers<[1], [1], [0], [0], [0, 0, 1, 0], [], []>} : vector<8x16xbf16>, vector<8x16xbf16>, vector<8x8xf32> -> vector<8x8xf32>
    %cst_21 = arith.constant dense<0xFF800000> : vector<8xf32>
    %50 = vector.multi_reduction <maximumf>, %49, %cst_21 [1] : vector<8x8xf32> to vector<8xf32>
    %51 = vector.shape_cast %50 : vector<8xf32> to vector<8x1xf32>
    %52 = vector.broadcast %51 : vector<8x1xf32> to vector<8x8xf32>
    %53 = arith.subf %49, %52 : vector<8x8xf32>
    %54 = math.exp %53 : vector<8x8xf32>
    %cst_22 = arith.constant dense<0.000000e+00> : vector<8xf32>
    %55 = vector.multi_reduction <add>, %54, %cst_22 [1] : vector<8x8xf32> to vector<8xf32>
    %56 = vector.shape_cast %55 : vector<8xf32> to vector<8x1xf32>
    %57 = tpu.reciprocal %56 {approx = true} : vector<8x1xf32> -> vector<8x1xf32>
    %58 = vector.broadcast %57 : vector<8x1xf32> to vector<8x8xf32>
    %59 = arith.mulf %54, %58 : vector<8x8xf32>
    %60 = arith.truncf %59 : vector<8x8xf32> to vector<8x8xbf16>
    %cst_23 = arith.constant dense<0.000000e+00> : vector<8x16xf32>
    %61 = tpu.matmul %60, %48, %cst_23 {dimension_numbers = #tpu.dot_dimension_numbers<[1], [0], [0], [1], [0, 0, 1, 1], [], []>} : vector<8x8xbf16>, vector<8x16xbf16>, vector<8x16xf32> -> vector<8x16xf32>
    %62 = arith.truncf %61 : vector<8x16xf32> to vector<8x16xbf16>
    %c0_24 = arith.constant 0 : index
    %c0_25 = arith.constant 0 : index
    %c32 = arith.constant 32 : index
    %63 = vector.load %arg5[%c0_24, %c0_25, %c32] : memref<1x8x64xbf16, #tpu.memory_space<vmem>>, vector<1x8x16xbf16>
    %64 = vector.shape_cast %63 : vector<1x8x16xbf16> to vector<8x16xbf16>
    %65 = vector.shape_cast %62 : vector<8x16xbf16> to vector<1x8x16xbf16>
    tpu.vector_store %arg5[%c0_24, %c0_25, %c32], %65 {strides = array<i32>} : memref<1x8x64xbf16, #tpu.memory_space<vmem>>, vector<1x8x16xbf16>,
    %66 = vector.extract_strided_slice %1 {offsets = [0, 48], sizes = [8, 16], strides = [1, 1]} : vector<8x64xbf16> to vector<8x16xbf16>
    %67 = vector.extract_strided_slice %3 {offsets = [0, 48], sizes = [8, 16], strides = [1, 1]} : vector<8x64xbf16> to vector<8x16xbf16>
    %68 = vector.extract_strided_slice %5 {offsets = [0, 48], sizes = [8, 16], strides = [1, 1]} : vector<8x64xbf16> to vector<8x16xbf16>
    %cst_26 = arith.constant dense<0.000000e+00> : vector<8x8xf32>
    %69 = tpu.matmul %66, %67, %cst_26 {dimension_numbers = #tpu.dot_dimension_numbers<[1], [1], [0], [0], [0, 0, 1, 0], [], []>} : vector<8x16xbf16>, vector<8x16xbf16>, vector<8x8xf32> -> vector<8x8xf32>
    %cst_27 = arith.constant dense<0xFF800000> : vector<8xf32>
    %70 = vector.multi_reduction <maximumf>, %69, %cst_27 [1] : vector<8x8xf32> to vector<8xf32>
    %71 = vector.shape_cast %70 : vector<8xf32> to vector<8x1xf32>
    %72 = vector.broadcast %71 : vector<8x1xf32> to vector<8x8xf32>
    %73 = arith.subf %69, %72 : vector<8x8xf32>
    %74 = math.exp %73 : vector<8x8xf32>
    %cst_28 = arith.constant dense<0.000000e+00> : vector<8xf32>
    %75 = vector.multi_reduction <add>, %74, %cst_28 [1] : vector<8x8xf32> to vector<8xf32>
    %76 = vector.shape_cast %75 : vector<8xf32> to vector<8x1xf32>
    %77 = tpu.reciprocal %76 {approx = true} : vector<8x1xf32> -> vector<8x1xf32>
    %78 = vector.broadcast %77 : vector<8x1xf32> to vector<8x8xf32>
    %79 = arith.mulf %74, %78 : vector<8x8xf32>
    %80 = arith.truncf %79 : vector<8x8xf32> to vector<8x8xbf16>
    %cst_29 = arith.constant dense<0.000000e+00> : vector<8x16xf32>
    %81 = tpu.matmul %80, %68, %cst_29 {dimension_numbers = #tpu.dot_dimension_numbers<[1], [0], [0], [1], [0, 0, 1, 1], [], []>} : vector<8x8xbf16>, vector<8x16xbf16>, vector<8x16xf32> -> vector<8x16xf32>
    %82 = arith.truncf %81 : vector<8x16xf32> to vector<8x16xbf16>
    %c0_30 = arith.constant 0 : index
    %c0_31 = arith.constant 0 : index
    %c48 = arith.constant 48 : index
    %83 = vector.load %arg5[%c0_30, %c0_31, %c48] : memref<1x8x64xbf16, #tpu.memory_space<vmem>>, vector<1x8x16xbf16>
    %84 = vector.shape_cast %83 : vector<1x8x16xbf16> to vector<8x16xbf16>
    %85 = vector.shape_cast %82 : vector<8x16xbf16> to vector<1x8x16xbf16>
    tpu.vector_store %arg5[%c0_30, %c0_31, %c48], %85 {strides = array<i32>} : memref<1x8x64xbf16, #tpu.memory_space<vmem>>, vector<1x8x16xbf16>,
    return
  }
  func.func @transform_0(%arg0: i32, %arg1: i32) -> (i32, i32, i32) {
    %c0_i32 = arith.constant 0 : i32
    %c0_i32_0 = arith.constant 0 : i32
    return %arg0, %arg1, %c0_i32 : i32, i32, i32
  }
  func.func @transform_1(%arg0: i32, %arg1: i32) -> (i32, i32, i32) {
    %c0_i32 = arith.constant 0 : i32
    %c0_i32_0 = arith.constant 0 : i32
    %c0_i32_1 = arith.constant 0 : i32
    return %arg0, %c0_i32, %c0_i32_0 : i32, i32, i32
  }
  func.func @transform_2(%arg0: i32, %arg1: i32) -> (i32, i32, i32) {
    %c0_i32 = arith.constant 0 : i32
    %c0_i32_0 = arith.constant 0 : i32
    %c0_i32_1 = arith.constant 0 : i32
    return %arg0, %c0_i32, %c0_i32_0 : i32, i32, i32
  }
  func.func @transform_3(%arg0: i32, %arg1: i32) -> (i32, i32, i32) {
    %c0_i32 = arith.constant 0 : i32
    %c0_i32_0 = arith.constant 0 : i32
    return %arg0, %arg1, %c0_i32 : i32, i32, i32
  }
}

module attributes {stable_mosaic.version = 11 : i64} {
  func.func @_proj_add_ln_kernel(%arg0: i32, %arg1: memref<16x64xbf16, #tpu.memory_space<vmem>>, %arg2: memref<16x64xbf16, #tpu.memory_space<vmem>>, %arg3: memref<64x64xbf16, #tpu.memory_space<vmem>>, %arg4: memref<1x64xf32, #tpu.memory_space<vmem>>, %arg5: memref<1x64xf32, #tpu.memory_space<vmem>>, %arg6: memref<1x64xf32, #tpu.memory_space<vmem>>, %arg7: memref<16x64xbf16, #tpu.memory_space<vmem>>) attributes {dimension_semantics = [#tpu.dimension_semantics<parallel>], iteration_bounds = array<i64: 1>, scalar_prefetch = 0 : i64, scratch_operands = 0 : i64, tpu.core_type = #tpu.core_type<tc>, window_params = [{transform_indices = @transform_0, window_bounds = array<i64: 16, 64>}, {transform_indices = @transform_1, window_bounds = array<i64: 16, 64>}, {pipeline_mode = #tpu.pipeline_mode<synchronous>, transform_indices = @transform_2, window_bounds = array<i64: 64, 64>}, {pipeline_mode = #tpu.pipeline_mode<synchronous>, transform_indices = @transform_3, window_bounds = array<i64: 1, 64>}, {pipeline_mode = #tpu.pipeline_mode<synchronous>, transform_indices = @transform_4, window_bounds = array<i64: 1, 64>}, {pipeline_mode = #tpu.pipeline_mode<synchronous>, transform_indices = @transform_5, window_bounds = array<i64: 1, 64>}, {transform_indices = @transform_6, window_bounds = array<i64: 16, 64>}]} {
    %c0 = arith.constant 0 : index
    %c0_0 = arith.constant 0 : index
    %0 = vector.load %arg1[%c0, %c0_0] : memref<16x64xbf16, #tpu.memory_space<vmem>>, vector<16x64xbf16>
    %c0_1 = arith.constant 0 : index
    %c0_2 = arith.constant 0 : index
    %1 = vector.load %arg3[%c0_1, %c0_2] : memref<64x64xbf16, #tpu.memory_space<vmem>>, vector<64x64xbf16>
    %cst = arith.constant dense<0.000000e+00> : vector<16x64xf32>
    %2 = tpu.matmul %0, %1, %cst {dimension_numbers = #tpu.dot_dimension_numbers<[1], [0], [0], [1], [0, 0, 1, 1], [], []>} : vector<16x64xbf16>, vector<64x64xbf16>, vector<16x64xf32> -> vector<16x64xf32>
    %c0_3 = arith.constant 0 : index
    %c0_4 = arith.constant 0 : index
    %3 = vector.load %arg4[%c0_3, %c0_4] : memref<1x64xf32, #tpu.memory_space<vmem>>, vector<1x64xf32>
    %4 = vector.broadcast %3 : vector<1x64xf32> to vector<16x64xf32>
    %5 = arith.addf %2, %4 : vector<16x64xf32>
    %c0_5 = arith.constant 0 : index
    %c0_6 = arith.constant 0 : index
    %6 = vector.load %arg2[%c0_5, %c0_6] : memref<16x64xbf16, #tpu.memory_space<vmem>>, vector<16x64xbf16>
    %7 = arith.extf %6 : vector<16x64xbf16> to vector<16x64xf32>
    %8 = arith.addf %5, %7 : vector<16x64xf32>
    %c0_7 = arith.constant 0 : index
    %c0_8 = arith.constant 0 : index
    %9 = vector.load %arg5[%c0_7, %c0_8] : memref<1x64xf32, #tpu.memory_space<vmem>>, vector<1x64xf32>
    %c0_9 = arith.constant 0 : index
    %c0_10 = arith.constant 0 : index
    %10 = vector.load %arg6[%c0_9, %c0_10] : memref<1x64xf32, #tpu.memory_space<vmem>>, vector<1x64xf32>
    %cst_11 = arith.constant dense<0.000000e+00> : vector<16xf32>
    %11 = vector.multi_reduction <add>, %8, %cst_11 [1] : vector<16x64xf32> to vector<16xf32>
    %12 = vector.shape_cast %11 : vector<16xf32> to vector<16x1xf32>
    %cst_12 = arith.constant 6.400000e+01 : f32
    %13 = vector.broadcast %cst_12 : f32 to vector<16x1xf32>
    %14 = arith.divf %12, %13 : vector<16x1xf32>
    %15 = vector.broadcast %14 : vector<16x1xf32> to vector<16x64xf32>
    %16 = arith.subf %8, %15 : vector<16x64xf32>
    %17 = arith.mulf %16, %16 : vector<16x64xf32>
    %cst_13 = arith.constant dense<0.000000e+00> : vector<16xf32>
    %18 = vector.multi_reduction <add>, %17, %cst_13 [1] : vector<16x64xf32> to vector<16xf32>
    %19 = vector.shape_cast %18 : vector<16xf32> to vector<16x1xf32>
    %cst_14 = arith.constant 6.400000e+01 : f32
    %20 = vector.broadcast %cst_14 : f32 to vector<16x1xf32>
    %21 = arith.divf %19, %20 : vector<16x1xf32>
    %22 = vector.broadcast %14 : vector<16x1xf32> to vector<16x64xf32>
    %23 = arith.subf %8, %22 : vector<16x64xf32>
    %cst_15 = arith.constant 9.99999974E-6 : f32
    %24 = vector.broadcast %cst_15 : f32 to vector<16x1xf32>
    %25 = arith.addf %21, %24 : vector<16x1xf32>
    %26 = math.rsqrt %25 : vector<16x1xf32>
    %27 = vector.broadcast %26 : vector<16x1xf32> to vector<16x64xf32>
    %28 = arith.mulf %23, %27 : vector<16x64xf32>
    %29 = vector.broadcast %9 : vector<1x64xf32> to vector<16x64xf32>
    %30 = arith.mulf %28, %29 : vector<16x64xf32>
    %31 = vector.broadcast %10 : vector<1x64xf32> to vector<16x64xf32>
    %32 = arith.addf %30, %31 : vector<16x64xf32>
    %33 = arith.truncf %32 : vector<16x64xf32> to vector<16x64xbf16>
    %c0_16 = arith.constant 0 : index
    %c0_17 = arith.constant 0 : index
    %34 = vector.load %arg7[%c0_16, %c0_17] : memref<16x64xbf16, #tpu.memory_space<vmem>>, vector<16x64xbf16>
    tpu.vector_store %arg7[%c0_16, %c0_17], %33 {strides = array<i32>} : memref<16x64xbf16, #tpu.memory_space<vmem>>, vector<16x64xbf16>,
    return
  }
  func.func @transform_0(%arg0: i32) -> (i32, i32) {
    %c0_i32 = arith.constant 0 : i32
    %c0_i32_0 = arith.constant 0 : i32
    return %arg0, %c0_i32 : i32, i32
  }
  func.func @transform_1(%arg0: i32) -> (i32, i32) {
    %c0_i32 = arith.constant 0 : i32
    %c0_i32_0 = arith.constant 0 : i32
    return %arg0, %c0_i32 : i32, i32
  }
  func.func @transform_2(%arg0: i32) -> (i32, i32) {
    %c0_i32 = arith.constant 0 : i32
    %c0_i32_0 = arith.constant 0 : i32
    %c0_i32_1 = arith.constant 0 : i32
    return %c0_i32, %c0_i32_0 : i32, i32
  }
  func.func @transform_3(%arg0: i32) -> (i32, i32) {
    %c0_i32 = arith.constant 0 : i32
    %c0_i32_0 = arith.constant 0 : i32
    %c0_i32_1 = arith.constant 0 : i32
    return %c0_i32, %c0_i32_0 : i32, i32
  }
  func.func @transform_4(%arg0: i32) -> (i32, i32) {
    %c0_i32 = arith.constant 0 : i32
    %c0_i32_0 = arith.constant 0 : i32
    %c0_i32_1 = arith.constant 0 : i32
    return %c0_i32, %c0_i32_0 : i32, i32
  }
  func.func @transform_5(%arg0: i32) -> (i32, i32) {
    %c0_i32 = arith.constant 0 : i32
    %c0_i32_0 = arith.constant 0 : i32
    %c0_i32_1 = arith.constant 0 : i32
    return %c0_i32, %c0_i32_0 : i32, i32
  }
  func.func @transform_6(%arg0: i32) -> (i32, i32) {
    %c0_i32 = arith.constant 0 : i32
    %c0_i32_0 = arith.constant 0 : i32
    return %arg0, %c0_i32 : i32, i32
  }
}

module attributes {stable_mosaic.version = 11 : i64} {
  func.func @_kv_cross_kernel(%arg0: i32, %arg1: memref<32x64xbf16, #tpu.memory_space<vmem>>, %arg2: memref<32x64xbf16, #tpu.memory_space<vmem>>, %arg3: memref<64x64xbf16, #tpu.memory_space<vmem>>, %arg4: memref<1x64xf32, #tpu.memory_space<vmem>>, %arg5: memref<64x64xbf16, #tpu.memory_space<vmem>>, %arg6: memref<1x64xf32, #tpu.memory_space<vmem>>, %arg7: memref<32x64xbf16, #tpu.memory_space<vmem>>, %arg8: memref<32x64xbf16, #tpu.memory_space<vmem>>) attributes {dimension_semantics = [#tpu.dimension_semantics<parallel>], iteration_bounds = array<i64: 1>, scalar_prefetch = 0 : i64, scratch_operands = 0 : i64, tpu.core_type = #tpu.core_type<tc>, window_params = [{transform_indices = @transform_0, window_bounds = array<i64: 32, 64>}, {transform_indices = @transform_1, window_bounds = array<i64: 32, 64>}, {pipeline_mode = #tpu.pipeline_mode<synchronous>, transform_indices = @transform_2, window_bounds = array<i64: 64, 64>}, {pipeline_mode = #tpu.pipeline_mode<synchronous>, transform_indices = @transform_3, window_bounds = array<i64: 1, 64>}, {pipeline_mode = #tpu.pipeline_mode<synchronous>, transform_indices = @transform_4, window_bounds = array<i64: 64, 64>}, {pipeline_mode = #tpu.pipeline_mode<synchronous>, transform_indices = @transform_5, window_bounds = array<i64: 1, 64>}, {transform_indices = @transform_6, window_bounds = array<i64: 32, 64>}, {transform_indices = @transform_7, window_bounds = array<i64: 32, 64>}]} {
    %c0 = arith.constant 0 : index
    %c0_0 = arith.constant 0 : index
    %0 = vector.load %arg1[%c0, %c0_0] : memref<32x64xbf16, #tpu.memory_space<vmem>>, vector<32x64xbf16>
    %c0_1 = arith.constant 0 : index
    %c0_2 = arith.constant 0 : index
    %1 = vector.load %arg2[%c0_1, %c0_2] : memref<32x64xbf16, #tpu.memory_space<vmem>>, vector<32x64xbf16>
    %2 = arith.addf %0, %1 : vector<32x64xbf16>
    %c0_3 = arith.constant 0 : index
    %c0_4 = arith.constant 0 : index
    %3 = vector.load %arg3[%c0_3, %c0_4] : memref<64x64xbf16, #tpu.memory_space<vmem>>, vector<64x64xbf16>
    %cst = arith.constant dense<0.000000e+00> : vector<32x64xf32>
    %4 = tpu.matmul %2, %3, %cst {dimension_numbers = #tpu.dot_dimension_numbers<[1], [0], [0], [1], [0, 0, 1, 1], [], []>} : vector<32x64xbf16>, vector<64x64xbf16>, vector<32x64xf32> -> vector<32x64xf32>
    %c0_5 = arith.constant 0 : index
    %c0_6 = arith.constant 0 : index
    %5 = vector.load %arg4[%c0_5, %c0_6] : memref<1x64xf32, #tpu.memory_space<vmem>>, vector<1x64xf32>
    %6 = vector.broadcast %5 : vector<1x64xf32> to vector<32x64xf32>
    %7 = arith.addf %4, %6 : vector<32x64xf32>
    %c0_7 = arith.constant 0 : index
    %c0_8 = arith.constant 0 : index
    %8 = vector.load %arg5[%c0_7, %c0_8] : memref<64x64xbf16, #tpu.memory_space<vmem>>, vector<64x64xbf16>
    %cst_9 = arith.constant dense<0.000000e+00> : vector<32x64xf32>
    %9 = tpu.matmul %0, %8, %cst_9 {dimension_numbers = #tpu.dot_dimension_numbers<[1], [0], [0], [1], [0, 0, 1, 1], [], []>} : vector<32x64xbf16>, vector<64x64xbf16>, vector<32x64xf32> -> vector<32x64xf32>
    %c0_10 = arith.constant 0 : index
    %c0_11 = arith.constant 0 : index
    %10 = vector.load %arg6[%c0_10, %c0_11] : memref<1x64xf32, #tpu.memory_space<vmem>>, vector<1x64xf32>
    %11 = vector.broadcast %10 : vector<1x64xf32> to vector<32x64xf32>
    %12 = arith.addf %9, %11 : vector<32x64xf32>
    %13 = arith.truncf %7 : vector<32x64xf32> to vector<32x64xbf16>
    %c0_12 = arith.constant 0 : index
    %c0_13 = arith.constant 0 : index
    %14 = vector.load %arg7[%c0_12, %c0_13] : memref<32x64xbf16, #tpu.memory_space<vmem>>, vector<32x64xbf16>
    tpu.vector_store %arg7[%c0_12, %c0_13], %13 {strides = array<i32>} : memref<32x64xbf16, #tpu.memory_space<vmem>>, vector<32x64xbf16>,
    %15 = arith.truncf %12 : vector<32x64xf32> to vector<32x64xbf16>
    %c0_14 = arith.constant 0 : index
    %c0_15 = arith.constant 0 : index
    %16 = vector.load %arg8[%c0_14, %c0_15] : memref<32x64xbf16, #tpu.memory_space<vmem>>, vector<32x64xbf16>
    tpu.vector_store %arg8[%c0_14, %c0_15], %15 {strides = array<i32>} : memref<32x64xbf16, #tpu.memory_space<vmem>>, vector<32x64xbf16>,
    return
  }
  func.func @transform_0(%arg0: i32) -> (i32, i32) {
    %c0_i32 = arith.constant 0 : i32
    %c0_i32_0 = arith.constant 0 : i32
    return %arg0, %c0_i32 : i32, i32
  }
  func.func @transform_1(%arg0: i32) -> (i32, i32) {
    %c0_i32 = arith.constant 0 : i32
    %c0_i32_0 = arith.constant 0 : i32
    return %arg0, %c0_i32 : i32, i32
  }
  func.func @transform_2(%arg0: i32) -> (i32, i32) {
    %c0_i32 = arith.constant 0 : i32
    %c0_i32_0 = arith.constant 0 : i32
    %c0_i32_1 = arith.constant 0 : i32
    return %c0_i32, %c0_i32_0 : i32, i32
  }
  func.func @transform_3(%arg0: i32) -> (i32, i32) {
    %c0_i32 = arith.constant 0 : i32
    %c0_i32_0 = arith.constant 0 : i32
    %c0_i32_1 = arith.constant 0 : i32
    return %c0_i32, %c0_i32_0 : i32, i32
  }
  func.func @transform_4(%arg0: i32) -> (i32, i32) {
    %c0_i32 = arith.constant 0 : i32
    %c0_i32_0 = arith.constant 0 : i32
    %c0_i32_1 = arith.constant 0 : i32
    return %c0_i32, %c0_i32_0 : i32, i32
  }
  func.func @transform_5(%arg0: i32) -> (i32, i32) {
    %c0_i32 = arith.constant 0 : i32
    %c0_i32_0 = arith.constant 0 : i32
    %c0_i32_1 = arith.constant 0 : i32
    return %c0_i32, %c0_i32_0 : i32, i32
  }
  func.func @transform_6(%arg0: i32) -> (i32, i32) {
    %c0_i32 = arith.constant 0 : i32
    %c0_i32_0 = arith.constant 0 : i32
    return %arg0, %c0_i32 : i32, i32
  }
  func.func @transform_7(%arg0: i32) -> (i32, i32) {
    %c0_i32 = arith.constant 0 : i32
    %c0_i32_0 = arith.constant 0 : i32
    return %arg0, %c0_i32 : i32, i32
  }
}

module attributes {stable_mosaic.version = 11 : i64} {
  func.func @_attn_kernel(%arg0: i32, %arg1: i32, %arg2: memref<1x8x64xbf16, #tpu.memory_space<vmem>>, %arg3: memref<1x8x64xbf16, #tpu.memory_space<vmem>>, %arg4: memref<64x64xbf16, #tpu.memory_space<vmem>>, %arg5: memref<1x64xf32, #tpu.memory_space<vmem>>, %arg6: memref<1x16x64xbf16, #tpu.memory_space<vmem>>, %arg7: memref<1x16x64xbf16, #tpu.memory_space<vmem>>, %arg8: memref<1x8x64xbf16, #tpu.memory_space<vmem>>) attributes {dimension_semantics = [#tpu.dimension_semantics<parallel>, #tpu.dimension_semantics<parallel>], iteration_bounds = array<i64: 2, 1>, scalar_prefetch = 0 : i64, scratch_operands = 0 : i64, tpu.core_type = #tpu.core_type<tc>, window_params = [{transform_indices = @transform_0, window_bounds = array<i64: 1, 8, 64>}, {transform_indices = @transform_1, window_bounds = array<i64: 1, 8, 64>}, {pipeline_mode = #tpu.pipeline_mode<synchronous>, transform_indices = @transform_2, window_bounds = array<i64: 64, 64>}, {pipeline_mode = #tpu.pipeline_mode<synchronous>, transform_indices = @transform_3, window_bounds = array<i64: 1, 64>}, {transform_indices = @transform_4, window_bounds = array<i64: 1, 16, 64>}, {transform_indices = @transform_5, window_bounds = array<i64: 1, 16, 64>}, {transform_indices = @transform_6, window_bounds = array<i64: 1, 8, 64>}]} {
    %c0 = arith.constant 0 : index
    %c0_0 = arith.constant 0 : index
    %c0_1 = arith.constant 0 : index
    %0 = vector.load %arg2[%c0, %c0_0, %c0_1] : memref<1x8x64xbf16, #tpu.memory_space<vmem>>, vector<1x8x64xbf16>
    %1 = vector.shape_cast %0 : vector<1x8x64xbf16> to vector<8x64xbf16>
    %c0_2 = arith.constant 0 : index
    %c0_3 = arith.constant 0 : index
    %c0_4 = arith.constant 0 : index
    %2 = vector.load %arg3[%c0_2, %c0_3, %c0_4] : memref<1x8x64xbf16, #tpu.memory_space<vmem>>, vector<1x8x64xbf16>
    %3 = vector.shape_cast %2 : vector<1x8x64xbf16> to vector<8x64xbf16>
    %4 = arith.addf %1, %3 : vector<8x64xbf16>
    %c0_5 = arith.constant 0 : index
    %c0_6 = arith.constant 0 : index
    %5 = vector.load %arg4[%c0_5, %c0_6] : memref<64x64xbf16, #tpu.memory_space<vmem>>, vector<64x64xbf16>
    %cst = arith.constant dense<0.000000e+00> : vector<8x64xf32>
    %6 = tpu.matmul %4, %5, %cst {dimension_numbers = #tpu.dot_dimension_numbers<[1], [0], [0], [1], [0, 0, 1, 1], [], []>} : vector<8x64xbf16>, vector<64x64xbf16>, vector<8x64xf32> -> vector<8x64xf32>
    %c0_7 = arith.constant 0 : index
    %c0_8 = arith.constant 0 : index
    %7 = vector.load %arg5[%c0_7, %c0_8] : memref<1x64xf32, #tpu.memory_space<vmem>>, vector<1x64xf32>
    %8 = vector.broadcast %7 : vector<1x64xf32> to vector<8x64xf32>
    %9 = arith.addf %6, %8 : vector<8x64xf32>
    %10 = arith.truncf %9 : vector<8x64xf32> to vector<8x64xbf16>
    %c0_9 = arith.constant 0 : index
    %c0_10 = arith.constant 0 : index
    %c0_11 = arith.constant 0 : index
    %11 = vector.load %arg6[%c0_9, %c0_10, %c0_11] : memref<1x16x64xbf16, #tpu.memory_space<vmem>>, vector<1x16x64xbf16>
    %12 = vector.shape_cast %11 : vector<1x16x64xbf16> to vector<16x64xbf16>
    %c0_12 = arith.constant 0 : index
    %c0_13 = arith.constant 0 : index
    %c0_14 = arith.constant 0 : index
    %13 = vector.load %arg7[%c0_12, %c0_13, %c0_14] : memref<1x16x64xbf16, #tpu.memory_space<vmem>>, vector<1x16x64xbf16>
    %14 = vector.shape_cast %13 : vector<1x16x64xbf16> to vector<16x64xbf16>
    %15 = vector.extract_strided_slice %10 {offsets = [0, 0], sizes = [8, 16], strides = [1, 1]} : vector<8x64xbf16> to vector<8x16xbf16>
    %16 = vector.extract_strided_slice %12 {offsets = [0, 0], sizes = [16, 16], strides = [1, 1]} : vector<16x64xbf16> to vector<16x16xbf16>
    %17 = vector.extract_strided_slice %14 {offsets = [0, 0], sizes = [16, 16], strides = [1, 1]} : vector<16x64xbf16> to vector<16x16xbf16>
    %cst_15 = arith.constant dense<0.000000e+00> : vector<8x16xf32>
    %18 = tpu.matmul %15, %16, %cst_15 {dimension_numbers = #tpu.dot_dimension_numbers<[1], [1], [0], [0], [0, 0, 1, 0], [], []>} : vector<8x16xbf16>, vector<16x16xbf16>, vector<8x16xf32> -> vector<8x16xf32>
    %cst_16 = arith.constant dense<0xFF800000> : vector<8xf32>
    %19 = vector.multi_reduction <maximumf>, %18, %cst_16 [1] : vector<8x16xf32> to vector<8xf32>
    %20 = vector.shape_cast %19 : vector<8xf32> to vector<8x1xf32>
    %21 = vector.broadcast %20 : vector<8x1xf32> to vector<8x16xf32>
    %22 = arith.subf %18, %21 : vector<8x16xf32>
    %23 = math.exp %22 : vector<8x16xf32>
    %cst_17 = arith.constant dense<0.000000e+00> : vector<8xf32>
    %24 = vector.multi_reduction <add>, %23, %cst_17 [1] : vector<8x16xf32> to vector<8xf32>
    %25 = vector.shape_cast %24 : vector<8xf32> to vector<8x1xf32>
    %26 = tpu.reciprocal %25 {approx = true} : vector<8x1xf32> -> vector<8x1xf32>
    %27 = vector.broadcast %26 : vector<8x1xf32> to vector<8x16xf32>
    %28 = arith.mulf %23, %27 : vector<8x16xf32>
    %29 = arith.truncf %28 : vector<8x16xf32> to vector<8x16xbf16>
    %cst_18 = arith.constant dense<0.000000e+00> : vector<8x16xf32>
    %30 = tpu.matmul %29, %17, %cst_18 {dimension_numbers = #tpu.dot_dimension_numbers<[1], [0], [0], [1], [0, 0, 1, 1], [], []>} : vector<8x16xbf16>, vector<16x16xbf16>, vector<8x16xf32> -> vector<8x16xf32>
    %31 = arith.truncf %30 : vector<8x16xf32> to vector<8x16xbf16>
    %c0_19 = arith.constant 0 : index
    %c0_20 = arith.constant 0 : index
    %c0_21 = arith.constant 0 : index
    %32 = vector.load %arg8[%c0_19, %c0_20, %c0_21] : memref<1x8x64xbf16, #tpu.memory_space<vmem>>, vector<1x8x16xbf16>
    %33 = vector.shape_cast %32 : vector<1x8x16xbf16> to vector<8x16xbf16>
    %34 = vector.shape_cast %31 : vector<8x16xbf16> to vector<1x8x16xbf16>
    tpu.vector_store %arg8[%c0_19, %c0_20, %c0_21], %34 {strides = array<i32>} : memref<1x8x64xbf16, #tpu.memory_space<vmem>>, vector<1x8x16xbf16>,
    %35 = vector.extract_strided_slice %10 {offsets = [0, 16], sizes = [8, 16], strides = [1, 1]} : vector<8x64xbf16> to vector<8x16xbf16>
    %36 = vector.extract_strided_slice %12 {offsets = [0, 16], sizes = [16, 16], strides = [1, 1]} : vector<16x64xbf16> to vector<16x16xbf16>
    %37 = vector.extract_strided_slice %14 {offsets = [0, 16], sizes = [16, 16], strides = [1, 1]} : vector<16x64xbf16> to vector<16x16xbf16>
    %cst_22 = arith.constant dense<0.000000e+00> : vector<8x16xf32>
    %38 = tpu.matmul %35, %36, %cst_22 {dimension_numbers = #tpu.dot_dimension_numbers<[1], [1], [0], [0], [0, 0, 1, 0], [], []>} : vector<8x16xbf16>, vector<16x16xbf16>, vector<8x16xf32> -> vector<8x16xf32>
    %cst_23 = arith.constant dense<0xFF800000> : vector<8xf32>
    %39 = vector.multi_reduction <maximumf>, %38, %cst_23 [1] : vector<8x16xf32> to vector<8xf32>
    %40 = vector.shape_cast %39 : vector<8xf32> to vector<8x1xf32>
    %41 = vector.broadcast %40 : vector<8x1xf32> to vector<8x16xf32>
    %42 = arith.subf %38, %41 : vector<8x16xf32>
    %43 = math.exp %42 : vector<8x16xf32>
    %cst_24 = arith.constant dense<0.000000e+00> : vector<8xf32>
    %44 = vector.multi_reduction <add>, %43, %cst_24 [1] : vector<8x16xf32> to vector<8xf32>
    %45 = vector.shape_cast %44 : vector<8xf32> to vector<8x1xf32>
    %46 = tpu.reciprocal %45 {approx = true} : vector<8x1xf32> -> vector<8x1xf32>
    %47 = vector.broadcast %46 : vector<8x1xf32> to vector<8x16xf32>
    %48 = arith.mulf %43, %47 : vector<8x16xf32>
    %49 = arith.truncf %48 : vector<8x16xf32> to vector<8x16xbf16>
    %cst_25 = arith.constant dense<0.000000e+00> : vector<8x16xf32>
    %50 = tpu.matmul %49, %37, %cst_25 {dimension_numbers = #tpu.dot_dimension_numbers<[1], [0], [0], [1], [0, 0, 1, 1], [], []>} : vector<8x16xbf16>, vector<16x16xbf16>, vector<8x16xf32> -> vector<8x16xf32>
    %51 = arith.truncf %50 : vector<8x16xf32> to vector<8x16xbf16>
    %c0_26 = arith.constant 0 : index
    %c0_27 = arith.constant 0 : index
    %c16 = arith.constant 16 : index
    %52 = vector.load %arg8[%c0_26, %c0_27, %c16] : memref<1x8x64xbf16, #tpu.memory_space<vmem>>, vector<1x8x16xbf16>
    %53 = vector.shape_cast %52 : vector<1x8x16xbf16> to vector<8x16xbf16>
    %54 = vector.shape_cast %51 : vector<8x16xbf16> to vector<1x8x16xbf16>
    tpu.vector_store %arg8[%c0_26, %c0_27, %c16], %54 {strides = array<i32>} : memref<1x8x64xbf16, #tpu.memory_space<vmem>>, vector<1x8x16xbf16>,
    %55 = vector.extract_strided_slice %10 {offsets = [0, 32], sizes = [8, 16], strides = [1, 1]} : vector<8x64xbf16> to vector<8x16xbf16>
    %56 = vector.extract_strided_slice %12 {offsets = [0, 32], sizes = [16, 16], strides = [1, 1]} : vector<16x64xbf16> to vector<16x16xbf16>
    %57 = vector.extract_strided_slice %14 {offsets = [0, 32], sizes = [16, 16], strides = [1, 1]} : vector<16x64xbf16> to vector<16x16xbf16>
    %cst_28 = arith.constant dense<0.000000e+00> : vector<8x16xf32>
    %58 = tpu.matmul %55, %56, %cst_28 {dimension_numbers = #tpu.dot_dimension_numbers<[1], [1], [0], [0], [0, 0, 1, 0], [], []>} : vector<8x16xbf16>, vector<16x16xbf16>, vector<8x16xf32> -> vector<8x16xf32>
    %cst_29 = arith.constant dense<0xFF800000> : vector<8xf32>
    %59 = vector.multi_reduction <maximumf>, %58, %cst_29 [1] : vector<8x16xf32> to vector<8xf32>
    %60 = vector.shape_cast %59 : vector<8xf32> to vector<8x1xf32>
    %61 = vector.broadcast %60 : vector<8x1xf32> to vector<8x16xf32>
    %62 = arith.subf %58, %61 : vector<8x16xf32>
    %63 = math.exp %62 : vector<8x16xf32>
    %cst_30 = arith.constant dense<0.000000e+00> : vector<8xf32>
    %64 = vector.multi_reduction <add>, %63, %cst_30 [1] : vector<8x16xf32> to vector<8xf32>
    %65 = vector.shape_cast %64 : vector<8xf32> to vector<8x1xf32>
    %66 = tpu.reciprocal %65 {approx = true} : vector<8x1xf32> -> vector<8x1xf32>
    %67 = vector.broadcast %66 : vector<8x1xf32> to vector<8x16xf32>
    %68 = arith.mulf %63, %67 : vector<8x16xf32>
    %69 = arith.truncf %68 : vector<8x16xf32> to vector<8x16xbf16>
    %cst_31 = arith.constant dense<0.000000e+00> : vector<8x16xf32>
    %70 = tpu.matmul %69, %57, %cst_31 {dimension_numbers = #tpu.dot_dimension_numbers<[1], [0], [0], [1], [0, 0, 1, 1], [], []>} : vector<8x16xbf16>, vector<16x16xbf16>, vector<8x16xf32> -> vector<8x16xf32>
    %71 = arith.truncf %70 : vector<8x16xf32> to vector<8x16xbf16>
    %c0_32 = arith.constant 0 : index
    %c0_33 = arith.constant 0 : index
    %c32 = arith.constant 32 : index
    %72 = vector.load %arg8[%c0_32, %c0_33, %c32] : memref<1x8x64xbf16, #tpu.memory_space<vmem>>, vector<1x8x16xbf16>
    %73 = vector.shape_cast %72 : vector<1x8x16xbf16> to vector<8x16xbf16>
    %74 = vector.shape_cast %71 : vector<8x16xbf16> to vector<1x8x16xbf16>
    tpu.vector_store %arg8[%c0_32, %c0_33, %c32], %74 {strides = array<i32>} : memref<1x8x64xbf16, #tpu.memory_space<vmem>>, vector<1x8x16xbf16>,
    %75 = vector.extract_strided_slice %10 {offsets = [0, 48], sizes = [8, 16], strides = [1, 1]} : vector<8x64xbf16> to vector<8x16xbf16>
    %76 = vector.extract_strided_slice %12 {offsets = [0, 48], sizes = [16, 16], strides = [1, 1]} : vector<16x64xbf16> to vector<16x16xbf16>
    %77 = vector.extract_strided_slice %14 {offsets = [0, 48], sizes = [16, 16], strides = [1, 1]} : vector<16x64xbf16> to vector<16x16xbf16>
    %cst_34 = arith.constant dense<0.000000e+00> : vector<8x16xf32>
    %78 = tpu.matmul %75, %76, %cst_34 {dimension_numbers = #tpu.dot_dimension_numbers<[1], [1], [0], [0], [0, 0, 1, 0], [], []>} : vector<8x16xbf16>, vector<16x16xbf16>, vector<8x16xf32> -> vector<8x16xf32>
    %cst_35 = arith.constant dense<0xFF800000> : vector<8xf32>
    %79 = vector.multi_reduction <maximumf>, %78, %cst_35 [1] : vector<8x16xf32> to vector<8xf32>
    %80 = vector.shape_cast %79 : vector<8xf32> to vector<8x1xf32>
    %81 = vector.broadcast %80 : vector<8x1xf32> to vector<8x16xf32>
    %82 = arith.subf %78, %81 : vector<8x16xf32>
    %83 = math.exp %82 : vector<8x16xf32>
    %cst_36 = arith.constant dense<0.000000e+00> : vector<8xf32>
    %84 = vector.multi_reduction <add>, %83, %cst_36 [1] : vector<8x16xf32> to vector<8xf32>
    %85 = vector.shape_cast %84 : vector<8xf32> to vector<8x1xf32>
    %86 = tpu.reciprocal %85 {approx = true} : vector<8x1xf32> -> vector<8x1xf32>
    %87 = vector.broadcast %86 : vector<8x1xf32> to vector<8x16xf32>
    %88 = arith.mulf %83, %87 : vector<8x16xf32>
    %89 = arith.truncf %88 : vector<8x16xf32> to vector<8x16xbf16>
    %cst_37 = arith.constant dense<0.000000e+00> : vector<8x16xf32>
    %90 = tpu.matmul %89, %77, %cst_37 {dimension_numbers = #tpu.dot_dimension_numbers<[1], [0], [0], [1], [0, 0, 1, 1], [], []>} : vector<8x16xbf16>, vector<16x16xbf16>, vector<8x16xf32> -> vector<8x16xf32>
    %91 = arith.truncf %90 : vector<8x16xf32> to vector<8x16xbf16>
    %c0_38 = arith.constant 0 : index
    %c0_39 = arith.constant 0 : index
    %c48 = arith.constant 48 : index
    %92 = vector.load %arg8[%c0_38, %c0_39, %c48] : memref<1x8x64xbf16, #tpu.memory_space<vmem>>, vector<1x8x16xbf16>
    %93 = vector.shape_cast %92 : vector<1x8x16xbf16> to vector<8x16xbf16>
    %94 = vector.shape_cast %91 : vector<8x16xbf16> to vector<1x8x16xbf16>
    tpu.vector_store %arg8[%c0_38, %c0_39, %c48], %94 {strides = array<i32>} : memref<1x8x64xbf16, #tpu.memory_space<vmem>>, vector<1x8x16xbf16>,
    return
  }
  func.func @transform_0(%arg0: i32, %arg1: i32) -> (i32, i32, i32) {
    %c0_i32 = arith.constant 0 : i32
    %c0_i32_0 = arith.constant 0 : i32
    return %arg0, %arg1, %c0_i32 : i32, i32, i32
  }
  func.func @transform_1(%arg0: i32, %arg1: i32) -> (i32, i32, i32) {
    %c0_i32 = arith.constant 0 : i32
    %c0_i32_0 = arith.constant 0 : i32
    return %arg0, %arg1, %c0_i32 : i32, i32, i32
  }
  func.func @transform_2(%arg0: i32, %arg1: i32) -> (i32, i32) {
    %c0_i32 = arith.constant 0 : i32
    %c0_i32_0 = arith.constant 0 : i32
    %c0_i32_1 = arith.constant 0 : i32
    return %c0_i32, %c0_i32_0 : i32, i32
  }
  func.func @transform_3(%arg0: i32, %arg1: i32) -> (i32, i32) {
    %c0_i32 = arith.constant 0 : i32
    %c0_i32_0 = arith.constant 0 : i32
    %c0_i32_1 = arith.constant 0 : i32
    return %c0_i32, %c0_i32_0 : i32, i32
  }
  func.func @transform_4(%arg0: i32, %arg1: i32) -> (i32, i32, i32) {
    %c0_i32 = arith.constant 0 : i32
    %c0_i32_0 = arith.constant 0 : i32
    %c0_i32_1 = arith.constant 0 : i32
    return %arg0, %c0_i32, %c0_i32_0 : i32, i32, i32
  }
  func.func @transform_5(%arg0: i32, %arg1: i32) -> (i32, i32, i32) {
    %c0_i32 = arith.constant 0 : i32
    %c0_i32_0 = arith.constant 0 : i32
    %c0_i32_1 = arith.constant 0 : i32
    return %arg0, %c0_i32, %c0_i32_0 : i32, i32, i32
  }
  func.func @transform_6(%arg0: i32, %arg1: i32) -> (i32, i32, i32) {
    %c0_i32 = arith.constant 0 : i32
    %c0_i32_0 = arith.constant 0 : i32
    return %arg0, %arg1, %c0_i32 : i32, i32, i32
  }
}

module attributes {stable_mosaic.version = 11 : i64} {
  func.func @_linear_act_kernel(%arg0: i32, %arg1: memref<16x64xbf16, #tpu.memory_space<vmem>>, %arg2: memref<64x128xbf16, #tpu.memory_space<vmem>>, %arg3: memref<1x128xf32, #tpu.memory_space<vmem>>, %arg4: memref<16x128xf32, #tpu.memory_space<vmem>>) attributes {dimension_semantics = [#tpu.dimension_semantics<parallel>], iteration_bounds = array<i64: 1>, scalar_prefetch = 0 : i64, scratch_operands = 0 : i64, tpu.core_type = #tpu.core_type<tc>, window_params = [{transform_indices = @transform_0, window_bounds = array<i64: 16, 64>}, {pipeline_mode = #tpu.pipeline_mode<synchronous>, transform_indices = @transform_1, window_bounds = array<i64: 64, 128>}, {pipeline_mode = #tpu.pipeline_mode<synchronous>, transform_indices = @transform_2, window_bounds = array<i64: 1, 128>}, {transform_indices = @transform_3, window_bounds = array<i64: 16, 128>}]} {
    %c0 = arith.constant 0 : index
    %c0_0 = arith.constant 0 : index
    %0 = vector.load %arg1[%c0, %c0_0] : memref<16x64xbf16, #tpu.memory_space<vmem>>, vector<16x64xbf16>
    %c0_1 = arith.constant 0 : index
    %c0_2 = arith.constant 0 : index
    %1 = vector.load %arg2[%c0_1, %c0_2] : memref<64x128xbf16, #tpu.memory_space<vmem>>, vector<64x128xbf16>
    %cst = arith.constant dense<0.000000e+00> : vector<16x128xf32>
    %2 = tpu.matmul %0, %1, %cst {dimension_numbers = #tpu.dot_dimension_numbers<[1], [0], [0], [1], [0, 0, 1, 1], [], []>} : vector<16x64xbf16>, vector<64x128xbf16>, vector<16x128xf32> -> vector<16x128xf32>
    %c0_3 = arith.constant 0 : index
    %c0_4 = arith.constant 0 : index
    %3 = vector.load %arg3[%c0_3, %c0_4] : memref<1x128xf32, #tpu.memory_space<vmem>>, vector<1x128xf32>
    %4 = vector.broadcast %3 : vector<1x128xf32> to vector<16x128xf32>
    %5 = arith.addf %2, %4 : vector<16x128xf32>
    %6 = arith.negf %5 : vector<16x128xf32>
    %7 = math.exp %6 : vector<16x128xf32>
    %cst_5 = arith.constant 1.000000e+00 : f32
    %8 = vector.broadcast %cst_5 : f32 to vector<16x128xf32>
    %9 = arith.addf %8, %7 : vector<16x128xf32>
    %10 = arith.divf %8, %9 : vector<16x128xf32>
    %c0_6 = arith.constant 0 : index
    %c0_7 = arith.constant 0 : index
    %11 = vector.load %arg4[%c0_6, %c0_7] : memref<16x128xf32, #tpu.memory_space<vmem>>, vector<16x128xf32>
    tpu.vector_store %arg4[%c0_6, %c0_7], %10 {strides = array<i32>} : memref<16x128xf32, #tpu.memory_space<vmem>>, vector<16x128xf32>,
    return
  }
  func.func @transform_0(%arg0: i32) -> (i32, i32) {
    %c0_i32 = arith.constant 0 : i32
    %c0_i32_0 = arith.constant 0 : i32
    return %arg0, %c0_i32 : i32, i32
  }
  func.func @transform_1(%arg0: i32) -> (i32, i32) {
    %c0_i32 = arith.constant 0 : i32
    %c0_i32_0 = arith.constant 0 : i32
    %c0_i32_1 = arith.constant 0 : i32
    return %c0_i32, %c0_i32_0 : i32, i32
  }
  func.func @transform_2(%arg0: i32) -> (i32, i32) {
    %c0_i32 = arith.constant 0 : i32
    %c0_i32_0 = arith.constant 0 : i32
    %c0_i32_1 = arith.constant 0 : i32
    return %c0_i32, %c0_i32_0 : i32, i32
  }
  func.func @transform_3(%arg0: i32) -> (i32, i32) {
    %c0_i32 = arith.constant 0 : i32
    %c0_i32_0 = arith.constant 0 : i32
    return %arg0, %c0_i32 : i32, i32
  }
}

module attributes {stable_mosaic.version = 11 : i64} {
  func.func @_ffn_add_ln2_kernel(%arg0: i32, %arg1: memref<16x64xbf16, #tpu.memory_space<vmem>>, %arg2: memref<64x128xbf16, #tpu.memory_space<vmem>>, %arg3: memref<1x128xf32, #tpu.memory_space<vmem>>, %arg4: memref<128x64xbf16, #tpu.memory_space<vmem>>, %arg5: memref<1x64xf32, #tpu.memory_space<vmem>>, %arg6: memref<1x64xf32, #tpu.memory_space<vmem>>, %arg7: memref<1x64xf32, #tpu.memory_space<vmem>>, %arg8: memref<1x64xf32, #tpu.memory_space<vmem>>, %arg9: memref<1x64xf32, #tpu.memory_space<vmem>>, %arg10: memref<16x64xbf16, #tpu.memory_space<vmem>>, %arg11: memref<16x64xf32, #tpu.memory_space<vmem>>) attributes {dimension_semantics = [#tpu.dimension_semantics<parallel>], iteration_bounds = array<i64: 1>, scalar_prefetch = 0 : i64, scratch_operands = 0 : i64, tpu.core_type = #tpu.core_type<tc>, window_params = [{transform_indices = @transform_0, window_bounds = array<i64: 16, 64>}, {pipeline_mode = #tpu.pipeline_mode<synchronous>, transform_indices = @transform_1, window_bounds = array<i64: 64, 128>}, {pipeline_mode = #tpu.pipeline_mode<synchronous>, transform_indices = @transform_2, window_bounds = array<i64: 1, 128>}, {pipeline_mode = #tpu.pipeline_mode<synchronous>, transform_indices = @transform_3, window_bounds = array<i64: 128, 64>}, {pipeline_mode = #tpu.pipeline_mode<synchronous>, transform_indices = @transform_4, window_bounds = array<i64: 1, 64>}, {pipeline_mode = #tpu.pipeline_mode<synchronous>, transform_indices = @transform_5, window_bounds = array<i64: 1, 64>}, {pipeline_mode = #tpu.pipeline_mode<synchronous>, transform_indices = @transform_6, window_bounds = array<i64: 1, 64>}, {pipeline_mode = #tpu.pipeline_mode<synchronous>, transform_indices = @transform_7, window_bounds = array<i64: 1, 64>}, {pipeline_mode = #tpu.pipeline_mode<synchronous>, transform_indices = @transform_8, window_bounds = array<i64: 1, 64>}, {transform_indices = @transform_9, window_bounds = array<i64: 16, 64>}, {transform_indices = @transform_10, window_bounds = array<i64: 16, 64>}]} {
    %c0 = arith.constant 0 : index
    %c0_0 = arith.constant 0 : index
    %0 = vector.load %arg1[%c0, %c0_0] : memref<16x64xbf16, #tpu.memory_space<vmem>>, vector<16x64xbf16>
    %c0_1 = arith.constant 0 : index
    %c0_2 = arith.constant 0 : index
    %1 = vector.load %arg2[%c0_1, %c0_2] : memref<64x128xbf16, #tpu.memory_space<vmem>>, vector<64x128xbf16>
    %cst = arith.constant dense<0.000000e+00> : vector<16x128xf32>
    %2 = tpu.matmul %0, %1, %cst {dimension_numbers = #tpu.dot_dimension_numbers<[1], [0], [0], [1], [0, 0, 1, 1], [], []>} : vector<16x64xbf16>, vector<64x128xbf16>, vector<16x128xf32> -> vector<16x128xf32>
    %c0_3 = arith.constant 0 : index
    %c0_4 = arith.constant 0 : index
    %3 = vector.load %arg3[%c0_3, %c0_4] : memref<1x128xf32, #tpu.memory_space<vmem>>, vector<1x128xf32>
    %4 = vector.broadcast %3 : vector<1x128xf32> to vector<16x128xf32>
    %5 = arith.addf %2, %4 : vector<16x128xf32>
    %cst_5 = arith.constant 0.000000e+00 : f32
    %6 = vector.broadcast %cst_5 : f32 to vector<16x128xf32>
    %7 = arith.maximumf %5, %6 : vector<16x128xf32>
    %8 = arith.truncf %7 : vector<16x128xf32> to vector<16x128xbf16>
    %c0_6 = arith.constant 0 : index
    %c0_7 = arith.constant 0 : index
    %9 = vector.load %arg4[%c0_6, %c0_7] : memref<128x64xbf16, #tpu.memory_space<vmem>>, vector<128x64xbf16>
    %cst_8 = arith.constant dense<0.000000e+00> : vector<16x64xf32>
    %10 = tpu.matmul %8, %9, %cst_8 {dimension_numbers = #tpu.dot_dimension_numbers<[1], [0], [0], [1], [0, 0, 1, 1], [], []>} : vector<16x128xbf16>, vector<128x64xbf16>, vector<16x64xf32> -> vector<16x64xf32>
    %c0_9 = arith.constant 0 : index
    %c0_10 = arith.constant 0 : index
    %11 = vector.load %arg5[%c0_9, %c0_10] : memref<1x64xf32, #tpu.memory_space<vmem>>, vector<1x64xf32>
    %12 = vector.broadcast %11 : vector<1x64xf32> to vector<16x64xf32>
    %13 = arith.addf %10, %12 : vector<16x64xf32>
    %14 = arith.extf %0 : vector<16x64xbf16> to vector<16x64xf32>
    %15 = arith.addf %13, %14 : vector<16x64xf32>
    %c0_11 = arith.constant 0 : index
    %c0_12 = arith.constant 0 : index
    %16 = vector.load %arg6[%c0_11, %c0_12] : memref<1x64xf32, #tpu.memory_space<vmem>>, vector<1x64xf32>
    %c0_13 = arith.constant 0 : index
    %c0_14 = arith.constant 0 : index
    %17 = vector.load %arg7[%c0_13, %c0_14] : memref<1x64xf32, #tpu.memory_space<vmem>>, vector<1x64xf32>
    %cst_15 = arith.constant dense<0.000000e+00> : vector<16xf32>
    %18 = vector.multi_reduction <add>, %15, %cst_15 [1] : vector<16x64xf32> to vector<16xf32>
    %19 = vector.shape_cast %18 : vector<16xf32> to vector<16x1xf32>
    %cst_16 = arith.constant 6.400000e+01 : f32
    %20 = vector.broadcast %cst_16 : f32 to vector<16x1xf32>
    %21 = arith.divf %19, %20 : vector<16x1xf32>
    %22 = vector.broadcast %21 : vector<16x1xf32> to vector<16x64xf32>
    %23 = arith.subf %15, %22 : vector<16x64xf32>
    %24 = arith.mulf %23, %23 : vector<16x64xf32>
    %cst_17 = arith.constant dense<0.000000e+00> : vector<16xf32>
    %25 = vector.multi_reduction <add>, %24, %cst_17 [1] : vector<16x64xf32> to vector<16xf32>
    %26 = vector.shape_cast %25 : vector<16xf32> to vector<16x1xf32>
    %cst_18 = arith.constant 6.400000e+01 : f32
    %27 = vector.broadcast %cst_18 : f32 to vector<16x1xf32>
    %28 = arith.divf %26, %27 : vector<16x1xf32>
    %29 = vector.broadcast %21 : vector<16x1xf32> to vector<16x64xf32>
    %30 = arith.subf %15, %29 : vector<16x64xf32>
    %cst_19 = arith.constant 9.99999974E-6 : f32
    %31 = vector.broadcast %cst_19 : f32 to vector<16x1xf32>
    %32 = arith.addf %28, %31 : vector<16x1xf32>
    %33 = math.rsqrt %32 : vector<16x1xf32>
    %34 = vector.broadcast %33 : vector<16x1xf32> to vector<16x64xf32>
    %35 = arith.mulf %30, %34 : vector<16x64xf32>
    %36 = vector.broadcast %16 : vector<1x64xf32> to vector<16x64xf32>
    %37 = arith.mulf %35, %36 : vector<16x64xf32>
    %38 = vector.broadcast %17 : vector<1x64xf32> to vector<16x64xf32>
    %39 = arith.addf %37, %38 : vector<16x64xf32>
    %40 = arith.truncf %39 : vector<16x64xf32> to vector<16x64xbf16>
    %c0_20 = arith.constant 0 : index
    %c0_21 = arith.constant 0 : index
    %41 = vector.load %arg10[%c0_20, %c0_21] : memref<16x64xbf16, #tpu.memory_space<vmem>>, vector<16x64xbf16>
    tpu.vector_store %arg10[%c0_20, %c0_21], %40 {strides = array<i32>} : memref<16x64xbf16, #tpu.memory_space<vmem>>, vector<16x64xbf16>,
    %c0_22 = arith.constant 0 : index
    %c0_23 = arith.constant 0 : index
    %42 = vector.load %arg8[%c0_22, %c0_23] : memref<1x64xf32, #tpu.memory_space<vmem>>, vector<1x64xf32>
    %c0_24 = arith.constant 0 : index
    %c0_25 = arith.constant 0 : index
    %43 = vector.load %arg9[%c0_24, %c0_25] : memref<1x64xf32, #tpu.memory_space<vmem>>, vector<1x64xf32>
    %cst_26 = arith.constant dense<0.000000e+00> : vector<16xf32>
    %44 = vector.multi_reduction <add>, %39, %cst_26 [1] : vector<16x64xf32> to vector<16xf32>
    %45 = vector.shape_cast %44 : vector<16xf32> to vector<16x1xf32>
    %cst_27 = arith.constant 6.400000e+01 : f32
    %46 = vector.broadcast %cst_27 : f32 to vector<16x1xf32>
    %47 = arith.divf %45, %46 : vector<16x1xf32>
    %48 = vector.broadcast %47 : vector<16x1xf32> to vector<16x64xf32>
    %49 = arith.subf %39, %48 : vector<16x64xf32>
    %50 = arith.mulf %49, %49 : vector<16x64xf32>
    %cst_28 = arith.constant dense<0.000000e+00> : vector<16xf32>
    %51 = vector.multi_reduction <add>, %50, %cst_28 [1] : vector<16x64xf32> to vector<16xf32>
    %52 = vector.shape_cast %51 : vector<16xf32> to vector<16x1xf32>
    %cst_29 = arith.constant 6.400000e+01 : f32
    %53 = vector.broadcast %cst_29 : f32 to vector<16x1xf32>
    %54 = arith.divf %52, %53 : vector<16x1xf32>
    %55 = vector.broadcast %47 : vector<16x1xf32> to vector<16x64xf32>
    %56 = arith.subf %39, %55 : vector<16x64xf32>
    %cst_30 = arith.constant 9.99999974E-6 : f32
    %57 = vector.broadcast %cst_30 : f32 to vector<16x1xf32>
    %58 = arith.addf %54, %57 : vector<16x1xf32>
    %59 = math.rsqrt %58 : vector<16x1xf32>
    %60 = vector.broadcast %59 : vector<16x1xf32> to vector<16x64xf32>
    %61 = arith.mulf %56, %60 : vector<16x64xf32>
    %62 = vector.broadcast %42 : vector<1x64xf32> to vector<16x64xf32>
    %63 = arith.mulf %61, %62 : vector<16x64xf32>
    %64 = vector.broadcast %43 : vector<1x64xf32> to vector<16x64xf32>
    %65 = arith.addf %63, %64 : vector<16x64xf32>
    %c0_31 = arith.constant 0 : index
    %c0_32 = arith.constant 0 : index
    %66 = vector.load %arg11[%c0_31, %c0_32] : memref<16x64xf32, #tpu.memory_space<vmem>>, vector<16x64xf32>
    tpu.vector_store %arg11[%c0_31, %c0_32], %65 {strides = array<i32>} : memref<16x64xf32, #tpu.memory_space<vmem>>, vector<16x64xf32>,
    return
  }
  func.func @transform_0(%arg0: i32) -> (i32, i32) {
    %c0_i32 = arith.constant 0 : i32
    %c0_i32_0 = arith.constant 0 : i32
    return %arg0, %c0_i32 : i32, i32
  }
  func.func @transform_1(%arg0: i32) -> (i32, i32) {
    %c0_i32 = arith.constant 0 : i32
    %c0_i32_0 = arith.constant 0 : i32
    %c0_i32_1 = arith.constant 0 : i32
    return %c0_i32, %c0_i32_0 : i32, i32
  }
  func.func @transform_2(%arg0: i32) -> (i32, i32) {
    %c0_i32 = arith.constant 0 : i32
    %c0_i32_0 = arith.constant 0 : i32
    %c0_i32_1 = arith.constant 0 : i32
    return %c0_i32, %c0_i32_0 : i32, i32
  }
  func.func @transform_3(%arg0: i32) -> (i32, i32) {
    %c0_i32 = arith.constant 0 : i32
    %c0_i32_0 = arith.constant 0 : i32
    %c0_i32_1 = arith.constant 0 : i32
    return %c0_i32, %c0_i32_0 : i32, i32
  }
  func.func @transform_4(%arg0: i32) -> (i32, i32) {
    %c0_i32 = arith.constant 0 : i32
    %c0_i32_0 = arith.constant 0 : i32
    %c0_i32_1 = arith.constant 0 : i32
    return %c0_i32, %c0_i32_0 : i32, i32
  }
  func.func @transform_5(%arg0: i32) -> (i32, i32) {
    %c0_i32 = arith.constant 0 : i32
    %c0_i32_0 = arith.constant 0 : i32
    %c0_i32_1 = arith.constant 0 : i32
    return %c0_i32, %c0_i32_0 : i32, i32
  }
  func.func @transform_6(%arg0: i32) -> (i32, i32) {
    %c0_i32 = arith.constant 0 : i32
    %c0_i32_0 = arith.constant 0 : i32
    %c0_i32_1 = arith.constant 0 : i32
    return %c0_i32, %c0_i32_0 : i32, i32
  }
  func.func @transform_7(%arg0: i32) -> (i32, i32) {
    %c0_i32 = arith.constant 0 : i32
    %c0_i32_0 = arith.constant 0 : i32
    %c0_i32_1 = arith.constant 0 : i32
    return %c0_i32, %c0_i32_0 : i32, i32
  }
  func.func @transform_8(%arg0: i32) -> (i32, i32) {
    %c0_i32 = arith.constant 0 : i32
    %c0_i32_0 = arith.constant 0 : i32
    %c0_i32_1 = arith.constant 0 : i32
    return %c0_i32, %c0_i32_0 : i32, i32
  }
  func.func @transform_9(%arg0: i32) -> (i32, i32) {
    %c0_i32 = arith.constant 0 : i32
    %c0_i32_0 = arith.constant 0 : i32
    return %arg0, %c0_i32 : i32, i32
  }
  func.func @transform_10(%arg0: i32) -> (i32, i32) {
    %c0_i32 = arith.constant 0 : i32
    %c0_i32_0 = arith.constant 0 : i32
    return %arg0, %c0_i32 : i32, i32
  }
}

</mosaic_0001>

<llo_original>
// kernel: group_detr_transformer_fwd.25
$region0: #{group_detr_transformer_fwd.25}
  #allocation0 [shape = 'u32[]', space=smem, size = 0x4, offset = 0x4, fixed_abs, tag = 'smem constant byte address 0x4 - core index']
  #allocation1 [shape = 'u32[144,128]{1,0:T(1,128)}', space=vmem, size = 0x12000, scoped, tag = 'internal scratch']
  %s0 = inlined_call_operand.hbm [shape: bf16[32,64], index: 0, kind: input, shape index: {}]
  %s1 = inlined_call_operand.hbm [shape: bf16[32,64], index: 1, kind: input, shape index: {}]
  %s2 = inlined_call_operand.hbm [shape: bf16[64,64], index: 2, kind: input, shape index: {}]
  %s3 = inlined_call_operand.hbm [shape: f32[1,64], index: 3, kind: input, shape index: {}, may-alias: {3,5}]
  %s4 = inlined_call_operand.hbm [shape: f32[1,64], index: 4, kind: input, shape index: {}]
  %s5 = inlined_call_operand.hbm [shape: f32[1,64], index: 5, kind: input, shape index: {}, may-alias: {3,5}]
  %s6 = inlined_call_operand.hbm [shape: bf16[32,64], index: 6, kind: output, shape index: {}]
  %s7 = sld [smem:[#allocation0]]
  $region58: #{group_detr_transformer_fwd.25} parent=0
    _
  %s9 = ssub.s32 1, %s7
  %s10 = scalar_select 0, %s9, %s7
  $region1: #{group_detr_transformer_fwd.25} parent=0
    #allocation2 [shape = 'u8[8192]{0}', space=vmem, size = 0x2000, scoped, tag = 'input window, operand 0, single buffered']
    #allocation3 [shape = 's32[1]{0}', space=sflag, size = 0x4, scoped, tag = 'scoped memory for group_detr_transformer_fwd.25']
    #allocation4 [shape = 's32[1]{0}', space=sflag, size = 0x4, scoped, tag = 'scoped memory for group_detr_transformer_fwd.25']
    #allocation5 [shape = 'u8[8192]{0}', space=vmem, size = 0x2000, scoped, tag = 'input window, operand 1, single buffered']
    #allocation6 [shape = 's32[1]{0}', space=sflag, size = 0x4, scoped, tag = 'scoped memory for group_detr_transformer_fwd.25']
    #allocation7 [shape = 'u8[16384]{0}', space=vmem, size = 0x4000, scoped, tag = 'input window, operand 2, single buffered']
    #allocation8 [shape = 'u8[512]{0}', space=vmem, size = 0x400, scoped, tag = 'input window, operand 3, single buffered']
    #allocation9 [shape = 's32[1]{0}', space=sflag, size = 0x4, scoped, tag = 'scoped memory for group_detr_transformer_fwd.25']
    #allocation10 [shape = 'u8[512]{0}', space=vmem, size = 0x400, scoped, tag = 'input window, operand 4, single buffered']
    #allocation11 [shape = 'u8[512]{0}', space=vmem, size = 0x400, scoped, tag = 'input window, operand 5, single buffered']
    #allocation12 [shape = 's32[1]{0}', space=sflag, size = 0x4, scoped, tag = 'scoped memory for group_detr_transformer_fwd.25']
    #allocation13 [shape = 'u8[8192]{0}', space=vmem, size = 0x2000, scoped, tag = 'output window, operand 0, single buffered']
    %11 = vsyncpa [#allocation3], 0
    %12 = vsyncpa [#allocation6], 0
    %13 = vsyncpa [#allocation9], 0
    %14 = vsyncpa [#allocation12], 0
    %15 = vsyncpa [#allocation4], 0
    // Predicated region
    $region2: #{group_detr_transformer_fwd.25} parent=1 // pred_check
      _
    $region3: #{group_detr_transformer_fwd.25} parent=1 // pred_check_branch
      %17 = sbr.rel (0) target = $region5
    $region4: #{group_detr_transformer_fwd.25} parent=1 // pred_region
      %s19 = ssub.s32 256, 256
      %20 = vsyncadd [#allocation3], %s19
      %s21 = sshll.u32 [#allocation2], 4
      %s22 = int_to_ptr.vmem [resolvable:$true] %s21
      %27 = dma.hbm_to_vmem [thread:$0]  %s0, 256, %s22, [#allocation3], 64, 64, 4
    $region5: #{group_detr_transformer_fwd.25} parent=1 // pred_fallthru
      _
    // Predicated region
    $region6: #{group_detr_transformer_fwd.25} parent=1 // pred_check
      _
    $region7: #{group_detr_transformer_fwd.25} parent=1 // pred_check_branch
      %29 = sbr.rel (0) target = $region9
    $region8: #{group_detr_transformer_fwd.25} parent=1 // pred_region
      %s31 = ssub.s32 256, 256
      %32 = vsyncadd [#allocation6], %s31
      %s33 = sshll.u32 [#allocation5], 4
      %s34 = int_to_ptr.vmem [resolvable:$true] %s33
      %39 = dma.hbm_to_vmem [thread:$0]  %s1, 256, %s34, [#allocation6], 64, 64, 4
    $region9: #{group_detr_transformer_fwd.25} parent=1 // pred_fallthru
      _
    // Predicated region
    $region10: #{group_detr_transformer_fwd.25} parent=1 // pred_check
      _
    $region11: #{group_detr_transformer_fwd.25} parent=1 // pred_check_branch
      %41 = sbr.rel (0) target = $region13
    $region12: #{group_detr_transformer_fwd.25} parent=1 // pred_region
      %s43 = ssub.s32 512, 512
      %44 = vsyncadd [#allocation6], %s43
      %s45 = sshll.u32 [#allocation7], 4
      %s46 = int_to_ptr.vmem [resolvable:$true] %s45
      %51 = dma.hbm_to_vmem [thread:$0]  %s2, 512, %s46, [#allocation6], 64, 64, 4
    $region13: #{group_detr_transformer_fwd.25} parent=1 // pred_fallthru
      _
    // Predicated region
    $region14: #{group_detr_transformer_fwd.25} parent=1 // pred_check
      _
    $region15: #{group_detr_transformer_fwd.25} parent=1 // pred_check_branch
      %53 = sbr.rel (0) target = $region17
    $region16: #{group_detr_transformer_fwd.25} parent=1 // pred_region
      %s55 = ssub.s32 16, 16
      %56 = vsyncadd [#allocation9], %s55
      %s58 = sshll.u32 [#allocation8], 4
      %s59 = int_to_ptr.vmem [resolvable:$true] %s58
      %61 = dma.hbm_to_vmem [thread:$0]  %s3, 16, %s59, [#allocation9]
    $region17: #{group_detr_transformer_fwd.25} parent=1 // pred_fallthru
      _
    // Predicated region
    $region18: #{group_detr_transformer_fwd.25} parent=1 // pred_check
      _
    $region19: #{group_detr_transformer_fwd.25} parent=1 // pred_check_branch
      %63 = sbr.rel (0) target = $region21
    $region20: #{group_detr_transformer_fwd.25} parent=1 // pred_region
      %s65 = ssub.s32 16, 16
      %66 = vsyncadd [#allocation9], %s65
      %s68 = sshll.u32 [#allocation10], 4
      %s69 = int_to_ptr.vmem [resolvable:$true] %s68
      %71 = dma.hbm_to_vmem [thread:$0]  %s4, 16, %s69, [#allocation9]
    $region21: #{group_detr_transformer_fwd.25} parent=1 // pred_fallthru
      _
    // Predicated region
    $region22: #{group_detr_transformer_fwd.25} parent=1 // pred_check
      _
    $region23: #{group_detr_transformer_fwd.25} parent=1 // pred_check_branch
      %73 = sbr.rel (0) target = $region25
    $region24: #{group_detr_transformer_fwd.25} parent=1 // pred_region
      %s75 = ssub.s32 16, 16
      %76 = vsyncadd [#allocation12], %s75
      %s78 = sshll.u32 [#allocation11], 4
      %s79 = int_to_ptr.vmem [resolvable:$true] %s78
      %81 = dma.hbm_to_vmem [thread:$0]  %s5, 16, %s79, [#allocation12]
    $region25: #{group_detr_transformer_fwd.25} parent=1 // pred_fallthru
      _
    // Predicated region
    $region26: #{group_detr_transformer_fwd.25} parent=1 // pred_check
      _
    $region27: #{group_detr_transformer_fwd.25} parent=1 // pred_check_branch
      %83 = sbr.rel (0) target = $region29
    $region28: #{group_detr_transformer_fwd.25} parent=1 // pred_region
      %84 = dma.done [#allocation3], 256
    $region29: #{group_detr_transformer_fwd.25} parent=1 // pred_fallthru
      _
    // Predicated region
    $region30: #{group_detr_transformer_fwd.25} parent=1 // pred_check
      _
    $region31: #{group_detr_transformer_fwd.25} parent=1 // pred_check_branch
      %86 = sbr.rel (0) target = $region33
    $region32: #{group_detr_transformer_fwd.25} parent=1 // pred_region
      %87 = dma.done [#allocation6], 256
    $region33: #{group_detr_transformer_fwd.25} parent=1 // pred_fallthru
      _
    // Predicated region
    $region34: #{group_detr_transformer_fwd.25} parent=1 // pred_check
      _
    $region35: #{group_detr_transformer_fwd.25} parent=1 // pred_check_branch
      %89 = sbr.rel (0) target = $region37
    $region36: #{group_detr_transformer_fwd.25} parent=1 // pred_region
      %90 = dma.done [#allocation6], 512
    $region37: #{group_detr_transformer_fwd.25} parent=1 // pred_fallthru
      _
    // Predicated region
    $region38: #{group_detr_transformer_fwd.25} parent=1 // pred_check
      _
    $region39: #{group_detr_transformer_fwd.25} parent=1 // pred_check_branch
      %92 = sbr.rel (0) target = $region41
    $region40: #{group_detr_transformer_fwd.25} parent=1 // pred_region
      %93 = dma.done [#allocation9], 16
    $region41: #{group_detr_transformer_fwd.25} parent=1 // pred_fallthru
      _
    // Predicated region
    $region42: #{group_detr_transformer_fwd.25} parent=1 // pred_check
      _
    $region43: #{group_detr_transformer_fwd.25} parent=1 // pred_check_branch
      %95 = sbr.rel (0) target = $region45
    $region44: #{group_detr_transformer_fwd.25} parent=1 // pred_region
      %96 = dma.done [#allocation9], 16
    $region45: #{group_detr_transformer_fwd.25} parent=1 // pred_fallthru
      _
    // Predicated region
    $region46: #{group_detr_transformer_fwd.25} parent=1 // pred_check
      _
    $region47: #{group_detr_transformer_fwd.25} parent=1 // pred_check_branch
      %98 = sbr.rel (0) target = $region49
    $region48: #{group_detr_transformer_fwd.25} parent=1 // pred_region
      %99 = dma.done [#allocation12], 16
    $region49: #{group_detr_transformer_fwd.25} parent=1 // pred_fallthru
      _
    %v101 = vld [vmem:[#allocation2] sm:$0xf]
    %v102 = vld [vmem:[#allocation2 + $0x4] sm:$0xf]
    %v103 = vld [vmem:[#allocation2 + $0x8] sm:$0xf]
    %v104 = vld [vmem:[#allocation2 + $0xc] sm:$0xf]
    %v105 = vld [vmem:[#allocation7] sm:$0xf]
    %v106 = vld [vmem:[#allocation7 + $0x4] sm:$0xf]
    %v107 = vld [vmem:[#allocation7 + $0x8] sm:$0xf]
    %v108 = vld [vmem:[#allocation7 + $0xc] sm:$0xf]
    %v109 = vld [vmem:[#allocation7 + $0x10] sm:$0xf]
    %v110 = vld [vmem:[#allocation7 + $0x14] sm:$0xf]
    %v111 = vld [vmem:[#allocation7 + $0x18] sm:$0xf]
    %v112 = vld [vmem:[#allocation7 + $0x1c] sm:$0xf]
    %v113 = vld [vmem:[#allocation8] sm:$0x1]
    %v115 = vlaneseq
    %v116 = vshrl.u32 %v115, 7
    %v117 = vsub.s32 0, %v116
    %v118 = vrot.slane %v113, %v117
    %v124 = vunpack.c.l.b16 %v101
    %v125 = vunpack.c.l.b16 %v102
    %v126 = vunpack.c.l.b16 %v103
    %v127 = vunpack.c.l.b16 %v104
    %v128 = vpack.c.b16 %v125, %v124
    %v129 = vpack.c.b16 %v127, %v126
    %v138 = vunpack.c.l.b16 %v105
    %v139 = vunpack.c.l.b16 %v106
    %v140 = vunpack.c.l.b16 %v107
    %v141 = vunpack.c.l.b16 %v108
    %v142 = vunpack.c.l.b16 %v109
    %v143 = vunpack.c.l.b16 %v110
    %v144 = vunpack.c.l.b16 %v111
    %v145 = vunpack.c.l.b16 %v112
    %v146 = vpack.c.b16 %v139, %v138
    %v147 = vpack.c.b16 %v141, %v140
    %v148 = vpack.c.b16 %v143, %v142
    %v149 = vpack.c.b16 %v145, %v144
    %vm154 = vcmask 523264
    %v156 = vsel %vm154, %v128, 0
    %v159 = vsel %vm154, %v129, 0
    %161 = vmatprep.subr.bf16.mxu0 0
    %162 = vmatpush1.bf16.msra.mxu0 %v146
    %163 = vmatprep.subr.bf16.mxu0 0
    %164 = vmatpush1.bf16.msra.mxu0 %v147
    %165 = vmatprep.subr.bf16.mxu0 0
    %166 = vmatpush1.bf16.msra.mxu0 %v148
    %167 = vmatprep.subr.bf16.mxu0 0
    %168 = vmatpush1.bf16.msra.mxu0 %v149
    %169 = vmatprep.subr.bf16.mxu0 0
    %170 = vmatpush1.bf16.msra.mxu0 0
    %171 = vmatprep.subr.bf16.mxu0 0
    %172 = vmatpush1.bf16.msra.mxu0 0
    %173 = vmatprep.subr.bf16.mxu0 0
    %174 = vmatpush1.bf16.msra.mxu0 0
    %175 = vmatprep.subr.bf16.mxu0 0
    %176 = vmatpush1.bf16.msra.mxu0 0
    %177 = vmatprep.subr.bf16.mxu0 0
    %178 = vmatpush1.bf16.msra.mxu0 0
    %179 = vmatprep.subr.bf16.mxu0 0
    %180 = vmatpush1.bf16.msra.mxu0 0
    %181 = vmatprep.subr.bf16.mxu0 0
    %182 = vmatpush1.bf16.msra.mxu0 0
    %183 = vmatprep.subr.bf16.mxu0 0
    %184 = vmatpush1.bf16.msra.mxu0 0
    %185 = vmatprep.subr.bf16.mxu0 0
    %186 = vmatpush1.bf16.msra.mxu0 0
    %187 = vmatprep.subr.bf16.mxu0 0
    %188 = vmatpush1.bf16.msra.mxu0 0
    %189 = vmatprep.subr.bf16.mxu0 0
    %190 = vmatpush1.bf16.msra.mxu0 0
    %191 = vmatprep.subr.bf16.mxu0 0
    %192 = vmatpush1.bf16.msra.mxu0 0
    %193 = vmatprep.mubr.bf16.mxu0 0
    %194 = vmatmul.mubr.bf16.gmra.mrb[0].mxu0 %v156
    %v195 = vpop.f32.mrb[0].mxu0
    %v196 = vadd.f32 %v118, %v195
    %v197 = vpop.f32.mrb[0].mxu0
    %v198 = vpop.f32.mrb[0].mxu0
    %v199 = vadd.f32 %v118, %v198
    %v200 = vpop.f32.mrb[0].mxu0
    %201 = vmatprep.mubr.bf16.mxu0 0
    %202 = vmatmul.mubr.bf16.gmra.mrb[0].mxu0 %v159
    %v203 = vpop.f32.mrb[0].mxu0
    %v204 = vadd.f32 %v118, %v203
    %v205 = vpop.f32.mrb[0].mxu0
    %v206 = vpop.f32.mrb[0].mxu0
    %v207 = vadd.f32 %v118, %v206
    %v208 = vpop.f32.mrb[0].mxu0
    %209 = vdwg.mxu0
    %v210 = vld [vmem:[#allocation5] sm:$0xf]
    %v211 = vld [vmem:[#allocation5 + $0x4] sm:$0xf]
    %v212 = vld [vmem:[#allocation5 + $0x8] sm:$0xf]
    %v213 = vld [vmem:[#allocation5 + $0xc] sm:$0xf]
    %v214 = vunpack.c.l.bf16 %v210
    %v215 = vunpack.c.l.bf16 %v211
    %v216 = vunpack.c.l.bf16 %v212
    %v217 = vunpack.c.l.bf16 %v213
    %v218 = vadd.f32 %v196, %v214
    %v219 = vadd.f32 %v199, %v215
    %v220 = vadd.f32 %v204, %v216
    %v221 = vadd.f32 %v207, %v217
    %v222 = vld [vmem:[#allocation10] sm:$0x1]
    %v223 = vld [vmem:[#allocation11] sm:$0x1]
    %v224 = vsel %vm154, %v218, 0.0
    %225 = vadd.xlane.f32.xlu0 %v224
    %v226 = vpop.xlane.xlu0 %225
    %v227 = vsel %vm154, %v219, 0.0
    %228 = vadd.xlane.f32.xlu0 %v227
    %v229 = vpop.xlane.xlu0 %228
    %v230 = vsel %vm154, %v220, 0.0
    %231 = vadd.xlane.f32.xlu0 %v230
    %v232 = vpop.xlane.xlu0 %231
    %v233 = vsel %vm154, %v221, 0.0
    %234 = vadd.xlane.f32.xlu0 %v233
    %v235 = vpop.xlane.xlu0 %234
    %v236 = vrcp.pop 64.0
    %v237 = vmul.f32 %v226, %v236
    %v238 = vmul.f32 %v229, %v236
    %v239 = vmul.f32 %v232, %v236
    %v240 = vmul.f32 %v235, %v236
    %v241 = vsub.f32 %v218, %v237
    %v242 = vsub.f32 %v219, %v238
    %v243 = vsub.f32 %v220, %v239
    %v244 = vsub.f32 %v221, %v240
    %v245 = vmul.f32 %v241, %v241
    %v246 = vmul.f32 %v242, %v242
    %v247 = vmul.f32 %v243, %v243
    %v248 = vmul.f32 %v244, %v244
    %v249 = vsel %vm154, %v245, 0.0
    %250 = vadd.xlane.f32.xlu0 %v249
    %v251 = vpop.xlane.xlu0 %250
    %v252 = vsel %vm154, %v246, 0.0
    %253 = vadd.xlane.f32.xlu0 %v252
    %v254 = vpop.xlane.xlu0 %253
    %v255 = vsel %vm154, %v247, 0.0
    %256 = vadd.xlane.f32.xlu0 %v255
    %v257 = vpop.xlane.xlu0 %256
    %v258 = vsel %vm154, %v248, 0.0
    %259 = vadd.xlane.f32.xlu0 %v258
    %v260 = vpop.xlane.xlu0 %259
    %v261 = vmul.f32 %v251, %v236
    %v262 = vmul.f32 %v254, %v236
    %v263 = vmul.f32 %v257, %v236
    %v264 = vmul.f32 %v260, %v236
    %v265 = vadd.f32 %v261, 1e-05
    %v266 = vadd.f32 %v262, 1e-05
    %v267 = vadd.f32 %v263, 1e-05
    %v268 = vadd.f32 %v264, 1e-05
    %v269 = vrsqrt.pop %v265
    %v270 = vrsqrt.pop %v266
    %v271 = vrsqrt.pop %v267
    %v272 = vrsqrt.pop %v268
    %v273 = vmul.f32 %v241, %v269
    %v274 = vmul.f32 %v242, %v270
    %v275 = vmul.f32 %v243, %v271
    %v276 = vmul.f32 %v244, %v272
    %v278 = vlaneseq
    %v279 = vshrl.u32 %v278, 7
    %v280 = vsub.s32 0, %v279
    %v281 = vrot.slane %v222, %v280
    %v283 = vmul.f32 %v273, %v281
    %v284 = vmul.f32 %v274, %v281
    %v285 = vmul.f32 %v275, %v281
    %v286 = vmul.f32 %v276, %v281
    %v288 = vlaneseq
    %v289 = vshrl.u32 %v288, 7
    %v290 = vsub.s32 0, %v289
    %v291 = vrot.slane %v223, %v290
    %v293 = vadd.f32 %v283, %v291
    %v294 = vadd.f32 %v284, %v291
    %v295 = vadd.f32 %v285, %v291
    %v296 = vadd.f32 %v286, %v291
    %v297 = vpack.c.bf16 %v294, %v293
    %v298 = vpack.c.bf16 %v296, %v295
    %v301 = vunpack.c.l.b16 %v297
    %v302 = vunpack.c.h.b16 %v297
    %v303 = vunpack.c.l.b16 %v298
    %v304 = vunpack.c.h.b16 %v298
    %v305 = vpack.c.b16 %v301, %v301
    %v306 = vpack.c.b16 %v302, %v302
    %v307 = vpack.c.b16 %v303, %v303
    %v308 = vpack.c.b16 %v304, %v304
    %vm313 = vcmask 519168
    %314 = vst.msk [vmem:[#allocation13] sm:$0xf] %vm313, %v305
    %315 = vst.msk [vmem:[#allocation13 + $0x4] sm:$0xf] %vm313, %v306
    %316 = vst.msk [vmem:[#allocation13 + $0x8] sm:$0xf] %vm313, %v307
    %317 = vst.msk [vmem:[#allocation13 + $0xc] sm:$0xf] %vm313, %v308
    // Predicated region
    $region50: #{group_detr_transformer_fwd.25} parent=1 // pred_check
      _
    $region51: #{group_detr_transformer_fwd.25} parent=1 // pred_check_branch
      %319 = sbr.rel (0) target = $region53
    $region52: #{group_detr_transformer_fwd.25} parent=1 // pred_region
      %s321 = ssub.s32 256, 256
      %322 = vsyncadd [#allocation4], %s321
      %s323 = sshll.u32 [#allocation13], 4
      %s324 = int_to_ptr.vmem [resolvable:$true] %s323
      %329 = dma.vmem_to_hbm [thread:$0]  %s324, 256, %s6, [#allocation4], 64, 64, 4
    $region53: #{group_detr_transformer_fwd.25} parent=1 // pred_fallthru
      _
    // Predicated region
    $region54: #{group_detr_transformer_fwd.25} parent=1 // pred_check
      _
    $region55: #{group_detr_transformer_fwd.25} parent=1 // pred_check_branch
      %331 = sbr.rel (0) target = $region57
    $region56: #{group_detr_transformer_fwd.25} parent=1 // pred_region
      %332 = dma.done [#allocation4], 256
    $region57: #{group_detr_transformer_fwd.25} parent=1 // pred_fallthru
      _
    %333 = vsyncpa [#allocation3], 1
    %334 = vsyncpa [#allocation6], 1
    %335 = vsyncpa [#allocation9], 1
    %336 = vsyncpa [#allocation12], 1
    %337 = vsyncpa [#allocation4], 1

// kernel: group_detr_transformer_fwd.23
$region0: #{group_detr_transformer_fwd.23}
  #allocation0 [shape = 'u32[]', space=smem, size = 0x4, offset = 0x4, fixed_abs, tag = 'smem constant byte address 0x4 - core index']
  #allocation1 [shape = 'u32[144,128]{1,0:T(1,128)}', space=vmem, size = 0x12000, scoped, tag = 'internal scratch']
  %s0 = inlined_call_operand.hbm [shape: bf16[32,64], index: 0, kind: input, shape index: {}]
  %s1 = inlined_call_operand.hbm [shape: bf16[32,64], index: 1, kind: input, shape index: {}]
  %s2 = inlined_call_operand.hbm [shape: bf16[64,128], index: 2, kind: input, shape index: {}]
  %s3 = inlined_call_operand.hbm [shape: f32[1,128], index: 3, kind: input, shape index: {}]
  %s4 = inlined_call_operand.hbm [shape: bf16[64,64], index: 4, kind: input, shape index: {}]
  %s5 = inlined_call_operand.hbm [shape: f32[1,64], index: 5, kind: input, shape index: {}]
  %s6 = inlined_call_operand.hbm [shape: bf16[32,64], index: 6, kind: output, shape index: {0}]
  %s7 = inlined_call_operand.hbm [shape: bf16[32,64], index: 7, kind: output, shape index: {1}]
  %s8 = inlined_call_operand.hbm [shape: bf16[32,64], index: 8, kind: output, shape index: {2}]
  %9 = xla_tuple %s6, %s7, %s8
  %s10 = sld [smem:[#allocation0]]
  $region74: #{group_detr_transformer_fwd.23} parent=0
    _
  %s12 = ssub.s32 1, %s10
  %s13 = scalar_select 0, %s12, %s10
  $region1: #{group_detr_transformer_fwd.23} parent=0
    #allocation2 [shape = 'u8[8192]{0}', space=vmem, size = 0x2000, scoped, tag = 'input window, operand 0, single buffered']
    #allocation3 [shape = 's32[1]{0}', space=sflag, size = 0x4, scoped, tag = 'scoped memory for group_detr_transformer_fwd.23']
    #allocation4 [shape = 's32[1]{0}', space=sflag, size = 0x4, scoped, tag = 'scoped memory for group_detr_transformer_fwd.23']
    #allocation5 [shape = 'u8[8192]{0}', space=vmem, size = 0x2000, scoped, tag = 'input window, operand 1, single buffered']
    #allocation6 [shape = 's32[1]{0}', space=sflag, size = 0x4, scoped, tag = 'scoped memory for group_detr_transformer_fwd.23']
    #allocation7 [shape = 'u8[16384]{0}', space=vmem, size = 0x4000, scoped, tag = 'input window, operand 2, single buffered']
    #allocation8 [shape = 'u8[512]{0}', space=vmem, size = 0x400, scoped, tag = 'input window, operand 3, single buffered']
    #allocation9 [shape = 's32[1]{0}', space=sflag, size = 0x4, scoped, tag = 'scoped memory for group_detr_transformer_fwd.23']
    #allocation10 [shape = 'u8[16384]{0}', space=vmem, size = 0x4000, scoped, tag = 'input window, operand 4, single buffered']
    #allocation11 [shape = 'u8[512]{0}', space=vmem, size = 0x400, scoped, tag = 'input window, operand 5, single buffered']
    #allocation12 [shape = 's32[1]{0}', space=sflag, size = 0x4, scoped, tag = 'scoped memory for group_detr_transformer_fwd.23']
    #allocation13 [shape = 'u8[8192]{0}', space=vmem, size = 0x2000, scoped, tag = 'output window, operand 0, single buffered']
    #allocation14 [shape = 'u8[8192]{0}', space=vmem, size = 0x2000, scoped, tag = 'output window, operand 1, single buffered']
    #allocation15 [shape = 's32[1]{0}', space=sflag, size = 0x4, scoped, tag = 'scoped memory for group_detr_transformer_fwd.23']
    #allocation16 [shape = 'u8[8192]{0}', space=vmem, size = 0x2000, scoped, tag = 'output window, operand 2, single buffered']
    %14 = vsyncpa [#allocation3], 0
    %15 = vsyncpa [#allocation6], 0
    %16 = vsyncpa [#allocation9], 0
    %17 = vsyncpa [#allocation12], 0
    %18 = vsyncpa [#allocation4], 0
    %19 = vsyncpa [#allocation15], 0
    // Predicated region
    $region2: #{group_detr_transformer_fwd.23} parent=1 // pred_check
      _
    $region3: #{group_detr_transformer_fwd.23} parent=1 // pred_check_branch
      %21 = sbr.rel (0) target = $region5
    $region4: #{group_detr_transformer_fwd.23} parent=1 // pred_region
      %s23 = ssub.s32 256, 256
      %24 = vsyncadd [#allocation3], %s23
      %s25 = sshll.u32 [#allocation2], 4
      %s26 = int_to_ptr.vmem [resolvable:$true] %s25
      %31 = dma.hbm_to_vmem [thread:$0]  %s0, 256, %s26, [#allocation3], 64, 64, 4
    $region5: #{group_detr_transformer_fwd.23} parent=1 // pred_fallthru
      _
    // Predicated region
    $region6: #{group_detr_transformer_fwd.23} parent=1 // pred_check
      _
    $region7: #{group_detr_transformer_fwd.23} parent=1 // pred_check_branch
      %33 = sbr.rel (0) target = $region9
    $region8: #{group_detr_transformer_fwd.23} parent=1 // pred_region
      %s35 = ssub.s32 256, 256
      %36 = vsyncadd [#allocation6], %s35
      %s37 = sshll.u32 [#allocation5], 4
      %s38 = int_to_ptr.vmem [resolvable:$true] %s37
      %43 = dma.hbm_to_vmem [thread:$0]  %s1, 256, %s38, [#allocation6], 64, 64, 4
    $region9: #{group_detr_transformer_fwd.23} parent=1 // pred_fallthru
      _
    // Predicated region
    $region10: #{group_detr_transformer_fwd.23} parent=1 // pred_check
      _
    $region11: #{group_detr_transformer_fwd.23} parent=1 // pred_check_branch
      %45 = sbr.rel (0) target = $region13
    $region12: #{group_detr_transformer_fwd.23} parent=1 // pred_region
      %s47 = ssub.s32 512, 512
      %48 = vsyncadd [#allocation6], %s47
      %s49 = sshll.u32 [#allocation7], 4
      %s50 = int_to_ptr.vmem [resolvable:$true] %s49
      %55 = dma.hbm_to_vmem [thread:$0]  %s2, 512, %s50, [#allocation6], 64, 64, 4
    $region13: #{group_detr_transformer_fwd.23} parent=1 // pred_fallthru
      _
    // Predicated region
    $region14: #{group_detr_transformer_fwd.23} parent=1 // pred_check
      _
    $region15: #{group_detr_transformer_fwd.23} parent=1 // pred_check_branch
      %57 = sbr.rel (0) target = $region17
    $region16: #{group_detr_transformer_fwd.23} parent=1 // pred_region
      %s59 = ssub.s32 16, 16
      %60 = vsyncadd [#allocation9], %s59
      %s62 = sshll.u32 [#allocation8], 4
      %s63 = int_to_ptr.vmem [resolvable:$true] %s62
      %65 = dma.hbm_to_vmem [thread:$0]  %s3, 16, %s63, [#allocation9]
    $region17: #{group_detr_transformer_fwd.23} parent=1 // pred_fallthru
      _
    // Predicated region
    $region18: #{group_detr_transformer_fwd.23} parent=1 // pred_check
      _
    $region19: #{group_detr_transformer_fwd.23} parent=1 // pred_check_branch
      %67 = sbr.rel (0) target = $region21
    $region20: #{group_detr_transformer_fwd.23} parent=1 // pred_region
      %s69 = ssub.s32 512, 512
      %70 = vsyncadd [#allocation9], %s69
      %s71 = sshll.u32 [#allocation10], 4
      %s72 = int_to_ptr.vmem [resolvable:$true] %s71
      %77 = dma.hbm_to_vmem [thread:$0]  %s4, 512, %s72, [#allocation9], 64, 64, 4
    $region21: #{group_detr_transformer_fwd.23} parent=1 // pred_fallthru
      _
    // Predicated region
    $region22: #{group_detr_transformer_fwd.23} parent=1 // pred_check
      _
    $region23: #{group_detr_transformer_fwd.23} parent=1 // pred_check_branch
      %79 = sbr.rel (0) target = $region25
    $region24: #{group_detr_transformer_fwd.23} parent=1 // pred_region
      %s81 = ssub.s32 16, 16
      %82 = vsyncadd [#allocation12], %s81
      %s84 = sshll.u32 [#allocation11], 4
      %s85 = int_to_ptr.vmem [resolvable:$true] %s84
      %87 = dma.hbm_to_vmem [thread:$0]  %s5, 16, %s85, [#allocation12]
    $region25: #{group_detr_transformer_fwd.23} parent=1 // pred_fallthru
      _
    // Predicated region
    $region26: #{group_detr_transformer_fwd.23} parent=1 // pred_check
      _
    $region27: #{group_detr_transformer_fwd.23} parent=1 // pred_check_branch
      %89 = sbr.rel (0) target = $region29
    $region28: #{group_detr_transformer_fwd.23} parent=1 // pred_region
      %90 = dma.done [#allocation3], 256
    $region29: #{group_detr_transformer_fwd.23} parent=1 // pred_fallthru
      _
    // Predicated region
    $region30: #{group_detr_transformer_fwd.23} parent=1 // pred_check
      _
    $region31: #{group_detr_transformer_fwd.23} parent=1 // pred_check_branch
      %92 = sbr.rel (0) target = $region33
    $region32: #{group_detr_transformer_fwd.23} parent=1 // pred_region
      %93 = dma.done [#allocation6], 256
    $region33: #{group_detr_transformer_fwd.23} parent=1 // pred_fallthru
      _
    // Predicated region
    $region34: #{group_detr_transformer_fwd.23} parent=1 // pred_check
      _
    $region35: #{group_detr_transformer_fwd.23} parent=1 // pred_check_branch
      %95 = sbr.rel (0) target = $region37
    $region36: #{group_detr_transformer_fwd.23} parent=1 // pred_region
      %96 = dma.done [#allocation6], 512
    $region37: #{group_detr_transformer_fwd.23} parent=1 // pred_fallthru
      _
    // Predicated region
    $region38: #{group_detr_transformer_fwd.23} parent=1 // pred_check
      _
    $region39: #{group_detr_transformer_fwd.23} parent=1 // pred_check_branch
      %98 = sbr.rel (0) target = $region41
    $region40: #{group_detr_transformer_fwd.23} parent=1 // pred_region
      %99 = dma.done [#allocation9], 16
    $region41: #{group_detr_transformer_fwd.23} parent=1 // pred_fallthru
      _
    // Predicated region
    $region42: #{group_detr_transformer_fwd.23} parent=1 // pred_check
      _
    $region43: #{group_detr_transformer_fwd.23} parent=1 // pred_check_branch
      %101 = sbr.rel (0) target = $region45
    $region44: #{group_detr_transformer_fwd.23} parent=1 // pred_region
      %102 = dma.done [#allocation9], 512
    $region45: #{group_detr_transformer_fwd.23} parent=1 // pred_fallthru
      _
    // Predicated region
    $region46: #{group_detr_transformer_fwd.23} parent=1 // pred_check
      _
    $region47: #{group_detr_transformer_fwd.23} parent=1 // pred_check_branch
      %104 = sbr.rel (0) target = $region49
    $region48: #{group_detr_transformer_fwd.23} parent=1 // pred_region
      %105 = dma.done [#allocation12], 16
    $region49: #{group_detr_transformer_fwd.23} parent=1 // pred_fallthru
      _
    %v107 = vld [vmem:[#allocation2] sm:$0xf]
    %v108 = vld [vmem:[#allocation2 + $0x4] sm:$0xf]
    %v109 = vld [vmem:[#allocation2 + $0x8] sm:$0xf]
    %v110 = vld [vmem:[#allocation2 + $0xc] sm:$0xf]
    %v111 = vld [vmem:[#allocation5] sm:$0xf]
    %v112 = vld [vmem:[#allocation5 + $0x4] sm:$0xf]
    %v113 = vld [vmem:[#allocation5 + $0x8] sm:$0xf]
    %v114 = vld [vmem:[#allocation5 + $0xc] sm:$0xf]
    %v115 = vadd.bf16 %v107, %v111
    %v116 = vadd.bf16 %v108, %v112
    %v117 = vadd.bf16 %v109, %v113
    %v118 = vadd.bf16 %v110, %v114
    %v119 = vld [vmem:[#allocation7] sm:$0xf]
    %v120 = vld [vmem:[#allocation7 + $0x4] sm:$0xf]
    %v121 = vld [vmem:[#allocation7 + $0x8] sm:$0xf]
    %v122 = vld [vmem:[#allocation7 + $0xc] sm:$0xf]
    %v123 = vld [vmem:[#allocation7 + $0x10] sm:$0xf]
    %v124 = vld [vmem:[#allocation7 + $0x14] sm:$0xf]
    %v125 = vld [vmem:[#allocation7 + $0x18] sm:$0xf]
    %v126 = vld [vmem:[#allocation7 + $0x1c] sm:$0xf]
    %v127 = vld [vmem:[#allocation8] sm:$0x1]
    %v129 = vlaneseq
    %v130 = vshrl.u32 %v129, 7
    %v131 = vsub.s32 0, %v130
    %v132 = vrot.slane %v127, %v131
    %v138 = vunpack.c.l.b16 %v115
    %v139 = vunpack.c.l.b16 %v116
    %v140 = vunpack.c.l.b16 %v117
    %v141 = vunpack.c.l.b16 %v118
    %v142 = vpack.c.b16 %v139, %v138
    %v143 = vpack.c.b16 %v141, %v140
    %v152 = vunpack.c.l.b16 %v119
    %v153 = vunpack.c.l.b16 %v120
    %v154 = vunpack.c.l.b16 %v121
    %v155 = vunpack.c.l.b16 %v122
    %v156 = vunpack.c.l.b16 %v123
    %v157 = vunpack.c.l.b16 %v124
    %v158 = vunpack.c.l.b16 %v125
    %v159 = vunpack.c.l.b16 %v126
    %v160 = vpack.c.b16 %v153, %v152
    %v161 = vpack.c.b16 %v155, %v154
    %v162 = vpack.c.b16 %v157, %v156
    %v163 = vpack.c.b16 %v159, %v158
    %vm168 = vcmask 523264
    %v170 = vsel %vm168, %v142, 0
    %v173 = vsel %vm168, %v143, 0
    %175 = vmatprep.subr.bf16.mxu0 0
    %176 = vmatpush1.bf16.msra.mxu0 %v160
    %177 = vmatprep.subr.bf16.mxu0 0
    %178 = vmatpush1.bf16.msra.mxu0 %v161
    %179 = vmatprep.subr.bf16.mxu0 0
    %180 = vmatpush1.bf16.msra.mxu0 %v162
    %181 = vmatprep.subr.bf16.mxu0 0
    %182 = vmatpush1.bf16.msra.mxu0 %v163
    %183 = vmatprep.subr.bf16.mxu0 0
    %184 = vmatpush1.bf16.msra.mxu0 0
    %185 = vmatprep.subr.bf16.mxu0 0
    %186 = vmatpush1.bf16.msra.mxu0 0
    %187 = vmatprep.subr.bf16.mxu0 0
    %188 = vmatpush1.bf16.msra.mxu0 0
    %189 = vmatprep.subr.bf16.mxu0 0
    %190 = vmatpush1.bf16.msra.mxu0 0
    %191 = vmatprep.subr.bf16.mxu0 0
    %192 = vmatpush1.bf16.msra.mxu0 0
    %193 = vmatprep.subr.bf16.mxu0 0
    %194 = vmatpush1.bf16.msra.mxu0 0
    %195 = vmatprep.subr.bf16.mxu0 0
    %196 = vmatpush1.bf16.msra.mxu0 0
    %197 = vmatprep.subr.bf16.mxu0 0
    %198 = vmatpush1.bf16.msra.mxu0 0
    %199 = vmatprep.subr.bf16.mxu0 0
    %200 = vmatpush1.bf16.msra.mxu0 0
    %201 = vmatprep.subr.bf16.mxu0 0
    %202 = vmatpush1.bf16.msra.mxu0 0
    %203 = vmatprep.subr.bf16.mxu0 0
    %204 = vmatpush1.bf16.msra.mxu0 0
    %205 = vmatprep.subr.bf16.mxu0 0
    %206 = vmatpush1.bf16.msra.mxu0 0
    %207 = vmatprep.mubr.bf16.mxu0 0
    %208 = vmatmul.mubr.bf16.gmra.mrb[0].mxu0 %v170
    %v209 = vpop.f32.mrb[0].mxu0
    %v210 = vadd.f32 %v132, %v209
    %v211 = vpop.f32.mrb[0].mxu0
    %v212 = vpop.f32.mrb[0].mxu0
    %v213 = vadd.f32 %v132, %v212
    %v214 = vpop.f32.mrb[0].mxu0
    %215 = vmatprep.mubr.bf16.mxu0 0
    %216 = vmatmul.mubr.bf16.gmra.mrb[0].mxu0 %v173
    %v217 = vpop.f32.mrb[0].mxu0
    %v218 = vadd.f32 %v132, %v217
    %v219 = vpop.f32.mrb[0].mxu0
    %v220 = vpop.f32.mrb[0].mxu0
    %v221 = vadd.f32 %v132, %v220
    %v222 = vpop.f32.mrb[0].mxu0
    %223 = vdwg.mxu0
    %v224 = vld [vmem:[#allocation10] sm:$0xf]
    %v225 = vld [vmem:[#allocation10 + $0x4] sm:$0xf]
    %v226 = vld [vmem:[#allocation10 + $0x8] sm:$0xf]
    %v227 = vld [vmem:[#allocation10 + $0xc] sm:$0xf]
    %v228 = vld [vmem:[#allocation10 + $0x10] sm:$0xf]
    %v229 = vld [vmem:[#allocation10 + $0x14] sm:$0xf]
    %v230 = vld [vmem:[#allocation10 + $0x18] sm:$0xf]
    %v231 = vld [vmem:[#allocation10 + $0x1c] sm:$0xf]
    %v232 = vld [vmem:[#allocation11] sm:$0x1]
    %v234 = vlaneseq
    %v235 = vshrl.u32 %v234, 7
    %v236 = vsub.s32 0, %v235
    %v237 = vrot.slane %v232, %v236
    %v243 = vunpack.c.l.b16 %v107
    %v244 = vunpack.c.l.b16 %v108
    %v245 = vunpack.c.l.b16 %v109
    %v246 = vunpack.c.l.b16 %v110
    %v247 = vpack.c.b16 %v244, %v243
    %v248 = vpack.c.b16 %v246, %v245
    %v257 = vunpack.c.l.b16 %v224
    %v258 = vunpack.c.l.b16 %v225
    %v259 = vunpack.c.l.b16 %v226
    %v260 = vunpack.c.l.b16 %v227
    %v261 = vunpack.c.l.b16 %v228
    %v262 = vunpack.c.l.b16 %v229
    %v263 = vunpack.c.l.b16 %v230
    %v264 = vunpack.c.l.b16 %v231
    %v265 = vpack.c.b16 %v258, %v257
    %v266 = vpack.c.b16 %v260, %v259
    %v267 = vpack.c.b16 %v262, %v261
    %v268 = vpack.c.b16 %v264, %v263
    %v274 = vsel %vm168, %v247, 0
    %v277 = vsel %vm168, %v248, 0
    %279 = vmatprep.subr.bf16.mxu0 0
    %280 = vmatpush1.bf16.msra.mxu0 %v265
    %281 = vmatprep.subr.bf16.mxu0 0
    %282 = vmatpush1.bf16.msra.mxu0 %v266
    %283 = vmatprep.subr.bf16.mxu0 0
    %284 = vmatpush1.bf16.msra.mxu0 %v267
    %285 = vmatprep.subr.bf16.mxu0 0
    %286 = vmatpush1.bf16.msra.mxu0 %v268
    %287 = vmatprep.subr.bf16.mxu0 0
    %288 = vmatpush1.bf16.msra.mxu0 0
    %289 = vmatprep.subr.bf16.mxu0 0
    %290 = vmatpush1.bf16.msra.mxu0 0
    %291 = vmatprep.subr.bf16.mxu0 0
    %292 = vmatpush1.bf16.msra.mxu0 0
    %293 = vmatprep.subr.bf16.mxu0 0
    %294 = vmatpush1.bf16.msra.mxu0 0
    %295 = vmatprep.subr.bf16.mxu0 0
    %296 = vmatpush1.bf16.msra.mxu0 0
    %297 = vmatprep.subr.bf16.mxu0 0
    %298 = vmatpush1.bf16.msra.mxu0 0
    %299 = vmatprep.subr.bf16.mxu0 0
    %300 = vmatpush1.bf16.msra.mxu0 0
    %301 = vmatprep.subr.bf16.mxu0 0
    %302 = vmatpush1.bf16.msra.mxu0 0
    %303 = vmatprep.subr.bf16.mxu0 0
    %304 = vmatpush1.bf16.msra.mxu0 0
    %305 = vmatprep.subr.bf16.mxu0 0
    %306 = vmatpush1.bf16.msra.mxu0 0
    %307 = vmatprep.subr.bf16.mxu0 0
    %308 = vmatpush1.bf16.msra.mxu0 0
    %309 = vmatprep.subr.bf16.mxu0 0
    %310 = vmatpush1.bf16.msra.mxu0 0
    %311 = vmatprep.mubr.bf16.mxu0 0
    %312 = vmatmul.mubr.bf16.gmra.mrb[0].mxu0 %v274
    %v313 = vpop.f32.mrb[0].mxu0
    %v314 = vadd.f32 %v237, %v313
    %v315 = vpop.f32.mrb[0].mxu0
    %v316 = vpop.f32.mrb[0].mxu0
    %v317 = vadd.f32 %v237, %v316
    %v318 = vpop.f32.mrb[0].mxu0
    %319 = vmatprep.mubr.bf16.mxu0 0
    %320 = vmatmul.mubr.bf16.gmra.mrb[0].mxu0 %v277
    %v321 = vpop.f32.mrb[0].mxu0
    %v322 = vadd.f32 %v237, %v321
    %v323 = vpop.f32.mrb[0].mxu0
    %v324 = vpop.f32.mrb[0].mxu0
    %v325 = vadd.f32 %v237, %v324
    %v326 = vpop.f32.mrb[0].mxu0
    %327 = vdwg.mxu0
    %v328 = vpack.c.bf16 %v213, %v210
    %v329 = vpack.c.bf16 %v221, %v218
    %v332 = vunpack.c.l.b16 %v328
    %v333 = vunpack.c.h.b16 %v328
    %v334 = vunpack.c.l.b16 %v329
    %v335 = vunpack.c.h.b16 %v329
    %v336 = vpack.c.b16 %v332, %v332
    %v337 = vpack.c.b16 %v333, %v333
    %v338 = vpack.c.b16 %v334, %v334
    %v339 = vpack.c.b16 %v335, %v335
    %vm344 = vcmask 519168
    %345 = vst.msk [vmem:[#allocation13] sm:$0xf] %vm344, %v336
    %346 = vst.msk [vmem:[#allocation13 + $0x4] sm:$0xf] %vm344, %v337
    %347 = vst.msk [vmem:[#allocation13 + $0x8] sm:$0xf] %vm344, %v338
    %348 = vst.msk [vmem:[#allocation13 + $0xc] sm:$0xf] %vm344, %v339
    %349 = vrot.lane.b32.xlu0 %v336, 64
    %v350 = vpop.permute.xlu0 %349
    %351 = vrot.lane.b32.xlu0 %v337, 64
    %v352 = vpop.permute.xlu0 %351
    %353 = vrot.lane.b32.xlu0 %v338, 64
    %v354 = vpop.permute.xlu0 %353
    %355 = vrot.lane.b32.xlu0 %v339, 64
    %v356 = vpop.permute.xlu0 %355
    %361 = vst.msk [vmem:[#allocation14] sm:$0xf] %vm344, %v350
    %362 = vst.msk [vmem:[#allocation14 + $0x4] sm:$0xf] %vm344, %v352
    %363 = vst.msk [vmem:[#allocation14 + $0x8] sm:$0xf] %vm344, %v354
    %364 = vst.msk [vmem:[#allocation14 + $0xc] sm:$0xf] %vm344, %v356
    %v365 = vpack.c.bf16 %v317, %v314
    %v366 = vpack.c.bf16 %v325, %v322
    %v369 = vunpack.c.l.b16 %v365
    %v370 = vunpack.c.h.b16 %v365
    %v371 = vunpack.c.l.b16 %v366
    %v372 = vunpack.c.h.b16 %v366
    %v373 = vpack.c.b16 %v369, %v369
    %v374 = vpack.c.b16 %v370, %v370
    %v375 = vpack.c.b16 %v371, %v371
    %v376 = vpack.c.b16 %v372, %v372
    %381 = vst.msk [vmem:[#allocation16] sm:$0xf] %vm344, %v373
    %382 = vst.msk [vmem:[#allocation16 + $0x4] sm:$0xf] %vm344, %v374
    %383 = vst.msk [vmem:[#allocation16 + $0x8] sm:$0xf] %vm344, %v375
    %384 = vst.msk [vmem:[#allocation16 + $0xc] sm:$0xf] %vm344, %v376
    // Predicated region
    $region50: #{group_detr_transformer_fwd.23} parent=1 // pred_check
      _
    $region51: #{group_detr_transformer_fwd.23} parent=1 // pred_check_branch
      %386 = sbr.rel (0) target = $region53
    $region52: #{group_detr_transformer_fwd.23} parent=1 // pred_region
      %s388 = ssub.s32 256, 256
      %389 = vsyncadd [#allocation4], %s388
      %s390 = sshll.u32 [#allocation13], 4
      %s391 = int_to_ptr.vmem [resolvable:$true] %s390
      %396 = dma.vmem_to_hbm [thread:$0]  %s391, 256, %s6, [#allocation4], 64, 64, 4
    $region53: #{group_detr_transformer_fwd.23} parent=1 // pred_fallthru
      _
    // Predicated region
    $region54: #{group_detr_transformer_fwd.23} parent=1 // pred_check
      _
    $region55: #{group_detr_transformer_fwd.23} parent=1 // pred_check_branch
      %398 = sbr.rel (0) target = $region57
    $region56: #{group_detr_transformer_fwd.23} parent=1 // pred_region
      %s400 = ssub.s32 256, 256
      %401 = vsyncadd [#allocation15], %s400
      %s402 = sshll.u32 [#allocation14], 4
      %s403 = int_to_ptr.vmem [resolvable:$true] %s402
      %408 = dma.vmem_to_hbm [thread:$0]  %s403, 256, %s7, [#allocation15], 64, 64, 4
    $region57: #{group_detr_transformer_fwd.23} parent=1 // pred_fallthru
      _
    // Predicated region
    $region58: #{group_detr_transformer_fwd.23} parent=1 // pred_check
      _
    $region59: #{group_detr_transformer_fwd.23} parent=1 // pred_check_branch
      %410 = sbr.rel (0) target = $region61
    $region60: #{group_detr_transformer_fwd.23} parent=1 // pred_region
      %s412 = ssub.s32 256, 256
      %413 = vsyncadd [#allocation15], %s412
      %s414 = sshll.u32 [#allocation16], 4
      %s415 = int_to_ptr.vmem [resolvable:$true] %s414
      %420 = dma.vmem_to_hbm [thread:$0]  %s415, 256, %s8, [#allocation15], 64, 64, 4
    $region61: #{group_detr_transformer_fwd.23} parent=1 // pred_fallthru
      _
    // Predicated region
    $region62: #{group_detr_transformer_fwd.23} parent=1 // pred_check
      _
    $region63: #{group_detr_transformer_fwd.23} parent=1 // pred_check_branch
      %422 = sbr.rel (0) target = $region65
    $region64: #{group_detr_transformer_fwd.23} parent=1 // pred_region
      %423 = dma.done [#allocation4], 256
    $region65: #{group_detr_transformer_fwd.23} parent=1 // pred_fallthru
      _
    // Predicated region
    $region66: #{group_detr_transformer_fwd.23} parent=1 // pred_check
      _
    $region67: #{group_detr_transformer_fwd.23} parent=1 // pred_check_branch
      %425 = sbr.rel (0) target = $region69
    $region68: #{group_detr_transformer_fwd.23} parent=1 // pred_region
      %426 = dma.done [#allocation15], 256
    $region69: #{group_detr_transformer_fwd.23} parent=1 // pred_fallthru
      _
    // Predicated region
    $region70: #{group_detr_transformer_fwd.23} parent=1 // pred_check
      _
    $region71: #{group_detr_transformer_fwd.23} parent=1 // pred_check_branch
      %428 = sbr.rel (0) target = $region73
    $region72: #{group_detr_transformer_fwd.23} parent=1 // pred_region
      %429 = dma.done [#allocation15], 256
    $region73: #{group_detr_transformer_fwd.23} parent=1 // pred_fallthru
      _
    %430 = vsyncpa [#allocation3], 1
    %431 = vsyncpa [#allocation6], 1
    %432 = vsyncpa [#allocation9], 1
    %433 = vsyncpa [#allocation12], 1
    %434 = vsyncpa [#allocation4], 1
    %435 = vsyncpa [#allocation15], 1

// kernel: group_detr_transformer_fwd.24
$region0: #{group_detr_transformer_fwd.24}
  #allocation0 [shape = 'u32[]', space=smem, size = 0x4, offset = 0x4, fixed_abs, tag = 'smem constant byte address 0x4 - core index']
  #allocation1 [shape = 'u32[144,128]{1,0:T(1,128)}', space=vmem, size = 0x12000, scoped, tag = 'internal scratch']
  %s0 = inlined_call_operand.hbm [shape: bf16[2,16,64], index: 0, kind: input, shape index: {}]
  %s1 = inlined_call_operand.hbm [shape: bf16[2,16,64], index: 1, kind: input, shape index: {}]
  %s2 = inlined_call_operand.hbm [shape: bf16[2,16,64], index: 2, kind: input, shape index: {}]
  %s3 = inlined_call_operand.hbm [shape: f32[2,1,16], index: 3, kind: input, shape index: {}]
  %s4 = inlined_call_operand.hbm [shape: bf16[2,16,64], index: 4, kind: output, shape index: {}]
  %s5 = sld [smem:[#allocation0]]
  $region65: #{group_detr_transformer_fwd.24} parent=0
    _
  %s7 = ssub.s32 1, %s5
  %s8 = scalar_select 0, %s7, %s5
  $region1: #{group_detr_transformer_fwd.24} parent=0
    #allocation2 [shape = 'u8[8192]{0}', space=vmem, size = 0x2000, scoped, tag = 'input window, operand 0']
    #allocation3 [shape = 's32[2]{0}', space=sflag, size = 0x8, scoped, tag = 'scoped memory for group_detr_transformer_fwd.24']
    #allocation4 [shape = 's32[2]{0}', space=sflag, size = 0x8, scoped, tag = 'scoped memory for group_detr_transformer_fwd.24']
    #allocation5 [shape = 'u8[8192]{0}', space=vmem, size = 0x2000, scoped, tag = 'input window, operand 1']
    #allocation6 [shape = 's32[2]{0}', space=sflag, size = 0x8, scoped, tag = 'scoped memory for group_detr_transformer_fwd.24']
    #allocation7 [shape = 'u8[8192]{0}', space=vmem, size = 0x2000, scoped, tag = 'input window, operand 2']
    #allocation8 [shape = 'u8[1024]{0}', space=vmem, size = 0x400, scoped, tag = 'input window, operand 3']
    #allocation9 [shape = 's32[2]{0}', space=sflag, size = 0x8, scoped, tag = 'scoped memory for group_detr_transformer_fwd.24']
    #allocation10 [shape = 'u8[8192]{0}', space=vmem, size = 0x2000, scoped, tag = 'output window, operand 0']
    %9 = vsyncpa [#allocation3], 0
    %s10 = scalar_lea.sflag [#allocation3], 1
    %11 = vsyncpa %s10, 0
    %12 = vsyncpa [#allocation6], 0
    %s13 = scalar_lea.sflag [#allocation6], 1
    %14 = vsyncpa %s13, 0
    %15 = vsyncpa [#allocation9], 0
    %s16 = scalar_lea.sflag [#allocation9], 1
    %17 = vsyncpa %s16, 0
    %18 = vsyncpa [#allocation4], 0
    %s19 = scalar_lea.sflag [#allocation4], 1
    %20 = vsyncpa %s19, 0
    loop: start=0, step=1, limit=4
    $region2: #{group_detr_transformer_fwd.24} parent=1 // loop_pre_header
      _
    $region3: #{group_detr_transformer_fwd.24} parent=1 // loop_header
      %s22 = sphi 0, %s26
      %p23 = scmp.ge.s32.totalorder %s22, 4
      %s29 = sphi 0, %s41
      %s30 = sphi 0, %s37
      %s31 = sphi 0, %s29
      %s32 = sphi 0, %s30
      %s33 = sphi 0, %s31
      %s34 = sphi 0, %s32
      %s46 = sphi 0, %s48
      %s49 = sphi 0, %s46
      %s50 = sphi 0, %s49
      %s66 = sphi 0, %s50
      %s72 = sphi 0, %s74
      %s75 = sphi 0, %s72
      %s76 = sphi 0, %s75
      %s92 = sphi 0, %s76
      %s98 = sphi 0, %s100
      %s101 = sphi 0, %s98
      %s102 = sphi 0, %s101
      %s118 = sphi 0, %s102
      %s124 = sphi 0, %s126
      %s127 = sphi 0, %s124
      %s128 = sphi 0, %s127
      %s144 = sphi 0, %s128
      %s152 = sphi 0, %s154
      %s155 = sphi 0, %s152
      %s156 = sphi 0, %s155
      %s172 = sphi 0, %s156
    $region4: #{group_detr_transformer_fwd.24} parent=1 // loop_header_branch
      %25 = sbr.rel (%p23) target = $region8
    $region5: #{group_detr_transformer_fwd.24} parent=1 // loop_body
      %s27 = ssub.s32 %s22, 1
      %s28 = ssub.s32 %s22, 2
      %s35 = sadd.s32 1, %s30
      %p36 = scmp.ge.s32.totalorder %s35, 1
      %s37 = scalar_select %p36, 0, %s35
      %s38 = sadd.s32 1, %s29
      %s39 = scalar_select %p36, %s38, %s29
      %p40 = scmp.ge.s32.totalorder %s39, 2
      %s41 = scalar_select %p40, 0, %s39
      %s42 = ssub.s32 %s29, %s41
      %s43 = ssub.s32 %s30, %s37
      %s44 = sor.u32 %s42, %s43
      %p45 = scmp.eq.s32.totalorder %s44, 0
      %s47 = sadd.s32 %s46, 1
      %s48 = scalar_select %p45, %s46, %s47
      %p51 = pneg %p45
      %p52 = scmp.eq.s32.totalorder %s22, 1
      %p53 = por %p51, %p52
      %p54 = scmp.ne.s32.totalorder %s46, %s49
      %p55 = scmp.eq.s32.totalorder %s22, 0
      %p56 = por %p54, %p55
      %p57 = scmp.ne.s32.totalorder %s46, %s49
      %p58 = scmp.eq.s32.totalorder %s27, 1
      %p59 = por %p57, %p58
      %p60 = scmp.ne.s32.totalorder %s49, %s50
      %p61 = scmp.eq.s32.totalorder %s27, 0
      %p62 = por %p60, %p61
      %p63 = scmp.ne.s32.totalorder %s49, %s50
      %p64 = scmp.eq.s32.totalorder %s28, 1
      %p65 = por %p63, %p64
      %p67 = scmp.ne.s32.totalorder %s50, %s66
      %p68 = scmp.eq.s32.totalorder %s28, 0
      %p69 = por %p67, %p68
      %s70 = ssub.s32 %s29, %s41
      %p71 = scmp.eq.s32.totalorder %s70, 0
      %s73 = sadd.s32 %s72, 1
      %s74 = scalar_select %p71, %s72, %s73
      %p77 = pneg %p71
      %p78 = scmp.eq.s32.totalorder %s22, 1
      %p79 = por %p77, %p78
      %p80 = scmp.ne.s32.totalorder %s72, %s75
      %p81 = scmp.eq.s32.totalorder %s22, 0
      %p82 = por %p80, %p81
      %p83 = scmp.ne.s32.totalorder %s72, %s75
      %p84 = scmp.eq.s32.totalorder %s27, 1
      %p85 = por %p83, %p84
      %p86 = scmp.ne.s32.totalorder %s75, %s76
      %p87 = scmp.eq.s32.totalorder %s27, 0
      %p88 = por %p86, %p87
      %p89 = scmp.ne.s32.totalorder %s75, %s76
      %p90 = scmp.eq.s32.totalorder %s28, 1
      %p91 = por %p89, %p90
      %p93 = scmp.ne.s32.totalorder %s76, %s92
      %p94 = scmp.eq.s32.totalorder %s28, 0
      %p95 = por %p93, %p94
      %s96 = ssub.s32 %s29, %s41
      %p97 = scmp.eq.s32.totalorder %s96, 0
      %s99 = sadd.s32 %s98, 1
      %s100 = scalar_select %p97, %s98, %s99
      %p103 = pneg %p97
      %p104 = scmp.eq.s32.totalorder %s22, 1
      %p105 = por %p103, %p104
      %p106 = scmp.ne.s32.totalorder %s98, %s101
      %p107 = scmp.eq.s32.totalorder %s22, 0
      %p108 = por %p106, %p107
      %p109 = scmp.ne.s32.totalorder %s98, %s101
      %p110 = scmp.eq.s32.totalorder %s27, 1
      %p111 = por %p109, %p110
      %p112 = scmp.ne.s32.totalorder %s101, %s102
      %p113 = scmp.eq.s32.totalorder %s27, 0
      %p114 = por %p112, %p113
      %p115 = scmp.ne.s32.totalorder %s101, %s102
      %p116 = scmp.eq.s32.totalorder %s28, 1
      %p117 = por %p115, %p116
      %p119 = scmp.ne.s32.totalorder %s102, %s118
      %p120 = scmp.eq.s32.totalorder %s28, 0
      %p121 = por %p119, %p120
      %s122 = ssub.s32 %s29, %s41
      %p123 = scmp.eq.s32.totalorder %s122, 0
      %s125 = sadd.s32 %s124, 1
      %s126 = scalar_select %p123, %s124, %s125
      %p129 = pneg %p123
      %p130 = scmp.eq.s32.totalorder %s22, 1
      %p131 = por %p129, %p130
      %p132 = scmp.ne.s32.totalorder %s124, %s127
      %p133 = scmp.eq.s32.totalorder %s22, 0
      %p134 = por %p132, %p133
      %p135 = scmp.ne.s32.totalorder %s124, %s127
      %p136 = scmp.eq.s32.totalorder %s27, 1
      %p137 = por %p135, %p136
      %p138 = scmp.ne.s32.totalorder %s127, %s128
      %p139 = scmp.eq.s32.totalorder %s27, 0
      %p140 = por %p138, %p139
      %p141 = scmp.ne.s32.totalorder %s127, %s128
      %p142 = scmp.eq.s32.totalorder %s28, 1
      %p143 = por %p141, %p142
      %p145 = scmp.ne.s32.totalorder %s128, %s144
      %p146 = scmp.eq.s32.totalorder %s28, 0
      %p147 = por %p145, %p146
      %s148 = ssub.s32 %s29, %s41
      %s149 = ssub.s32 %s30, %s37
      %s150 = sor.u32 %s148, %s149
      %p151 = scmp.eq.s32.totalorder %s150, 0
      %s153 = sadd.s32 %s152, 1
      %s154 = scalar_select %p151, %s152, %s153
      %p157 = pneg %p151
      %p158 = scmp.eq.s32.totalorder %s22, 1
      %p159 = por %p157, %p158
      %p160 = scmp.ne.s32.totalorder %s152, %s155
      %p161 = scmp.eq.s32.totalorder %s22, 0
      %p162 = por %p160, %p161
      %p163 = scmp.ne.s32.totalorder %s152, %s155
      %p164 = scmp.eq.s32.totalorder %s27, 1
      %p165 = por %p163, %p164
      %p166 = scmp.ne.s32.totalorder %s155, %s156
      %p167 = scmp.eq.s32.totalorder %s27, 0
      %p168 = por %p166, %p167
      %p169 = scmp.ne.s32.totalorder %s155, %s156
      %p170 = scmp.eq.s32.totalorder %s28, 1
      %p171 = por %p169, %p170
      %p173 = scmp.ne.s32.totalorder %s156, %s172
      %p174 = scmp.eq.s32.totalorder %s28, 0
      %p175 = por %p173, %p174
      %p176 = scmp.le.s32.totalorder 1, %s22
      %p177 = scmp.lt.s32.totalorder %s22, 3
      %p178 = pnand %p176, %p177
      %p179 = pneg %p178
      // Predicated region
      $region9: #{group_detr_transformer_fwd.24} parent=5 // pred_check
        _
      $region10: #{group_detr_transformer_fwd.24} parent=5 // pred_check_branch
        %181 = sbr.rel (%p178) target = $region12
      $region11: #{group_detr_transformer_fwd.24} parent=5 // pred_region
        %s182 = ssub.s32 %s22, 1
      $region12: #{group_detr_transformer_fwd.24} parent=5 // pred_fallthru
        _
      %p183 = scmp.lt.s32.totalorder %s22, 2
      // Predicated region
      $region13: #{group_detr_transformer_fwd.24} parent=5 // pred_check
        %p184 = pneg %p183
      $region14: #{group_detr_transformer_fwd.24} parent=5 // pred_check_branch
        %186 = sbr.rel (%p184) target = $region16
      $region15: #{group_detr_transformer_fwd.24} parent=5 // pred_region
        // Predicated region
        $region17: #{group_detr_transformer_fwd.24} parent=15 // pred_check
          %p187 = pneg %p56
        $region18: #{group_detr_transformer_fwd.24} parent=15 // pred_check_branch
          %189 = sbr.rel (%p187) target = $region20
        $region19: #{group_detr_transformer_fwd.24} parent=15 // pred_region
          %s190 = sand.u32 %s46, 1
          %s191 = scalar_lea.sflag [#allocation3], %s190
          %s192 = sand.u32 %s46, 1
          %s193 = smul.addr %s192, 8
          %s194 = scalar_lea.vmem [#allocation2], %s193
          %s195 = smul.u32 2, %s30
          %s197 = ssub.s32 128, 128
          %198 = vsyncadd %s191, %s197
          %s199 = smul.addr %s29, 2
          %s200 = sadd.s32 %s195, %s199
          %s201 = smul.addr %s200, 64
          %s202 = scalar_lea.hbm %s0, %s201
          %s203 = sshll.u32 %s194, 4
          %s204 = int_to_ptr.vmem [resolvable:$true] %s203
          %209 = dma.hbm_to_vmem [thread:$0]  %s202, 128, %s204, %s191, 64, 64, 4
        $region20: #{group_detr_transformer_fwd.24} parent=15 // pred_fallthru
          _
        // Predicated region
        $region21: #{group_detr_transformer_fwd.24} parent=15 // pred_check
          %p210 = pneg %p82
        $region22: #{group_detr_transformer_fwd.24} parent=15 // pred_check_branch
          %212 = sbr.rel (%p210) target = $region24
        $region23: #{group_detr_transformer_fwd.24} parent=15 // pred_region
          %s213 = sand.u32 %s22, 1
          %s214 = scalar_lea.sflag [#allocation6], %s213
          %s215 = sand.u32 %s72, 1
          %s216 = smul.addr %s215, 8
          %s217 = scalar_lea.vmem [#allocation5], %s216
          %s219 = ssub.s32 128, 128
          %220 = vsyncadd %s214, %s219
          %s221 = smul.addr %s29, 2
          %s222 = smul.addr %s221, 64
          %s223 = scalar_lea.hbm %s1, %s222
          %s224 = sshll.u32 %s217, 4
          %s225 = int_to_ptr.vmem [resolvable:$true] %s224
          %230 = dma.hbm_to_vmem [thread:$0]  %s223, 128, %s225, %s214, 64, 64, 4
        $region24: #{group_detr_transformer_fwd.24} parent=15 // pred_fallthru
          _
        // Predicated region
        $region25: #{group_detr_transformer_fwd.24} parent=15 // pred_check
          %p231 = pneg %p108
        $region26: #{group_detr_transformer_fwd.24} parent=15 // pred_check_branch
          %233 = sbr.rel (%p231) target = $region28
        $region27: #{group_detr_transformer_fwd.24} parent=15 // pred_region
          %s234 = sand.u32 %s22, 1
          %s235 = scalar_lea.sflag [#allocation6], %s234
          %s236 = sand.u32 %s98, 1
          %s237 = smul.addr %s236, 8
          %s238 = scalar_lea.vmem [#allocation7], %s237
          %s240 = ssub.s32 128, 128
          %241 = vsyncadd %s235, %s240
          %s242 = smul.addr %s29, 2
          %s243 = smul.addr %s242, 64
          %s244 = scalar_lea.hbm %s2, %s243
          %s245 = sshll.u32 %s238, 4
          %s246 = int_to_ptr.vmem [resolvable:$true] %s245
          %251 = dma.hbm_to_vmem [thread:$0]  %s244, 128, %s246, %s235, 64, 64, 4
        $region28: #{group_detr_transformer_fwd.24} parent=15 // pred_fallthru
          _
        // Predicated region
        $region29: #{group_detr_transformer_fwd.24} parent=15 // pred_check
          %p252 = pneg %p134
        $region30: #{group_detr_transformer_fwd.24} parent=15 // pred_check_branch
          %254 = sbr.rel (%p252) target = $region32
        $region31: #{group_detr_transformer_fwd.24} parent=15 // pred_region
          %s255 = sand.u32 %s124, 1
          %s256 = scalar_lea.sflag [#allocation9], %s255
          %s257 = sand.u32 %s124, 1
          %s258 = scalar_lea.vmem [#allocation8], %s257
          %s260 = ssub.s32 16, 16
          %261 = vsyncadd %s256, %s260
          %s262 = smul.addr %s29, 16
          %s263 = scalar_lea.hbm %s3, %s262
          %s265 = sshll.u32 %s258, 4
          %s266 = int_to_ptr.vmem [resolvable:$true] %s265
          %268 = dma.hbm_to_vmem [thread:$0]  %s263, 16, %s266, %s256
        $region32: #{group_detr_transformer_fwd.24} parent=15 // pred_fallthru
          _
      $region16: #{group_detr_transformer_fwd.24} parent=5 // pred_fallthru
        _
      %p269 = scmp.le.s32.totalorder 1, %s22
      %p270 = scmp.lt.s32.totalorder %s22, 3
      %p271 = pnand %p269, %p270
      %p272 = pneg %p271
      // Predicated region
      $region33: #{group_detr_transformer_fwd.24} parent=5 // pred_check
        _
      $region34: #{group_detr_transformer_fwd.24} parent=5 // pred_check_branch
        %274 = sbr.rel (%p271) target = $region36
      $region35: #{group_detr_transformer_fwd.24} parent=5 // pred_region
        %s275 = ssub.s32 %s22, 1
        %s276 = sand.u32 %s49, 1
        %s277 = scalar_lea.sflag [#allocation3], %s276
        %s278 = sand.u32 %s49, 1
        %s279 = smul.addr %s278, 8
        %s280 = scalar_lea.vmem [#allocation2], %s279
        // Predicated region
        $region37: #{group_detr_transformer_fwd.24} parent=35 // pred_check
          %p281 = pneg %p62
        $region38: #{group_detr_transformer_fwd.24} parent=35 // pred_check_branch
          %283 = sbr.rel (%p281) target = $region40
        $region39: #{group_detr_transformer_fwd.24} parent=35 // pred_region
          %284 = dma.done %s277, 128
        $region40: #{group_detr_transformer_fwd.24} parent=35 // pred_fallthru
          _
        %s285 = sand.u32 %s27, 1
        %s286 = scalar_lea.sflag [#allocation6], %s285
        %s287 = sand.u32 %s75, 1
        %s288 = smul.addr %s287, 8
        %s289 = scalar_lea.vmem [#allocation5], %s288
        // Predicated region
        $region41: #{group_detr_transformer_fwd.24} parent=35 // pred_check
          %p290 = pneg %p88
        $region42: #{group_detr_transformer_fwd.24} parent=35 // pred_check_branch
          %292 = sbr.rel (%p290) target = $region44
        $region43: #{group_detr_transformer_fwd.24} parent=35 // pred_region
          %293 = dma.done %s286, 128
        $region44: #{group_detr_transformer_fwd.24} parent=35 // pred_fallthru
          _
        %s294 = sand.u32 %s27, 1
        %s295 = scalar_lea.sflag [#allocation6], %s294
        %s296 = sand.u32 %s101, 1
        %s297 = smul.addr %s296, 8
        %s298 = scalar_lea.vmem [#allocation7], %s297
        // Predicated region
        $region45: #{group_detr_transformer_fwd.24} parent=35 // pred_check
          %p299 = pneg %p114
        $region46: #{group_detr_transformer_fwd.24} parent=35 // pred_check_branch
          %301 = sbr.rel (%p299) target = $region48
        $region47: #{group_detr_transformer_fwd.24} parent=35 // pred_region
          %302 = dma.done %s295, 128
        $region48: #{group_detr_transformer_fwd.24} parent=35 // pred_fallthru
          _
        %s303 = sand.u32 %s127, 1
        %s304 = scalar_lea.sflag [#allocation9], %s303
        %s305 = sand.u32 %s127, 1
        %s306 = scalar_lea.vmem [#allocation8], %s305
        // Predicated region
        $region49: #{group_detr_transformer_fwd.24} parent=35 // pred_check
          %p307 = pneg %p140
        $region50: #{group_detr_transformer_fwd.24} parent=35 // pred_check_branch
          %309 = sbr.rel (%p307) target = $region52
        $region51: #{group_detr_transformer_fwd.24} parent=35 // pred_region
          %310 = dma.done %s304, 16
        $region52: #{group_detr_transformer_fwd.24} parent=35 // pred_fallthru
          _
        %s311 = sand.u32 %s49, 1
        %s312 = scalar_lea.sflag [#allocation3], %s311
        %s313 = sand.u32 %s49, 1
        %s314 = smul.addr %s313, 8
        %s315 = scalar_lea.vmem [#allocation2], %s314
        %p316 = pneg %p62
        %p317 = pneg %p59
        %s318 = sand.u32 %s27, 1
        %s319 = scalar_lea.sflag [#allocation6], %s318
        %s320 = sand.u32 %s75, 1
        %s321 = smul.addr %s320, 8
        %s322 = scalar_lea.vmem [#allocation5], %s321
        %p323 = pneg %p88
        %p324 = pneg %p85
        %s325 = sand.u32 %s27, 1
        %s326 = scalar_lea.sflag [#allocation6], %s325
        %s327 = sand.u32 %s101, 1
        %s328 = smul.addr %s327, 8
        %s329 = scalar_lea.vmem [#allocation7], %s328
        %p330 = pneg %p114
        %p331 = pneg %p111
        %s332 = sand.u32 %s127, 1
        %s333 = scalar_lea.sflag [#allocation9], %s332
        %s334 = sand.u32 %s127, 1
        %s335 = scalar_lea.vmem [#allocation8], %s334
        %p336 = pneg %p140
        %p337 = pneg %p137
        %p338 = pneg %p168
        %p339 = pneg %p165
        %s340 = sand.u32 %s155, 1
        %s341 = scalar_lea.sflag [#allocation4], %s340
        %s342 = sand.u32 %s155, 1
        %s343 = smul.addr %s342, 8
        %s344 = scalar_lea.vmem [#allocation10], %s343
        %s345 = smul.u32 2, %s32
        %s346 = smul.u32 2, %s32
        %v348 = vld [vmem:[%s280] sm:$0xf]
        %v349 = vld [vmem:[%s280 + $0x4] sm:$0xf]
        %v350 = vld [vmem:[%s289] sm:$0xf]
        %v351 = vld [vmem:[%s289 + $0x4] sm:$0xf]
        %v352 = vld [vmem:[%s298] sm:$0xf]
        %v353 = vld [vmem:[%s298 + $0x4] sm:$0xf]
        %v354 = vld [vmem:[%s306] sm:$0x1]
        %v355 = vmul.f32 %v354, -1e+09
        %v357 = vlaneseq
        %v358 = vshrl.u32 %v357, 7
        %v359 = vsub.s32 0, %v358
        %v360 = vrot.slane %v355, %v359
        %v364 = vunpack.c.l.b16 %v348
        %v365 = vunpack.c.l.b16 %v349
        %v366 = vpack.c.b16 %v365, %v364
        %v369 = vunpack.c.l.b16 %v350
        %v370 = vunpack.c.l.b16 %v351
        %v371 = vpack.c.b16 %v370, %v369
        %vm372 = vcmask 130048
        %v374 = vsel %vm372, %v366, 0
        %v377 = vsel %vm372, %v371, 0
        %379 = vmatprep.subr.bf16.mxu0 0
        %380 = vmatpush1.bf16.xpose.msra.mxu0 %v377
        %381 = vmatprep.subr.bf16.mxu0 0
        %382 = vmatpush1.bf16.xpose.msra.mxu0 0
        %383 = vmatprep.subr.bf16.mxu0 0
        %384 = vmatpush1.bf16.xpose.msra.mxu0 0
        %385 = vmatprep.subr.bf16.mxu0 0
        %386 = vmatpush1.bf16.xpose.msra.mxu0 0
        %387 = vmatprep.subr.bf16.mxu0 0
        %388 = vmatpush1.bf16.xpose.msra.mxu0 0
        %389 = vmatprep.subr.bf16.mxu0 0
        %390 = vmatpush1.bf16.xpose.msra.mxu0 0
        %391 = vmatprep.subr.bf16.mxu0 0
        %392 = vmatpush1.bf16.xpose.msra.mxu0 0
        %393 = vmatprep.subr.bf16.mxu0 0
        %394 = vmatpush1.bf16.xpose.msra.mxu0 0
        %395 = vmatprep.subr.bf16.mxu0 0
        %396 = vmatpush1.bf16.xpose.msra.mxu0 0
        %397 = vmatprep.subr.bf16.mxu0 0
        %398 = vmatpush1.bf16.xpose.msra.mxu0 0
        %399 = vmatprep.subr.bf16.mxu0 0
        %400 = vmatpush1.bf16.xpose.msra.mxu0 0
        %401 = vmatprep.subr.bf16.mxu0 0
        %402 = vmatpush1.bf16.xpose.msra.mxu0 0
        %403 = vmatprep.subr.bf16.mxu0 0
        %404 = vmatpush1.bf16.xpose.msra.mxu0 0
        %405 = vmatprep.subr.bf16.mxu0 0
        %406 = vmatpush1.bf16.xpose.msra.mxu0 0
        %407 = vmatprep.subr.bf16.mxu0 0
        %408 = vmatpush1.bf16.xpose.msra.mxu0 0
        %409 = vmatprep.subr.bf16.mxu0 0
        %410 = vmatpush1.bf16.xpose.msra.mxu0 0
        %411 = vmatprep.mubr.bf16.mxu0 0
        %412 = vmatmul.mubr.bf16.gmra.mrb[0].mxu0 %v374
        %v413 = vpop.f32.mrb[0].mxu0
        %v414 = vadd.f32 %v360, %v413
        %v415 = vpop.f32.mrb[0].mxu0
        %v416 = vpop.f32.mrb[0].mxu0
        %v417 = vadd.f32 %v360, %v416
        %v418 = vpop.f32.mrb[0].mxu0
        %419 = vdwg.mxu0
        %v420 = vsel %vm372, %v414, -inf
        %421 = vmax.xlane.f32.xlu0 %v420
        %v422 = vpop.xlane.xlu0 %421
        %v423 = vsel %vm372, %v417, -inf
        %424 = vmax.xlane.f32.xlu0 %v423
        %v425 = vpop.xlane.xlu0 %424
        %v426 = vsub.f32 %v414, %v422
        %v427 = vsub.f32 %v417, %v425
        %v428 = vmul.f32 %v426, 1.442695
        %v429 = vpow.pop %v428
        %v430 = vmul.f32 %v427, 1.442695
        %v431 = vpow.pop %v430
        %v432 = vsel %vm372, %v429, 0.0
        %433 = vadd.xlane.f32.xlu0 %v432
        %v434 = vpop.xlane.xlu0 %433
        %v435 = vsel %vm372, %v431, 0.0
        %436 = vadd.xlane.f32.xlu0 %v435
        %v437 = vpop.xlane.xlu0 %436
        %v438 = vrcp.pop %v434
        %v439 = vrcp.pop %v437
        %v440 = vmul.f32 %v429, %v438
        %v441 = vmul.f32 %v431, %v439
        %v442 = vpack.c.bf16 %v441, %v440
        %v445 = vunpack.c.l.b16 %v352
        %v446 = vunpack.c.l.b16 %v353
        %v447 = vpack.c.b16 %v446, %v445
        %v450 = vsel %vm372, %v442, 0
        %452 = vmatprep.subr.bf16.mxu0 0
        %453 = vmatpush1.bf16.msra.mxu0 %v447
        %454 = vmatprep.subr.bf16.mxu0 0
        %455 = vmatpush1.bf16.msra.mxu0 0
        %456 = vmatprep.subr.bf16.mxu0 0
        %457 = vmatpush1.bf16.msra.mxu0 0
        %458 = vmatprep.subr.bf16.mxu0 0
        %459 = vmatpush1.bf16.msra.mxu0 0
        %460 = vmatprep.subr.bf16.mxu0 0
        %461 = vmatpush1.bf16.msra.mxu0 0
        %462 = vmatprep.subr.bf16.mxu0 0
        %463 = vmatpush1.bf16.msra.mxu0 0
        %464 = vmatprep.subr.bf16.mxu0 0
        %465 = vmatpush1.bf16.msra.mxu0 0
        %466 = vmatprep.subr.bf16.mxu0 0
        %467 = vmatpush1.bf16.msra.mxu0 0
        %468 = vmatprep.subr.bf16.mxu0 0
        %469 = vmatpush1.bf16.msra.mxu0 0
        %470 = vmatprep.subr.bf16.mxu0 0
        %471 = vmatpush1.bf16.msra.mxu0 0
        %472 = vmatprep.subr.bf16.mxu0 0
        %473 = vmatpush1.bf16.msra.mxu0 0
        %474 = vmatprep.subr.bf16.mxu0 0
        %475 = vmatpush1.bf16.msra.mxu0 0
        %476 = vmatprep.subr.bf16.mxu0 0
        %477 = vmatpush1.bf16.msra.mxu0 0
        %478 = vmatprep.subr.bf16.mxu0 0
        %479 = vmatpush1.bf16.msra.mxu0 0
        %480 = vmatprep.subr.bf16.mxu0 0
        %481 = vmatpush1.bf16.msra.mxu0 0
        %482 = vmatprep.subr.bf16.mxu0 0
        %483 = vmatpush1.bf16.msra.mxu0 0
        %484 = vmatprep.mubr.bf16.mxu0 0
        %485 = vmatmul.mubr.bf16.gmra.mrb[0].mxu0 %v450
        %v486 = vpop.f32.mrb[0].mxu0
        %v487 = vadd.f32 0.0, %v486
        %v488 = vpop.f32.mrb[0].mxu0
        %v489 = vpop.f32.mrb[0].mxu0
        %v490 = vadd.f32 0.0, %v489
        %v491 = vpop.f32.mrb[0].mxu0
        %492 = vdwg.mxu0
        %v493 = vpack.c.bf16 %v490, %v487
        %v495 = vunpack.c.l.b16 %v493
        %v496 = vunpack.c.h.b16 %v493
        %v497 = vpack.c.b16 %v495, %v495
        %v498 = vpack.c.b16 %v496, %v496
        %vm501 = vcmask 125952
        %502 = vst.msk [vmem:[%s344] sm:$0xf] %vm501, %v497
        %503 = vst.msk [vmem:[%s344 + $0x4] sm:$0xf] %vm501, %v498
        %504 = vrot.lane.b32.xlu0 %v366, 112
        %v505 = vpop.permute.xlu0 %504
        %506 = vrot.lane.b32.xlu0 %v371, 112
        %v507 = vpop.permute.xlu0 %506
        %v509 = vsel %vm372, %v505, 0
        %v512 = vsel %vm372, %v507, 0
        %514 = vmatprep.subr.bf16.mxu0 0
        %515 = vmatpush1.bf16.xpose.msra.mxu0 %v512
        %516 = vmatprep.subr.bf16.mxu0 0
        %517 = vmatpush1.bf16.xpose.msra.mxu0 0
        %518 = vmatprep.subr.bf16.mxu0 0
        %519 = vmatpush1.bf16.xpose.msra.mxu0 0
        %520 = vmatprep.subr.bf16.mxu0 0
        %521 = vmatpush1.bf16.xpose.msra.mxu0 0
        %522 = vmatprep.subr.bf16.mxu0 0
        %523 = vmatpush1.bf16.xpose.msra.mxu0 0
        %524 = vmatprep.subr.bf16.mxu0 0
        %525 = vmatpush1.bf16.xpose.msra.mxu0 0
        %526 = vmatprep.subr.bf16.mxu0 0
        %527 = vmatpush1.bf16.xpose.msra.mxu0 0
        %528 = vmatprep.subr.bf16.mxu0 0
        %529 = vmatpush1.bf16.xpose.msra.mxu0 0
        %530 = vmatprep.subr.bf16.mxu0 0
        %531 = vmatpush1.bf16.xpose.msra.mxu0 0
        %532 = vmatprep.subr.bf16.mxu0 0
        %533 = vmatpush1.bf16.xpose.msra.mxu0 0
        %534 = vmatprep.subr.bf16.mxu0 0
        %535 = vmatpush1.bf16.xpose.msra.mxu0 0
        %536 = vmatprep.subr.bf16.mxu0 0
        %537 = vmatpush1.bf16.xpose.msra.mxu0 0
        %538 = vmatprep.subr.bf16.mxu0 0
        %539 = vmatpush1.bf16.xpose.msra.mxu0 0
        %540 = vmatprep.subr.bf16.mxu0 0
        %541 = vmatpush1.bf16.xpose.msra.mxu0 0
        %542 = vmatprep.subr.bf16.mxu0 0
        %543 = vmatpush1.bf16.xpose.msra.mxu0 0
        %544 = vmatprep.subr.bf16.mxu0 0
        %545 = vmatpush1.bf16.xpose.msra.mxu0 0
        %546 = vmatprep.mubr.bf16.mxu0 0
        %547 = vmatmul.mubr.bf16.gmra.mrb[0].mxu0 %v509
        %v548 = vpop.f32.mrb[0].mxu0
        %v549 = vadd.f32 %v360, %v548
        %v550 = vpop.f32.mrb[0].mxu0
        %v551 = vpop.f32.mrb[0].mxu0
        %v552 = vadd.f32 %v360, %v551
        %v553 = vpop.f32.mrb[0].mxu0
        %554 = vdwg.mxu0
        %v555 = vsel %vm372, %v549, -inf
        %556 = vmax.xlane.f32.xlu0 %v555
        %v557 = vpop.xlane.xlu0 %556
        %v558 = vsel %vm372, %v552, -inf
        %559 = vmax.xlane.f32.xlu0 %v558
        %v560 = vpop.xlane.xlu0 %559
        %v561 = vsub.f32 %v549, %v557
        %v562 = vsub.f32 %v552, %v560
        %v563 = vmul.f32 %v561, 1.442695
        %v564 = vpow.pop %v563
        %v565 = vmul.f32 %v562, 1.442695
        %v566 = vpow.pop %v565
        %v567 = vsel %vm372, %v564, 0.0
        %568 = vadd.xlane.f32.xlu0 %v567
        %v569 = vpop.xlane.xlu0 %568
        %v570 = vsel %vm372, %v566, 0.0
        %571 = vadd.xlane.f32.xlu0 %v570
        %v572 = vpop.xlane.xlu0 %571
        %v573 = vrcp.pop %v569
        %v574 = vrcp.pop %v572
        %v575 = vmul.f32 %v564, %v573
        %v576 = vmul.f32 %v566, %v574
        %v577 = vpack.c.bf16 %v576, %v575
        %578 = vrot.lane.b32.xlu0 %v447, 112
        %v579 = vpop.permute.xlu0 %578
        %v582 = vsel %vm372, %v577, 0
        %584 = vmatprep.subr.bf16.mxu0 0
        %585 = vmatpush1.bf16.msra.mxu0 %v579
        %586 = vmatprep.subr.bf16.mxu0 0
        %587 = vmatpush1.bf16.msra.mxu0 0
        %588 = vmatprep.subr.bf16.mxu0 0
        %589 = vmatpush1.bf16.msra.mxu0 0
        %590 = vmatprep.subr.bf16.mxu0 0
        %591 = vmatpush1.bf16.msra.mxu0 0
        %592 = vmatprep.subr.bf16.mxu0 0
        %593 = vmatpush1.bf16.msra.mxu0 0
        %594 = vmatprep.subr.bf16.mxu0 0
        %595 = vmatpush1.bf16.msra.mxu0 0
        %596 = vmatprep.subr.bf16.mxu0 0
        %597 = vmatpush1.bf16.msra.mxu0 0
        %598 = vmatprep.subr.bf16.mxu0 0
        %599 = vmatpush1.bf16.msra.mxu0 0
        %600 = vmatprep.subr.bf16.mxu0 0
        %601 = vmatpush1.bf16.msra.mxu0 0
        %602 = vmatprep.subr.bf16.mxu0 0
        %603 = vmatpush1.bf16.msra.mxu0 0
        %604 = vmatprep.subr.bf16.mxu0 0
        %605 = vmatpush1.bf16.msra.mxu0 0
        %606 = vmatprep.subr.bf16.mxu0 0
        %607 = vmatpush1.bf16.msra.mxu0 0
        %608 = vmatprep.subr.bf16.mxu0 0
        %609 = vmatpush1.bf16.msra.mxu0 0
        %610 = vmatprep.subr.bf16.mxu0 0
        %611 = vmatpush1.bf16.msra.mxu0 0
        %612 = vmatprep.subr.bf16.mxu0 0
        %613 = vmatpush1.bf16.msra.mxu0 0
        %614 = vmatprep.subr.bf16.mxu0 0
        %615 = vmatpush1.bf16.msra.mxu0 0
        %616 = vmatprep.mubr.bf16.mxu0 0
        %617 = vmatmul.mubr.bf16.gmra.mrb[0].mxu0 %v582
        %v618 = vpop.f32.mrb[0].mxu0
        %v619 = vadd.f32 0.0, %v618
        %v620 = vpop.f32.mrb[0].mxu0
        %v621 = vpop.f32.mrb[0].mxu0
        %v622 = vadd.f32 0.0, %v621
        %v623 = vpop.f32.mrb[0].mxu0
        %624 = vdwg.mxu0
        %v625 = vpack.c.bf16 %v622, %v619
        %v627 = vunpack.c.l.b16 %v625
        %v628 = vunpack.c.h.b16 %v625
        %v629 = vpack.c.b16 %v627, %v627
        %v630 = vpack.c.b16 %v628, %v628
        %631 = vrot.lane.b32.xlu0 %v629, 16
        %v632 = vpop.permute.xlu0 %631
        %633 = vrot.lane.b32.xlu0 %v630, 16
        %v634 = vpop.permute.xlu0 %633
        %vm637 = vcmask 257152
        %638 = vst.msk [vmem:[%s344] sm:$0xf] %vm637, %v632
        %639 = vst.msk [vmem:[%s344 + $0x4] sm:$0xf] %vm637, %v634
        %640 = vrot.lane.b32.xlu0 %v366, 96
        %v641 = vpop.permute.xlu0 %640
        %642 = vrot.lane.b32.xlu0 %v371, 96
        %v643 = vpop.permute.xlu0 %642
        %v645 = vsel %vm372, %v641, 0
        %v648 = vsel %vm372, %v643, 0
        %650 = vmatprep.subr.bf16.mxu0 0
        %651 = vmatpush1.bf16.xpose.msra.mxu0 %v648
        %652 = vmatprep.subr.bf16.mxu0 0
        %653 = vmatpush1.bf16.xpose.msra.mxu0 0
        %654 = vmatprep.subr.bf16.mxu0 0
        %655 = vmatpush1.bf16.xpose.msra.mxu0 0
        %656 = vmatprep.subr.bf16.mxu0 0
        %657 = vmatpush1.bf16.xpose.msra.mxu0 0
        %658 = vmatprep.subr.bf16.mxu0 0
        %659 = vmatpush1.bf16.xpose.msra.mxu0 0
        %660 = vmatprep.subr.bf16.mxu0 0
        %661 = vmatpush1.bf16.xpose.msra.mxu0 0
        %662 = vmatprep.subr.bf16.mxu0 0
        %663 = vmatpush1.bf16.xpose.msra.mxu0 0
        %664 = vmatprep.subr.bf16.mxu0 0
        %665 = vmatpush1.bf16.xpose.msra.mxu0 0
        %666 = vmatprep.subr.bf16.mxu0 0
        %667 = vmatpush1.bf16.xpose.msra.mxu0 0
        %668 = vmatprep.subr.bf16.mxu0 0
        %669 = vmatpush1.bf16.xpose.msra.mxu0 0
        %670 = vmatprep.subr.bf16.mxu0 0
        %671 = vmatpush1.bf16.xpose.msra.mxu0 0
        %672 = vmatprep.subr.bf16.mxu0 0
        %673 = vmatpush1.bf16.xpose.msra.mxu0 0
        %674 = vmatprep.subr.bf16.mxu0 0
        %675 = vmatpush1.bf16.xpose.msra.mxu0 0
        %676 = vmatprep.subr.bf16.mxu0 0
        %677 = vmatpush1.bf16.xpose.msra.mxu0 0
        %678 = vmatprep.subr.bf16.mxu0 0
        %679 = vmatpush1.bf16.xpose.msra.mxu0 0
        %680 = vmatprep.subr.bf16.mxu0 0
        %681 = vmatpush1.bf16.xpose.msra.mxu0 0
        %682 = vmatprep.mubr.bf16.mxu0 0
        %683 = vmatmul.mubr.bf16.gmra.mrb[0].mxu0 %v645
        %v684 = vpop.f32.mrb[0].mxu0
        %v685 = vadd.f32 %v360, %v684
        %v686 = vpop.f32.mrb[0].mxu0
        %v687 = vpop.f32.mrb[0].mxu0
        %v688 = vadd.f32 %v360, %v687
        %v689 = vpop.f32.mrb[0].mxu0
        %690 = vdwg.mxu0
        %v691 = vsel %vm372, %v685, -inf
        %692 = vmax.xlane.f32.xlu0 %v691
        %v693 = vpop.xlane.xlu0 %692
        %v694 = vsel %vm372, %v688, -inf
        %695 = vmax.xlane.f32.xlu0 %v694
        %v696 = vpop.xlane.xlu0 %695
        %v697 = vsub.f32 %v685, %v693
        %v698 = vsub.f32 %v688, %v696
        %v699 = vmul.f32 %v697, 1.442695
        %v700 = vpow.pop %v699
        %v701 = vmul.f32 %v698, 1.442695
        %v702 = vpow.pop %v701
        %v703 = vsel %vm372, %v700, 0.0
        %704 = vadd.xlane.f32.xlu0 %v703
        %v705 = vpop.xlane.xlu0 %704
        %v706 = vsel %vm372, %v702, 0.0
        %707 = vadd.xlane.f32.xlu0 %v706
        %v708 = vpop.xlane.xlu0 %707
        %v709 = vrcp.pop %v705
        %v710 = vrcp.pop %v708
        %v711 = vmul.f32 %v700, %v709
        %v712 = vmul.f32 %v702, %v710
        %v713 = vpack.c.bf16 %v712, %v711
        %714 = vrot.lane.b32.xlu0 %v447, 96
        %v715 = vpop.permute.xlu0 %714
        %v718 = vsel %vm372, %v713, 0
        %720 = vmatprep.subr.bf16.mxu0 0
        %721 = vmatpush1.bf16.msra.mxu0 %v715
        %722 = vmatprep.subr.bf16.mxu0 0
        %723 = vmatpush1.bf16.msra.mxu0 0
        %724 = vmatprep.subr.bf16.mxu0 0
        %725 = vmatpush1.bf16.msra.mxu0 0
        %726 = vmatprep.subr.bf16.mxu0 0
        %727 = vmatpush1.bf16.msra.mxu0 0
        %728 = vmatprep.subr.bf16.mxu0 0
        %729 = vmatpush1.bf16.msra.mxu0 0
        %730 = vmatprep.subr.bf16.mxu0 0
        %731 = vmatpush1.bf16.msra.mxu0 0
        %732 = vmatprep.subr.bf16.mxu0 0
        %733 = vmatpush1.bf16.msra.mxu0 0
        %734 = vmatprep.subr.bf16.mxu0 0
        %735 = vmatpush1.bf16.msra.mxu0 0
        %736 = vmatprep.subr.bf16.mxu0 0
        %737 = vmatpush1.bf16.msra.mxu0 0
        %738 = vmatprep.subr.bf16.mxu0 0
        %739 = vmatpush1.bf16.msra.mxu0 0
        %740 = vmatprep.subr.bf16.mxu0 0
        %741 = vmatpush1.bf16.msra.mxu0 0
        %742 = vmatprep.subr.bf16.mxu0 0
        %743 = vmatpush1.bf16.msra.mxu0 0
        %744 = vmatprep.subr.bf16.mxu0 0
        %745 = vmatpush1.bf16.msra.mxu0 0
        %746 = vmatprep.subr.bf16.mxu0 0
        %747 = vmatpush1.bf16.msra.mxu0 0
        %748 = vmatprep.subr.bf16.mxu0 0
        %749 = vmatpush1.bf16.msra.mxu0 0
        %750 = vmatprep.subr.bf16.mxu0 0
        %751 = vmatpush1.bf16.msra.mxu0 0
        %752 = vmatprep.mubr.bf16.mxu0 0
        %753 = vmatmul.mubr.bf16.gmra.mrb[0].mxu0 %v718
        %v754 = vpop.f32.mrb[0].mxu0
        %v755 = vadd.f32 0.0, %v754
        %v756 = vpop.f32.mrb[0].mxu0
        %v757 = vpop.f32.mrb[0].mxu0
        %v758 = vadd.f32 0.0, %v757
        %v759 = vpop.f32.mrb[0].mxu0
        %760 = vdwg.mxu0
        %v761 = vpack.c.bf16 %v758, %v755
        %v763 = vunpack.c.l.b16 %v761
        %v764 = vunpack.c.h.b16 %v761
        %v765 = vpack.c.b16 %v763, %v763
        %v766 = vpack.c.b16 %v764, %v764
        %767 = vrot.lane.b32.xlu0 %v765, 32
        %v768 = vpop.permute.xlu0 %767
        %769 = vrot.lane.b32.xlu0 %v766, 32
        %v770 = vpop.permute.xlu0 %769
        %vm773 = vcmask 388352
        %774 = vst.msk [vmem:[%s344] sm:$0xf] %vm773, %v768
        %775 = vst.msk [vmem:[%s344 + $0x4] sm:$0xf] %vm773, %v770
        %776 = vrot.lane.b32.xlu0 %v366, 80
        %v777 = vpop.permute.xlu0 %776
        %778 = vrot.lane.b32.xlu0 %v371, 80
        %v779 = vpop.permute.xlu0 %778
        %v781 = vsel %vm372, %v777, 0
        %v784 = vsel %vm372, %v779, 0
        %786 = vmatprep.subr.bf16.mxu0 0
        %787 = vmatpush1.bf16.xpose.msra.mxu0 %v784
        %788 = vmatprep.subr.bf16.mxu0 0
        %789 = vmatpush1.bf16.xpose.msra.mxu0 0
        %790 = vmatprep.subr.bf16.mxu0 0
        %791 = vmatpush1.bf16.xpose.msra.mxu0 0
        %792 = vmatprep.subr.bf16.mxu0 0
        %793 = vmatpush1.bf16.xpose.msra.mxu0 0
        %794 = vmatprep.subr.bf16.mxu0 0
        %795 = vmatpush1.bf16.xpose.msra.mxu0 0
        %796 = vmatprep.subr.bf16.mxu0 0
        %797 = vmatpush1.bf16.xpose.msra.mxu0 0
        %798 = vmatprep.subr.bf16.mxu0 0
        %799 = vmatpush1.bf16.xpose.msra.mxu0 0
        %800 = vmatprep.subr.bf16.mxu0 0
        %801 = vmatpush1.bf16.xpose.msra.mxu0 0
        %802 = vmatprep.subr.bf16.mxu0 0
        %803 = vmatpush1.bf16.xpose.msra.mxu0 0
        %804 = vmatprep.subr.bf16.mxu0 0
        %805 = vmatpush1.bf16.xpose.msra.mxu0 0
        %806 = vmatprep.subr.bf16.mxu0 0
        %807 = vmatpush1.bf16.xpose.msra.mxu0 0
        %808 = vmatprep.subr.bf16.mxu0 0
        %809 = vmatpush1.bf16.xpose.msra.mxu0 0
        %810 = vmatprep.subr.bf16.mxu0 0
        %811 = vmatpush1.bf16.xpose.msra.mxu0 0
        %812 = vmatprep.subr.bf16.mxu0 0
        %813 = vmatpush1.bf16.xpose.msra.mxu0 0
        %814 = vmatprep.subr.bf16.mxu0 0
        %815 = vmatpush1.bf16.xpose.msra.mxu0 0
        %816 = vmatprep.subr.bf16.mxu0 0
        %817 = vmatpush1.bf16.xpose.msra.mxu0 0
        %818 = vmatprep.mubr.bf16.mxu0 0
        %819 = vmatmul.mubr.bf16.gmra.mrb[0].mxu0 %v781
        %v820 = vpop.f32.mrb[0].mxu0
        %v821 = vadd.f32 %v360, %v820
        %v822 = vpop.f32.mrb[0].mxu0
        %v823 = vpop.f32.mrb[0].mxu0
        %v824 = vadd.f32 %v360, %v823
        %v825 = vpop.f32.mrb[0].mxu0
        %826 = vdwg.mxu0
        %v827 = vsel %vm372, %v821, -inf
        %828 = vmax.xlane.f32.xlu0 %v827
        %v829 = vpop.xlane.xlu0 %828
        %v830 = vsel %vm372, %v824, -inf
        %831 = vmax.xlane.f32.xlu0 %v830
        %v832 = vpop.xlane.xlu0 %831
        %v833 = vsub.f32 %v821, %v829
        %v834 = vsub.f32 %v824, %v832
        %v835 = vmul.f32 %v833, 1.442695
        %v836 = vpow.pop %v835
        %v837 = vmul.f32 %v834, 1.442695
        %v838 = vpow.pop %v837
        %v839 = vsel %vm372, %v836, 0.0
        %840 = vadd.xlane.f32.xlu0 %v839
        %v841 = vpop.xlane.xlu0 %840
        %v842 = vsel %vm372, %v838, 0.0
        %843 = vadd.xlane.f32.xlu0 %v842
        %v844 = vpop.xlane.xlu0 %843
        %v845 = vrcp.pop %v841
        %v846 = vrcp.pop %v844
        %v847 = vmul.f32 %v836, %v845
        %v848 = vmul.f32 %v838, %v846
        %v849 = vpack.c.bf16 %v848, %v847
        %850 = vrot.lane.b32.xlu0 %v447, 80
        %v851 = vpop.permute.xlu0 %850
        %v854 = vsel %vm372, %v849, 0
        %856 = vmatprep.subr.bf16.mxu0 0
        %857 = vmatpush1.bf16.msra.mxu0 %v851
        %858 = vmatprep.subr.bf16.mxu0 0
        %859 = vmatpush1.bf16.msra.mxu0 0
        %860 = vmatprep.subr.bf16.mxu0 0
        %861 = vmatpush1.bf16.msra.mxu0 0
        %862 = vmatprep.subr.bf16.mxu0 0
        %863 = vmatpush1.bf16.msra.mxu0 0
        %864 = vmatprep.subr.bf16.mxu0 0
        %865 = vmatpush1.bf16.msra.mxu0 0
        %866 = vmatprep.subr.bf16.mxu0 0
        %867 = vmatpush1.bf16.msra.mxu0 0
        %868 = vmatprep.subr.bf16.mxu0 0
        %869 = vmatpush1.bf16.msra.mxu0 0
        %870 = vmatprep.subr.bf16.mxu0 0
        %871 = vmatpush1.bf16.msra.mxu0 0
        %872 = vmatprep.subr.bf16.mxu0 0
        %873 = vmatpush1.bf16.msra.mxu0 0
        %874 = vmatprep.subr.bf16.mxu0 0
        %875 = vmatpush1.bf16.msra.mxu0 0
        %876 = vmatprep.subr.bf16.mxu0 0
        %877 = vmatpush1.bf16.msra.mxu0 0
        %878 = vmatprep.subr.bf16.mxu0 0
        %879 = vmatpush1.bf16.msra.mxu0 0
        %880 = vmatprep.subr.bf16.mxu0 0
        %881 = vmatpush1.bf16.msra.mxu0 0
        %882 = vmatprep.subr.bf16.mxu0 0
        %883 = vmatpush1.bf16.msra.mxu0 0
        %884 = vmatprep.subr.bf16.mxu0 0
        %885 = vmatpush1.bf16.msra.mxu0 0
        %886 = vmatprep.subr.bf16.mxu0 0
        %887 = vmatpush1.bf16.msra.mxu0 0
        %888 = vmatprep.mubr.bf16.mxu0 0
        %889 = vmatmul.mubr.bf16.gmra.mrb[0].mxu0 %v854
        %v890 = vpop.f32.mrb[0].mxu0
        %v891 = vadd.f32 0.0, %v890
        %v892 = vpop.f32.mrb[0].mxu0
        %v893 = vpop.f32.mrb[0].mxu0
        %v894 = vadd.f32 0.0, %v893
        %v895 = vpop.f32.mrb[0].mxu0
        %896 = vdwg.mxu0
        %v897 = vpack.c.bf16 %v894, %v891
        %v899 = vunpack.c.l.b16 %v897
        %v900 = vunpack.c.h.b16 %v897
        %v901 = vpack.c.b16 %v899, %v899
        %v902 = vpack.c.b16 %v900, %v900
        %903 = vrot.lane.b32.xlu0 %v901, 48
        %v904 = vpop.permute.xlu0 %903
        %905 = vrot.lane.b32.xlu0 %v902, 48
        %v906 = vpop.permute.xlu0 %905
        %vm909 = vcmask 519552
        %910 = vst.msk [vmem:[%s344] sm:$0xf] %vm909, %v904
        %911 = vst.msk [vmem:[%s344 + $0x4] sm:$0xf] %vm909, %v906
        %s912 = sand.u32 %s155, 1
        %s913 = scalar_lea.sflag [#allocation4], %s912
        %s914 = sand.u32 %s155, 1
        %s915 = smul.addr %s914, 8
        %s916 = scalar_lea.vmem [#allocation10], %s915
        // Predicated region
        $region53: #{group_detr_transformer_fwd.24} parent=35 // pred_check
          %p917 = pneg %p165
        $region54: #{group_detr_transformer_fwd.24} parent=35 // pred_check_branch
          %919 = sbr.rel (%p917) target = $region56
        $region55: #{group_detr_transformer_fwd.24} parent=35 // pred_region
          %s920 = smul.u32 2, %s32
          %s922 = ssub.s32 128, 128
          %923 = vsyncadd %s913, %s922
          %s924 = smul.addr %s31, 2
          %s925 = sadd.s32 %s920, %s924
          %s926 = smul.addr %s925, 64
          %s927 = scalar_lea.hbm %s4, %s926
          %s928 = sshll.u32 %s916, 4
          %s929 = int_to_ptr.vmem [resolvable:$true] %s928
          %934 = dma.vmem_to_hbm [thread:$0]  %s929, 128, %s927, %s913, 64, 64, 4
        $region56: #{group_detr_transformer_fwd.24} parent=35 // pred_fallthru
          _
      $region36: #{group_detr_transformer_fwd.24} parent=5 // pred_fallthru
        _
      %p935 = scmp.le.s32.totalorder 2, %s22
      // Predicated region
      $region57: #{group_detr_transformer_fwd.24} parent=5 // pred_check
        %p936 = pneg %p935
      $region58: #{group_detr_transformer_fwd.24} parent=5 // pred_check_branch
        %938 = sbr.rel (%p936) target = $region60
      $region59: #{group_detr_transformer_fwd.24} parent=5 // pred_region
        %s939 = ssub.s32 %s22, 2
        // Predicated region
        $region61: #{group_detr_transformer_fwd.24} parent=59 // pred_check
          %p940 = pneg %p171
        $region62: #{group_detr_transformer_fwd.24} parent=59 // pred_check_branch
          %942 = sbr.rel (%p940) target = $region64
        $region63: #{group_detr_transformer_fwd.24} parent=59 // pred_region
          %s943 = sand.u32 %s156, 1
          %s944 = scalar_lea.sflag [#allocation4], %s943
          %s945 = sand.u32 %s156, 1
          %s946 = smul.addr %s945, 8
          %s947 = scalar_lea.vmem [#allocation10], %s946
          %948 = dma.done %s944, 128
        $region64: #{group_detr_transformer_fwd.24} parent=59 // pred_fallthru
          _
      $region60: #{group_detr_transformer_fwd.24} parent=5 // pred_fallthru
        _
    $region6: #{group_detr_transformer_fwd.24} parent=1 // loop_footer
      %s26 = sadd.s32 1, %s22
    $region7: #{group_detr_transformer_fwd.24} parent=1 // loop_footer_branch
      %21 = sbr.rel target = $region3
    $region8: #{group_detr_transformer_fwd.24} parent=1 // loop_exit
      _
    %949 = vsyncpa [#allocation3], 1
    %s950 = scalar_lea.sflag [#allocation3], 1
    %951 = vsyncpa %s950, 1
    %952 = vsyncpa [#allocation6], 1
    %s953 = scalar_lea.sflag [#allocation6], 1
    %954 = vsyncpa %s953, 1
    %955 = vsyncpa [#allocation9], 1
    %s956 = scalar_lea.sflag [#allocation9], 1
    %957 = vsyncpa %s956, 1
    %958 = vsyncpa [#allocation4], 1
    %s959 = scalar_lea.sflag [#allocation4], 1
    %960 = vsyncpa %s959, 1

// kernel: group_detr_transformer_fwd.26
$region0: #{group_detr_transformer_fwd.26}
  #allocation0 [shape = 'u32[]', space=smem, size = 0x4, offset = 0x4, fixed_abs, tag = 'smem constant byte address 0x4 - core index']
  #allocation1 [shape = 'u32[144,128]{1,0:T(1,128)}', space=vmem, size = 0x12000, scoped, tag = 'internal scratch']
  %s0 = inlined_call_operand.hbm [shape: bf16[32,64], index: 0, kind: input, shape index: {}]
  %s1 = inlined_call_operand.hbm [shape: bf16[64,128], index: 1, kind: input, shape index: {}]
  %s2 = inlined_call_operand.hbm [shape: f32[1,128], index: 2, kind: input, shape index: {}]
  %s3 = inlined_call_operand.hbm [shape: bf16[128,64], index: 3, kind: input, shape index: {}]
  %s4 = inlined_call_operand.hbm [shape: f32[1,64], index: 4, kind: input, shape index: {}, may-alias: {4,6}]
  %s5 = inlined_call_operand.hbm [shape: f32[1,64], index: 5, kind: input, shape index: {}]
  %s6 = inlined_call_operand.hbm [shape: f32[1,64], index: 6, kind: input, shape index: {}, may-alias: {4,6}]
  %s7 = inlined_call_operand.hbm [shape: bf16[32,64], index: 7, kind: output, shape index: {}]
  %s8 = sld [smem:[#allocation0]]
  $region66: #{group_detr_transformer_fwd.26} parent=0
    _
  %s10 = ssub.s32 1, %s8
  %s11 = scalar_select 0, %s10, %s8
  $region1: #{group_detr_transformer_fwd.26} parent=0
    #allocation2 [shape = 'u8[8192]{0}', space=vmem, size = 0x2000, scoped, tag = 'input window, operand 0, single buffered']
    #allocation3 [shape = 's32[1]{0}', space=sflag, size = 0x4, scoped, tag = 'scoped memory for group_detr_transformer_fwd.26']
    #allocation4 [shape = 's32[1]{0}', space=sflag, size = 0x4, scoped, tag = 'scoped memory for group_detr_transformer_fwd.26']
    #allocation5 [shape = 'u8[16384]{0}', space=vmem, size = 0x4000, scoped, tag = 'input window, operand 1, single buffered']
    #allocation6 [shape = 's32[1]{0}', space=sflag, size = 0x4, scoped, tag = 'scoped memory for group_detr_transformer_fwd.26']
    #allocation7 [shape = 'u8[512]{0}', space=vmem, size = 0x400, scoped, tag = 'input window, operand 2, single buffered']
    #allocation8 [shape = 'u8[32768]{0}', space=vmem, size = 0x8000, scoped, tag = 'input window, operand 3, single buffered']
    #allocation9 [shape = 's32[1]{0}', space=sflag, size = 0x4, scoped, tag = 'scoped memory for group_detr_transformer_fwd.26']
    #allocation10 [shape = 'u8[512]{0}', space=vmem, size = 0x400, scoped, tag = 'input window, operand 4, single buffered']
    #allocation11 [shape = 'u8[512]{0}', space=vmem, size = 0x400, scoped, tag = 'input window, operand 5, single buffered']
    #allocation12 [shape = 's32[1]{0}', space=sflag, size = 0x4, scoped, tag = 'scoped memory for group_detr_transformer_fwd.26']
    #allocation13 [shape = 'u8[512]{0}', space=vmem, size = 0x400, scoped, tag = 'input window, operand 6, single buffered']
    #allocation14 [shape = 'u8[8192]{0}', space=vmem, size = 0x2000, scoped, tag = 'output window, operand 0, single buffered']
    %12 = vsyncpa [#allocation3], 0
    %13 = vsyncpa [#allocation6], 0
    %14 = vsyncpa [#allocation9], 0
    %15 = vsyncpa [#allocation12], 0
    %16 = vsyncpa [#allocation4], 0
    // Predicated region
    $region2: #{group_detr_transformer_fwd.26} parent=1 // pred_check
      _
    $region3: #{group_detr_transformer_fwd.26} parent=1 // pred_check_branch
      %18 = sbr.rel (0) target = $region5
    $region4: #{group_detr_transformer_fwd.26} parent=1 // pred_region
      %s20 = ssub.s32 256, 256
      %21 = vsyncadd [#allocation3], %s20
      %s22 = sshll.u32 [#allocation2], 4
      %s23 = int_to_ptr.vmem [resolvable:$true] %s22
      %28 = dma.hbm_to_vmem [thread:$0]  %s0, 256, %s23, [#allocation3], 64, 64, 4
    $region5: #{group_detr_transformer_fwd.26} parent=1 // pred_fallthru
      _
    // Predicated region
    $region6: #{group_detr_transformer_fwd.26} parent=1 // pred_check
      _
    $region7: #{group_detr_transformer_fwd.26} parent=1 // pred_check_branch
      %30 = sbr.rel (0) target = $region9
    $region8: #{group_detr_transformer_fwd.26} parent=1 // pred_region
      %s32 = ssub.s32 512, 512
      %33 = vsyncadd [#allocation6], %s32
      %s34 = sshll.u32 [#allocation5], 4
      %s35 = int_to_ptr.vmem [resolvable:$true] %s34
      %40 = dma.hbm_to_vmem [thread:$0]  %s1, 512, %s35, [#allocation6], 64, 64, 4
    $region9: #{group_detr_transformer_fwd.26} parent=1 // pred_fallthru
      _
    // Predicated region
    $region10: #{group_detr_transformer_fwd.26} parent=1 // pred_check
      _
    $region11: #{group_detr_transformer_fwd.26} parent=1 // pred_check_branch
      %42 = sbr.rel (0) target = $region13
    $region12: #{group_detr_transformer_fwd.26} parent=1 // pred_region
      %s44 = ssub.s32 16, 16
      %45 = vsyncadd [#allocation6], %s44
      %s47 = sshll.u32 [#allocation7], 4
      %s48 = int_to_ptr.vmem [resolvable:$true] %s47
      %50 = dma.hbm_to_vmem [thread:$0]  %s2, 16, %s48, [#allocation6]
    $region13: #{group_detr_transformer_fwd.26} parent=1 // pred_fallthru
      _
    // Predicated region
    $region14: #{group_detr_transformer_fwd.26} parent=1 // pred_check
      _
    $region15: #{group_detr_transformer_fwd.26} parent=1 // pred_check_branch
      %52 = sbr.rel (0) target = $region17
    $region16: #{group_detr_transformer_fwd.26} parent=1 // pred_region
      %s54 = ssub.s32 1024, 1024
      %55 = vsyncadd [#allocation9], %s54
      %s56 = sshll.u32 [#allocation8], 4
      %s57 = int_to_ptr.vmem [resolvable:$true] %s56
      %62 = dma.hbm_to_vmem [thread:$0]  %s3, 1024, %s57, [#allocation9], 64, 64, 4
    $region17: #{group_detr_transformer_fwd.26} parent=1 // pred_fallthru
      _
    // Predicated region
    $region18: #{group_detr_transformer_fwd.26} parent=1 // pred_check
      _
    $region19: #{group_detr_transformer_fwd.26} parent=1 // pred_check_branch
      %64 = sbr.rel (0) target = $region21
    $region20: #{group_detr_transformer_fwd.26} parent=1 // pred_region
      %s66 = ssub.s32 16, 16
      %67 = vsyncadd [#allocation9], %s66
      %s69 = sshll.u32 [#allocation10], 4
      %s70 = int_to_ptr.vmem [resolvable:$true] %s69
      %72 = dma.hbm_to_vmem [thread:$0]  %s4, 16, %s70, [#allocation9]
    $region21: #{group_detr_transformer_fwd.26} parent=1 // pred_fallthru
      _
    // Predicated region
    $region22: #{group_detr_transformer_fwd.26} parent=1 // pred_check
      _
    $region23: #{group_detr_transformer_fwd.26} parent=1 // pred_check_branch
      %74 = sbr.rel (0) target = $region25
    $region24: #{group_detr_transformer_fwd.26} parent=1 // pred_region
      %s76 = ssub.s32 16, 16
      %77 = vsyncadd [#allocation12], %s76
      %s79 = sshll.u32 [#allocation11], 4
      %s80 = int_to_ptr.vmem [resolvable:$true] %s79
      %82 = dma.hbm_to_vmem [thread:$0]  %s5, 16, %s80, [#allocation12]
    $region25: #{group_detr_transformer_fwd.26} parent=1 // pred_fallthru
      _
    // Predicated region
    $region26: #{group_detr_transformer_fwd.26} parent=1 // pred_check
      _
    $region27: #{group_detr_transformer_fwd.26} parent=1 // pred_check_branch
      %84 = sbr.rel (0) target = $region29
    $region28: #{group_detr_transformer_fwd.26} parent=1 // pred_region
      %s86 = ssub.s32 16, 16
      %87 = vsyncadd [#allocation12], %s86
      %s89 = sshll.u32 [#allocation13], 4
      %s90 = int_to_ptr.vmem [resolvable:$true] %s89
      %92 = dma.hbm_to_vmem [thread:$0]  %s6, 16, %s90, [#allocation12]
    $region29: #{group_detr_transformer_fwd.26} parent=1 // pred_fallthru
      _
    // Predicated region
    $region30: #{group_detr_transformer_fwd.26} parent=1 // pred_check
      _
    $region31: #{group_detr_transformer_fwd.26} parent=1 // pred_check_branch
      %94 = sbr.rel (0) target = $region33
    $region32: #{group_detr_transformer_fwd.26} parent=1 // pred_region
      %95 = dma.done [#allocation3], 256
    $region33: #{group_detr_transformer_fwd.26} parent=1 // pred_fallthru
      _
    // Predicated region
    $region34: #{group_detr_transformer_fwd.26} parent=1 // pred_check
      _
    $region35: #{group_detr_transformer_fwd.26} parent=1 // pred_check_branch
      %97 = sbr.rel (0) target = $region37
    $region36: #{group_detr_transformer_fwd.26} parent=1 // pred_region
      %98 = dma.done [#allocation6], 512
    $region37: #{group_detr_transformer_fwd.26} parent=1 // pred_fallthru
      _
    // Predicated region
    $region38: #{group_detr_transformer_fwd.26} parent=1 // pred_check
      _
    $region39: #{group_detr_transformer_fwd.26} parent=1 // pred_check_branch
      %100 = sbr.rel (0) target = $region41
    $region40: #{group_detr_transformer_fwd.26} parent=1 // pred_region
      %101 = dma.done [#allocation6], 16
    $region41: #{group_detr_transformer_fwd.26} parent=1 // pred_fallthru
      _
    // Predicated region
    $region42: #{group_detr_transformer_fwd.26} parent=1 // pred_check
      _
    $region43: #{group_detr_transformer_fwd.26} parent=1 // pred_check_branch
      %103 = sbr.rel (0) target = $region45
    $region44: #{group_detr_transformer_fwd.26} parent=1 // pred_region
      %104 = dma.done [#allocation9], 1024
    $region45: #{group_detr_transformer_fwd.26} parent=1 // pred_fallthru
      _
    // Predicated region
    $region46: #{group_detr_transformer_fwd.26} parent=1 // pred_check
      _
    $region47: #{group_detr_transformer_fwd.26} parent=1 // pred_check_branch
      %106 = sbr.rel (0) target = $region49
    $region48: #{group_detr_transformer_fwd.26} parent=1 // pred_region
      %107 = dma.done [#allocation9], 16
    $region49: #{group_detr_transformer_fwd.26} parent=1 // pred_fallthru
      _
    // Predicated region
    $region50: #{group_detr_transformer_fwd.26} parent=1 // pred_check
      _
    $region51: #{group_detr_transformer_fwd.26} parent=1 // pred_check_branch
      %109 = sbr.rel (0) target = $region53
    $region52: #{group_detr_transformer_fwd.26} parent=1 // pred_region
      %110 = dma.done [#allocation12], 16
    $region53: #{group_detr_transformer_fwd.26} parent=1 // pred_fallthru
      _
    // Predicated region
    $region54: #{group_detr_transformer_fwd.26} parent=1 // pred_check
      _
    $region55: #{group_detr_transformer_fwd.26} parent=1 // pred_check_branch
      %112 = sbr.rel (0) target = $region57
    $region56: #{group_detr_transformer_fwd.26} parent=1 // pred_region
      %113 = dma.done [#allocation12], 16
    $region57: #{group_detr_transformer_fwd.26} parent=1 // pred_fallthru
      _
    %v115 = vld [vmem:[#allocation2] sm:$0xf]
    %v116 = vld [vmem:[#allocation2 + $0x4] sm:$0xf]
    %v117 = vld [vmem:[#allocation2 + $0x8] sm:$0xf]
    %v118 = vld [vmem:[#allocation2 + $0xc] sm:$0xf]
    %v119 = vld [vmem:[#allocation5] sm:$0xf]
    %v120 = vld [vmem:[#allocation5 + $0x4] sm:$0xf]
    %v121 = vld [vmem:[#allocation5 + $0x8] sm:$0xf]
    %v122 = vld [vmem:[#allocation5 + $0xc] sm:$0xf]
    %v123 = vld [vmem:[#allocation5 + $0x10] sm:$0xf]
    %v124 = vld [vmem:[#allocation5 + $0x14] sm:$0xf]
    %v125 = vld [vmem:[#allocation5 + $0x18] sm:$0xf]
    %v126 = vld [vmem:[#allocation5 + $0x1c] sm:$0xf]
    %v127 = vld [vmem:[#allocation7] sm:$0x1]
    %v129 = vlaneseq
    %v130 = vshrl.u32 %v129, 7
    %v131 = vsub.s32 0, %v130
    %v132 = vrot.slane %v127, %v131
    %v138 = vunpack.c.l.b16 %v115
    %v139 = vunpack.c.l.b16 %v116
    %v140 = vunpack.c.l.b16 %v117
    %v141 = vunpack.c.l.b16 %v118
    %v142 = vpack.c.b16 %v139, %v138
    %v143 = vpack.c.b16 %v141, %v140
    %v152 = vunpack.c.l.b16 %v119
    %v153 = vunpack.c.l.b16 %v120
    %v154 = vunpack.c.l.b16 %v121
    %v155 = vunpack.c.l.b16 %v122
    %v156 = vunpack.c.l.b16 %v123
    %v157 = vunpack.c.l.b16 %v124
    %v158 = vunpack.c.l.b16 %v125
    %v159 = vunpack.c.l.b16 %v126
    %v160 = vpack.c.b16 %v153, %v152
    %v161 = vpack.c.b16 %v155, %v154
    %v162 = vpack.c.b16 %v157, %v156
    %v163 = vpack.c.b16 %v159, %v158
    %vm168 = vcmask 523264
    %v170 = vsel %vm168, %v142, 0
    %v173 = vsel %vm168, %v143, 0
    %175 = vmatprep.subr.bf16.mxu0 0
    %176 = vmatpush1.bf16.msra.mxu0 %v160
    %177 = vmatprep.subr.bf16.mxu0 0
    %178 = vmatpush1.bf16.msra.mxu0 %v161
    %179 = vmatprep.subr.bf16.mxu0 0
    %180 = vmatpush1.bf16.msra.mxu0 %v162
    %181 = vmatprep.subr.bf16.mxu0 0
    %182 = vmatpush1.bf16.msra.mxu0 %v163
    %183 = vmatprep.subr.bf16.mxu0 0
    %184 = vmatpush1.bf16.msra.mxu0 0
    %185 = vmatprep.subr.bf16.mxu0 0
    %186 = vmatpush1.bf16.msra.mxu0 0
    %187 = vmatprep.subr.bf16.mxu0 0
    %188 = vmatpush1.bf16.msra.mxu0 0
    %189 = vmatprep.subr.bf16.mxu0 0
    %190 = vmatpush1.bf16.msra.mxu0 0
    %191 = vmatprep.subr.bf16.mxu0 0
    %192 = vmatpush1.bf16.msra.mxu0 0
    %193 = vmatprep.subr.bf16.mxu0 0
    %194 = vmatpush1.bf16.msra.mxu0 0
    %195 = vmatprep.subr.bf16.mxu0 0
    %196 = vmatpush1.bf16.msra.mxu0 0
    %197 = vmatprep.subr.bf16.mxu0 0
    %198 = vmatpush1.bf16.msra.mxu0 0
    %199 = vmatprep.subr.bf16.mxu0 0
    %200 = vmatpush1.bf16.msra.mxu0 0
    %201 = vmatprep.subr.bf16.mxu0 0
    %202 = vmatpush1.bf16.msra.mxu0 0
    %203 = vmatprep.subr.bf16.mxu0 0
    %204 = vmatpush1.bf16.msra.mxu0 0
    %205 = vmatprep.subr.bf16.mxu0 0
    %206 = vmatpush1.bf16.msra.mxu0 0
    %207 = vmatprep.mubr.bf16.mxu0 0
    %208 = vmatmul.mubr.bf16.gmra.mrb[0].mxu0 %v170
    %v209 = vpop.f32.mrb[0].mxu0
    %v210 = vadd.f32 %v132, %v209
    %v211 = vpop.f32.mrb[0].mxu0
    %v212 = vpop.f32.mrb[0].mxu0
    %v213 = vadd.f32 %v132, %v212
    %v214 = vpop.f32.mrb[0].mxu0
    %215 = vmatprep.mubr.bf16.mxu0 0
    %216 = vmatmul.mubr.bf16.gmra.mrb[0].mxu0 %v173
    %v217 = vpop.f32.mrb[0].mxu0
    %v218 = vadd.f32 %v132, %v217
    %v219 = vpop.f32.mrb[0].mxu0
    %v220 = vpop.f32.mrb[0].mxu0
    %v221 = vadd.f32 %v132, %v220
    %v222 = vpop.f32.mrb[0].mxu0
    %223 = vdwg.mxu0
    %v224 = vmax.f32 %v210, 0.0
    %v225 = vmax.f32 %v213, 0.0
    %v226 = vmax.f32 %v218, 0.0
    %v227 = vmax.f32 %v221, 0.0
    %v228 = vpack.c.bf16 %v225, %v224
    %v229 = vpack.c.bf16 %v227, %v226
    %v230 = vld [vmem:[#allocation8] sm:$0xf]
    %v231 = vld [vmem:[#allocation8 + $0x4] sm:$0xf]
    %v232 = vld [vmem:[#allocation8 + $0x8] sm:$0xf]
    %v233 = vld [vmem:[#allocation8 + $0xc] sm:$0xf]
    %v234 = vld [vmem:[#allocation8 + $0x10] sm:$0xf]
    %v235 = vld [vmem:[#allocation8 + $0x14] sm:$0xf]
    %v236 = vld [vmem:[#allocation8 + $0x18] sm:$0xf]
    %v237 = vld [vmem:[#allocation8 + $0x1c] sm:$0xf]
    %v238 = vld [vmem:[#allocation8 + $0x20] sm:$0xf]
    %v239 = vld [vmem:[#allocation8 + $0x24] sm:$0xf]
    %v240 = vld [vmem:[#allocation8 + $0x28] sm:$0xf]
    %v241 = vld [vmem:[#allocation8 + $0x2c] sm:$0xf]
    %v242 = vld [vmem:[#allocation8 + $0x30] sm:$0xf]
    %v243 = vld [vmem:[#allocation8 + $0x34] sm:$0xf]
    %v244 = vld [vmem:[#allocation8 + $0x38] sm:$0xf]
    %v245 = vld [vmem:[#allocation8 + $0x3c] sm:$0xf]
    %v246 = vld [vmem:[#allocation10] sm:$0x1]
    %v248 = vlaneseq
    %v249 = vshrl.u32 %v248, 7
    %v250 = vsub.s32 0, %v249
    %v251 = vrot.slane %v246, %v250
    %v269 = vunpack.c.l.b16 %v230
    %v270 = vunpack.c.l.b16 %v231
    %v271 = vunpack.c.l.b16 %v232
    %v272 = vunpack.c.l.b16 %v233
    %v273 = vunpack.c.l.b16 %v234
    %v274 = vunpack.c.l.b16 %v235
    %v275 = vunpack.c.l.b16 %v236
    %v276 = vunpack.c.l.b16 %v237
    %v277 = vunpack.c.l.b16 %v238
    %v278 = vunpack.c.l.b16 %v239
    %v279 = vunpack.c.l.b16 %v240
    %v280 = vunpack.c.l.b16 %v241
    %v281 = vunpack.c.l.b16 %v242
    %v282 = vunpack.c.l.b16 %v243
    %v283 = vunpack.c.l.b16 %v244
    %v284 = vunpack.c.l.b16 %v245
    %v285 = vpack.c.b16 %v270, %v269
    %v286 = vpack.c.b16 %v272, %v271
    %v287 = vpack.c.b16 %v274, %v273
    %v288 = vpack.c.b16 %v276, %v275
    %v289 = vpack.c.b16 %v278, %v277
    %v290 = vpack.c.b16 %v280, %v279
    %v291 = vpack.c.b16 %v282, %v281
    %v292 = vpack.c.b16 %v284, %v283
    %301 = vmatprep.subr.bf16.mxu0 0
    %302 = vmatpush1.bf16.msra.mxu0 %v285
    %303 = vmatprep.subr.bf16.mxu0 0
    %304 = vmatpush1.bf16.msra.mxu0 %v286
    %305 = vmatprep.subr.bf16.mxu0 0
    %306 = vmatpush1.bf16.msra.mxu0 %v287
    %307 = vmatprep.subr.bf16.mxu0 0
    %308 = vmatpush1.bf16.msra.mxu0 %v288
    %309 = vmatprep.subr.bf16.mxu0 0
    %310 = vmatpush1.bf16.msra.mxu0 %v289
    %311 = vmatprep.subr.bf16.mxu0 0
    %312 = vmatpush1.bf16.msra.mxu0 %v290
    %313 = vmatprep.subr.bf16.mxu0 0
    %314 = vmatpush1.bf16.msra.mxu0 %v291
    %315 = vmatprep.subr.bf16.mxu0 0
    %316 = vmatpush1.bf16.msra.mxu0 %v292
    %317 = vmatprep.subr.bf16.mxu0 0
    %318 = vmatpush1.bf16.msra.mxu0 0
    %319 = vmatprep.subr.bf16.mxu0 0
    %320 = vmatpush1.bf16.msra.mxu0 0
    %321 = vmatprep.subr.bf16.mxu0 0
    %322 = vmatpush1.bf16.msra.mxu0 0
    %323 = vmatprep.subr.bf16.mxu0 0
    %324 = vmatpush1.bf16.msra.mxu0 0
    %325 = vmatprep.subr.bf16.mxu0 0
    %326 = vmatpush1.bf16.msra.mxu0 0
    %327 = vmatprep.subr.bf16.mxu0 0
    %328 = vmatpush1.bf16.msra.mxu0 0
    %329 = vmatprep.subr.bf16.mxu0 0
    %330 = vmatpush1.bf16.msra.mxu0 0
    %331 = vmatprep.subr.bf16.mxu0 0
    %332 = vmatpush1.bf16.msra.mxu0 0
    %333 = vmatprep.mubr.bf16.mxu0 0
    %334 = vmatmul.mubr.bf16.gmra.mrb[0].mxu0 %v228
    %v335 = vpop.f32.mrb[0].mxu0
    %v336 = vadd.f32 %v251, %v335
    %v337 = vpop.f32.mrb[0].mxu0
    %v338 = vpop.f32.mrb[0].mxu0
    %v339 = vadd.f32 %v251, %v338
    %v340 = vpop.f32.mrb[0].mxu0
    %341 = vmatprep.mubr.bf16.mxu0 0
    %342 = vmatmul.mubr.bf16.gmra.mrb[0].mxu0 %v229
    %v343 = vpop.f32.mrb[0].mxu0
    %v344 = vadd.f32 %v251, %v343
    %v345 = vpop.f32.mrb[0].mxu0
    %v346 = vpop.f32.mrb[0].mxu0
    %v347 = vadd.f32 %v251, %v346
    %v348 = vpop.f32.mrb[0].mxu0
    %349 = vdwg.mxu0
    %v350 = vunpack.c.l.bf16 %v115
    %v351 = vunpack.c.l.bf16 %v116
    %v352 = vunpack.c.l.bf16 %v117
    %v353 = vunpack.c.l.bf16 %v118
    %v354 = vadd.f32 %v336, %v350
    %v355 = vadd.f32 %v339, %v351
    %v356 = vadd.f32 %v344, %v352
    %v357 = vadd.f32 %v347, %v353
    %v358 = vld [vmem:[#allocation11] sm:$0x1]
    %v359 = vld [vmem:[#allocation13] sm:$0x1]
    %v360 = vsel %vm168, %v354, 0.0
    %361 = vadd.xlane.f32.xlu0 %v360
    %v362 = vpop.xlane.xlu0 %361
    %v363 = vsel %vm168, %v355, 0.0
    %364 = vadd.xlane.f32.xlu0 %v363
    %v365 = vpop.xlane.xlu0 %364
    %v366 = vsel %vm168, %v356, 0.0
    %367 = vadd.xlane.f32.xlu0 %v366
    %v368 = vpop.xlane.xlu0 %367
    %v369 = vsel %vm168, %v357, 0.0
    %370 = vadd.xlane.f32.xlu0 %v369
    %v371 = vpop.xlane.xlu0 %370
    %v372 = vrcp.pop 64.0
    %v373 = vmul.f32 %v362, %v372
    %v374 = vmul.f32 %v365, %v372
    %v375 = vmul.f32 %v368, %v372
    %v376 = vmul.f32 %v371, %v372
    %v377 = vsub.f32 %v354, %v373
    %v378 = vsub.f32 %v355, %v374
    %v379 = vsub.f32 %v356, %v375
    %v380 = vsub.f32 %v357, %v376
    %v381 = vmul.f32 %v377, %v377
    %v382 = vmul.f32 %v378, %v378
    %v383 = vmul.f32 %v379, %v379
    %v384 = vmul.f32 %v380, %v380
    %v385 = vsel %vm168, %v381, 0.0
    %386 = vadd.xlane.f32.xlu0 %v385
    %v387 = vpop.xlane.xlu0 %386
    %v388 = vsel %vm168, %v382, 0.0
    %389 = vadd.xlane.f32.xlu0 %v388
    %v390 = vpop.xlane.xlu0 %389
    %v391 = vsel %vm168, %v383, 0.0
    %392 = vadd.xlane.f32.xlu0 %v391
    %v393 = vpop.xlane.xlu0 %392
    %v394 = vsel %vm168, %v384, 0.0
    %395 = vadd.xlane.f32.xlu0 %v394
    %v396 = vpop.xlane.xlu0 %395
    %v397 = vmul.f32 %v387, %v372
    %v398 = vmul.f32 %v390, %v372
    %v399 = vmul.f32 %v393, %v372
    %v400 = vmul.f32 %v396, %v372
    %v401 = vadd.f32 %v397, 1e-05
    %v402 = vadd.f32 %v398, 1e-05
    %v403 = vadd.f32 %v399, 1e-05
    %v404 = vadd.f32 %v400, 1e-05
    %v405 = vrsqrt.pop %v401
    %v406 = vrsqrt.pop %v402
    %v407 = vrsqrt.pop %v403
    %v408 = vrsqrt.pop %v404
    %v409 = vmul.f32 %v377, %v405
    %v410 = vmul.f32 %v378, %v406
    %v411 = vmul.f32 %v379, %v407
    %v412 = vmul.f32 %v380, %v408
    %v414 = vlaneseq
    %v415 = vshrl.u32 %v414, 7
    %v416 = vsub.s32 0, %v415
    %v417 = vrot.slane %v358, %v416
    %v419 = vmul.f32 %v409, %v417
    %v420 = vmul.f32 %v410, %v417
    %v421 = vmul.f32 %v411, %v417
    %v422 = vmul.f32 %v412, %v417
    %v424 = vlaneseq
    %v425 = vshrl.u32 %v424, 7
    %v426 = vsub.s32 0, %v425
    %v427 = vrot.slane %v359, %v426
    %v429 = vadd.f32 %v419, %v427
    %v430 = vadd.f32 %v420, %v427
    %v431 = vadd.f32 %v421, %v427
    %v432 = vadd.f32 %v422, %v427
    %v433 = vpack.c.bf16 %v430, %v429
    %v434 = vpack.c.bf16 %v432, %v431
    %v437 = vunpack.c.l.b16 %v433
    %v438 = vunpack.c.h.b16 %v433
    %v439 = vunpack.c.l.b16 %v434
    %v440 = vunpack.c.h.b16 %v434
    %v441 = vpack.c.b16 %v437, %v437
    %v442 = vpack.c.b16 %v438, %v438
    %v443 = vpack.c.b16 %v439, %v439
    %v444 = vpack.c.b16 %v440, %v440
    %vm449 = vcmask 519168
    %450 = vst.msk [vmem:[#allocation14] sm:$0xf] %vm449, %v441
    %451 = vst.msk [vmem:[#allocation14 + $0x4] sm:$0xf] %vm449, %v442
    %452 = vst.msk [vmem:[#allocation14 + $0x8] sm:$0xf] %vm449, %v443
    %453 = vst.msk [vmem:[#allocation14 + $0xc] sm:$0xf] %vm449, %v444
    // Predicated region
    $region58: #{group_detr_transformer_fwd.26} parent=1 // pred_check
      _
    $region59: #{group_detr_transformer_fwd.26} parent=1 // pred_check_branch
      %455 = sbr.rel (0) target = $region61
    $region60: #{group_detr_transformer_fwd.26} parent=1 // pred_region
      %s457 = ssub.s32 256, 256
      %458 = vsyncadd [#allocation4], %s457
      %s459 = sshll.u32 [#allocation14], 4
      %s460 = int_to_ptr.vmem [resolvable:$true] %s459
      %465 = dma.vmem_to_hbm [thread:$0]  %s460, 256, %s7, [#allocation4], 64, 64, 4
    $region61: #{group_detr_transformer_fwd.26} parent=1 // pred_fallthru
      _
    // Predicated region
    $region62: #{group_detr_transformer_fwd.26} parent=1 // pred_check
      _
    $region63: #{group_detr_transformer_fwd.26} parent=1 // pred_check_branch
      %467 = sbr.rel (0) target = $region65
    $region64: #{group_detr_transformer_fwd.26} parent=1 // pred_region
      %468 = dma.done [#allocation4], 256
    $region65: #{group_detr_transformer_fwd.26} parent=1 // pred_fallthru
      _
    %469 = vsyncpa [#allocation3], 1
    %470 = vsyncpa [#allocation6], 1
    %471 = vsyncpa [#allocation9], 1
    %472 = vsyncpa [#allocation12], 1
    %473 = vsyncpa [#allocation4], 1

// kernel: group_detr_transformer_fwd.31
$region0: #{group_detr_transformer_fwd.31}
  #allocation0 [shape = 'u32[]', space=smem, size = 0x4, offset = 0x4, fixed_abs, tag = 'smem constant byte address 0x4 - core index']
  #allocation1 [shape = 'u32[144,128]{1,0:T(1,128)}', space=vmem, size = 0x12000, scoped, tag = 'internal scratch']
  %s0 = inlined_call_operand.hbm [shape: bf16[16,64], index: 0, kind: input, shape index: {}]
  %s1 = inlined_call_operand.hbm [shape: bf16[16,64], index: 1, kind: input, shape index: {}]
  %s2 = inlined_call_operand.hbm [shape: bf16[64,128], index: 2, kind: input, shape index: {}]
  %s3 = inlined_call_operand.hbm [shape: f32[1,128], index: 3, kind: input, shape index: {}]
  %s4 = inlined_call_operand.hbm [shape: bf16[64,64], index: 4, kind: input, shape index: {}]
  %s5 = inlined_call_operand.hbm [shape: f32[1,64], index: 5, kind: input, shape index: {}]
  %s6 = inlined_call_operand.hbm [shape: bf16[16,64], index: 6, kind: output, shape index: {0}]
  %s7 = inlined_call_operand.hbm [shape: bf16[16,64], index: 7, kind: output, shape index: {1}]
  %s8 = inlined_call_operand.hbm [shape: bf16[16,64], index: 8, kind: output, shape index: {2}]
  %9 = xla_tuple %s6, %s7, %s8
  %s10 = sld [smem:[#allocation0]]
  $region74: #{group_detr_transformer_fwd.31} parent=0
    _
  %s12 = ssub.s32 1, %s10
  %s13 = scalar_select 0, %s12, %s10
  $region1: #{group_detr_transformer_fwd.31} parent=0
    #allocation2 [shape = 'u8[4096]{0}', space=vmem, size = 0x1000, scoped, tag = 'input window, operand 0, single buffered']
    #allocation3 [shape = 's32[1]{0}', space=sflag, size = 0x4, scoped, tag = 'scoped memory for group_detr_transformer_fwd.31']
    #allocation4 [shape = 's32[1]{0}', space=sflag, size = 0x4, scoped, tag = 'scoped memory for group_detr_transformer_fwd.31']
    #allocation5 [shape = 'u8[4096]{0}', space=vmem, size = 0x1000, scoped, tag = 'input window, operand 1, single buffered']
    #allocation6 [shape = 's32[1]{0}', space=sflag, size = 0x4, scoped, tag = 'scoped memory for group_detr_transformer_fwd.31']
    #allocation7 [shape = 'u8[16384]{0}', space=vmem, size = 0x4000, scoped, tag = 'input window, operand 2, single buffered']
    #allocation8 [shape = 'u8[512]{0}', space=vmem, size = 0x400, scoped, tag = 'input window, operand 3, single buffered']
    #allocation9 [shape = 's32[1]{0}', space=sflag, size = 0x4, scoped, tag = 'scoped memory for group_detr_transformer_fwd.31']
    #allocation10 [shape = 'u8[16384]{0}', space=vmem, size = 0x4000, scoped, tag = 'input window, operand 4, single buffered']
    #allocation11 [shape = 'u8[512]{0}', space=vmem, size = 0x400, scoped, tag = 'input window, operand 5, single buffered']
    #allocation12 [shape = 's32[1]{0}', space=sflag, size = 0x4, scoped, tag = 'scoped memory for group_detr_transformer_fwd.31']
    #allocation13 [shape = 'u8[4096]{0}', space=vmem, size = 0x1000, scoped, tag = 'output window, operand 0, single buffered']
    #allocation14 [shape = 'u8[4096]{0}', space=vmem, size = 0x1000, scoped, tag = 'output window, operand 1, single buffered']
    #allocation15 [shape = 's32[1]{0}', space=sflag, size = 0x4, scoped, tag = 'scoped memory for group_detr_transformer_fwd.31']
    #allocation16 [shape = 'u8[4096]{0}', space=vmem, size = 0x1000, scoped, tag = 'output window, operand 2, single buffered']
    %14 = vsyncpa [#allocation3], 0
    %15 = vsyncpa [#allocation6], 0
    %16 = vsyncpa [#allocation9], 0
    %17 = vsyncpa [#allocation12], 0
    %18 = vsyncpa [#allocation4], 0
    %19 = vsyncpa [#allocation15], 0
    // Predicated region
    $region2: #{group_detr_transformer_fwd.31} parent=1 // pred_check
      _
    $region3: #{group_detr_transformer_fwd.31} parent=1 // pred_check_branch
      %21 = sbr.rel (0) target = $region5
    $region4: #{group_detr_transformer_fwd.31} parent=1 // pred_region
      %s23 = ssub.s32 128, 128
      %24 = vsyncadd [#allocation3], %s23
      %s25 = sshll.u32 [#allocation2], 4
      %s26 = int_to_ptr.vmem [resolvable:$true] %s25
      %31 = dma.hbm_to_vmem [thread:$0]  %s0, 128, %s26, [#allocation3], 64, 64, 4
    $region5: #{group_detr_transformer_fwd.31} parent=1 // pred_fallthru
      _
    // Predicated region
    $region6: #{group_detr_transformer_fwd.31} parent=1 // pred_check
      _
    $region7: #{group_detr_transformer_fwd.31} parent=1 // pred_check_branch
      %33 = sbr.rel (0) target = $region9
    $region8: #{group_detr_transformer_fwd.31} parent=1 // pred_region
      %s35 = ssub.s32 128, 128
      %36 = vsyncadd [#allocation6], %s35
      %s37 = sshll.u32 [#allocation5], 4
      %s38 = int_to_ptr.vmem [resolvable:$true] %s37
      %43 = dma.hbm_to_vmem [thread:$0]  %s1, 128, %s38, [#allocation6], 64, 64, 4
    $region9: #{group_detr_transformer_fwd.31} parent=1 // pred_fallthru
      _
    // Predicated region
    $region10: #{group_detr_transformer_fwd.31} parent=1 // pred_check
      _
    $region11: #{group_detr_transformer_fwd.31} parent=1 // pred_check_branch
      %45 = sbr.rel (0) target = $region13
    $region12: #{group_detr_transformer_fwd.31} parent=1 // pred_region
      %s47 = ssub.s32 512, 512
      %48 = vsyncadd [#allocation6], %s47
      %s49 = sshll.u32 [#allocation7], 4
      %s50 = int_to_ptr.vmem [resolvable:$true] %s49
      %55 = dma.hbm_to_vmem [thread:$0]  %s2, 512, %s50, [#allocation6], 64, 64, 4
    $region13: #{group_detr_transformer_fwd.31} parent=1 // pred_fallthru
      _
    // Predicated region
    $region14: #{group_detr_transformer_fwd.31} parent=1 // pred_check
      _
    $region15: #{group_detr_transformer_fwd.31} parent=1 // pred_check_branch
      %57 = sbr.rel (0) target = $region17
    $region16: #{group_detr_transformer_fwd.31} parent=1 // pred_region
      %s59 = ssub.s32 16, 16
      %60 = vsyncadd [#allocation9], %s59
      %s62 = sshll.u32 [#allocation8], 4
      %s63 = int_to_ptr.vmem [resolvable:$true] %s62
      %65 = dma.hbm_to_vmem [thread:$0]  %s3, 16, %s63, [#allocation9]
    $region17: #{group_detr_transformer_fwd.31} parent=1 // pred_fallthru
      _
    // Predicated region
    $region18: #{group_detr_transformer_fwd.31} parent=1 // pred_check
      _
    $region19: #{group_detr_transformer_fwd.31} parent=1 // pred_check_branch
      %67 = sbr.rel (0) target = $region21
    $region20: #{group_detr_transformer_fwd.31} parent=1 // pred_region
      %s69 = ssub.s32 512, 512
      %70 = vsyncadd [#allocation9], %s69
      %s71 = sshll.u32 [#allocation10], 4
      %s72 = int_to_ptr.vmem [resolvable:$true] %s71
      %77 = dma.hbm_to_vmem [thread:$0]  %s4, 512, %s72, [#allocation9], 64, 64, 4
    $region21: #{group_detr_transformer_fwd.31} parent=1 // pred_fallthru
      _
    // Predicated region
    $region22: #{group_detr_transformer_fwd.31} parent=1 // pred_check
      _
    $region23: #{group_detr_transformer_fwd.31} parent=1 // pred_check_branch
      %79 = sbr.rel (0) target = $region25
    $region24: #{group_detr_transformer_fwd.31} parent=1 // pred_region
      %s81 = ssub.s32 16, 16
      %82 = vsyncadd [#allocation12], %s81
      %s84 = sshll.u32 [#allocation11], 4
      %s85 = int_to_ptr.vmem [resolvable:$true] %s84
      %87 = dma.hbm_to_vmem [thread:$0]  %s5, 16, %s85, [#allocation12]
    $region25: #{group_detr_transformer_fwd.31} parent=1 // pred_fallthru
      _
    // Predicated region
    $region26: #{group_detr_transformer_fwd.31} parent=1 // pred_check
      _
    $region27: #{group_detr_transformer_fwd.31} parent=1 // pred_check_branch
      %89 = sbr.rel (0) target = $region29
    $region28: #{group_detr_transformer_fwd.31} parent=1 // pred_region
      %90 = dma.done [#allocation3], 128
    $region29: #{group_detr_transformer_fwd.31} parent=1 // pred_fallthru
      _
    // Predicated region
    $region30: #{group_detr_transformer_fwd.31} parent=1 // pred_check
      _
    $region31: #{group_detr_transformer_fwd.31} parent=1 // pred_check_branch
      %92 = sbr.rel (0) target = $region33
    $region32: #{group_detr_transformer_fwd.31} parent=1 // pred_region
      %93 = dma.done [#allocation6], 128
    $region33: #{group_detr_transformer_fwd.31} parent=1 // pred_fallthru
      _
    // Predicated region
    $region34: #{group_detr_transformer_fwd.31} parent=1 // pred_check
      _
    $region35: #{group_detr_transformer_fwd.31} parent=1 // pred_check_branch
      %95 = sbr.rel (0) target = $region37
    $region36: #{group_detr_transformer_fwd.31} parent=1 // pred_region
      %96 = dma.done [#allocation6], 512
    $region37: #{group_detr_transformer_fwd.31} parent=1 // pred_fallthru
      _
    // Predicated region
    $region38: #{group_detr_transformer_fwd.31} parent=1 // pred_check
      _
    $region39: #{group_detr_transformer_fwd.31} parent=1 // pred_check_branch
      %98 = sbr.rel (0) target = $region41
    $region40: #{group_detr_transformer_fwd.31} parent=1 // pred_region
      %99 = dma.done [#allocation9], 16
    $region41: #{group_detr_transformer_fwd.31} parent=1 // pred_fallthru
      _
    // Predicated region
    $region42: #{group_detr_transformer_fwd.31} parent=1 // pred_check
      _
    $region43: #{group_detr_transformer_fwd.31} parent=1 // pred_check_branch
      %101 = sbr.rel (0) target = $region45
    $region44: #{group_detr_transformer_fwd.31} parent=1 // pred_region
      %102 = dma.done [#allocation9], 512
    $region45: #{group_detr_transformer_fwd.31} parent=1 // pred_fallthru
      _
    // Predicated region
    $region46: #{group_detr_transformer_fwd.31} parent=1 // pred_check
      _
    $region47: #{group_detr_transformer_fwd.31} parent=1 // pred_check_branch
      %104 = sbr.rel (0) target = $region49
    $region48: #{group_detr_transformer_fwd.31} parent=1 // pred_region
      %105 = dma.done [#allocation12], 16
    $region49: #{group_detr_transformer_fwd.31} parent=1 // pred_fallthru
      _
    %v107 = vld [vmem:[#allocation2] sm:$0xf]
    %v108 = vld [vmem:[#allocation2 + $0x4] sm:$0xf]
    %v109 = vld [vmem:[#allocation5] sm:$0xf]
    %v110 = vld [vmem:[#allocation5 + $0x4] sm:$0xf]
    %v111 = vadd.bf16 %v107, %v109
    %v112 = vadd.bf16 %v108, %v110
    %v113 = vld [vmem:[#allocation7] sm:$0xf]
    %v114 = vld [vmem:[#allocation7 + $0x4] sm:$0xf]
    %v115 = vld [vmem:[#allocation7 + $0x8] sm:$0xf]
    %v116 = vld [vmem:[#allocation7 + $0xc] sm:$0xf]
    %v117 = vld [vmem:[#allocation7 + $0x10] sm:$0xf]
    %v118 = vld [vmem:[#allocation7 + $0x14] sm:$0xf]
    %v119 = vld [vmem:[#allocation7 + $0x18] sm:$0xf]
    %v120 = vld [vmem:[#allocation7 + $0x1c] sm:$0xf]
    %v121 = vld [vmem:[#allocation8] sm:$0x1]
    %v123 = vlaneseq
    %v124 = vshrl.u32 %v123, 7
    %v125 = vsub.s32 0, %v124
    %v126 = vrot.slane %v121, %v125
    %v130 = vunpack.c.l.b16 %v111
    %v131 = vunpack.c.l.b16 %v112
    %v132 = vpack.c.b16 %v131, %v130
    %v141 = vunpack.c.l.b16 %v113
    %v142 = vunpack.c.l.b16 %v114
    %v143 = vunpack.c.l.b16 %v115
    %v144 = vunpack.c.l.b16 %v116
    %v145 = vunpack.c.l.b16 %v117
    %v146 = vunpack.c.l.b16 %v118
    %v147 = vunpack.c.l.b16 %v119
    %v148 = vunpack.c.l.b16 %v120
    %v149 = vpack.c.b16 %v142, %v141
    %v150 = vpack.c.b16 %v144, %v143
    %v151 = vpack.c.b16 %v146, %v145
    %v152 = vpack.c.b16 %v148, %v147
    %vm157 = vcmask 523264
    %v159 = vsel %vm157, %v132, 0
    %161 = vmatprep.subr.bf16.mxu0 0
    %162 = vmatpush1.bf16.msra.mxu0 %v149
    %163 = vmatprep.subr.bf16.mxu0 0
    %164 = vmatpush1.bf16.msra.mxu0 %v150
    %165 = vmatprep.subr.bf16.mxu0 0
    %166 = vmatpush1.bf16.msra.mxu0 %v151
    %167 = vmatprep.subr.bf16.mxu0 0
    %168 = vmatpush1.bf16.msra.mxu0 %v152
    %169 = vmatprep.subr.bf16.mxu0 0
    %170 = vmatpush1.bf16.msra.mxu0 0
    %171 = vmatprep.subr.bf16.mxu0 0
    %172 = vmatpush1.bf16.msra.mxu0 0
    %173 = vmatprep.subr.bf16.mxu0 0
    %174 = vmatpush1.bf16.msra.mxu0 0
    %175 = vmatprep.subr.bf16.mxu0 0
    %176 = vmatpush1.bf16.msra.mxu0 0
    %177 = vmatprep.subr.bf16.mxu0 0
    %178 = vmatpush1.bf16.msra.mxu0 0
    %179 = vmatprep.subr.bf16.mxu0 0
    %180 = vmatpush1.bf16.msra.mxu0 0
    %181 = vmatprep.subr.bf16.mxu0 0
    %182 = vmatpush1.bf16.msra.mxu0 0
    %183 = vmatprep.subr.bf16.mxu0 0
    %184 = vmatpush1.bf16.msra.mxu0 0
    %185 = vmatprep.subr.bf16.mxu0 0
    %186 = vmatpush1.bf16.msra.mxu0 0
    %187 = vmatprep.subr.bf16.mxu0 0
    %188 = vmatpush1.bf16.msra.mxu0 0
    %189 = vmatprep.subr.bf16.mxu0 0
    %190 = vmatpush1.bf16.msra.mxu0 0
    %191 = vmatprep.subr.bf16.mxu0 0
    %192 = vmatpush1.bf16.msra.mxu0 0
    %193 = vmatprep.mubr.bf16.mxu0 0
    %194 = vmatmul.mubr.bf16.gmra.mrb[0].mxu0 %v159
    %v195 = vpop.f32.mrb[0].mxu0
    %v196 = vadd.f32 %v126, %v195
    %v197 = vpop.f32.mrb[0].mxu0
    %v198 = vpop.f32.mrb[0].mxu0
    %v199 = vadd.f32 %v126, %v198
    %v200 = vpop.f32.mrb[0].mxu0
    %201 = vdwg.mxu0
    %v202 = vld [vmem:[#allocation10] sm:$0xf]
    %v203 = vld [vmem:[#allocation10 + $0x4] sm:$0xf]
    %v204 = vld [vmem:[#allocation10 + $0x8] sm:$0xf]
    %v205 = vld [vmem:[#allocation10 + $0xc] sm:$0xf]
    %v206 = vld [vmem:[#allocation10 + $0x10] sm:$0xf]
    %v207 = vld [vmem:[#allocation10 + $0x14] sm:$0xf]
    %v208 = vld [vmem:[#allocation10 + $0x18] sm:$0xf]
    %v209 = vld [vmem:[#allocation10 + $0x1c] sm:$0xf]
    %v210 = vld [vmem:[#allocation11] sm:$0x1]
    %v212 = vlaneseq
    %v213 = vshrl.u32 %v212, 7
    %v214 = vsub.s32 0, %v213
    %v215 = vrot.slane %v210, %v214
    %v219 = vunpack.c.l.b16 %v107
    %v220 = vunpack.c.l.b16 %v108
    %v221 = vpack.c.b16 %v220, %v219
    %v230 = vunpack.c.l.b16 %v202
    %v231 = vunpack.c.l.b16 %v203
    %v232 = vunpack.c.l.b16 %v204
    %v233 = vunpack.c.l.b16 %v205
    %v234 = vunpack.c.l.b16 %v206
    %v235 = vunpack.c.l.b16 %v207
    %v236 = vunpack.c.l.b16 %v208
    %v237 = vunpack.c.l.b16 %v209
    %v238 = vpack.c.b16 %v231, %v230
    %v239 = vpack.c.b16 %v233, %v232
    %v240 = vpack.c.b16 %v235, %v234
    %v241 = vpack.c.b16 %v237, %v236
    %v247 = vsel %vm157, %v221, 0
    %249 = vmatprep.subr.bf16.mxu0 0
    %250 = vmatpush1.bf16.msra.mxu0 %v238
    %251 = vmatprep.subr.bf16.mxu0 0
    %252 = vmatpush1.bf16.msra.mxu0 %v239
    %253 = vmatprep.subr.bf16.mxu0 0
    %254 = vmatpush1.bf16.msra.mxu0 %v240
    %255 = vmatprep.subr.bf16.mxu0 0
    %256 = vmatpush1.bf16.msra.mxu0 %v241
    %257 = vmatprep.subr.bf16.mxu0 0
    %258 = vmatpush1.bf16.msra.mxu0 0
    %259 = vmatprep.subr.bf16.mxu0 0
    %260 = vmatpush1.bf16.msra.mxu0 0
    %261 = vmatprep.subr.bf16.mxu0 0
    %262 = vmatpush1.bf16.msra.mxu0 0
    %263 = vmatprep.subr.bf16.mxu0 0
    %264 = vmatpush1.bf16.msra.mxu0 0
    %265 = vmatprep.subr.bf16.mxu0 0
    %266 = vmatpush1.bf16.msra.mxu0 0
    %267 = vmatprep.subr.bf16.mxu0 0
    %268 = vmatpush1.bf16.msra.mxu0 0
    %269 = vmatprep.subr.bf16.mxu0 0
    %270 = vmatpush1.bf16.msra.mxu0 0
    %271 = vmatprep.subr.bf16.mxu0 0
    %272 = vmatpush1.bf16.msra.mxu0 0
    %273 = vmatprep.subr.bf16.mxu0 0
    %274 = vmatpush1.bf16.msra.mxu0 0
    %275 = vmatprep.subr.bf16.mxu0 0
    %276 = vmatpush1.bf16.msra.mxu0 0
    %277 = vmatprep.subr.bf16.mxu0 0
    %278 = vmatpush1.bf16.msra.mxu0 0
    %279 = vmatprep.subr.bf16.mxu0 0
    %280 = vmatpush1.bf16.msra.mxu0 0
    %281 = vmatprep.mubr.bf16.mxu0 0
    %282 = vmatmul.mubr.bf16.gmra.mrb[0].mxu0 %v247
    %v283 = vpop.f32.mrb[0].mxu0
    %v284 = vadd.f32 %v215, %v283
    %v285 = vpop.f32.mrb[0].mxu0
    %v286 = vpop.f32.mrb[0].mxu0
    %v287 = vadd.f32 %v215, %v286
    %v288 = vpop.f32.mrb[0].mxu0
    %289 = vdwg.mxu0
    %v290 = vpack.c.bf16 %v199, %v196
    %v292 = vunpack.c.l.b16 %v290
    %v293 = vunpack.c.h.b16 %v290
    %v294 = vpack.c.b16 %v292, %v292
    %v295 = vpack.c.b16 %v293, %v293
    %vm298 = vcmask 519168
    %299 = vst.msk [vmem:[#allocation13] sm:$0xf] %vm298, %v294
    %300 = vst.msk [vmem:[#allocation13 + $0x4] sm:$0xf] %vm298, %v295
    %301 = vrot.lane.b32.xlu0 %v294, 64
    %v302 = vpop.permute.xlu0 %301
    %303 = vrot.lane.b32.xlu0 %v295, 64
    %v304 = vpop.permute.xlu0 %303
    %307 = vst.msk [vmem:[#allocation14] sm:$0xf] %vm298, %v302
    %308 = vst.msk [vmem:[#allocation14 + $0x4] sm:$0xf] %vm298, %v304
    %v309 = vpack.c.bf16 %v287, %v284
    %v311 = vunpack.c.l.b16 %v309
    %v312 = vunpack.c.h.b16 %v309
    %v313 = vpack.c.b16 %v311, %v311
    %v314 = vpack.c.b16 %v312, %v312
    %317 = vst.msk [vmem:[#allocation16] sm:$0xf] %vm298, %v313
    %318 = vst.msk [vmem:[#allocation16 + $0x4] sm:$0xf] %vm298, %v314
    // Predicated region
    $region50: #{group_detr_transformer_fwd.31} parent=1 // pred_check
      _
    $region51: #{group_detr_transformer_fwd.31} parent=1 // pred_check_branch
      %320 = sbr.rel (0) target = $region53
    $region52: #{group_detr_transformer_fwd.31} parent=1 // pred_region
      %s322 = ssub.s32 128, 128
      %323 = vsyncadd [#allocation4], %s322
      %s324 = sshll.u32 [#allocation13], 4
      %s325 = int_to_ptr.vmem [resolvable:$true] %s324
      %330 = dma.vmem_to_hbm [thread:$0]  %s325, 128, %s6, [#allocation4], 64, 64, 4
    $region53: #{group_detr_transformer_fwd.31} parent=1 // pred_fallthru
      _
    // Predicated region
    $region54: #{group_detr_transformer_fwd.31} parent=1 // pred_check
      _
    $region55: #{group_detr_transformer_fwd.31} parent=1 // pred_check_branch
      %332 = sbr.rel (0) target = $region57
    $region56: #{group_detr_transformer_fwd.31} parent=1 // pred_region
      %s334 = ssub.s32 128, 128
      %335 = vsyncadd [#allocation15], %s334
      %s336 = sshll.u32 [#allocation14], 4
      %s337 = int_to_ptr.vmem [resolvable:$true] %s336
      %342 = dma.vmem_to_hbm [thread:$0]  %s337, 128, %s7, [#allocation15], 64, 64, 4
    $region57: #{group_detr_transformer_fwd.31} parent=1 // pred_fallthru
      _
    // Predicated region
    $region58: #{group_detr_transformer_fwd.31} parent=1 // pred_check
      _
    $region59: #{group_detr_transformer_fwd.31} parent=1 // pred_check_branch
      %344 = sbr.rel (0) target = $region61
    $region60: #{group_detr_transformer_fwd.31} parent=1 // pred_region
      %s346 = ssub.s32 128, 128
      %347 = vsyncadd [#allocation15], %s346
      %s348 = sshll.u32 [#allocation16], 4
      %s349 = int_to_ptr.vmem [resolvable:$true] %s348
      %354 = dma.vmem_to_hbm [thread:$0]  %s349, 128, %s8, [#allocation15], 64, 64, 4
    $region61: #{group_detr_transformer_fwd.31} parent=1 // pred_fallthru
      _
    // Predicated region
    $region62: #{group_detr_transformer_fwd.31} parent=1 // pred_check
      _
    $region63: #{group_detr_transformer_fwd.31} parent=1 // pred_check_branch
      %356 = sbr.rel (0) target = $region65
    $region64: #{group_detr_transformer_fwd.31} parent=1 // pred_region
      %357 = dma.done [#allocation4], 128
    $region65: #{group_detr_transformer_fwd.31} parent=1 // pred_fallthru
      _
    // Predicated region
    $region66: #{group_detr_transformer_fwd.31} parent=1 // pred_check
      _
    $region67: #{group_detr_transformer_fwd.31} parent=1 // pred_check_branch
      %359 = sbr.rel (0) target = $region69
    $region68: #{group_detr_transformer_fwd.31} parent=1 // pred_region
      %360 = dma.done [#allocation15], 128
    $region69: #{group_detr_transformer_fwd.31} parent=1 // pred_fallthru
      _
    // Predicated region
    $region70: #{group_detr_transformer_fwd.31} parent=1 // pred_check
      _
    $region71: #{group_detr_transformer_fwd.31} parent=1 // pred_check_branch
      %362 = sbr.rel (0) target = $region73
    $region72: #{group_detr_transformer_fwd.31} parent=1 // pred_region
      %363 = dma.done [#allocation15], 128
    $region73: #{group_detr_transformer_fwd.31} parent=1 // pred_fallthru
      _
    %364 = vsyncpa [#allocation3], 1
    %365 = vsyncpa [#allocation6], 1
    %366 = vsyncpa [#allocation9], 1
    %367 = vsyncpa [#allocation12], 1
    %368 = vsyncpa [#allocation4], 1
    %369 = vsyncpa [#allocation15], 1

// kernel: group_detr_transformer_fwd.33
$region0: #{group_detr_transformer_fwd.33}
  #allocation0 [shape = 'u32[]', space=smem, size = 0x4, offset = 0x4, fixed_abs, tag = 'smem constant byte address 0x4 - core index']
  #allocation1 [shape = 'u32[144,128]{1,0:T(1,128)}', space=vmem, size = 0x12000, scoped, tag = 'internal scratch']
  %s0 = inlined_call_operand.hbm [shape: bf16[16,64], index: 0, kind: input, shape index: {}]
  %s1 = inlined_call_operand.hbm [shape: bf16[16,64], index: 1, kind: input, shape index: {}]
  %s2 = inlined_call_operand.hbm [shape: bf16[64,64], index: 2, kind: input, shape index: {}]
  %s3 = inlined_call_operand.hbm [shape: f32[1,64], index: 3, kind: input, shape index: {}, may-alias: {3,5}]
  %s4 = inlined_call_operand.hbm [shape: f32[1,64], index: 4, kind: input, shape index: {}]
  %s5 = inlined_call_operand.hbm [shape: f32[1,64], index: 5, kind: input, shape index: {}, may-alias: {3,5}]
  %s6 = inlined_call_operand.hbm [shape: bf16[16,64], index: 6, kind: output, shape index: {}]
  %s7 = sld [smem:[#allocation0]]
  $region58: #{group_detr_transformer_fwd.33} parent=0
    _
  %s9 = ssub.s32 1, %s7
  %s10 = scalar_select 0, %s9, %s7
  $region1: #{group_detr_transformer_fwd.33} parent=0
    #allocation2 [shape = 'u8[4096]{0}', space=vmem, size = 0x1000, scoped, tag = 'input window, operand 0, single buffered']
    #allocation3 [shape = 's32[1]{0}', space=sflag, size = 0x4, scoped, tag = 'scoped memory for group_detr_transformer_fwd.33']
    #allocation4 [shape = 's32[1]{0}', space=sflag, size = 0x4, scoped, tag = 'scoped memory for group_detr_transformer_fwd.33']
    #allocation5 [shape = 'u8[4096]{0}', space=vmem, size = 0x1000, scoped, tag = 'input window, operand 1, single buffered']
    #allocation6 [shape = 's32[1]{0}', space=sflag, size = 0x4, scoped, tag = 'scoped memory for group_detr_transformer_fwd.33']
    #allocation7 [shape = 'u8[16384]{0}', space=vmem, size = 0x4000, scoped, tag = 'input window, operand 2, single buffered']
    #allocation8 [shape = 'u8[512]{0}', space=vmem, size = 0x400, scoped, tag = 'input window, operand 3, single buffered']
    #allocation9 [shape = 's32[1]{0}', space=sflag, size = 0x4, scoped, tag = 'scoped memory for group_detr_transformer_fwd.33']
    #allocation10 [shape = 'u8[512]{0}', space=vmem, size = 0x400, scoped, tag = 'input window, operand 4, single buffered']
    #allocation11 [shape = 'u8[512]{0}', space=vmem, size = 0x400, scoped, tag = 'input window, operand 5, single buffered']
    #allocation12 [shape = 's32[1]{0}', space=sflag, size = 0x4, scoped, tag = 'scoped memory for group_detr_transformer_fwd.33']
    #allocation13 [shape = 'u8[4096]{0}', space=vmem, size = 0x1000, scoped, tag = 'output window, operand 0, single buffered']
    %11 = vsyncpa [#allocation3], 0
    %12 = vsyncpa [#allocation6], 0
    %13 = vsyncpa [#allocation9], 0
    %14 = vsyncpa [#allocation12], 0
    %15 = vsyncpa [#allocation4], 0
    // Predicated region
    $region2: #{group_detr_transformer_fwd.33} parent=1 // pred_check
      _
    $region3: #{group_detr_transformer_fwd.33} parent=1 // pred_check_branch
      %17 = sbr.rel (0) target = $region5
    $region4: #{group_detr_transformer_fwd.33} parent=1 // pred_region
      %s19 = ssub.s32 128, 128
      %20 = vsyncadd [#allocation3], %s19
      %s21 = sshll.u32 [#allocation2], 4
      %s22 = int_to_ptr.vmem [resolvable:$true] %s21
      %27 = dma.hbm_to_vmem [thread:$0]  %s0, 128, %s22, [#allocation3], 64, 64, 4
    $region5: #{group_detr_transformer_fwd.33} parent=1 // pred_fallthru
      _
    // Predicated region
    $region6: #{group_detr_transformer_fwd.33} parent=1 // pred_check
      _
    $region7: #{group_detr_transformer_fwd.33} parent=1 // pred_check_branch
      %29 = sbr.rel (0) target = $region9
    $region8: #{group_detr_transformer_fwd.33} parent=1 // pred_region
      %s31 = ssub.s32 128, 128
      %32 = vsyncadd [#allocation6], %s31
      %s33 = sshll.u32 [#allocation5], 4
      %s34 = int_to_ptr.vmem [resolvable:$true] %s33
      %39 = dma.hbm_to_vmem [thread:$0]  %s1, 128, %s34, [#allocation6], 64, 64, 4
    $region9: #{group_detr_transformer_fwd.33} parent=1 // pred_fallthru
      _
    // Predicated region
    $region10: #{group_detr_transformer_fwd.33} parent=1 // pred_check
      _
    $region11: #{group_detr_transformer_fwd.33} parent=1 // pred_check_branch
      %41 = sbr.rel (0) target = $region13
    $region12: #{group_detr_transformer_fwd.33} parent=1 // pred_region
      %s43 = ssub.s32 512, 512
      %44 = vsyncadd [#allocation6], %s43
      %s45 = sshll.u32 [#allocation7], 4
      %s46 = int_to_ptr.vmem [resolvable:$true] %s45
      %51 = dma.hbm_to_vmem [thread:$0]  %s2, 512, %s46, [#allocation6], 64, 64, 4
    $region13: #{group_detr_transformer_fwd.33} parent=1 // pred_fallthru
      _
    // Predicated region
    $region14: #{group_detr_transformer_fwd.33} parent=1 // pred_check
      _
    $region15: #{group_detr_transformer_fwd.33} parent=1 // pred_check_branch
      %53 = sbr.rel (0) target = $region17
    $region16: #{group_detr_transformer_fwd.33} parent=1 // pred_region
      %s55 = ssub.s32 16, 16
      %56 = vsyncadd [#allocation9], %s55
      %s58 = sshll.u32 [#allocation8], 4
      %s59 = int_to_ptr.vmem [resolvable:$true] %s58
      %61 = dma.hbm_to_vmem [thread:$0]  %s3, 16, %s59, [#allocation9]
    $region17: #{group_detr_transformer_fwd.33} parent=1 // pred_fallthru
      _
    // Predicated region
    $region18: #{group_detr_transformer_fwd.33} parent=1 // pred_check
      _
    $region19: #{group_detr_transformer_fwd.33} parent=1 // pred_check_branch
      %63 = sbr.rel (0) target = $region21
    $region20: #{group_detr_transformer_fwd.33} parent=1 // pred_region
      %s65 = ssub.s32 16, 16
      %66 = vsyncadd [#allocation9], %s65
      %s68 = sshll.u32 [#allocation10], 4
      %s69 = int_to_ptr.vmem [resolvable:$true] %s68
      %71 = dma.hbm_to_vmem [thread:$0]  %s4, 16, %s69, [#allocation9]
    $region21: #{group_detr_transformer_fwd.33} parent=1 // pred_fallthru
      _
    // Predicated region
    $region22: #{group_detr_transformer_fwd.33} parent=1 // pred_check
      _
    $region23: #{group_detr_transformer_fwd.33} parent=1 // pred_check_branch
      %73 = sbr.rel (0) target = $region25
    $region24: #{group_detr_transformer_fwd.33} parent=1 // pred_region
      %s75 = ssub.s32 16, 16
      %76 = vsyncadd [#allocation12], %s75
      %s78 = sshll.u32 [#allocation11], 4
      %s79 = int_to_ptr.vmem [resolvable:$true] %s78
      %81 = dma.hbm_to_vmem [thread:$0]  %s5, 16, %s79, [#allocation12]
    $region25: #{group_detr_transformer_fwd.33} parent=1 // pred_fallthru
      _
    // Predicated region
    $region26: #{group_detr_transformer_fwd.33} parent=1 // pred_check
      _
    $region27: #{group_detr_transformer_fwd.33} parent=1 // pred_check_branch
      %83 = sbr.rel (0) target = $region29
    $region28: #{group_detr_transformer_fwd.33} parent=1 // pred_region
      %84 = dma.done [#allocation3], 128
    $region29: #{group_detr_transformer_fwd.33} parent=1 // pred_fallthru
      _
    // Predicated region
    $region30: #{group_detr_transformer_fwd.33} parent=1 // pred_check
      _
    $region31: #{group_detr_transformer_fwd.33} parent=1 // pred_check_branch
      %86 = sbr.rel (0) target = $region33
    $region32: #{group_detr_transformer_fwd.33} parent=1 // pred_region
      %87 = dma.done [#allocation6], 128
    $region33: #{group_detr_transformer_fwd.33} parent=1 // pred_fallthru
      _
    // Predicated region
    $region34: #{group_detr_transformer_fwd.33} parent=1 // pred_check
      _
    $region35: #{group_detr_transformer_fwd.33} parent=1 // pred_check_branch
      %89 = sbr.rel (0) target = $region37
    $region36: #{group_detr_transformer_fwd.33} parent=1 // pred_region
      %90 = dma.done [#allocation6], 512
    $region37: #{group_detr_transformer_fwd.33} parent=1 // pred_fallthru
      _
    // Predicated region
    $region38: #{group_detr_transformer_fwd.33} parent=1 // pred_check
      _
    $region39: #{group_detr_transformer_fwd.33} parent=1 // pred_check_branch
      %92 = sbr.rel (0) target = $region41
    $region40: #{group_detr_transformer_fwd.33} parent=1 // pred_region
      %93 = dma.done [#allocation9], 16
    $region41: #{group_detr_transformer_fwd.33} parent=1 // pred_fallthru
      _
    // Predicated region
    $region42: #{group_detr_transformer_fwd.33} parent=1 // pred_check
      _
    $region43: #{group_detr_transformer_fwd.33} parent=1 // pred_check_branch
      %95 = sbr.rel (0) target = $region45
    $region44: #{group_detr_transformer_fwd.33} parent=1 // pred_region
      %96 = dma.done [#allocation9], 16
    $region45: #{group_detr_transformer_fwd.33} parent=1 // pred_fallthru
      _
    // Predicated region
    $region46: #{group_detr_transformer_fwd.33} parent=1 // pred_check
      _
    $region47: #{group_detr_transformer_fwd.33} parent=1 // pred_check_branch
      %98 = sbr.rel (0) target = $region49
    $region48: #{group_detr_transformer_fwd.33} parent=1 // pred_region
      %99 = dma.done [#allocation12], 16
    $region49: #{group_detr_transformer_fwd.33} parent=1 // pred_fallthru
      _
    %v101 = vld [vmem:[#allocation2] sm:$0xf]
    %v102 = vld [vmem:[#allocation2 + $0x4] sm:$0xf]
    %v103 = vld [vmem:[#allocation7] sm:$0xf]
    %v104 = vld [vmem:[#allocation7 + $0x4] sm:$0xf]
    %v105 = vld [vmem:[#allocation7 + $0x8] sm:$0xf]
    %v106 = vld [vmem:[#allocation7 + $0xc] sm:$0xf]
    %v107 = vld [vmem:[#allocation7 + $0x10] sm:$0xf]
    %v108 = vld [vmem:[#allocation7 + $0x14] sm:$0xf]
    %v109 = vld [vmem:[#allocation7 + $0x18] sm:$0xf]
    %v110 = vld [vmem:[#allocation7 + $0x1c] sm:$0xf]
    %v111 = vld [vmem:[#allocation8] sm:$0x1]
    %v113 = vlaneseq
    %v114 = vshrl.u32 %v113, 7
    %v115 = vsub.s32 0, %v114
    %v116 = vrot.slane %v111, %v115
    %v120 = vunpack.c.l.b16 %v101
    %v121 = vunpack.c.l.b16 %v102
    %v122 = vpack.c.b16 %v121, %v120
    %v131 = vunpack.c.l.b16 %v103
    %v132 = vunpack.c.l.b16 %v104
    %v133 = vunpack.c.l.b16 %v105
    %v134 = vunpack.c.l.b16 %v106
    %v135 = vunpack.c.l.b16 %v107
    %v136 = vunpack.c.l.b16 %v108
    %v137 = vunpack.c.l.b16 %v109
    %v138 = vunpack.c.l.b16 %v110
    %v139 = vpack.c.b16 %v132, %v131
    %v140 = vpack.c.b16 %v134, %v133
    %v141 = vpack.c.b16 %v136, %v135
    %v142 = vpack.c.b16 %v138, %v137
    %vm147 = vcmask 523264
    %v149 = vsel %vm147, %v122, 0
    %151 = vmatprep.subr.bf16.mxu0 0
    %152 = vmatpush1.bf16.msra.mxu0 %v139
    %153 = vmatprep.subr.bf16.mxu0 0
    %154 = vmatpush1.bf16.msra.mxu0 %v140
    %155 = vmatprep.subr.bf16.mxu0 0
    %156 = vmatpush1.bf16.msra.mxu0 %v141
    %157 = vmatprep.subr.bf16.mxu0 0
    %158 = vmatpush1.bf16.msra.mxu0 %v142
    %159 = vmatprep.subr.bf16.mxu0 0
    %160 = vmatpush1.bf16.msra.mxu0 0
    %161 = vmatprep.subr.bf16.mxu0 0
    %162 = vmatpush1.bf16.msra.mxu0 0
    %163 = vmatprep.subr.bf16.mxu0 0
    %164 = vmatpush1.bf16.msra.mxu0 0
    %165 = vmatprep.subr.bf16.mxu0 0
    %166 = vmatpush1.bf16.msra.mxu0 0
    %167 = vmatprep.subr.bf16.mxu0 0
    %168 = vmatpush1.bf16.msra.mxu0 0
    %169 = vmatprep.subr.bf16.mxu0 0
    %170 = vmatpush1.bf16.msra.mxu0 0
    %171 = vmatprep.subr.bf16.mxu0 0
    %172 = vmatpush1.bf16.msra.mxu0 0
    %173 = vmatprep.subr.bf16.mxu0 0
    %174 = vmatpush1.bf16.msra.mxu0 0
    %175 = vmatprep.subr.bf16.mxu0 0
    %176 = vmatpush1.bf16.msra.mxu0 0
    %177 = vmatprep.subr.bf16.mxu0 0
    %178 = vmatpush1.bf16.msra.mxu0 0
    %179 = vmatprep.subr.bf16.mxu0 0
    %180 = vmatpush1.bf16.msra.mxu0 0
    %181 = vmatprep.subr.bf16.mxu0 0
    %182 = vmatpush1.bf16.msra.mxu0 0
    %183 = vmatprep.mubr.bf16.mxu0 0
    %184 = vmatmul.mubr.bf16.gmra.mrb[0].mxu0 %v149
    %v185 = vpop.f32.mrb[0].mxu0
    %v186 = vadd.f32 %v116, %v185
    %v187 = vpop.f32.mrb[0].mxu0
    %v188 = vpop.f32.mrb[0].mxu0
    %v189 = vadd.f32 %v116, %v188
    %v190 = vpop.f32.mrb[0].mxu0
    %191 = vdwg.mxu0
    %v192 = vld [vmem:[#allocation5] sm:$0xf]
    %v193 = vld [vmem:[#allocation5 + $0x4] sm:$0xf]
    %v194 = vunpack.c.l.bf16 %v192
    %v195 = vunpack.c.l.bf16 %v193
    %v196 = vadd.f32 %v186, %v194
    %v197 = vadd.f32 %v189, %v195
    %v198 = vld [vmem:[#allocation10] sm:$0x1]
    %v199 = vld [vmem:[#allocation11] sm:$0x1]
    %v200 = vsel %vm147, %v196, 0.0
    %201 = vadd.xlane.f32.xlu0 %v200
    %v202 = vpop.xlane.xlu0 %201
    %v203 = vsel %vm147, %v197, 0.0
    %204 = vadd.xlane.f32.xlu0 %v203
    %v205 = vpop.xlane.xlu0 %204
    %v206 = vrcp.pop 64.0
    %v207 = vmul.f32 %v202, %v206
    %v208 = vmul.f32 %v205, %v206
    %v209 = vsub.f32 %v196, %v207
    %v210 = vsub.f32 %v197, %v208
    %v211 = vmul.f32 %v209, %v209
    %v212 = vmul.f32 %v210, %v210
    %v213 = vsel %vm147, %v211, 0.0
    %214 = vadd.xlane.f32.xlu0 %v213
    %v215 = vpop.xlane.xlu0 %214
    %v216 = vsel %vm147, %v212, 0.0
    %217 = vadd.xlane.f32.xlu0 %v216
    %v218 = vpop.xlane.xlu0 %217
    %v219 = vmul.f32 %v215, %v206
    %v220 = vmul.f32 %v218, %v206
    %v221 = vadd.f32 %v219, 1e-05
    %v222 = vadd.f32 %v220, 1e-05
    %v223 = vrsqrt.pop %v221
    %v224 = vrsqrt.pop %v222
    %v225 = vmul.f32 %v209, %v223
    %v226 = vmul.f32 %v210, %v224
    %v228 = vlaneseq
    %v229 = vshrl.u32 %v228, 7
    %v230 = vsub.s32 0, %v229
    %v231 = vrot.slane %v198, %v230
    %v233 = vmul.f32 %v225, %v231
    %v234 = vmul.f32 %v226, %v231
    %v236 = vlaneseq
    %v237 = vshrl.u32 %v236, 7
    %v238 = vsub.s32 0, %v237
    %v239 = vrot.slane %v199, %v238
    %v241 = vadd.f32 %v233, %v239
    %v242 = vadd.f32 %v234, %v239
    %v243 = vpack.c.bf16 %v242, %v241
    %v245 = vunpack.c.l.b16 %v243
    %v246 = vunpack.c.h.b16 %v243
    %v247 = vpack.c.b16 %v245, %v245
    %v248 = vpack.c.b16 %v246, %v246
    %vm251 = vcmask 519168
    %252 = vst.msk [vmem:[#allocation13] sm:$0xf] %vm251, %v247
    %253 = vst.msk [vmem:[#allocation13 + $0x4] sm:$0xf] %vm251, %v248
    // Predicated region
    $region50: #{group_detr_transformer_fwd.33} parent=1 // pred_check
      _
    $region51: #{group_detr_transformer_fwd.33} parent=1 // pred_check_branch
      %255 = sbr.rel (0) target = $region53
    $region52: #{group_detr_transformer_fwd.33} parent=1 // pred_region
      %s257 = ssub.s32 128, 128
      %258 = vsyncadd [#allocation4], %s257
      %s259 = sshll.u32 [#allocation13], 4
      %s260 = int_to_ptr.vmem [resolvable:$true] %s259
      %265 = dma.vmem_to_hbm [thread:$0]  %s260, 128, %s6, [#allocation4], 64, 64, 4
    $region53: #{group_detr_transformer_fwd.33} parent=1 // pred_fallthru
      _
    // Predicated region
    $region54: #{group_detr_transformer_fwd.33} parent=1 // pred_check
      _
    $region55: #{group_detr_transformer_fwd.33} parent=1 // pred_check_branch
      %267 = sbr.rel (0) target = $region57
    $region56: #{group_detr_transformer_fwd.33} parent=1 // pred_region
      %268 = dma.done [#allocation4], 128
    $region57: #{group_detr_transformer_fwd.33} parent=1 // pred_fallthru
      _
    %269 = vsyncpa [#allocation3], 1
    %270 = vsyncpa [#allocation6], 1
    %271 = vsyncpa [#allocation9], 1
    %272 = vsyncpa [#allocation12], 1
    %273 = vsyncpa [#allocation4], 1

// kernel: group_detr_transformer_fwd.32
$region0: #{group_detr_transformer_fwd.32}
  #allocation0 [shape = 'u32[]', space=smem, size = 0x4, offset = 0x4, fixed_abs, tag = 'smem constant byte address 0x4 - core index']
  #allocation1 [shape = 'u32[144,128]{1,0:T(1,128)}', space=vmem, size = 0x12000, scoped, tag = 'internal scratch']
  %s0 = inlined_call_operand.hbm [shape: bf16[2,8,64], index: 0, kind: input, shape index: {}]
  %s1 = inlined_call_operand.hbm [shape: bf16[2,8,64], index: 1, kind: input, shape index: {}]
  %s2 = inlined_call_operand.hbm [shape: bf16[2,8,64], index: 2, kind: input, shape index: {}]
  %s3 = inlined_call_operand.hbm [shape: bf16[2,8,64], index: 3, kind: output, shape index: {}]
  %s4 = sld [smem:[#allocation0]]
  $region57: #{group_detr_transformer_fwd.32} parent=0
    _
  %s6 = ssub.s32 1, %s4
  %s7 = scalar_select 0, %s6, %s4
  $region1: #{group_detr_transformer_fwd.32} parent=0
    #allocation2 [shape = 'u8[4096]{0}', space=vmem, size = 0x1000, scoped, tag = 'input window, operand 0']
    #allocation3 [shape = 's32[2]{0}', space=sflag, size = 0x8, scoped, tag = 'scoped memory for group_detr_transformer_fwd.32']
    #allocation4 [shape = 's32[2]{0}', space=sflag, size = 0x8, scoped, tag = 'scoped memory for group_detr_transformer_fwd.32']
    #allocation5 [shape = 'u8[4096]{0}', space=vmem, size = 0x1000, scoped, tag = 'input window, operand 1']
    #allocation6 [shape = 's32[2]{0}', space=sflag, size = 0x8, scoped, tag = 'scoped memory for group_detr_transformer_fwd.32']
    #allocation7 [shape = 'u8[4096]{0}', space=vmem, size = 0x1000, scoped, tag = 'input window, operand 2']
    #allocation8 [shape = 'u8[4096]{0}', space=vmem, size = 0x1000, scoped, tag = 'output window, operand 0']
    %8 = vsyncpa [#allocation3], 0
    %s9 = scalar_lea.sflag [#allocation3], 1
    %10 = vsyncpa %s9, 0
    %11 = vsyncpa [#allocation6], 0
    %s12 = scalar_lea.sflag [#allocation6], 1
    %13 = vsyncpa %s12, 0
    %14 = vsyncpa [#allocation4], 0
    %s15 = scalar_lea.sflag [#allocation4], 1
    %16 = vsyncpa %s15, 0
    loop: start=0, step=1, limit=4
    $region2: #{group_detr_transformer_fwd.32} parent=1 // loop_pre_header
      _
    $region3: #{group_detr_transformer_fwd.32} parent=1 // loop_header
      %s18 = sphi 0, %s22
      %p19 = scmp.ge.s32.totalorder %s18, 4
      %s25 = sphi 0, %s37
      %s26 = sphi 0, %s33
      %s27 = sphi 0, %s25
      %s28 = sphi 0, %s26
      %s29 = sphi 0, %s27
      %s30 = sphi 0, %s28
      %s42 = sphi 0, %s44
      %s45 = sphi 0, %s42
      %s46 = sphi 0, %s45
      %s62 = sphi 0, %s46
      %s68 = sphi 0, %s70
      %s71 = sphi 0, %s68
      %s72 = sphi 0, %s71
      %s88 = sphi 0, %s72
      %s94 = sphi 0, %s96
      %s97 = sphi 0, %s94
      %s98 = sphi 0, %s97
      %s114 = sphi 0, %s98
      %s122 = sphi 0, %s124
      %s125 = sphi 0, %s122
      %s126 = sphi 0, %s125
      %s142 = sphi 0, %s126
    $region4: #{group_detr_transformer_fwd.32} parent=1 // loop_header_branch
      %21 = sbr.rel (%p19) target = $region8
    $region5: #{group_detr_transformer_fwd.32} parent=1 // loop_body
      %s23 = ssub.s32 %s18, 1
      %s24 = ssub.s32 %s18, 2
      %s31 = sadd.s32 1, %s26
      %p32 = scmp.ge.s32.totalorder %s31, 1
      %s33 = scalar_select %p32, 0, %s31
      %s34 = sadd.s32 1, %s25
      %s35 = scalar_select %p32, %s34, %s25
      %p36 = scmp.ge.s32.totalorder %s35, 2
      %s37 = scalar_select %p36, 0, %s35
      %s38 = ssub.s32 %s25, %s37
      %s39 = ssub.s32 %s26, %s33
      %s40 = sor.u32 %s38, %s39
      %p41 = scmp.eq.s32.totalorder %s40, 0
      %s43 = sadd.s32 %s42, 1
      %s44 = scalar_select %p41, %s42, %s43
      %p47 = pneg %p41
      %p48 = scmp.eq.s32.totalorder %s18, 1
      %p49 = por %p47, %p48
      %p50 = scmp.ne.s32.totalorder %s42, %s45
      %p51 = scmp.eq.s32.totalorder %s18, 0
      %p52 = por %p50, %p51
      %p53 = scmp.ne.s32.totalorder %s42, %s45
      %p54 = scmp.eq.s32.totalorder %s23, 1
      %p55 = por %p53, %p54
      %p56 = scmp.ne.s32.totalorder %s45, %s46
      %p57 = scmp.eq.s32.totalorder %s23, 0
      %p58 = por %p56, %p57
      %p59 = scmp.ne.s32.totalorder %s45, %s46
      %p60 = scmp.eq.s32.totalorder %s24, 1
      %p61 = por %p59, %p60
      %p63 = scmp.ne.s32.totalorder %s46, %s62
      %p64 = scmp.eq.s32.totalorder %s24, 0
      %p65 = por %p63, %p64
      %s66 = ssub.s32 %s25, %s37
      %p67 = scmp.eq.s32.totalorder %s66, 0
      %s69 = sadd.s32 %s68, 1
      %s70 = scalar_select %p67, %s68, %s69
      %p73 = pneg %p67
      %p74 = scmp.eq.s32.totalorder %s18, 1
      %p75 = por %p73, %p74
      %p76 = scmp.ne.s32.totalorder %s68, %s71
      %p77 = scmp.eq.s32.totalorder %s18, 0
      %p78 = por %p76, %p77
      %p79 = scmp.ne.s32.totalorder %s68, %s71
      %p80 = scmp.eq.s32.totalorder %s23, 1
      %p81 = por %p79, %p80
      %p82 = scmp.ne.s32.totalorder %s71, %s72
      %p83 = scmp.eq.s32.totalorder %s23, 0
      %p84 = por %p82, %p83
      %p85 = scmp.ne.s32.totalorder %s71, %s72
      %p86 = scmp.eq.s32.totalorder %s24, 1
      %p87 = por %p85, %p86
      %p89 = scmp.ne.s32.totalorder %s72, %s88
      %p90 = scmp.eq.s32.totalorder %s24, 0
      %p91 = por %p89, %p90
      %s92 = ssub.s32 %s25, %s37
      %p93 = scmp.eq.s32.totalorder %s92, 0
      %s95 = sadd.s32 %s94, 1
      %s96 = scalar_select %p93, %s94, %s95
      %p99 = pneg %p93
      %p100 = scmp.eq.s32.totalorder %s18, 1
      %p101 = por %p99, %p100
      %p102 = scmp.ne.s32.totalorder %s94, %s97
      %p103 = scmp.eq.s32.totalorder %s18, 0
      %p104 = por %p102, %p103
      %p105 = scmp.ne.s32.totalorder %s94, %s97
      %p106 = scmp.eq.s32.totalorder %s23, 1
      %p107 = por %p105, %p106
      %p108 = scmp.ne.s32.totalorder %s97, %s98
      %p109 = scmp.eq.s32.totalorder %s23, 0
      %p110 = por %p108, %p109
      %p111 = scmp.ne.s32.totalorder %s97, %s98
      %p112 = scmp.eq.s32.totalorder %s24, 1
      %p113 = por %p111, %p112
      %p115 = scmp.ne.s32.totalorder %s98, %s114
      %p116 = scmp.eq.s32.totalorder %s24, 0
      %p117 = por %p115, %p116
      %s118 = ssub.s32 %s25, %s37
      %s119 = ssub.s32 %s26, %s33
      %s120 = sor.u32 %s118, %s119
      %p121 = scmp.eq.s32.totalorder %s120, 0
      %s123 = sadd.s32 %s122, 1
      %s124 = scalar_select %p121, %s122, %s123
      %p127 = pneg %p121
      %p128 = scmp.eq.s32.totalorder %s18, 1
      %p129 = por %p127, %p128
      %p130 = scmp.ne.s32.totalorder %s122, %s125
      %p131 = scmp.eq.s32.totalorder %s18, 0
      %p132 = por %p130, %p131
      %p133 = scmp.ne.s32.totalorder %s122, %s125
      %p134 = scmp.eq.s32.totalorder %s23, 1
      %p135 = por %p133, %p134
      %p136 = scmp.ne.s32.totalorder %s125, %s126
      %p137 = scmp.eq.s32.totalorder %s23, 0
      %p138 = por %p136, %p137
      %p139 = scmp.ne.s32.totalorder %s125, %s126
      %p140 = scmp.eq.s32.totalorder %s24, 1
      %p141 = por %p139, %p140
      %p143 = scmp.ne.s32.totalorder %s126, %s142
      %p144 = scmp.eq.s32.totalorder %s24, 0
      %p145 = por %p143, %p144
      %p146 = scmp.le.s32.totalorder 1, %s18
      %p147 = scmp.lt.s32.totalorder %s18, 3
      %p148 = pnand %p146, %p147
      %p149 = pneg %p148
      // Predicated region
      $region9: #{group_detr_transformer_fwd.32} parent=5 // pred_check
        _
      $region10: #{group_detr_transformer_fwd.32} parent=5 // pred_check_branch
        %151 = sbr.rel (%p148) target = $region12
      $region11: #{group_detr_transformer_fwd.32} parent=5 // pred_region
        %s152 = ssub.s32 %s18, 1
      $region12: #{group_detr_transformer_fwd.32} parent=5 // pred_fallthru
        _
      %p153 = scmp.lt.s32.totalorder %s18, 2
      // Predicated region
      $region13: #{group_detr_transformer_fwd.32} parent=5 // pred_check
        %p154 = pneg %p153
      $region14: #{group_detr_transformer_fwd.32} parent=5 // pred_check_branch
        %156 = sbr.rel (%p154) target = $region16
      $region15: #{group_detr_transformer_fwd.32} parent=5 // pred_region
        // Predicated region
        $region17: #{group_detr_transformer_fwd.32} parent=15 // pred_check
          %p157 = pneg %p52
        $region18: #{group_detr_transformer_fwd.32} parent=15 // pred_check_branch
          %159 = sbr.rel (%p157) target = $region20
        $region19: #{group_detr_transformer_fwd.32} parent=15 // pred_region
          %s160 = sand.u32 %s42, 1
          %s161 = scalar_lea.sflag [#allocation3], %s160
          %s162 = sand.u32 %s42, 1
          %s163 = smul.addr %s162, 4
          %s164 = scalar_lea.vmem [#allocation2], %s163
          %s166 = ssub.s32 64, 64
          %167 = vsyncadd %s161, %s166
          %s168 = sadd.s32 %s26, %s25
          %s169 = smul.addr %s168, 64
          %s170 = scalar_lea.hbm %s0, %s169
          %s172 = sshll.u32 %s164, 4
          %s173 = int_to_ptr.vmem [resolvable:$true] %s172
          %175 = dma.hbm_to_vmem [thread:$0]  %s170, 64, %s173, %s161
        $region20: #{group_detr_transformer_fwd.32} parent=15 // pred_fallthru
          _
        // Predicated region
        $region21: #{group_detr_transformer_fwd.32} parent=15 // pred_check
          %p176 = pneg %p78
        $region22: #{group_detr_transformer_fwd.32} parent=15 // pred_check_branch
          %178 = sbr.rel (%p176) target = $region24
        $region23: #{group_detr_transformer_fwd.32} parent=15 // pred_region
          %s179 = sand.u32 %s18, 1
          %s180 = scalar_lea.sflag [#allocation6], %s179
          %s181 = sand.u32 %s68, 1
          %s182 = smul.addr %s181, 4
          %s183 = scalar_lea.vmem [#allocation5], %s182
          %s185 = ssub.s32 64, 64
          %186 = vsyncadd %s180, %s185
          %s187 = smul.addr %s25, 64
          %s188 = scalar_lea.hbm %s1, %s187
          %s190 = sshll.u32 %s183, 4
          %s191 = int_to_ptr.vmem [resolvable:$true] %s190
          %193 = dma.hbm_to_vmem [thread:$0]  %s188, 64, %s191, %s180
        $region24: #{group_detr_transformer_fwd.32} parent=15 // pred_fallthru
          _
        // Predicated region
        $region25: #{group_detr_transformer_fwd.32} parent=15 // pred_check
          %p194 = pneg %p104
        $region26: #{group_detr_transformer_fwd.32} parent=15 // pred_check_branch
          %196 = sbr.rel (%p194) target = $region28
        $region27: #{group_detr_transformer_fwd.32} parent=15 // pred_region
          %s197 = sand.u32 %s18, 1
          %s198 = scalar_lea.sflag [#allocation6], %s197
          %s199 = sand.u32 %s94, 1
          %s200 = smul.addr %s199, 4
          %s201 = scalar_lea.vmem [#allocation7], %s200
          %s203 = ssub.s32 64, 64
          %204 = vsyncadd %s198, %s203
          %s205 = smul.addr %s25, 64
          %s206 = scalar_lea.hbm %s2, %s205
          %s208 = sshll.u32 %s201, 4
          %s209 = int_to_ptr.vmem [resolvable:$true] %s208
          %211 = dma.hbm_to_vmem [thread:$0]  %s206, 64, %s209, %s198
        $region28: #{group_detr_transformer_fwd.32} parent=15 // pred_fallthru
          _
      $region16: #{group_detr_transformer_fwd.32} parent=5 // pred_fallthru
        _
      %p212 = scmp.le.s32.totalorder 1, %s18
      %p213 = scmp.lt.s32.totalorder %s18, 3
      %p214 = pnand %p212, %p213
      %p215 = pneg %p214
      // Predicated region
      $region29: #{group_detr_transformer_fwd.32} parent=5 // pred_check
        _
      $region30: #{group_detr_transformer_fwd.32} parent=5 // pred_check_branch
        %217 = sbr.rel (%p214) target = $region32
      $region31: #{group_detr_transformer_fwd.32} parent=5 // pred_region
        %s218 = ssub.s32 %s18, 1
        %s219 = sand.u32 %s45, 1
        %s220 = scalar_lea.sflag [#allocation3], %s219
        %s221 = sand.u32 %s45, 1
        %s222 = smul.addr %s221, 4
        %s223 = scalar_lea.vmem [#allocation2], %s222
        // Predicated region
        $region33: #{group_detr_transformer_fwd.32} parent=31 // pred_check
          %p224 = pneg %p58
        $region34: #{group_detr_transformer_fwd.32} parent=31 // pred_check_branch
          %226 = sbr.rel (%p224) target = $region36
        $region35: #{group_detr_transformer_fwd.32} parent=31 // pred_region
          %227 = dma.done %s220, 64
        $region36: #{group_detr_transformer_fwd.32} parent=31 // pred_fallthru
          _
        %s228 = sand.u32 %s23, 1
        %s229 = scalar_lea.sflag [#allocation6], %s228
        %s230 = sand.u32 %s71, 1
        %s231 = smul.addr %s230, 4
        %s232 = scalar_lea.vmem [#allocation5], %s231
        // Predicated region
        $region37: #{group_detr_transformer_fwd.32} parent=31 // pred_check
          %p233 = pneg %p84
        $region38: #{group_detr_transformer_fwd.32} parent=31 // pred_check_branch
          %235 = sbr.rel (%p233) target = $region40
        $region39: #{group_detr_transformer_fwd.32} parent=31 // pred_region
          %236 = dma.done %s229, 64
        $region40: #{group_detr_transformer_fwd.32} parent=31 // pred_fallthru
          _
        %s237 = sand.u32 %s23, 1
        %s238 = scalar_lea.sflag [#allocation6], %s237
        %s239 = sand.u32 %s97, 1
        %s240 = smul.addr %s239, 4
        %s241 = scalar_lea.vmem [#allocation7], %s240
        // Predicated region
        $region41: #{group_detr_transformer_fwd.32} parent=31 // pred_check
          %p242 = pneg %p110
        $region42: #{group_detr_transformer_fwd.32} parent=31 // pred_check_branch
          %244 = sbr.rel (%p242) target = $region44
        $region43: #{group_detr_transformer_fwd.32} parent=31 // pred_region
          %245 = dma.done %s238, 64
        $region44: #{group_detr_transformer_fwd.32} parent=31 // pred_fallthru
          _
        %s246 = sand.u32 %s45, 1
        %s247 = scalar_lea.sflag [#allocation3], %s246
        %s248 = sand.u32 %s45, 1
        %s249 = smul.addr %s248, 4
        %s250 = scalar_lea.vmem [#allocation2], %s249
        %p251 = pneg %p58
        %p252 = pneg %p55
        %s253 = sand.u32 %s23, 1
        %s254 = scalar_lea.sflag [#allocation6], %s253
        %s255 = sand.u32 %s71, 1
        %s256 = smul.addr %s255, 4
        %s257 = scalar_lea.vmem [#allocation5], %s256
        %p258 = pneg %p84
        %p259 = pneg %p81
        %s260 = sand.u32 %s23, 1
        %s261 = scalar_lea.sflag [#allocation6], %s260
        %s262 = sand.u32 %s97, 1
        %s263 = smul.addr %s262, 4
        %s264 = scalar_lea.vmem [#allocation7], %s263
        %p265 = pneg %p110
        %p266 = pneg %p107
        %p267 = pneg %p138
        %p268 = pneg %p135
        %s269 = sand.u32 %s125, 1
        %s270 = scalar_lea.sflag [#allocation4], %s269
        %s271 = sand.u32 %s125, 1
        %s272 = smul.addr %s271, 4
        %s273 = scalar_lea.vmem [#allocation8], %s272
        %v275 = vld [vmem:[%s223] sm:$0xf]
        %v276 = vld [vmem:[%s232] sm:$0xf]
        %v277 = vld [vmem:[%s241] sm:$0xf]
        %vm278 = vcmask 130048
        %v280 = vsel %vm278, %v275, 0
        %v283 = vsel %vm278, %v276, 0
        %285 = vmatprep.subr.bf16.mxu0 0
        %286 = vmatpush1.bf16.xpose.msra.mxu0 %v283
        %287 = vmatprep.subr.bf16.mxu0 0
        %288 = vmatpush1.bf16.xpose.msra.mxu0 0
        %289 = vmatprep.subr.bf16.mxu0 0
        %290 = vmatpush1.bf16.xpose.msra.mxu0 0
        %291 = vmatprep.subr.bf16.mxu0 0
        %292 = vmatpush1.bf16.xpose.msra.mxu0 0
        %293 = vmatprep.subr.bf16.mxu0 0
        %294 = vmatpush1.bf16.xpose.msra.mxu0 0
        %295 = vmatprep.subr.bf16.mxu0 0
        %296 = vmatpush1.bf16.xpose.msra.mxu0 0
        %297 = vmatprep.subr.bf16.mxu0 0
        %298 = vmatpush1.bf16.xpose.msra.mxu0 0
        %299 = vmatprep.subr.bf16.mxu0 0
        %300 = vmatpush1.bf16.xpose.msra.mxu0 0
        %301 = vmatprep.subr.bf16.mxu0 0
        %302 = vmatpush1.bf16.xpose.msra.mxu0 0
        %303 = vmatprep.subr.bf16.mxu0 0
        %304 = vmatpush1.bf16.xpose.msra.mxu0 0
        %305 = vmatprep.subr.bf16.mxu0 0
        %306 = vmatpush1.bf16.xpose.msra.mxu0 0
        %307 = vmatprep.subr.bf16.mxu0 0
        %308 = vmatpush1.bf16.xpose.msra.mxu0 0
        %309 = vmatprep.subr.bf16.mxu0 0
        %310 = vmatpush1.bf16.xpose.msra.mxu0 0
        %311 = vmatprep.subr.bf16.mxu0 0
        %312 = vmatpush1.bf16.xpose.msra.mxu0 0
        %313 = vmatprep.subr.bf16.mxu0 0
        %314 = vmatpush1.bf16.xpose.msra.mxu0 0
        %315 = vmatprep.subr.bf16.mxu0 0
        %316 = vmatpush1.bf16.xpose.msra.mxu0 0
        %317 = vmatprep.mubr.bf16.mxu0 0
        %318 = vmatmul.mubr.bf16.gmra.mrb[0].mxu0 %v280
        %v319 = vpop.f32.mrb[0].mxu0
        %v320 = vadd.f32 0.0, %v319
        %v321 = vpop.f32.mrb[0].mxu0
        %v322 = vpop.f32.mrb[0].mxu0
        %v323 = vpop.f32.mrb[0].mxu0
        %324 = vdwg.mxu0
        %vm325 = vcmask 64512
        %v326 = vsel %vm325, %v320, -inf
        %327 = vmax.xlane.f32.xlu0 %v326
        %v328 = vpop.xlane.xlu0 %327
        %v329 = vsub.f32 %v320, %v328
        %v330 = vmul.f32 %v329, 1.442695
        %v331 = vpow.pop %v330
        %v332 = vsel %vm325, %v331, 0.0
        %333 = vadd.xlane.f32.xlu0 %v332
        %v334 = vpop.xlane.xlu0 %333
        %v335 = vrcp.pop %v334
        %v336 = vmul.f32 %v331, %v335
        %v337 = vpack.c.bf16 %v336, %v336
        %v339 = vsel %vm325, %v337, 0
        %vm341 = vcmask 1043456
        %v343 = vsel %vm341, %v277, 0
        %345 = vmatprep.subr.bf16.mxu0 0
        %346 = vmatpush1.bf16.msra.mxu0 %v343
        %347 = vmatprep.subr.bf16.mxu0 0
        %348 = vmatpush1.bf16.msra.mxu0 0
        %349 = vmatprep.subr.bf16.mxu0 0
        %350 = vmatpush1.bf16.msra.mxu0 0
        %351 = vmatprep.subr.bf16.mxu0 0
        %352 = vmatpush1.bf16.msra.mxu0 0
        %353 = vmatprep.subr.bf16.mxu0 0
        %354 = vmatpush1.bf16.msra.mxu0 0
        %355 = vmatprep.subr.bf16.mxu0 0
        %356 = vmatpush1.bf16.msra.mxu0 0
        %357 = vmatprep.subr.bf16.mxu0 0
        %358 = vmatpush1.bf16.msra.mxu0 0
        %359 = vmatprep.subr.bf16.mxu0 0
        %360 = vmatpush1.bf16.msra.mxu0 0
        %361 = vmatprep.subr.bf16.mxu0 0
        %362 = vmatpush1.bf16.msra.mxu0 0
        %363 = vmatprep.subr.bf16.mxu0 0
        %364 = vmatpush1.bf16.msra.mxu0 0
        %365 = vmatprep.subr.bf16.mxu0 0
        %366 = vmatpush1.bf16.msra.mxu0 0
        %367 = vmatprep.subr.bf16.mxu0 0
        %368 = vmatpush1.bf16.msra.mxu0 0
        %369 = vmatprep.subr.bf16.mxu0 0
        %370 = vmatpush1.bf16.msra.mxu0 0
        %371 = vmatprep.subr.bf16.mxu0 0
        %372 = vmatpush1.bf16.msra.mxu0 0
        %373 = vmatprep.subr.bf16.mxu0 0
        %374 = vmatpush1.bf16.msra.mxu0 0
        %375 = vmatprep.subr.bf16.mxu0 0
        %376 = vmatpush1.bf16.msra.mxu0 0
        %377 = vmatprep.mubr.bf16.mxu0 0
        %378 = vmatmul.mubr.bf16.gmra.mrb[0].mxu0 %v339
        %v379 = vpop.f32.mrb[0].mxu0
        %v380 = vadd.f32 0.0, %v379
        %v381 = vpop.f32.mrb[0].mxu0
        %v382 = vpop.f32.mrb[0].mxu0
        %v383 = vpop.f32.mrb[0].mxu0
        %384 = vdwg.mxu0
        %v385 = vpack.c.bf16 %v380, %v380
        %vm386 = vcmask 125952
        %387 = vst.msk [vmem:[%s273] sm:$0xf] %vm386, %v385
        %v389 = vunpack.c.l.b16 %v275
        %v390 = vpack.c.b16 %v389, %v389
        %391 = vrot.lane.b32.xlu0 %v390, 112
        %v392 = vpop.permute.xlu0 %391
        %v394 = vunpack.c.l.b16 %v276
        %v395 = vpack.c.b16 %v394, %v394
        %396 = vrot.lane.b32.xlu0 %v395, 112
        %v397 = vpop.permute.xlu0 %396
        %v399 = vsel %vm278, %v392, 0
        %v402 = vsel %vm278, %v397, 0
        %404 = vmatprep.subr.bf16.mxu0 0
        %405 = vmatpush1.bf16.xpose.msra.mxu0 %v402
        %406 = vmatprep.subr.bf16.mxu0 0
        %407 = vmatpush1.bf16.xpose.msra.mxu0 0
        %408 = vmatprep.subr.bf16.mxu0 0
        %409 = vmatpush1.bf16.xpose.msra.mxu0 0
        %410 = vmatprep.subr.bf16.mxu0 0
        %411 = vmatpush1.bf16.xpose.msra.mxu0 0
        %412 = vmatprep.subr.bf16.mxu0 0
        %413 = vmatpush1.bf16.xpose.msra.mxu0 0
        %414 = vmatprep.subr.bf16.mxu0 0
        %415 = vmatpush1.bf16.xpose.msra.mxu0 0
        %416 = vmatprep.subr.bf16.mxu0 0
        %417 = vmatpush1.bf16.xpose.msra.mxu0 0
        %418 = vmatprep.subr.bf16.mxu0 0
        %419 = vmatpush1.bf16.xpose.msra.mxu0 0
        %420 = vmatprep.subr.bf16.mxu0 0
        %421 = vmatpush1.bf16.xpose.msra.mxu0 0
        %422 = vmatprep.subr.bf16.mxu0 0
        %423 = vmatpush1.bf16.xpose.msra.mxu0 0
        %424 = vmatprep.subr.bf16.mxu0 0
        %425 = vmatpush1.bf16.xpose.msra.mxu0 0
        %426 = vmatprep.subr.bf16.mxu0 0
        %427 = vmatpush1.bf16.xpose.msra.mxu0 0
        %428 = vmatprep.subr.bf16.mxu0 0
        %429 = vmatpush1.bf16.xpose.msra.mxu0 0
        %430 = vmatprep.subr.bf16.mxu0 0
        %431 = vmatpush1.bf16.xpose.msra.mxu0 0
        %432 = vmatprep.subr.bf16.mxu0 0
        %433 = vmatpush1.bf16.xpose.msra.mxu0 0
        %434 = vmatprep.subr.bf16.mxu0 0
        %435 = vmatpush1.bf16.xpose.msra.mxu0 0
        %436 = vmatprep.mubr.bf16.mxu0 0
        %437 = vmatmul.mubr.bf16.gmra.mrb[0].mxu0 %v399
        %v438 = vpop.f32.mrb[0].mxu0
        %v439 = vadd.f32 0.0, %v438
        %v440 = vpop.f32.mrb[0].mxu0
        %v441 = vpop.f32.mrb[0].mxu0
        %v442 = vpop.f32.mrb[0].mxu0
        %443 = vdwg.mxu0
        %v444 = vsel %vm325, %v439, -inf
        %445 = vmax.xlane.f32.xlu0 %v444
        %v446 = vpop.xlane.xlu0 %445
        %v447 = vsub.f32 %v439, %v446
        %v448 = vmul.f32 %v447, 1.442695
        %v449 = vpow.pop %v448
        %v450 = vsel %vm325, %v449, 0.0
        %451 = vadd.xlane.f32.xlu0 %v450
        %v452 = vpop.xlane.xlu0 %451
        %v453 = vrcp.pop %v452
        %v454 = vmul.f32 %v449, %v453
        %v455 = vpack.c.bf16 %v454, %v454
        %v457 = vunpack.c.l.b16 %v277
        %v458 = vpack.c.b16 %v457, %v457
        %459 = vrot.lane.b32.xlu0 %v458, 112
        %v460 = vpop.permute.xlu0 %459
        %v462 = vsel %vm325, %v455, 0
        %v465 = vsel %vm341, %v460, 0
        %467 = vmatprep.subr.bf16.mxu0 0
        %468 = vmatpush1.bf16.msra.mxu0 %v465
        %469 = vmatprep.subr.bf16.mxu0 0
        %470 = vmatpush1.bf16.msra.mxu0 0
        %471 = vmatprep.subr.bf16.mxu0 0
        %472 = vmatpush1.bf16.msra.mxu0 0
        %473 = vmatprep.subr.bf16.mxu0 0
        %474 = vmatpush1.bf16.msra.mxu0 0
        %475 = vmatprep.subr.bf16.mxu0 0
        %476 = vmatpush1.bf16.msra.mxu0 0
        %477 = vmatprep.subr.bf16.mxu0 0
        %478 = vmatpush1.bf16.msra.mxu0 0
        %479 = vmatprep.subr.bf16.mxu0 0
        %480 = vmatpush1.bf16.msra.mxu0 0
        %481 = vmatprep.subr.bf16.mxu0 0
        %482 = vmatpush1.bf16.msra.mxu0 0
        %483 = vmatprep.subr.bf16.mxu0 0
        %484 = vmatpush1.bf16.msra.mxu0 0
        %485 = vmatprep.subr.bf16.mxu0 0
        %486 = vmatpush1.bf16.msra.mxu0 0
        %487 = vmatprep.subr.bf16.mxu0 0
        %488 = vmatpush1.bf16.msra.mxu0 0
        %489 = vmatprep.subr.bf16.mxu0 0
        %490 = vmatpush1.bf16.msra.mxu0 0
        %491 = vmatprep.subr.bf16.mxu0 0
        %492 = vmatpush1.bf16.msra.mxu0 0
        %493 = vmatprep.subr.bf16.mxu0 0
        %494 = vmatpush1.bf16.msra.mxu0 0
        %495 = vmatprep.subr.bf16.mxu0 0
        %496 = vmatpush1.bf16.msra.mxu0 0
        %497 = vmatprep.subr.bf16.mxu0 0
        %498 = vmatpush1.bf16.msra.mxu0 0
        %499 = vmatprep.mubr.bf16.mxu0 0
        %500 = vmatmul.mubr.bf16.gmra.mrb[0].mxu0 %v462
        %v501 = vpop.f32.mrb[0].mxu0
        %v502 = vadd.f32 0.0, %v501
        %v503 = vpop.f32.mrb[0].mxu0
        %v504 = vpop.f32.mrb[0].mxu0
        %v505 = vpop.f32.mrb[0].mxu0
        %506 = vdwg.mxu0
        %v507 = vpack.c.bf16 %v502, %v502
        %v509 = vunpack.c.l.b16 %v507
        %v510 = vpack.c.b16 %v509, %v509
        %511 = vrot.lane.b32.xlu0 %v510, 16
        %v512 = vpop.permute.xlu0 %511
        %vm514 = vcmask 257152
        %515 = vst.msk [vmem:[%s273] sm:$0xf] %vm514, %v512
        %516 = vrot.lane.b32.xlu0 %v390, 96
        %v517 = vpop.permute.xlu0 %516
        %518 = vrot.lane.b32.xlu0 %v395, 96
        %v519 = vpop.permute.xlu0 %518
        %v521 = vsel %vm278, %v517, 0
        %v524 = vsel %vm278, %v519, 0
        %526 = vmatprep.subr.bf16.mxu0 0
        %527 = vmatpush1.bf16.xpose.msra.mxu0 %v524
        %528 = vmatprep.subr.bf16.mxu0 0
        %529 = vmatpush1.bf16.xpose.msra.mxu0 0
        %530 = vmatprep.subr.bf16.mxu0 0
        %531 = vmatpush1.bf16.xpose.msra.mxu0 0
        %532 = vmatprep.subr.bf16.mxu0 0
        %533 = vmatpush1.bf16.xpose.msra.mxu0 0
        %534 = vmatprep.subr.bf16.mxu0 0
        %535 = vmatpush1.bf16.xpose.msra.mxu0 0
        %536 = vmatprep.subr.bf16.mxu0 0
        %537 = vmatpush1.bf16.xpose.msra.mxu0 0
        %538 = vmatprep.subr.bf16.mxu0 0
        %539 = vmatpush1.bf16.xpose.msra.mxu0 0
        %540 = vmatprep.subr.bf16.mxu0 0
        %541 = vmatpush1.bf16.xpose.msra.mxu0 0
        %542 = vmatprep.subr.bf16.mxu0 0
        %543 = vmatpush1.bf16.xpose.msra.mxu0 0
        %544 = vmatprep.subr.bf16.mxu0 0
        %545 = vmatpush1.bf16.xpose.msra.mxu0 0
        %546 = vmatprep.subr.bf16.mxu0 0
        %547 = vmatpush1.bf16.xpose.msra.mxu0 0
        %548 = vmatprep.subr.bf16.mxu0 0
        %549 = vmatpush1.bf16.xpose.msra.mxu0 0
        %550 = vmatprep.subr.bf16.mxu0 0
        %551 = vmatpush1.bf16.xpose.msra.mxu0 0
        %552 = vmatprep.subr.bf16.mxu0 0
        %553 = vmatpush1.bf16.xpose.msra.mxu0 0
        %554 = vmatprep.subr.bf16.mxu0 0
        %555 = vmatpush1.bf16.xpose.msra.mxu0 0
        %556 = vmatprep.subr.bf16.mxu0 0
        %557 = vmatpush1.bf16.xpose.msra.mxu0 0
        %558 = vmatprep.mubr.bf16.mxu0 0
        %559 = vmatmul.mubr.bf16.gmra.mrb[0].mxu0 %v521
        %v560 = vpop.f32.mrb[0].mxu0
        %v561 = vadd.f32 0.0, %v560
        %v562 = vpop.f32.mrb[0].mxu0
        %v563 = vpop.f32.mrb[0].mxu0
        %v564 = vpop.f32.mrb[0].mxu0
        %565 = vdwg.mxu0
        %v566 = vsel %vm325, %v561, -inf
        %567 = vmax.xlane.f32.xlu0 %v566
        %v568 = vpop.xlane.xlu0 %567
        %v569 = vsub.f32 %v561, %v568
        %v570 = vmul.f32 %v569, 1.442695
        %v571 = vpow.pop %v570
        %v572 = vsel %vm325, %v571, 0.0
        %573 = vadd.xlane.f32.xlu0 %v572
        %v574 = vpop.xlane.xlu0 %573
        %v575 = vrcp.pop %v574
        %v576 = vmul.f32 %v571, %v575
        %v577 = vpack.c.bf16 %v576, %v576
        %578 = vrot.lane.b32.xlu0 %v458, 96
        %v579 = vpop.permute.xlu0 %578
        %v581 = vsel %vm325, %v577, 0
        %v584 = vsel %vm341, %v579, 0
        %586 = vmatprep.subr.bf16.mxu0 0
        %587 = vmatpush1.bf16.msra.mxu0 %v584
        %588 = vmatprep.subr.bf16.mxu0 0
        %589 = vmatpush1.bf16.msra.mxu0 0
        %590 = vmatprep.subr.bf16.mxu0 0
        %591 = vmatpush1.bf16.msra.mxu0 0
        %592 = vmatprep.subr.bf16.mxu0 0
        %593 = vmatpush1.bf16.msra.mxu0 0
        %594 = vmatprep.subr.bf16.mxu0 0
        %595 = vmatpush1.bf16.msra.mxu0 0
        %596 = vmatprep.subr.bf16.mxu0 0
        %597 = vmatpush1.bf16.msra.mxu0 0
        %598 = vmatprep.subr.bf16.mxu0 0
        %599 = vmatpush1.bf16.msra.mxu0 0
        %600 = vmatprep.subr.bf16.mxu0 0
        %601 = vmatpush1.bf16.msra.mxu0 0
        %602 = vmatprep.subr.bf16.mxu0 0
        %603 = vmatpush1.bf16.msra.mxu0 0
        %604 = vmatprep.subr.bf16.mxu0 0
        %605 = vmatpush1.bf16.msra.mxu0 0
        %606 = vmatprep.subr.bf16.mxu0 0
        %607 = vmatpush1.bf16.msra.mxu0 0
        %608 = vmatprep.subr.bf16.mxu0 0
        %609 = vmatpush1.bf16.msra.mxu0 0
        %610 = vmatprep.subr.bf16.mxu0 0
        %611 = vmatpush1.bf16.msra.mxu0 0
        %612 = vmatprep.subr.bf16.mxu0 0
        %613 = vmatpush1.bf16.msra.mxu0 0
        %614 = vmatprep.subr.bf16.mxu0 0
        %615 = vmatpush1.bf16.msra.mxu0 0
        %616 = vmatprep.subr.bf16.mxu0 0
        %617 = vmatpush1.bf16.msra.mxu0 0
        %618 = vmatprep.mubr.bf16.mxu0 0
        %619 = vmatmul.mubr.bf16.gmra.mrb[0].mxu0 %v581
        %v620 = vpop.f32.mrb[0].mxu0
        %v621 = vadd.f32 0.0, %v620
        %v622 = vpop.f32.mrb[0].mxu0
        %v623 = vpop.f32.mrb[0].mxu0
        %v624 = vpop.f32.mrb[0].mxu0
        %625 = vdwg.mxu0
        %v626 = vpack.c.bf16 %v621, %v621
        %v628 = vunpack.c.l.b16 %v626
        %v629 = vpack.c.b16 %v628, %v628
        %630 = vrot.lane.b32.xlu0 %v629, 32
        %v631 = vpop.permute.xlu0 %630
        %vm633 = vcmask 388352
        %634 = vst.msk [vmem:[%s273] sm:$0xf] %vm633, %v631
        %635 = vrot.lane.b32.xlu0 %v390, 80
        %v636 = vpop.permute.xlu0 %635
        %637 = vrot.lane.b32.xlu0 %v395, 80
        %v638 = vpop.permute.xlu0 %637
        %v640 = vsel %vm278, %v636, 0
        %v643 = vsel %vm278, %v638, 0
        %645 = vmatprep.subr.bf16.mxu0 0
        %646 = vmatpush1.bf16.xpose.msra.mxu0 %v643
        %647 = vmatprep.subr.bf16.mxu0 0
        %648 = vmatpush1.bf16.xpose.msra.mxu0 0
        %649 = vmatprep.subr.bf16.mxu0 0
        %650 = vmatpush1.bf16.xpose.msra.mxu0 0
        %651 = vmatprep.subr.bf16.mxu0 0
        %652 = vmatpush1.bf16.xpose.msra.mxu0 0
        %653 = vmatprep.subr.bf16.mxu0 0
        %654 = vmatpush1.bf16.xpose.msra.mxu0 0
        %655 = vmatprep.subr.bf16.mxu0 0
        %656 = vmatpush1.bf16.xpose.msra.mxu0 0
        %657 = vmatprep.subr.bf16.mxu0 0
        %658 = vmatpush1.bf16.xpose.msra.mxu0 0
        %659 = vmatprep.subr.bf16.mxu0 0
        %660 = vmatpush1.bf16.xpose.msra.mxu0 0
        %661 = vmatprep.subr.bf16.mxu0 0
        %662 = vmatpush1.bf16.xpose.msra.mxu0 0
        %663 = vmatprep.subr.bf16.mxu0 0
        %664 = vmatpush1.bf16.xpose.msra.mxu0 0
        %665 = vmatprep.subr.bf16.mxu0 0
        %666 = vmatpush1.bf16.xpose.msra.mxu0 0
        %667 = vmatprep.subr.bf16.mxu0 0
        %668 = vmatpush1.bf16.xpose.msra.mxu0 0
        %669 = vmatprep.subr.bf16.mxu0 0
        %670 = vmatpush1.bf16.xpose.msra.mxu0 0
        %671 = vmatprep.subr.bf16.mxu0 0
        %672 = vmatpush1.bf16.xpose.msra.mxu0 0
        %673 = vmatprep.subr.bf16.mxu0 0
        %674 = vmatpush1.bf16.xpose.msra.mxu0 0
        %675 = vmatprep.subr.bf16.mxu0 0
        %676 = vmatpush1.bf16.xpose.msra.mxu0 0
        %677 = vmatprep.mubr.bf16.mxu0 0
        %678 = vmatmul.mubr.bf16.gmra.mrb[0].mxu0 %v640
        %v679 = vpop.f32.mrb[0].mxu0
        %v680 = vadd.f32 0.0, %v679
        %v681 = vpop.f32.mrb[0].mxu0
        %v682 = vpop.f32.mrb[0].mxu0
        %v683 = vpop.f32.mrb[0].mxu0
        %684 = vdwg.mxu0
        %v685 = vsel %vm325, %v680, -inf
        %686 = vmax.xlane.f32.xlu0 %v685
        %v687 = vpop.xlane.xlu0 %686
        %v688 = vsub.f32 %v680, %v687
        %v689 = vmul.f32 %v688, 1.442695
        %v690 = vpow.pop %v689
        %v691 = vsel %vm325, %v690, 0.0
        %692 = vadd.xlane.f32.xlu0 %v691
        %v693 = vpop.xlane.xlu0 %692
        %v694 = vrcp.pop %v693
        %v695 = vmul.f32 %v690, %v694
        %v696 = vpack.c.bf16 %v695, %v695
        %697 = vrot.lane.b32.xlu0 %v458, 80
        %v698 = vpop.permute.xlu0 %697
        %v700 = vsel %vm325, %v696, 0
        %v703 = vsel %vm341, %v698, 0
        %705 = vmatprep.subr.bf16.mxu0 0
        %706 = vmatpush1.bf16.msra.mxu0 %v703
        %707 = vmatprep.subr.bf16.mxu0 0
        %708 = vmatpush1.bf16.msra.mxu0 0
        %709 = vmatprep.subr.bf16.mxu0 0
        %710 = vmatpush1.bf16.msra.mxu0 0
        %711 = vmatprep.subr.bf16.mxu0 0
        %712 = vmatpush1.bf16.msra.mxu0 0
        %713 = vmatprep.subr.bf16.mxu0 0
        %714 = vmatpush1.bf16.msra.mxu0 0
        %715 = vmatprep.subr.bf16.mxu0 0
        %716 = vmatpush1.bf16.msra.mxu0 0
        %717 = vmatprep.subr.bf16.mxu0 0
        %718 = vmatpush1.bf16.msra.mxu0 0
        %719 = vmatprep.subr.bf16.mxu0 0
        %720 = vmatpush1.bf16.msra.mxu0 0
        %721 = vmatprep.subr.bf16.mxu0 0
        %722 = vmatpush1.bf16.msra.mxu0 0
        %723 = vmatprep.subr.bf16.mxu0 0
        %724 = vmatpush1.bf16.msra.mxu0 0
        %725 = vmatprep.subr.bf16.mxu0 0
        %726 = vmatpush1.bf16.msra.mxu0 0
        %727 = vmatprep.subr.bf16.mxu0 0
        %728 = vmatpush1.bf16.msra.mxu0 0
        %729 = vmatprep.subr.bf16.mxu0 0
        %730 = vmatpush1.bf16.msra.mxu0 0
        %731 = vmatprep.subr.bf16.mxu0 0
        %732 = vmatpush1.bf16.msra.mxu0 0
        %733 = vmatprep.subr.bf16.mxu0 0
        %734 = vmatpush1.bf16.msra.mxu0 0
        %735 = vmatprep.subr.bf16.mxu0 0
        %736 = vmatpush1.bf16.msra.mxu0 0
        %737 = vmatprep.mubr.bf16.mxu0 0
        %738 = vmatmul.mubr.bf16.gmra.mrb[0].mxu0 %v700
        %v739 = vpop.f32.mrb[0].mxu0
        %v740 = vadd.f32 0.0, %v739
        %v741 = vpop.f32.mrb[0].mxu0
        %v742 = vpop.f32.mrb[0].mxu0
        %v743 = vpop.f32.mrb[0].mxu0
        %744 = vdwg.mxu0
        %v745 = vpack.c.bf16 %v740, %v740
        %v747 = vunpack.c.l.b16 %v745
        %v748 = vpack.c.b16 %v747, %v747
        %749 = vrot.lane.b32.xlu0 %v748, 48
        %v750 = vpop.permute.xlu0 %749
        %vm752 = vcmask 519552
        %753 = vst.msk [vmem:[%s273] sm:$0xf] %vm752, %v750
        %s754 = sand.u32 %s125, 1
        %s755 = scalar_lea.sflag [#allocation4], %s754
        %s756 = sand.u32 %s125, 1
        %s757 = smul.addr %s756, 4
        %s758 = scalar_lea.vmem [#allocation8], %s757
        // Predicated region
        $region45: #{group_detr_transformer_fwd.32} parent=31 // pred_check
          %p759 = pneg %p135
        $region46: #{group_detr_transformer_fwd.32} parent=31 // pred_check_branch
          %761 = sbr.rel (%p759) target = $region48
        $region47: #{group_detr_transformer_fwd.32} parent=31 // pred_region
          %s763 = ssub.s32 64, 64
          %764 = vsyncadd %s755, %s763
          %s765 = sadd.s32 %s28, %s27
          %s766 = smul.addr %s765, 64
          %s767 = scalar_lea.hbm %s3, %s766
          %s769 = sshll.u32 %s758, 4
          %s770 = int_to_ptr.vmem [resolvable:$true] %s769
          %772 = dma.vmem_to_hbm [thread:$0]  %s770, 64, %s767, %s755
        $region48: #{group_detr_transformer_fwd.32} parent=31 // pred_fallthru
          _
      $region32: #{group_detr_transformer_fwd.32} parent=5 // pred_fallthru
        _
      %p773 = scmp.le.s32.totalorder 2, %s18
      // Predicated region
      $region49: #{group_detr_transformer_fwd.32} parent=5 // pred_check
        %p774 = pneg %p773
      $region50: #{group_detr_transformer_fwd.32} parent=5 // pred_check_branch
        %776 = sbr.rel (%p774) target = $region52
      $region51: #{group_detr_transformer_fwd.32} parent=5 // pred_region
        %s777 = ssub.s32 %s18, 2
        // Predicated region
        $region53: #{group_detr_transformer_fwd.32} parent=51 // pred_check
          %p778 = pneg %p141
        $region54: #{group_detr_transformer_fwd.32} parent=51 // pred_check_branch
          %780 = sbr.rel (%p778) target = $region56
        $region55: #{group_detr_transformer_fwd.32} parent=51 // pred_region
          %s781 = sand.u32 %s126, 1
          %s782 = scalar_lea.sflag [#allocation4], %s781
          %s783 = sand.u32 %s126, 1
          %s784 = smul.addr %s783, 4
          %s785 = scalar_lea.vmem [#allocation8], %s784
          %786 = dma.done %s782, 64
        $region56: #{group_detr_transformer_fwd.32} parent=51 // pred_fallthru
          _
      $region52: #{group_detr_transformer_fwd.32} parent=5 // pred_fallthru
        _
    $region6: #{group_detr_transformer_fwd.32} parent=1 // loop_footer
      %s22 = sadd.s32 1, %s18
    $region7: #{group_detr_transformer_fwd.32} parent=1 // loop_footer_branch
      %17 = sbr.rel target = $region3
    $region8: #{group_detr_transformer_fwd.32} parent=1 // loop_exit
      _
    %787 = vsyncpa [#allocation3], 1
    %s788 = scalar_lea.sflag [#allocation3], 1
    %789 = vsyncpa %s788, 1
    %790 = vsyncpa [#allocation6], 1
    %s791 = scalar_lea.sflag [#allocation6], 1
    %792 = vsyncpa %s791, 1
    %793 = vsyncpa [#allocation4], 1
    %s794 = scalar_lea.sflag [#allocation4], 1
    %795 = vsyncpa %s794, 1

// kernel: group_detr_transformer_fwd.34
$region0: #{group_detr_transformer_fwd.34}
  #allocation0 [shape = 'u32[]', space=smem, size = 0x4, offset = 0x4, fixed_abs, tag = 'smem constant byte address 0x4 - core index']
  #allocation1 [shape = 'u32[144,128]{1,0:T(1,128)}', space=vmem, size = 0x12000, scoped, tag = 'internal scratch']
  %s0 = inlined_call_operand.hbm [shape: bf16[32,64], index: 0, kind: input, shape index: {}]
  %s1 = inlined_call_operand.hbm [shape: bf16[32,64], index: 1, kind: input, shape index: {}]
  %s2 = inlined_call_operand.hbm [shape: bf16[64,64], index: 2, kind: input, shape index: {}]
  %s3 = inlined_call_operand.hbm [shape: f32[1,64], index: 3, kind: input, shape index: {}, may-alias: {3,5}]
  %s4 = inlined_call_operand.hbm [shape: bf16[64,64], index: 4, kind: input, shape index: {}]
  %s5 = inlined_call_operand.hbm [shape: f32[1,64], index: 5, kind: input, shape index: {}, may-alias: {3,5}]
  %s6 = inlined_call_operand.hbm [shape: bf16[32,64], index: 6, kind: output, shape index: {0}]
  %s7 = inlined_call_operand.hbm [shape: bf16[32,64], index: 7, kind: output, shape index: {1}]
  %8 = xla_tuple %s6, %s7
  %s9 = sld [smem:[#allocation0]]
  $region66: #{group_detr_transformer_fwd.34} parent=0
    _
  %s11 = ssub.s32 1, %s9
  %s12 = scalar_select 0, %s11, %s9
  $region1: #{group_detr_transformer_fwd.34} parent=0
    #allocation2 [shape = 'u8[8192]{0}', space=vmem, size = 0x2000, scoped, tag = 'input window, operand 0, single buffered']
    #allocation3 [shape = 's32[1]{0}', space=sflag, size = 0x4, scoped, tag = 'scoped memory for group_detr_transformer_fwd.34']
    #allocation4 [shape = 's32[1]{0}', space=sflag, size = 0x4, scoped, tag = 'scoped memory for group_detr_transformer_fwd.34']
    #allocation5 [shape = 'u8[8192]{0}', space=vmem, size = 0x2000, scoped, tag = 'input window, operand 1, single buffered']
    #allocation6 [shape = 's32[1]{0}', space=sflag, size = 0x4, scoped, tag = 'scoped memory for group_detr_transformer_fwd.34']
    #allocation7 [shape = 'u8[16384]{0}', space=vmem, size = 0x4000, scoped, tag = 'input window, operand 2, single buffered']
    #allocation8 [shape = 'u8[512]{0}', space=vmem, size = 0x400, scoped, tag = 'input window, operand 3, single buffered']
    #allocation9 [shape = 's32[1]{0}', space=sflag, size = 0x4, scoped, tag = 'scoped memory for group_detr_transformer_fwd.34']
    #allocation10 [shape = 'u8[16384]{0}', space=vmem, size = 0x4000, scoped, tag = 'input window, operand 4, single buffered']
    #allocation11 [shape = 'u8[512]{0}', space=vmem, size = 0x400, scoped, tag = 'input window, operand 5, single buffered']
    #allocation12 [shape = 's32[1]{0}', space=sflag, size = 0x4, scoped, tag = 'scoped memory for group_detr_transformer_fwd.34']
    #allocation13 [shape = 'u8[8192]{0}', space=vmem, size = 0x2000, scoped, tag = 'output window, operand 0, single buffered']
    #allocation14 [shape = 'u8[8192]{0}', space=vmem, size = 0x2000, scoped, tag = 'output window, operand 1, single buffered']
    #allocation15 [shape = 's32[1]{0}', space=sflag, size = 0x4, scoped, tag = 'scoped memory for group_detr_transformer_fwd.34']
    %13 = vsyncpa [#allocation3], 0
    %14 = vsyncpa [#allocation6], 0
    %15 = vsyncpa [#allocation9], 0
    %16 = vsyncpa [#allocation12], 0
    %17 = vsyncpa [#allocation4], 0
    %18 = vsyncpa [#allocation15], 0
    // Predicated region
    $region2: #{group_detr_transformer_fwd.34} parent=1 // pred_check
      _
    $region3: #{group_detr_transformer_fwd.34} parent=1 // pred_check_branch
      %20 = sbr.rel (0) target = $region5
    $region4: #{group_detr_transformer_fwd.34} parent=1 // pred_region
      %s22 = ssub.s32 256, 256
      %23 = vsyncadd [#allocation3], %s22
      %s24 = sshll.u32 [#allocation2], 4
      %s25 = int_to_ptr.vmem [resolvable:$true] %s24
      %30 = dma.hbm_to_vmem [thread:$0]  %s0, 256, %s25, [#allocation3], 64, 64, 4
    $region5: #{group_detr_transformer_fwd.34} parent=1 // pred_fallthru
      _
    // Predicated region
    $region6: #{group_detr_transformer_fwd.34} parent=1 // pred_check
      _
    $region7: #{group_detr_transformer_fwd.34} parent=1 // pred_check_branch
      %32 = sbr.rel (0) target = $region9
    $region8: #{group_detr_transformer_fwd.34} parent=1 // pred_region
      %s34 = ssub.s32 256, 256
      %35 = vsyncadd [#allocation6], %s34
      %s36 = sshll.u32 [#allocation5], 4
      %s37 = int_to_ptr.vmem [resolvable:$true] %s36
      %42 = dma.hbm_to_vmem [thread:$0]  %s1, 256, %s37, [#allocation6], 64, 64, 4
    $region9: #{group_detr_transformer_fwd.34} parent=1 // pred_fallthru
      _
    // Predicated region
    $region10: #{group_detr_transformer_fwd.34} parent=1 // pred_check
      _
    $region11: #{group_detr_transformer_fwd.34} parent=1 // pred_check_branch
      %44 = sbr.rel (0) target = $region13
    $region12: #{group_detr_transformer_fwd.34} parent=1 // pred_region
      %s46 = ssub.s32 512, 512
      %47 = vsyncadd [#allocation6], %s46
      %s48 = sshll.u32 [#allocation7], 4
      %s49 = int_to_ptr.vmem [resolvable:$true] %s48
      %54 = dma.hbm_to_vmem [thread:$0]  %s2, 512, %s49, [#allocation6], 64, 64, 4
    $region13: #{group_detr_transformer_fwd.34} parent=1 // pred_fallthru
      _
    // Predicated region
    $region14: #{group_detr_transformer_fwd.34} parent=1 // pred_check
      _
    $region15: #{group_detr_transformer_fwd.34} parent=1 // pred_check_branch
      %56 = sbr.rel (0) target = $region17
    $region16: #{group_detr_transformer_fwd.34} parent=1 // pred_region
      %s58 = ssub.s32 16, 16
      %59 = vsyncadd [#allocation9], %s58
      %s61 = sshll.u32 [#allocation8], 4
      %s62 = int_to_ptr.vmem [resolvable:$true] %s61
      %64 = dma.hbm_to_vmem [thread:$0]  %s3, 16, %s62, [#allocation9]
    $region17: #{group_detr_transformer_fwd.34} parent=1 // pred_fallthru
      _
    // Predicated region
    $region18: #{group_detr_transformer_fwd.34} parent=1 // pred_check
      _
    $region19: #{group_detr_transformer_fwd.34} parent=1 // pred_check_branch
      %66 = sbr.rel (0) target = $region21
    $region20: #{group_detr_transformer_fwd.34} parent=1 // pred_region
      %s68 = ssub.s32 512, 512
      %69 = vsyncadd [#allocation9], %s68
      %s70 = sshll.u32 [#allocation10], 4
      %s71 = int_to_ptr.vmem [resolvable:$true] %s70
      %76 = dma.hbm_to_vmem [thread:$0]  %s4, 512, %s71, [#allocation9], 64, 64, 4
    $region21: #{group_detr_transformer_fwd.34} parent=1 // pred_fallthru
      _
    // Predicated region
    $region22: #{group_detr_transformer_fwd.34} parent=1 // pred_check
      _
    $region23: #{group_detr_transformer_fwd.34} parent=1 // pred_check_branch
      %78 = sbr.rel (0) target = $region25
    $region24: #{group_detr_transformer_fwd.34} parent=1 // pred_region
      %s80 = ssub.s32 16, 16
      %81 = vsyncadd [#allocation12], %s80
      %s83 = sshll.u32 [#allocation11], 4
      %s84 = int_to_ptr.vmem [resolvable:$true] %s83
      %86 = dma.hbm_to_vmem [thread:$0]  %s5, 16, %s84, [#allocation12]
    $region25: #{group_detr_transformer_fwd.34} parent=1 // pred_fallthru
      _
    // Predicated region
    $region26: #{group_detr_transformer_fwd.34} parent=1 // pred_check
      _
    $region27: #{group_detr_transformer_fwd.34} parent=1 // pred_check_branch
      %88 = sbr.rel (0) target = $region29
    $region28: #{group_detr_transformer_fwd.34} parent=1 // pred_region
      %89 = dma.done [#allocation3], 256
    $region29: #{group_detr_transformer_fwd.34} parent=1 // pred_fallthru
      _
    // Predicated region
    $region30: #{group_detr_transformer_fwd.34} parent=1 // pred_check
      _
    $region31: #{group_detr_transformer_fwd.34} parent=1 // pred_check_branch
      %91 = sbr.rel (0) target = $region33
    $region32: #{group_detr_transformer_fwd.34} parent=1 // pred_region
      %92 = dma.done [#allocation6], 256
    $region33: #{group_detr_transformer_fwd.34} parent=1 // pred_fallthru
      _
    // Predicated region
    $region34: #{group_detr_transformer_fwd.34} parent=1 // pred_check
      _
    $region35: #{group_detr_transformer_fwd.34} parent=1 // pred_check_branch
      %94 = sbr.rel (0) target = $region37
    $region36: #{group_detr_transformer_fwd.34} parent=1 // pred_region
      %95 = dma.done [#allocation6], 512
    $region37: #{group_detr_transformer_fwd.34} parent=1 // pred_fallthru
      _
    // Predicated region
    $region38: #{group_detr_transformer_fwd.34} parent=1 // pred_check
      _
    $region39: #{group_detr_transformer_fwd.34} parent=1 // pred_check_branch
      %97 = sbr.rel (0) target = $region41
    $region40: #{group_detr_transformer_fwd.34} parent=1 // pred_region
      %98 = dma.done [#allocation9], 16
    $region41: #{group_detr_transformer_fwd.34} parent=1 // pred_fallthru
      _
    // Predicated region
    $region42: #{group_detr_transformer_fwd.34} parent=1 // pred_check
      _
    $region43: #{group_detr_transformer_fwd.34} parent=1 // pred_check_branch
      %100 = sbr.rel (0) target = $region45
    $region44: #{group_detr_transformer_fwd.34} parent=1 // pred_region
      %101 = dma.done [#allocation9], 512
    $region45: #{group_detr_transformer_fwd.34} parent=1 // pred_fallthru
      _
    // Predicated region
    $region46: #{group_detr_transformer_fwd.34} parent=1 // pred_check
      _
    $region47: #{group_detr_transformer_fwd.34} parent=1 // pred_check_branch
      %103 = sbr.rel (0) target = $region49
    $region48: #{group_detr_transformer_fwd.34} parent=1 // pred_region
      %104 = dma.done [#allocation12], 16
    $region49: #{group_detr_transformer_fwd.34} parent=1 // pred_fallthru
      _
    %v106 = vld [vmem:[#allocation2] sm:$0xf]
    %v107 = vld [vmem:[#allocation2 + $0x4] sm:$0xf]
    %v108 = vld [vmem:[#allocation2 + $0x8] sm:$0xf]
    %v109 = vld [vmem:[#allocation2 + $0xc] sm:$0xf]
    %v110 = vld [vmem:[#allocation5] sm:$0xf]
    %v111 = vld [vmem:[#allocation5 + $0x4] sm:$0xf]
    %v112 = vld [vmem:[#allocation5 + $0x8] sm:$0xf]
    %v113 = vld [vmem:[#allocation5 + $0xc] sm:$0xf]
    %v114 = vadd.bf16 %v106, %v110
    %v115 = vadd.bf16 %v107, %v111
    %v116 = vadd.bf16 %v108, %v112
    %v117 = vadd.bf16 %v109, %v113
    %v118 = vld [vmem:[#allocation7] sm:$0xf]
    %v119 = vld [vmem:[#allocation7 + $0x4] sm:$0xf]
    %v120 = vld [vmem:[#allocation7 + $0x8] sm:$0xf]
    %v121 = vld [vmem:[#allocation7 + $0xc] sm:$0xf]
    %v122 = vld [vmem:[#allocation7 + $0x10] sm:$0xf]
    %v123 = vld [vmem:[#allocation7 + $0x14] sm:$0xf]
    %v124 = vld [vmem:[#allocation7 + $0x18] sm:$0xf]
    %v125 = vld [vmem:[#allocation7 + $0x1c] sm:$0xf]
    %v126 = vld [vmem:[#allocation8] sm:$0x1]
    %v128 = vlaneseq
    %v129 = vshrl.u32 %v128, 7
    %v130 = vsub.s32 0, %v129
    %v131 = vrot.slane %v126, %v130
    %v137 = vunpack.c.l.b16 %v114
    %v138 = vunpack.c.l.b16 %v115
    %v139 = vunpack.c.l.b16 %v116
    %v140 = vunpack.c.l.b16 %v117
    %v141 = vpack.c.b16 %v138, %v137
    %v142 = vpack.c.b16 %v140, %v139
    %v151 = vunpack.c.l.b16 %v118
    %v152 = vunpack.c.l.b16 %v119
    %v153 = vunpack.c.l.b16 %v120
    %v154 = vunpack.c.l.b16 %v121
    %v155 = vunpack.c.l.b16 %v122
    %v156 = vunpack.c.l.b16 %v123
    %v157 = vunpack.c.l.b16 %v124
    %v158 = vunpack.c.l.b16 %v125
    %v159 = vpack.c.b16 %v152, %v151
    %v160 = vpack.c.b16 %v154, %v153
    %v161 = vpack.c.b16 %v156, %v155
    %v162 = vpack.c.b16 %v158, %v157
    %vm167 = vcmask 523264
    %v169 = vsel %vm167, %v141, 0
    %v172 = vsel %vm167, %v142, 0
    %174 = vmatprep.subr.bf16.mxu0 0
    %175 = vmatpush1.bf16.msra.mxu0 %v159
    %176 = vmatprep.subr.bf16.mxu0 0
    %177 = vmatpush1.bf16.msra.mxu0 %v160
    %178 = vmatprep.subr.bf16.mxu0 0
    %179 = vmatpush1.bf16.msra.mxu0 %v161
    %180 = vmatprep.subr.bf16.mxu0 0
    %181 = vmatpush1.bf16.msra.mxu0 %v162
    %182 = vmatprep.subr.bf16.mxu0 0
    %183 = vmatpush1.bf16.msra.mxu0 0
    %184 = vmatprep.subr.bf16.mxu0 0
    %185 = vmatpush1.bf16.msra.mxu0 0
    %186 = vmatprep.subr.bf16.mxu0 0
    %187 = vmatpush1.bf16.msra.mxu0 0
    %188 = vmatprep.subr.bf16.mxu0 0
    %189 = vmatpush1.bf16.msra.mxu0 0
    %190 = vmatprep.subr.bf16.mxu0 0
    %191 = vmatpush1.bf16.msra.mxu0 0
    %192 = vmatprep.subr.bf16.mxu0 0
    %193 = vmatpush1.bf16.msra.mxu0 0
    %194 = vmatprep.subr.bf16.mxu0 0
    %195 = vmatpush1.bf16.msra.mxu0 0
    %196 = vmatprep.subr.bf16.mxu0 0
    %197 = vmatpush1.bf16.msra.mxu0 0
    %198 = vmatprep.subr.bf16.mxu0 0
    %199 = vmatpush1.bf16.msra.mxu0 0
    %200 = vmatprep.subr.bf16.mxu0 0
    %201 = vmatpush1.bf16.msra.mxu0 0
    %202 = vmatprep.subr.bf16.mxu0 0
    %203 = vmatpush1.bf16.msra.mxu0 0
    %204 = vmatprep.subr.bf16.mxu0 0
    %205 = vmatpush1.bf16.msra.mxu0 0
    %206 = vmatprep.mubr.bf16.mxu0 0
    %207 = vmatmul.mubr.bf16.gmra.mrb[0].mxu0 %v169
    %v208 = vpop.f32.mrb[0].mxu0
    %v209 = vadd.f32 %v131, %v208
    %v210 = vpop.f32.mrb[0].mxu0
    %v211 = vpop.f32.mrb[0].mxu0
    %v212 = vadd.f32 %v131, %v211
    %v213 = vpop.f32.mrb[0].mxu0
    %214 = vmatprep.mubr.bf16.mxu0 0
    %215 = vmatmul.mubr.bf16.gmra.mrb[0].mxu0 %v172
    %v216 = vpop.f32.mrb[0].mxu0
    %v217 = vadd.f32 %v131, %v216
    %v218 = vpop.f32.mrb[0].mxu0
    %v219 = vpop.f32.mrb[0].mxu0
    %v220 = vadd.f32 %v131, %v219
    %v221 = vpop.f32.mrb[0].mxu0
    %222 = vdwg.mxu0
    %v223 = vld [vmem:[#allocation10] sm:$0xf]
    %v224 = vld [vmem:[#allocation10 + $0x4] sm:$0xf]
    %v225 = vld [vmem:[#allocation10 + $0x8] sm:$0xf]
    %v226 = vld [vmem:[#allocation10 + $0xc] sm:$0xf]
    %v227 = vld [vmem:[#allocation10 + $0x10] sm:$0xf]
    %v228 = vld [vmem:[#allocation10 + $0x14] sm:$0xf]
    %v229 = vld [vmem:[#allocation10 + $0x18] sm:$0xf]
    %v230 = vld [vmem:[#allocation10 + $0x1c] sm:$0xf]
    %v231 = vld [vmem:[#allocation11] sm:$0x1]
    %v233 = vlaneseq
    %v234 = vshrl.u32 %v233, 7
    %v235 = vsub.s32 0, %v234
    %v236 = vrot.slane %v231, %v235
    %v242 = vunpack.c.l.b16 %v106
    %v243 = vunpack.c.l.b16 %v107
    %v244 = vunpack.c.l.b16 %v108
    %v245 = vunpack.c.l.b16 %v109
    %v246 = vpack.c.b16 %v243, %v242
    %v247 = vpack.c.b16 %v245, %v244
    %v256 = vunpack.c.l.b16 %v223
    %v257 = vunpack.c.l.b16 %v224
    %v258 = vunpack.c.l.b16 %v225
    %v259 = vunpack.c.l.b16 %v226
    %v260 = vunpack.c.l.b16 %v227
    %v261 = vunpack.c.l.b16 %v228
    %v262 = vunpack.c.l.b16 %v229
    %v263 = vunpack.c.l.b16 %v230
    %v264 = vpack.c.b16 %v257, %v256
    %v265 = vpack.c.b16 %v259, %v258
    %v266 = vpack.c.b16 %v261, %v260
    %v267 = vpack.c.b16 %v263, %v262
    %v273 = vsel %vm167, %v246, 0
    %v276 = vsel %vm167, %v247, 0
    %278 = vmatprep.subr.bf16.mxu0 0
    %279 = vmatpush1.bf16.msra.mxu0 %v264
    %280 = vmatprep.subr.bf16.mxu0 0
    %281 = vmatpush1.bf16.msra.mxu0 %v265
    %282 = vmatprep.subr.bf16.mxu0 0
    %283 = vmatpush1.bf16.msra.mxu0 %v266
    %284 = vmatprep.subr.bf16.mxu0 0
    %285 = vmatpush1.bf16.msra.mxu0 %v267
    %286 = vmatprep.subr.bf16.mxu0 0
    %287 = vmatpush1.bf16.msra.mxu0 0
    %288 = vmatprep.subr.bf16.mxu0 0
    %289 = vmatpush1.bf16.msra.mxu0 0
    %290 = vmatprep.subr.bf16.mxu0 0
    %291 = vmatpush1.bf16.msra.mxu0 0
    %292 = vmatprep.subr.bf16.mxu0 0
    %293 = vmatpush1.bf16.msra.mxu0 0
    %294 = vmatprep.subr.bf16.mxu0 0
    %295 = vmatpush1.bf16.msra.mxu0 0
    %296 = vmatprep.subr.bf16.mxu0 0
    %297 = vmatpush1.bf16.msra.mxu0 0
    %298 = vmatprep.subr.bf16.mxu0 0
    %299 = vmatpush1.bf16.msra.mxu0 0
    %300 = vmatprep.subr.bf16.mxu0 0
    %301 = vmatpush1.bf16.msra.mxu0 0
    %302 = vmatprep.subr.bf16.mxu0 0
    %303 = vmatpush1.bf16.msra.mxu0 0
    %304 = vmatprep.subr.bf16.mxu0 0
    %305 = vmatpush1.bf16.msra.mxu0 0
    %306 = vmatprep.subr.bf16.mxu0 0
    %307 = vmatpush1.bf16.msra.mxu0 0
    %308 = vmatprep.subr.bf16.mxu0 0
    %309 = vmatpush1.bf16.msra.mxu0 0
    %310 = vmatprep.mubr.bf16.mxu0 0
    %311 = vmatmul.mubr.bf16.gmra.mrb[0].mxu0 %v273
    %v312 = vpop.f32.mrb[0].mxu0
    %v313 = vadd.f32 %v236, %v312
    %v314 = vpop.f32.mrb[0].mxu0
    %v315 = vpop.f32.mrb[0].mxu0
    %v316 = vadd.f32 %v236, %v315
    %v317 = vpop.f32.mrb[0].mxu0
    %318 = vmatprep.mubr.bf16.mxu0 0
    %319 = vmatmul.mubr.bf16.gmra.mrb[0].mxu0 %v276
    %v320 = vpop.f32.mrb[0].mxu0
    %v321 = vadd.f32 %v236, %v320
    %v322 = vpop.f32.mrb[0].mxu0
    %v323 = vpop.f32.mrb[0].mxu0
    %v324 = vadd.f32 %v236, %v323
    %v325 = vpop.f32.mrb[0].mxu0
    %326 = vdwg.mxu0
    %v327 = vpack.c.bf16 %v212, %v209
    %v328 = vpack.c.bf16 %v220, %v217
    %v331 = vunpack.c.l.b16 %v327
    %v332 = vunpack.c.h.b16 %v327
    %v333 = vunpack.c.l.b16 %v328
    %v334 = vunpack.c.h.b16 %v328
    %v335 = vpack.c.b16 %v331, %v331
    %v336 = vpack.c.b16 %v332, %v332
    %v337 = vpack.c.b16 %v333, %v333
    %v338 = vpack.c.b16 %v334, %v334
    %vm343 = vcmask 519168
    %344 = vst.msk [vmem:[#allocation13] sm:$0xf] %vm343, %v335
    %345 = vst.msk [vmem:[#allocation13 + $0x4] sm:$0xf] %vm343, %v336
    %346 = vst.msk [vmem:[#allocation13 + $0x8] sm:$0xf] %vm343, %v337
    %347 = vst.msk [vmem:[#allocation13 + $0xc] sm:$0xf] %vm343, %v338
    %v348 = vpack.c.bf16 %v316, %v313
    %v349 = vpack.c.bf16 %v324, %v321
    %v352 = vunpack.c.l.b16 %v348
    %v353 = vunpack.c.h.b16 %v348
    %v354 = vunpack.c.l.b16 %v349
    %v355 = vunpack.c.h.b16 %v349
    %v356 = vpack.c.b16 %v352, %v352
    %v357 = vpack.c.b16 %v353, %v353
    %v358 = vpack.c.b16 %v354, %v354
    %v359 = vpack.c.b16 %v355, %v355
    %364 = vst.msk [vmem:[#allocation14] sm:$0xf] %vm343, %v356
    %365 = vst.msk [vmem:[#allocation14 + $0x4] sm:$0xf] %vm343, %v357
    %366 = vst.msk [vmem:[#allocation14 + $0x8] sm:$0xf] %vm343, %v358
    %367 = vst.msk [vmem:[#allocation14 + $0xc] sm:$0xf] %vm343, %v359
    // Predicated region
    $region50: #{group_detr_transformer_fwd.34} parent=1 // pred_check
      _
    $region51: #{group_detr_transformer_fwd.34} parent=1 // pred_check_branch
      %369 = sbr.rel (0) target = $region53
    $region52: #{group_detr_transformer_fwd.34} parent=1 // pred_region
      %s371 = ssub.s32 256, 256
      %372 = vsyncadd [#allocation4], %s371
      %s373 = sshll.u32 [#allocation13], 4
      %s374 = int_to_ptr.vmem [resolvable:$true] %s373
      %379 = dma.vmem_to_hbm [thread:$0]  %s374, 256, %s6, [#allocation4], 64, 64, 4
    $region53: #{group_detr_transformer_fwd.34} parent=1 // pred_fallthru
      _
    // Predicated region
    $region54: #{group_detr_transformer_fwd.34} parent=1 // pred_check
      _
    $region55: #{group_detr_transformer_fwd.34} parent=1 // pred_check_branch
      %381 = sbr.rel (0) target = $region57
    $region56: #{group_detr_transformer_fwd.34} parent=1 // pred_region
      %s383 = ssub.s32 256, 256
      %384 = vsyncadd [#allocation15], %s383
      %s385 = sshll.u32 [#allocation14], 4
      %s386 = int_to_ptr.vmem [resolvable:$true] %s385
      %391 = dma.vmem_to_hbm [thread:$0]  %s386, 256, %s7, [#allocation15], 64, 64, 4
    $region57: #{group_detr_transformer_fwd.34} parent=1 // pred_fallthru
      _
    // Predicated region
    $region58: #{group_detr_transformer_fwd.34} parent=1 // pred_check
      _
    $region59: #{group_detr_transformer_fwd.34} parent=1 // pred_check_branch
      %393 = sbr.rel (0) target = $region61
    $region60: #{group_detr_transformer_fwd.34} parent=1 // pred_region
      %394 = dma.done [#allocation4], 256
    $region61: #{group_detr_transformer_fwd.34} parent=1 // pred_fallthru
      _
    // Predicated region
    $region62: #{group_detr_transformer_fwd.34} parent=1 // pred_check
      _
    $region63: #{group_detr_transformer_fwd.34} parent=1 // pred_check_branch
      %396 = sbr.rel (0) target = $region65
    $region64: #{group_detr_transformer_fwd.34} parent=1 // pred_region
      %397 = dma.done [#allocation15], 256
    $region65: #{group_detr_transformer_fwd.34} parent=1 // pred_fallthru
      _
    %398 = vsyncpa [#allocation3], 1
    %399 = vsyncpa [#allocation6], 1
    %400 = vsyncpa [#allocation9], 1
    %401 = vsyncpa [#allocation12], 1
    %402 = vsyncpa [#allocation4], 1
    %403 = vsyncpa [#allocation15], 1

// kernel: group_detr_transformer_fwd.45
$region0: #{group_detr_transformer_fwd.45}
  #allocation0 [shape = 'u32[]', space=smem, size = 0x4, offset = 0x4, fixed_abs, tag = 'smem constant byte address 0x4 - core index']
  #allocation1 [shape = 'u32[144,128]{1,0:T(1,128)}', space=vmem, size = 0x12000, scoped, tag = 'internal scratch']
  %s0 = inlined_call_operand.hbm [shape: bf16[16,64], index: 0, kind: input, shape index: {}]
  %s1 = inlined_call_operand.hbm [shape: bf16[64,128], index: 1, kind: input, shape index: {}]
  %s2 = inlined_call_operand.hbm [shape: f32[1,128], index: 2, kind: input, shape index: {}]
  %s3 = inlined_call_operand.hbm [shape: f32[16,128], index: 3, kind: output, shape index: {}]
  %s4 = sld [smem:[#allocation0]]
  $region34: #{group_detr_transformer_fwd.45} parent=0
    _
  %s6 = ssub.s32 1, %s4
  %s7 = scalar_select 0, %s6, %s4
  $region1: #{group_detr_transformer_fwd.45} parent=0
    #allocation2 [shape = 'u8[4096]{0}', space=vmem, size = 0x1000, scoped, tag = 'input window, operand 0, single buffered']
    #allocation3 [shape = 's32[1]{0}', space=sflag, size = 0x4, scoped, tag = 'scoped memory for group_detr_transformer_fwd.45']
    #allocation4 [shape = 's32[1]{0}', space=sflag, size = 0x4, scoped, tag = 'scoped memory for group_detr_transformer_fwd.45']
    #allocation5 [shape = 'u8[16384]{0}', space=vmem, size = 0x4000, scoped, tag = 'input window, operand 1, single buffered']
    #allocation6 [shape = 's32[1]{0}', space=sflag, size = 0x4, scoped, tag = 'scoped memory for group_detr_transformer_fwd.45']
    #allocation7 [shape = 'u8[512]{0}', space=vmem, size = 0x400, scoped, tag = 'input window, operand 2, single buffered']
    #allocation8 [shape = 'u8[8192]{0}', space=vmem, size = 0x2000, scoped, tag = 'output window, operand 0, single buffered']
    %8 = vsyncpa [#allocation3], 0
    %9 = vsyncpa [#allocation6], 0
    %10 = vsyncpa [#allocation4], 0
    // Predicated region
    $region2: #{group_detr_transformer_fwd.45} parent=1 // pred_check
      _
    $region3: #{group_detr_transformer_fwd.45} parent=1 // pred_check_branch
      %12 = sbr.rel (0) target = $region5
    $region4: #{group_detr_transformer_fwd.45} parent=1 // pred_region
      %s14 = ssub.s32 128, 128
      %15 = vsyncadd [#allocation3], %s14
      %s16 = sshll.u32 [#allocation2], 4
      %s17 = int_to_ptr.vmem [resolvable:$true] %s16
      %22 = dma.hbm_to_vmem [thread:$0]  %s0, 128, %s17, [#allocation3], 64, 64, 4
    $region5: #{group_detr_transformer_fwd.45} parent=1 // pred_fallthru
      _
    // Predicated region
    $region6: #{group_detr_transformer_fwd.45} parent=1 // pred_check
      _
    $region7: #{group_detr_transformer_fwd.45} parent=1 // pred_check_branch
      %24 = sbr.rel (0) target = $region9
    $region8: #{group_detr_transformer_fwd.45} parent=1 // pred_region
      %s26 = ssub.s32 512, 512
      %27 = vsyncadd [#allocation6], %s26
      %s28 = sshll.u32 [#allocation5], 4
      %s29 = int_to_ptr.vmem [resolvable:$true] %s28
      %34 = dma.hbm_to_vmem [thread:$0]  %s1, 512, %s29, [#allocation6], 64, 64, 4
    $region9: #{group_detr_transformer_fwd.45} parent=1 // pred_fallthru
      _
    // Predicated region
    $region10: #{group_detr_transformer_fwd.45} parent=1 // pred_check
      _
    $region11: #{group_detr_transformer_fwd.45} parent=1 // pred_check_branch
      %36 = sbr.rel (0) target = $region13
    $region12: #{group_detr_transformer_fwd.45} parent=1 // pred_region
      %s38 = ssub.s32 16, 16
      %39 = vsyncadd [#allocation6], %s38
      %s41 = sshll.u32 [#allocation7], 4
      %s42 = int_to_ptr.vmem [resolvable:$true] %s41
      %44 = dma.hbm_to_vmem [thread:$0]  %s2, 16, %s42, [#allocation6]
    $region13: #{group_detr_transformer_fwd.45} parent=1 // pred_fallthru
      _
    // Predicated region
    $region14: #{group_detr_transformer_fwd.45} parent=1 // pred_check
      _
    $region15: #{group_detr_transformer_fwd.45} parent=1 // pred_check_branch
      %46 = sbr.rel (0) target = $region17
    $region16: #{group_detr_transformer_fwd.45} parent=1 // pred_region
      %47 = dma.done [#allocation3], 128
    $region17: #{group_detr_transformer_fwd.45} parent=1 // pred_fallthru
      _
    // Predicated region
    $region18: #{group_detr_transformer_fwd.45} parent=1 // pred_check
      _
    $region19: #{group_detr_transformer_fwd.45} parent=1 // pred_check_branch
      %49 = sbr.rel (0) target = $region21
    $region20: #{group_detr_transformer_fwd.45} parent=1 // pred_region
      %50 = dma.done [#allocation6], 512
    $region21: #{group_detr_transformer_fwd.45} parent=1 // pred_fallthru
      _
    // Predicated region
    $region22: #{group_detr_transformer_fwd.45} parent=1 // pred_check
      _
    $region23: #{group_detr_transformer_fwd.45} parent=1 // pred_check_branch
      %52 = sbr.rel (0) target = $region25
    $region24: #{group_detr_transformer_fwd.45} parent=1 // pred_region
      %53 = dma.done [#allocation6], 16
    $region25: #{group_detr_transformer_fwd.45} parent=1 // pred_fallthru
      _
    %v55 = vld [vmem:[#allocation2] sm:$0xf]
    %v56 = vld [vmem:[#allocation2 + $0x4] sm:$0xf]
    %v57 = vld [vmem:[#allocation5] sm:$0xf]
    %v58 = vld [vmem:[#allocation5 + $0x4] sm:$0xf]
    %v59 = vld [vmem:[#allocation5 + $0x8] sm:$0xf]
    %v60 = vld [vmem:[#allocation5 + $0xc] sm:$0xf]
    %v61 = vld [vmem:[#allocation5 + $0x10] sm:$0xf]
    %v62 = vld [vmem:[#allocation5 + $0x14] sm:$0xf]
    %v63 = vld [vmem:[#allocation5 + $0x18] sm:$0xf]
    %v64 = vld [vmem:[#allocation5 + $0x1c] sm:$0xf]
    %v65 = vld [vmem:[#allocation7] sm:$0x1]
    %v67 = vlaneseq
    %v68 = vshrl.u32 %v67, 7
    %v69 = vsub.s32 0, %v68
    %v70 = vrot.slane %v65, %v69
    %v74 = vunpack.c.l.b16 %v55
    %v75 = vunpack.c.l.b16 %v56
    %v76 = vpack.c.b16 %v75, %v74
    %v85 = vunpack.c.l.b16 %v57
    %v86 = vunpack.c.l.b16 %v58
    %v87 = vunpack.c.l.b16 %v59
    %v88 = vunpack.c.l.b16 %v60
    %v89 = vunpack.c.l.b16 %v61
    %v90 = vunpack.c.l.b16 %v62
    %v91 = vunpack.c.l.b16 %v63
    %v92 = vunpack.c.l.b16 %v64
    %v93 = vpack.c.b16 %v86, %v85
    %v94 = vpack.c.b16 %v88, %v87
    %v95 = vpack.c.b16 %v90, %v89
    %v96 = vpack.c.b16 %v92, %v91
    %vm101 = vcmask 523264
    %v103 = vsel %vm101, %v76, 0
    %105 = vmatprep.subr.bf16.mxu0 0
    %106 = vmatpush1.bf16.msra.mxu0 %v93
    %107 = vmatprep.subr.bf16.mxu0 0
    %108 = vmatpush1.bf16.msra.mxu0 %v94
    %109 = vmatprep.subr.bf16.mxu0 0
    %110 = vmatpush1.bf16.msra.mxu0 %v95
    %111 = vmatprep.subr.bf16.mxu0 0
    %112 = vmatpush1.bf16.msra.mxu0 %v96
    %113 = vmatprep.subr.bf16.mxu0 0
    %114 = vmatpush1.bf16.msra.mxu0 0
    %115 = vmatprep.subr.bf16.mxu0 0
    %116 = vmatpush1.bf16.msra.mxu0 0
    %117 = vmatprep.subr.bf16.mxu0 0
    %118 = vmatpush1.bf16.msra.mxu0 0
    %119 = vmatprep.subr.bf16.mxu0 0
    %120 = vmatpush1.bf16.msra.mxu0 0
    %121 = vmatprep.subr.bf16.mxu0 0
    %122 = vmatpush1.bf16.msra.mxu0 0
    %123 = vmatprep.subr.bf16.mxu0 0
    %124 = vmatpush1.bf16.msra.mxu0 0
    %125 = vmatprep.subr.bf16.mxu0 0
    %126 = vmatpush1.bf16.msra.mxu0 0
    %127 = vmatprep.subr.bf16.mxu0 0
    %128 = vmatpush1.bf16.msra.mxu0 0
    %129 = vmatprep.subr.bf16.mxu0 0
    %130 = vmatpush1.bf16.msra.mxu0 0
    %131 = vmatprep.subr.bf16.mxu0 0
    %132 = vmatpush1.bf16.msra.mxu0 0
    %133 = vmatprep.subr.bf16.mxu0 0
    %134 = vmatpush1.bf16.msra.mxu0 0
    %135 = vmatprep.subr.bf16.mxu0 0
    %136 = vmatpush1.bf16.msra.mxu0 0
    %137 = vmatprep.mubr.bf16.mxu0 0
    %138 = vmatmul.mubr.bf16.gmra.mrb[0].mxu0 %v103
    %v139 = vpop.f32.mrb[0].mxu0
    %v140 = vadd.f32 %v70, %v139
    %v141 = vpop.f32.mrb[0].mxu0
    %v142 = vpop.f32.mrb[0].mxu0
    %v143 = vadd.f32 %v70, %v142
    %v144 = vpop.f32.mrb[0].mxu0
    %145 = vdwg.mxu0
    %v146 = vxor.u32 %v140, 2147483648
    %v147 = vxor.u32 %v143, 2147483648
    %v148 = vmul.f32 %v146, 1.442695
    %v149 = vpow.pop %v148
    %v150 = vmul.f32 %v147, 1.442695
    %v151 = vpow.pop %v150
    %v152 = vadd.f32 %v149, 1.0
    %v153 = vadd.f32 %v151, 1.0
    %v154 = vrcp.pop %v152
    %v155 = vmul.f32 1.0, %v154
    %v156 = vrcp.pop %v153
    %v157 = vmul.f32 1.0, %v156
    %158 = vst [vmem:[#allocation8] sm:$0xff] %v155
    %159 = vst [vmem:[#allocation8 + $0x8] sm:$0xff] %v157
    // Predicated region
    $region26: #{group_detr_transformer_fwd.45} parent=1 // pred_check
      _
    $region27: #{group_detr_transformer_fwd.45} parent=1 // pred_check_branch
      %161 = sbr.rel (0) target = $region29
    $region28: #{group_detr_transformer_fwd.45} parent=1 // pred_region
      %s163 = ssub.s32 256, 256
      %164 = vsyncadd [#allocation4], %s163
      %s165 = sshll.u32 [#allocation8], 4
      %s166 = int_to_ptr.vmem [resolvable:$true] %s165
      %171 = dma.vmem_to_hbm [thread:$0]  %s166, 256, %s3, [#allocation4], 128, 128, 8
    $region29: #{group_detr_transformer_fwd.45} parent=1 // pred_fallthru
      _
    // Predicated region
    $region30: #{group_detr_transformer_fwd.45} parent=1 // pred_check
      _
    $region31: #{group_detr_transformer_fwd.45} parent=1 // pred_check_branch
      %173 = sbr.rel (0) target = $region33
    $region32: #{group_detr_transformer_fwd.45} parent=1 // pred_region
      %174 = dma.done [#allocation4], 256
    $region33: #{group_detr_transformer_fwd.45} parent=1 // pred_fallthru
      _
    %175 = vsyncpa [#allocation3], 1
    %176 = vsyncpa [#allocation6], 1
    %177 = vsyncpa [#allocation4], 1

// kernel: group_detr_transformer_fwd.35
$region0: #{group_detr_transformer_fwd.35}
  #allocation0 [shape = 'u32[]', space=smem, size = 0x4, offset = 0x4, fixed_abs, tag = 'smem constant byte address 0x4 - core index']
  #allocation1 [shape = 'u32[144,128]{1,0:T(1,128)}', space=vmem, size = 0x12000, scoped, tag = 'internal scratch']
  %s0 = inlined_call_operand.hbm [shape: bf16[2,8,64], index: 0, kind: input, shape index: {}]
  %s1 = inlined_call_operand.hbm [shape: bf16[2,8,64], index: 1, kind: input, shape index: {}]
  %s2 = inlined_call_operand.hbm [shape: bf16[64,64], index: 2, kind: input, shape index: {}]
  %s3 = inlined_call_operand.hbm [shape: f32[1,64], index: 3, kind: input, shape index: {}]
  %s4 = inlined_call_operand.hbm [shape: bf16[2,16,64], index: 4, kind: input, shape index: {}]
  %s5 = inlined_call_operand.hbm [shape: bf16[2,16,64], index: 5, kind: input, shape index: {}]
  %s6 = inlined_call_operand.hbm [shape: bf16[2,8,64], index: 6, kind: output, shape index: {}]
  %s7 = sld [smem:[#allocation0]]
  $region81: #{group_detr_transformer_fwd.35} parent=0
    _
  %s9 = ssub.s32 1, %s7
  %s10 = scalar_select 0, %s9, %s7
  $region1: #{group_detr_transformer_fwd.35} parent=0
    #allocation2 [shape = 'u8[4096]{0}', space=vmem, size = 0x1000, scoped, tag = 'input window, operand 0']
    #allocation3 [shape = 's32[2]{0}', space=sflag, size = 0x8, scoped, tag = 'scoped memory for group_detr_transformer_fwd.35']
    #allocation4 [shape = 's32[2]{0}', space=sflag, size = 0x8, scoped, tag = 'scoped memory for group_detr_transformer_fwd.35']
    #allocation5 [shape = 'u8[4096]{0}', space=vmem, size = 0x1000, scoped, tag = 'input window, operand 1']
    #allocation6 [shape = 's32[2]{0}', space=sflag, size = 0x8, scoped, tag = 'scoped memory for group_detr_transformer_fwd.35']
    #allocation7 [shape = 'u8[16384]{0}', space=vmem, size = 0x4000, scoped, tag = 'input window, operand 2, single buffered']
    #allocation8 [shape = 'u8[512]{0}', space=vmem, size = 0x400, scoped, tag = 'input window, operand 3, single buffered']
    #allocation9 [shape = 's32[1]{0}', space=sflag, size = 0x4, scoped, tag = 'scoped memory for group_detr_transformer_fwd.35']
    #allocation10 [shape = 'u8[8192]{0}', space=vmem, size = 0x2000, scoped, tag = 'input window, operand 4']
    #allocation11 [shape = 'u8[8192]{0}', space=vmem, size = 0x2000, scoped, tag = 'input window, operand 5']
    #allocation12 [shape = 'u8[4096]{0}', space=vmem, size = 0x1000, scoped, tag = 'output window, operand 0']
    %11 = vsyncpa [#allocation3], 0
    %s12 = scalar_lea.sflag [#allocation3], 1
    %13 = vsyncpa %s12, 0
    %14 = vsyncpa [#allocation6], 0
    %s15 = scalar_lea.sflag [#allocation6], 1
    %16 = vsyncpa %s15, 0
    %17 = vsyncpa [#allocation9], 0
    %18 = vsyncpa [#allocation4], 0
    %s19 = scalar_lea.sflag [#allocation4], 1
    %20 = vsyncpa %s19, 0
    loop: start=0, step=1, limit=4
    $region2: #{group_detr_transformer_fwd.35} parent=1 // loop_pre_header
      _
    $region3: #{group_detr_transformer_fwd.35} parent=1 // loop_header
      %s22 = sphi 0, %s26
      %p23 = scmp.ge.s32.totalorder %s22, 4
      %s29 = sphi 0, %s41
      %s30 = sphi 0, %s37
      %s31 = sphi 0, %s29
      %s32 = sphi 0, %s30
      %s33 = sphi 0, %s31
      %s34 = sphi 0, %s32
      %s46 = sphi 0, %s48
      %s49 = sphi 0, %s46
      %s50 = sphi 0, %s49
      %s66 = sphi 0, %s50
      %s74 = sphi 0, %s76
      %s77 = sphi 0, %s74
      %s78 = sphi 0, %s77
      %s94 = sphi 0, %s78
      %s98 = sphi 0, %s98
      %s100 = sphi 0, %s98
      %s101 = sphi 0, %s100
      %s115 = sphi 0, %s101
      %s119 = sphi 0, %s119
      %s121 = sphi 0, %s119
      %s122 = sphi 0, %s121
      %s136 = sphi 0, %s122
      %s142 = sphi 0, %s144
      %s145 = sphi 0, %s142
      %s146 = sphi 0, %s145
      %s162 = sphi 0, %s146
      %s168 = sphi 0, %s170
      %s171 = sphi 0, %s168
      %s172 = sphi 0, %s171
      %s188 = sphi 0, %s172
      %s196 = sphi 0, %s198
      %s199 = sphi 0, %s196
      %s200 = sphi 0, %s199
      %s216 = sphi 0, %s200
    $region4: #{group_detr_transformer_fwd.35} parent=1 // loop_header_branch
      %25 = sbr.rel (%p23) target = $region8
    $region5: #{group_detr_transformer_fwd.35} parent=1 // loop_body
      %s27 = ssub.s32 %s22, 1
      %s28 = ssub.s32 %s22, 2
      %s35 = sadd.s32 1, %s30
      %p36 = scmp.ge.s32.totalorder %s35, 1
      %s37 = scalar_select %p36, 0, %s35
      %s38 = sadd.s32 1, %s29
      %s39 = scalar_select %p36, %s38, %s29
      %p40 = scmp.ge.s32.totalorder %s39, 2
      %s41 = scalar_select %p40, 0, %s39
      %s42 = ssub.s32 %s29, %s41
      %s43 = ssub.s32 %s30, %s37
      %s44 = sor.u32 %s42, %s43
      %p45 = scmp.eq.s32.totalorder %s44, 0
      %s47 = sadd.s32 %s46, 1
      %s48 = scalar_select %p45, %s46, %s47
      %p51 = pneg %p45
      %p52 = scmp.eq.s32.totalorder %s22, 1
      %p53 = por %p51, %p52
      %p54 = scmp.ne.s32.totalorder %s46, %s49
      %p55 = scmp.eq.s32.totalorder %s22, 0
      %p56 = por %p54, %p55
      %p57 = scmp.ne.s32.totalorder %s46, %s49
      %p58 = scmp.eq.s32.totalorder %s27, 1
      %p59 = por %p57, %p58
      %p60 = scmp.ne.s32.totalorder %s49, %s50
      %p61 = scmp.eq.s32.totalorder %s27, 0
      %p62 = por %p60, %p61
      %p63 = scmp.ne.s32.totalorder %s49, %s50
      %p64 = scmp.eq.s32.totalorder %s28, 1
      %p65 = por %p63, %p64
      %p67 = scmp.ne.s32.totalorder %s50, %s66
      %p68 = scmp.eq.s32.totalorder %s28, 0
      %p69 = por %p67, %p68
      %s70 = ssub.s32 %s29, %s41
      %s71 = ssub.s32 %s30, %s37
      %s72 = sor.u32 %s70, %s71
      %p73 = scmp.eq.s32.totalorder %s72, 0
      %s75 = sadd.s32 %s74, 1
      %s76 = scalar_select %p73, %s74, %s75
      %p79 = pneg %p73
      %p80 = scmp.eq.s32.totalorder %s22, 1
      %p81 = por %p79, %p80
      %p82 = scmp.ne.s32.totalorder %s74, %s77
      %p83 = scmp.eq.s32.totalorder %s22, 0
      %p84 = por %p82, %p83
      %p85 = scmp.ne.s32.totalorder %s74, %s77
      %p86 = scmp.eq.s32.totalorder %s27, 1
      %p87 = por %p85, %p86
      %p88 = scmp.ne.s32.totalorder %s77, %s78
      %p89 = scmp.eq.s32.totalorder %s27, 0
      %p90 = por %p88, %p89
      %p91 = scmp.ne.s32.totalorder %s77, %s78
      %p92 = scmp.eq.s32.totalorder %s28, 1
      %p93 = por %p91, %p92
      %p95 = scmp.ne.s32.totalorder %s78, %s94
      %p96 = scmp.eq.s32.totalorder %s28, 0
      %p97 = por %p95, %p96
      %s99 = sadd.s32 %s98, 1
      %p102 = scmp.eq.s32.totalorder %s22, 1
      %p103 = scmp.ne.s32.totalorder %s98, %s100
      %p104 = scmp.eq.s32.totalorder %s22, 0
      %p105 = por %p103, %p104
      %p106 = scmp.ne.s32.totalorder %s98, %s100
      %p107 = scmp.eq.s32.totalorder %s27, 1
      %p108 = por %p106, %p107
      %p109 = scmp.ne.s32.totalorder %s100, %s101
      %p110 = scmp.eq.s32.totalorder %s27, 0
      %p111 = por %p109, %p110
      %p112 = scmp.ne.s32.totalorder %s100, %s101
      %p113 = scmp.eq.s32.totalorder %s28, 1
      %p114 = por %p112, %p113
      %p116 = scmp.ne.s32.totalorder %s101, %s115
      %p117 = scmp.eq.s32.totalorder %s28, 0
      %p118 = por %p116, %p117
      %s120 = sadd.s32 %s119, 1
      %p123 = scmp.eq.s32.totalorder %s22, 1
      %p124 = scmp.ne.s32.totalorder %s119, %s121
      %p125 = scmp.eq.s32.totalorder %s22, 0
      %p126 = por %p124, %p125
      %p127 = scmp.ne.s32.totalorder %s119, %s121
      %p128 = scmp.eq.s32.totalorder %s27, 1
      %p129 = por %p127, %p128
      %p130 = scmp.ne.s32.totalorder %s121, %s122
      %p131 = scmp.eq.s32.totalorder %s27, 0
      %p132 = por %p130, %p131
      %p133 = scmp.ne.s32.totalorder %s121, %s122
      %p134 = scmp.eq.s32.totalorder %s28, 1
      %p135 = por %p133, %p134
      %p137 = scmp.ne.s32.totalorder %s122, %s136
      %p138 = scmp.eq.s32.totalorder %s28, 0
      %p139 = por %p137, %p138
      %s140 = ssub.s32 %s29, %s41
      %p141 = scmp.eq.s32.totalorder %s140, 0
      %s143 = sadd.s32 %s142, 1
      %s144 = scalar_select %p141, %s142, %s143
      %p147 = pneg %p141
      %p148 = scmp.eq.s32.totalorder %s22, 1
      %p149 = por %p147, %p148
      %p150 = scmp.ne.s32.totalorder %s142, %s145
      %p151 = scmp.eq.s32.totalorder %s22, 0
      %p152 = por %p150, %p151
      %p153 = scmp.ne.s32.totalorder %s142, %s145
      %p154 = scmp.eq.s32.totalorder %s27, 1
      %p155 = por %p153, %p154
      %p156 = scmp.ne.s32.totalorder %s145, %s146
      %p157 = scmp.eq.s32.totalorder %s27, 0
      %p158 = por %p156, %p157
      %p159 = scmp.ne.s32.totalorder %s145, %s146
      %p160 = scmp.eq.s32.totalorder %s28, 1
      %p161 = por %p159, %p160
      %p163 = scmp.ne.s32.totalorder %s146, %s162
      %p164 = scmp.eq.s32.totalorder %s28, 0
      %p165 = por %p163, %p164
      %s166 = ssub.s32 %s29, %s41
      %p167 = scmp.eq.s32.totalorder %s166, 0
      %s169 = sadd.s32 %s168, 1
      %s170 = scalar_select %p167, %s168, %s169
      %p173 = pneg %p167
      %p174 = scmp.eq.s32.totalorder %s22, 1
      %p175 = por %p173, %p174
      %p176 = scmp.ne.s32.totalorder %s168, %s171
      %p177 = scmp.eq.s32.totalorder %s22, 0
      %p178 = por %p176, %p177
      %p179 = scmp.ne.s32.totalorder %s168, %s171
      %p180 = scmp.eq.s32.totalorder %s27, 1
      %p181 = por %p179, %p180
      %p182 = scmp.ne.s32.totalorder %s171, %s172
      %p183 = scmp.eq.s32.totalorder %s27, 0
      %p184 = por %p182, %p183
      %p185 = scmp.ne.s32.totalorder %s171, %s172
      %p186 = scmp.eq.s32.totalorder %s28, 1
      %p187 = por %p185, %p186
      %p189 = scmp.ne.s32.totalorder %s172, %s188
      %p190 = scmp.eq.s32.totalorder %s28, 0
      %p191 = por %p189, %p190
      %s192 = ssub.s32 %s29, %s41
      %s193 = ssub.s32 %s30, %s37
      %s194 = sor.u32 %s192, %s193
      %p195 = scmp.eq.s32.totalorder %s194, 0
      %s197 = sadd.s32 %s196, 1
      %s198 = scalar_select %p195, %s196, %s197
      %p201 = pneg %p195
      %p202 = scmp.eq.s32.totalorder %s22, 1
      %p203 = por %p201, %p202
      %p204 = scmp.ne.s32.totalorder %s196, %s199
      %p205 = scmp.eq.s32.totalorder %s22, 0
      %p206 = por %p204, %p205
      %p207 = scmp.ne.s32.totalorder %s196, %s199
      %p208 = scmp.eq.s32.totalorder %s27, 1
      %p209 = por %p207, %p208
      %p210 = scmp.ne.s32.totalorder %s199, %s200
      %p211 = scmp.eq.s32.totalorder %s27, 0
      %p212 = por %p210, %p211
      %p213 = scmp.ne.s32.totalorder %s199, %s200
      %p214 = scmp.eq.s32.totalorder %s28, 1
      %p215 = por %p213, %p214
      %p217 = scmp.ne.s32.totalorder %s200, %s216
      %p218 = scmp.eq.s32.totalorder %s28, 0
      %p219 = por %p217, %p218
      %p220 = scmp.le.s32.totalorder 1, %s22
      %p221 = scmp.lt.s32.totalorder %s22, 3
      %p222 = pnand %p220, %p221
      %p223 = pneg %p222
      // Predicated region
      $region9: #{group_detr_transformer_fwd.35} parent=5 // pred_check
        _
      $region10: #{group_detr_transformer_fwd.35} parent=5 // pred_check_branch
        %225 = sbr.rel (%p222) target = $region12
      $region11: #{group_detr_transformer_fwd.35} parent=5 // pred_region
        %s226 = ssub.s32 %s22, 1
        // Predicated region
        $region13: #{group_detr_transformer_fwd.35} parent=11 // pred_check
          %p227 = pneg %p111
        $region14: #{group_detr_transformer_fwd.35} parent=11 // pred_check_branch
          %229 = sbr.rel (%p227) target = $region16
        $region15: #{group_detr_transformer_fwd.35} parent=11 // pred_region
          %s231 = ssub.s32 512, 512
          %232 = vsyncadd [#allocation6], %s231
          %s233 = sshll.u32 [#allocation7], 4
          %s234 = int_to_ptr.vmem [resolvable:$true] %s233
          %239 = dma.hbm_to_vmem [thread:$0]  %s2, 512, %s234, [#allocation6], 64, 64, 4
        $region16: #{group_detr_transformer_fwd.35} parent=11 // pred_fallthru
          _
        // Predicated region
        $region17: #{group_detr_transformer_fwd.35} parent=11 // pred_check
          %p240 = pneg %p132
        $region18: #{group_detr_transformer_fwd.35} parent=11 // pred_check_branch
          %242 = sbr.rel (%p240) target = $region20
        $region19: #{group_detr_transformer_fwd.35} parent=11 // pred_region
          %s244 = ssub.s32 16, 16
          %245 = vsyncadd [#allocation9], %s244
          %s247 = sshll.u32 [#allocation8], 4
          %s248 = int_to_ptr.vmem [resolvable:$true] %s247
          %250 = dma.hbm_to_vmem [thread:$0]  %s3, 16, %s248, [#allocation9]
        $region20: #{group_detr_transformer_fwd.35} parent=11 // pred_fallthru
          _
      $region12: #{group_detr_transformer_fwd.35} parent=5 // pred_fallthru
        _
      %p251 = scmp.lt.s32.totalorder %s22, 2
      // Predicated region
      $region21: #{group_detr_transformer_fwd.35} parent=5 // pred_check
        %p252 = pneg %p251
      $region22: #{group_detr_transformer_fwd.35} parent=5 // pred_check_branch
        %254 = sbr.rel (%p252) target = $region24
      $region23: #{group_detr_transformer_fwd.35} parent=5 // pred_region
        // Predicated region
        $region25: #{group_detr_transformer_fwd.35} parent=23 // pred_check
          %p255 = pneg %p56
        $region26: #{group_detr_transformer_fwd.35} parent=23 // pred_check_branch
          %257 = sbr.rel (%p255) target = $region28
        $region27: #{group_detr_transformer_fwd.35} parent=23 // pred_region
          %s258 = sand.u32 %s22, 1
          %s259 = scalar_lea.sflag [#allocation3], %s258
          %s260 = sand.u32 %s46, 1
          %s261 = smul.addr %s260, 4
          %s262 = scalar_lea.vmem [#allocation2], %s261
          %s264 = ssub.s32 64, 64
          %265 = vsyncadd %s259, %s264
          %s266 = sadd.s32 %s30, %s29
          %s267 = smul.addr %s266, 64
          %s268 = scalar_lea.hbm %s0, %s267
          %s270 = sshll.u32 %s262, 4
          %s271 = int_to_ptr.vmem [resolvable:$true] %s270
          %273 = dma.hbm_to_vmem [thread:$0]  %s268, 64, %s271, %s259
        $region28: #{group_detr_transformer_fwd.35} parent=23 // pred_fallthru
          _
        // Predicated region
        $region29: #{group_detr_transformer_fwd.35} parent=23 // pred_check
          %p274 = pneg %p84
        $region30: #{group_detr_transformer_fwd.35} parent=23 // pred_check_branch
          %276 = sbr.rel (%p274) target = $region32
        $region31: #{group_detr_transformer_fwd.35} parent=23 // pred_region
          %s277 = sand.u32 %s22, 1
          %s278 = scalar_lea.sflag [#allocation6], %s277
          %s279 = sand.u32 %s74, 1
          %s280 = smul.addr %s279, 4
          %s281 = scalar_lea.vmem [#allocation5], %s280
          %s283 = ssub.s32 64, 64
          %284 = vsyncadd %s278, %s283
          %s285 = sadd.s32 %s30, %s29
          %s286 = smul.addr %s285, 64
          %s287 = scalar_lea.hbm %s1, %s286
          %s289 = sshll.u32 %s281, 4
          %s290 = int_to_ptr.vmem [resolvable:$true] %s289
          %292 = dma.hbm_to_vmem [thread:$0]  %s287, 64, %s290, %s278
        $region32: #{group_detr_transformer_fwd.35} parent=23 // pred_fallthru
          _
        // Predicated region
        $region33: #{group_detr_transformer_fwd.35} parent=23 // pred_check
          %p293 = pneg %p152
        $region34: #{group_detr_transformer_fwd.35} parent=23 // pred_check_branch
          %295 = sbr.rel (%p293) target = $region36
        $region35: #{group_detr_transformer_fwd.35} parent=23 // pred_region
          %s296 = sand.u32 %s22, 1
          %s297 = scalar_lea.sflag [#allocation3], %s296
          %s298 = sand.u32 %s142, 1
          %s299 = smul.addr %s298, 8
          %s300 = scalar_lea.vmem [#allocation10], %s299
          %s302 = ssub.s32 128, 128
          %303 = vsyncadd %s297, %s302
          %s304 = smul.addr %s29, 2
          %s305 = smul.addr %s304, 64
          %s306 = scalar_lea.hbm %s4, %s305
          %s307 = sshll.u32 %s300, 4
          %s308 = int_to_ptr.vmem [resolvable:$true] %s307
          %313 = dma.hbm_to_vmem [thread:$0]  %s306, 128, %s308, %s297, 64, 64, 4
        $region36: #{group_detr_transformer_fwd.35} parent=23 // pred_fallthru
          _
        // Predicated region
        $region37: #{group_detr_transformer_fwd.35} parent=23 // pred_check
          %p314 = pneg %p178
        $region38: #{group_detr_transformer_fwd.35} parent=23 // pred_check_branch
          %316 = sbr.rel (%p314) target = $region40
        $region39: #{group_detr_transformer_fwd.35} parent=23 // pred_region
          %s317 = sand.u32 %s22, 1
          %s318 = scalar_lea.sflag [#allocation6], %s317
          %s319 = sand.u32 %s168, 1
          %s320 = smul.addr %s319, 8
          %s321 = scalar_lea.vmem [#allocation11], %s320
          %s323 = ssub.s32 128, 128
          %324 = vsyncadd %s318, %s323
          %s325 = smul.addr %s29, 2
          %s326 = smul.addr %s325, 64
          %s327 = scalar_lea.hbm %s5, %s326
          %s328 = sshll.u32 %s321, 4
          %s329 = int_to_ptr.vmem [resolvable:$true] %s328
          %334 = dma.hbm_to_vmem [thread:$0]  %s327, 128, %s329, %s318, 64, 64, 4
        $region40: #{group_detr_transformer_fwd.35} parent=23 // pred_fallthru
          _
      $region24: #{group_detr_transformer_fwd.35} parent=5 // pred_fallthru
        _
      %p335 = scmp.le.s32.totalorder 1, %s22
      %p336 = scmp.lt.s32.totalorder %s22, 3
      %p337 = pnand %p335, %p336
      %p338 = pneg %p337
      // Predicated region
      $region41: #{group_detr_transformer_fwd.35} parent=5 // pred_check
        _
      $region42: #{group_detr_transformer_fwd.35} parent=5 // pred_check_branch
        %340 = sbr.rel (%p337) target = $region44
      $region43: #{group_detr_transformer_fwd.35} parent=5 // pred_region
        %s341 = ssub.s32 %s22, 1
        %s342 = sand.u32 %s27, 1
        %s343 = scalar_lea.sflag [#allocation3], %s342
        %s344 = sand.u32 %s49, 1
        %s345 = smul.addr %s344, 4
        %s346 = scalar_lea.vmem [#allocation2], %s345
        // Predicated region
        $region45: #{group_detr_transformer_fwd.35} parent=43 // pred_check
          %p347 = pneg %p62
        $region46: #{group_detr_transformer_fwd.35} parent=43 // pred_check_branch
          %349 = sbr.rel (%p347) target = $region48
        $region47: #{group_detr_transformer_fwd.35} parent=43 // pred_region
          %350 = dma.done %s343, 64
        $region48: #{group_detr_transformer_fwd.35} parent=43 // pred_fallthru
          _
        %s351 = sand.u32 %s27, 1
        %s352 = scalar_lea.sflag [#allocation6], %s351
        %s353 = sand.u32 %s77, 1
        %s354 = smul.addr %s353, 4
        %s355 = scalar_lea.vmem [#allocation5], %s354
        // Predicated region
        $region49: #{group_detr_transformer_fwd.35} parent=43 // pred_check
          %p356 = pneg %p90
        $region50: #{group_detr_transformer_fwd.35} parent=43 // pred_check_branch
          %358 = sbr.rel (%p356) target = $region52
        $region51: #{group_detr_transformer_fwd.35} parent=43 // pred_region
          %359 = dma.done %s352, 64
        $region52: #{group_detr_transformer_fwd.35} parent=43 // pred_fallthru
          _
        // Predicated region
        $region53: #{group_detr_transformer_fwd.35} parent=43 // pred_check
          %p360 = pneg %p111
        $region54: #{group_detr_transformer_fwd.35} parent=43 // pred_check_branch
          %362 = sbr.rel (%p360) target = $region56
        $region55: #{group_detr_transformer_fwd.35} parent=43 // pred_region
          %363 = dma.done [#allocation6], 512
        $region56: #{group_detr_transformer_fwd.35} parent=43 // pred_fallthru
          _
        // Predicated region
        $region57: #{group_detr_transformer_fwd.35} parent=43 // pred_check
          %p364 = pneg %p132
        $region58: #{group_detr_transformer_fwd.35} parent=43 // pred_check_branch
          %366 = sbr.rel (%p364) target = $region60
        $region59: #{group_detr_transformer_fwd.35} parent=43 // pred_region
          %367 = dma.done [#allocation9], 16
        $region60: #{group_detr_transformer_fwd.35} parent=43 // pred_fallthru
          _
        %s368 = sand.u32 %s27, 1
        %s369 = scalar_lea.sflag [#allocation3], %s368
        %s370 = sand.u32 %s145, 1
        %s371 = smul.addr %s370, 8
        %s372 = scalar_lea.vmem [#allocation10], %s371
        // Predicated region
        $region61: #{group_detr_transformer_fwd.35} parent=43 // pred_check
          %p373 = pneg %p158
        $region62: #{group_detr_transformer_fwd.35} parent=43 // pred_check_branch
          %375 = sbr.rel (%p373) target = $region64
        $region63: #{group_detr_transformer_fwd.35} parent=43 // pred_region
          %376 = dma.done %s369, 128
        $region64: #{group_detr_transformer_fwd.35} parent=43 // pred_fallthru
          _
        %s377 = sand.u32 %s27, 1
        %s378 = scalar_lea.sflag [#allocation6], %s377
        %s379 = sand.u32 %s171, 1
        %s380 = smul.addr %s379, 8
        %s381 = scalar_lea.vmem [#allocation11], %s380
        // Predicated region
        $region65: #{group_detr_transformer_fwd.35} parent=43 // pred_check
          %p382 = pneg %p184
        $region66: #{group_detr_transformer_fwd.35} parent=43 // pred_check_branch
          %384 = sbr.rel (%p382) target = $region68
        $region67: #{group_detr_transformer_fwd.35} parent=43 // pred_region
          %385 = dma.done %s378, 128
        $region68: #{group_detr_transformer_fwd.35} parent=43 // pred_fallthru
          _
        %s386 = sand.u32 %s27, 1
        %s387 = scalar_lea.sflag [#allocation3], %s386
        %s388 = sand.u32 %s49, 1
        %s389 = smul.addr %s388, 4
        %s390 = scalar_lea.vmem [#allocation2], %s389
        %p391 = pneg %p62
        %p392 = pneg %p59
        %s393 = sand.u32 %s27, 1
        %s394 = scalar_lea.sflag [#allocation6], %s393
        %s395 = sand.u32 %s77, 1
        %s396 = smul.addr %s395, 4
        %s397 = scalar_lea.vmem [#allocation5], %s396
        %p398 = pneg %p90
        %p399 = pneg %p87
        %p400 = pneg %p111
        %p401 = pneg %p108
        %p402 = pneg %p132
        %p403 = pneg %p129
        %s404 = sand.u32 %s27, 1
        %s405 = scalar_lea.sflag [#allocation3], %s404
        %s406 = sand.u32 %s145, 1
        %s407 = smul.addr %s406, 8
        %s408 = scalar_lea.vmem [#allocation10], %s407
        %p409 = pneg %p158
        %p410 = pneg %p155
        %s411 = sand.u32 %s27, 1
        %s412 = scalar_lea.sflag [#allocation6], %s411
        %s413 = sand.u32 %s171, 1
        %s414 = smul.addr %s413, 8
        %s415 = scalar_lea.vmem [#allocation11], %s414
        %p416 = pneg %p184
        %p417 = pneg %p181
        %p418 = pneg %p212
        %p419 = pneg %p209
        %s420 = sand.u32 %s199, 1
        %s421 = scalar_lea.sflag [#allocation4], %s420
        %s422 = sand.u32 %s199, 1
        %s423 = smul.addr %s422, 4
        %s424 = scalar_lea.vmem [#allocation12], %s423
        %v426 = vld [vmem:[%s346] sm:$0xf]
        %v427 = vld [vmem:[%s355] sm:$0xf]
        %v428 = vadd.bf16 %v426, %v427
        %v429 = vld [vmem:[#allocation7] sm:$0xf]
        %v430 = vld [vmem:[#allocation7 + $0x4] sm:$0xf]
        %v431 = vld [vmem:[#allocation7 + $0x8] sm:$0xf]
        %v432 = vld [vmem:[#allocation7 + $0xc] sm:$0xf]
        %v433 = vld [vmem:[#allocation7 + $0x10] sm:$0xf]
        %v434 = vld [vmem:[#allocation7 + $0x14] sm:$0xf]
        %v435 = vld [vmem:[#allocation7 + $0x18] sm:$0xf]
        %v436 = vld [vmem:[#allocation7 + $0x1c] sm:$0xf]
        %v437 = vld [vmem:[#allocation8] sm:$0x1]
        %v439 = vlaneseq
        %v440 = vshrl.u32 %v439, 7
        %v441 = vsub.s32 0, %v440
        %v442 = vrot.slane %v437, %v441
        %v452 = vunpack.c.l.b16 %v429
        %v453 = vunpack.c.l.b16 %v430
        %v454 = vunpack.c.l.b16 %v431
        %v455 = vunpack.c.l.b16 %v432
        %v456 = vunpack.c.l.b16 %v433
        %v457 = vunpack.c.l.b16 %v434
        %v458 = vunpack.c.l.b16 %v435
        %v459 = vunpack.c.l.b16 %v436
        %v460 = vpack.c.b16 %v453, %v452
        %v461 = vpack.c.b16 %v455, %v454
        %v462 = vpack.c.b16 %v457, %v456
        %v463 = vpack.c.b16 %v459, %v458
        %vm468 = vcmask 523264
        %v470 = vsel %vm468, %v428, 0
        %472 = vmatprep.subr.bf16.mxu0 0
        %473 = vmatpush1.bf16.msra.mxu0 %v460
        %474 = vmatprep.subr.bf16.mxu0 0
        %475 = vmatpush1.bf16.msra.mxu0 %v461
        %476 = vmatprep.subr.bf16.mxu0 0
        %477 = vmatpush1.bf16.msra.mxu0 %v462
        %478 = vmatprep.subr.bf16.mxu0 0
        %479 = vmatpush1.bf16.msra.mxu0 %v463
        %480 = vmatprep.subr.bf16.mxu0 0
        %481 = vmatpush1.bf16.msra.mxu0 0
        %482 = vmatprep.subr.bf16.mxu0 0
        %483 = vmatpush1.bf16.msra.mxu0 0
        %484 = vmatprep.subr.bf16.mxu0 0
        %485 = vmatpush1.bf16.msra.mxu0 0
        %486 = vmatprep.subr.bf16.mxu0 0
        %487 = vmatpush1.bf16.msra.mxu0 0
        %488 = vmatprep.subr.bf16.mxu0 0
        %489 = vmatpush1.bf16.msra.mxu0 0
        %490 = vmatprep.subr.bf16.mxu0 0
        %491 = vmatpush1.bf16.msra.mxu0 0
        %492 = vmatprep.subr.bf16.mxu0 0
        %493 = vmatpush1.bf16.msra.mxu0 0
        %494 = vmatprep.subr.bf16.mxu0 0
        %495 = vmatpush1.bf16.msra.mxu0 0
        %496 = vmatprep.subr.bf16.mxu0 0
        %497 = vmatpush1.bf16.msra.mxu0 0
        %498 = vmatprep.subr.bf16.mxu0 0
        %499 = vmatpush1.bf16.msra.mxu0 0
        %500 = vmatprep.subr.bf16.mxu0 0
        %501 = vmatpush1.bf16.msra.mxu0 0
        %502 = vmatprep.subr.bf16.mxu0 0
        %503 = vmatpush1.bf16.msra.mxu0 0
        %504 = vmatprep.mubr.bf16.mxu0 0
        %505 = vmatmul.mubr.bf16.gmra.mrb[0].mxu0 %v470
        %v506 = vpop.f32.mrb[0].mxu0
        %v507 = vadd.f32 %v442, %v506
        %v508 = vpop.f32.mrb[0].mxu0
        %v509 = vpop.f32.mrb[0].mxu0
        %v510 = vpop.f32.mrb[0].mxu0
        %511 = vdwg.mxu0
        %v512 = vpack.c.bf16 %v507, %v507
        %v513 = vld [vmem:[%s372] sm:$0xf]
        %v514 = vld [vmem:[%s372 + $0x4] sm:$0xf]
        %v515 = vld [vmem:[%s381] sm:$0xf]
        %v516 = vld [vmem:[%s381 + $0x4] sm:$0xf]
        %v519 = vunpack.c.l.b16 %v513
        %v520 = vunpack.c.l.b16 %v514
        %v521 = vpack.c.b16 %v520, %v519
        %vm522 = vcmask 130048
        %v524 = vsel %vm522, %v512, 0
        %v527 = vsel %vm522, %v521, 0
        %529 = vmatprep.subr.bf16.mxu0 0
        %530 = vmatpush1.bf16.xpose.msra.mxu0 %v527
        %531 = vmatprep.subr.bf16.mxu0 0
        %532 = vmatpush1.bf16.xpose.msra.mxu0 0
        %533 = vmatprep.subr.bf16.mxu0 0
        %534 = vmatpush1.bf16.xpose.msra.mxu0 0
        %535 = vmatprep.subr.bf16.mxu0 0
        %536 = vmatpush1.bf16.xpose.msra.mxu0 0
        %537 = vmatprep.subr.bf16.mxu0 0
        %538 = vmatpush1.bf16.xpose.msra.mxu0 0
        %539 = vmatprep.subr.bf16.mxu0 0
        %540 = vmatpush1.bf16.xpose.msra.mxu0 0
        %541 = vmatprep.subr.bf16.mxu0 0
        %542 = vmatpush1.bf16.xpose.msra.mxu0 0
        %543 = vmatprep.subr.bf16.mxu0 0
        %544 = vmatpush1.bf16.xpose.msra.mxu0 0
        %545 = vmatprep.subr.bf16.mxu0 0
        %546 = vmatpush1.bf16.xpose.msra.mxu0 0
        %547 = vmatprep.subr.bf16.mxu0 0
        %548 = vmatpush1.bf16.xpose.msra.mxu0 0
        %549 = vmatprep.subr.bf16.mxu0 0
        %550 = vmatpush1.bf16.xpose.msra.mxu0 0
        %551 = vmatprep.subr.bf16.mxu0 0
        %552 = vmatpush1.bf16.xpose.msra.mxu0 0
        %553 = vmatprep.subr.bf16.mxu0 0
        %554 = vmatpush1.bf16.xpose.msra.mxu0 0
        %555 = vmatprep.subr.bf16.mxu0 0
        %556 = vmatpush1.bf16.xpose.msra.mxu0 0
        %557 = vmatprep.subr.bf16.mxu0 0
        %558 = vmatpush1.bf16.xpose.msra.mxu0 0
        %559 = vmatprep.subr.bf16.mxu0 0
        %560 = vmatpush1.bf16.xpose.msra.mxu0 0
        %561 = vmatprep.mubr.bf16.mxu0 0
        %562 = vmatmul.mubr.bf16.gmra.mrb[0].mxu0 %v524
        %v563 = vpop.f32.mrb[0].mxu0
        %v564 = vadd.f32 0.0, %v563
        %v565 = vpop.f32.mrb[0].mxu0
        %v566 = vpop.f32.mrb[0].mxu0
        %v567 = vpop.f32.mrb[0].mxu0
        %568 = vdwg.mxu0
        %v569 = vsel %vm522, %v564, -inf
        %570 = vmax.xlane.f32.xlu0 %v569
        %v571 = vpop.xlane.xlu0 %570
        %v572 = vsub.f32 %v564, %v571
        %v573 = vmul.f32 %v572, 1.442695
        %v574 = vpow.pop %v573
        %v575 = vsel %vm522, %v574, 0.0
        %576 = vadd.xlane.f32.xlu0 %v575
        %v577 = vpop.xlane.xlu0 %576
        %v578 = vrcp.pop %v577
        %v579 = vmul.f32 %v574, %v578
        %v580 = vpack.c.bf16 %v579, %v579
        %v583 = vunpack.c.l.b16 %v515
        %v584 = vunpack.c.l.b16 %v516
        %v585 = vpack.c.b16 %v584, %v583
        %v588 = vsel %vm522, %v580, 0
        %590 = vmatprep.subr.bf16.mxu0 0
        %591 = vmatpush1.bf16.msra.mxu0 %v585
        %592 = vmatprep.subr.bf16.mxu0 0
        %593 = vmatpush1.bf16.msra.mxu0 0
        %594 = vmatprep.subr.bf16.mxu0 0
        %595 = vmatpush1.bf16.msra.mxu0 0
        %596 = vmatprep.subr.bf16.mxu0 0
        %597 = vmatpush1.bf16.msra.mxu0 0
        %598 = vmatprep.subr.bf16.mxu0 0
        %599 = vmatpush1.bf16.msra.mxu0 0
        %600 = vmatprep.subr.bf16.mxu0 0
        %601 = vmatpush1.bf16.msra.mxu0 0
        %602 = vmatprep.subr.bf16.mxu0 0
        %603 = vmatpush1.bf16.msra.mxu0 0
        %604 = vmatprep.subr.bf16.mxu0 0
        %605 = vmatpush1.bf16.msra.mxu0 0
        %606 = vmatprep.subr.bf16.mxu0 0
        %607 = vmatpush1.bf16.msra.mxu0 0
        %608 = vmatprep.subr.bf16.mxu0 0
        %609 = vmatpush1.bf16.msra.mxu0 0
        %610 = vmatprep.subr.bf16.mxu0 0
        %611 = vmatpush1.bf16.msra.mxu0 0
        %612 = vmatprep.subr.bf16.mxu0 0
        %613 = vmatpush1.bf16.msra.mxu0 0
        %614 = vmatprep.subr.bf16.mxu0 0
        %615 = vmatpush1.bf16.msra.mxu0 0
        %616 = vmatprep.subr.bf16.mxu0 0
        %617 = vmatpush1.bf16.msra.mxu0 0
        %618 = vmatprep.subr.bf16.mxu0 0
        %619 = vmatpush1.bf16.msra.mxu0 0
        %620 = vmatprep.subr.bf16.mxu0 0
        %621 = vmatpush1.bf16.msra.mxu0 0
        %622 = vmatprep.mubr.bf16.mxu0 0
        %623 = vmatmul.mubr.bf16.gmra.mrb[0].mxu0 %v588
        %v624 = vpop.f32.mrb[0].mxu0
        %v625 = vadd.f32 0.0, %v624
        %v626 = vpop.f32.mrb[0].mxu0
        %v627 = vpop.f32.mrb[0].mxu0
        %v628 = vpop.f32.mrb[0].mxu0
        %629 = vdwg.mxu0
        %v630 = vpack.c.bf16 %v625, %v625
        %vm631 = vcmask 125952
        %632 = vst.msk [vmem:[%s424] sm:$0xf] %vm631, %v630
        %634 = vrot.lane.b32.xlu0 %v512, 112
        %v635 = vpop.permute.xlu0 %634
        %636 = vrot.lane.b32.xlu0 %v521, 112
        %v637 = vpop.permute.xlu0 %636
        %v639 = vsel %vm522, %v635, 0
        %v642 = vsel %vm522, %v637, 0
        %644 = vmatprep.subr.bf16.mxu0 0
        %645 = vmatpush1.bf16.xpose.msra.mxu0 %v642
        %646 = vmatprep.subr.bf16.mxu0 0
        %647 = vmatpush1.bf16.xpose.msra.mxu0 0
        %648 = vmatprep.subr.bf16.mxu0 0
        %649 = vmatpush1.bf16.xpose.msra.mxu0 0
        %650 = vmatprep.subr.bf16.mxu0 0
        %651 = vmatpush1.bf16.xpose.msra.mxu0 0
        %652 = vmatprep.subr.bf16.mxu0 0
        %653 = vmatpush1.bf16.xpose.msra.mxu0 0
        %654 = vmatprep.subr.bf16.mxu0 0
        %655 = vmatpush1.bf16.xpose.msra.mxu0 0
        %656 = vmatprep.subr.bf16.mxu0 0
        %657 = vmatpush1.bf16.xpose.msra.mxu0 0
        %658 = vmatprep.subr.bf16.mxu0 0
        %659 = vmatpush1.bf16.xpose.msra.mxu0 0
        %660 = vmatprep.subr.bf16.mxu0 0
        %661 = vmatpush1.bf16.xpose.msra.mxu0 0
        %662 = vmatprep.subr.bf16.mxu0 0
        %663 = vmatpush1.bf16.xpose.msra.mxu0 0
        %664 = vmatprep.subr.bf16.mxu0 0
        %665 = vmatpush1.bf16.xpose.msra.mxu0 0
        %666 = vmatprep.subr.bf16.mxu0 0
        %667 = vmatpush1.bf16.xpose.msra.mxu0 0
        %668 = vmatprep.subr.bf16.mxu0 0
        %669 = vmatpush1.bf16.xpose.msra.mxu0 0
        %670 = vmatprep.subr.bf16.mxu0 0
        %671 = vmatpush1.bf16.xpose.msra.mxu0 0
        %672 = vmatprep.subr.bf16.mxu0 0
        %673 = vmatpush1.bf16.xpose.msra.mxu0 0
        %674 = vmatprep.subr.bf16.mxu0 0
        %675 = vmatpush1.bf16.xpose.msra.mxu0 0
        %676 = vmatprep.mubr.bf16.mxu0 0
        %677 = vmatmul.mubr.bf16.gmra.mrb[0].mxu0 %v639
        %v678 = vpop.f32.mrb[0].mxu0
        %v679 = vadd.f32 0.0, %v678
        %v680 = vpop.f32.mrb[0].mxu0
        %v681 = vpop.f32.mrb[0].mxu0
        %v682 = vpop.f32.mrb[0].mxu0
        %683 = vdwg.mxu0
        %v684 = vsel %vm522, %v679, -inf
        %685 = vmax.xlane.f32.xlu0 %v684
        %v686 = vpop.xlane.xlu0 %685
        %v687 = vsub.f32 %v679, %v686
        %v688 = vmul.f32 %v687, 1.442695
        %v689 = vpow.pop %v688
        %v690 = vsel %vm522, %v689, 0.0
        %691 = vadd.xlane.f32.xlu0 %v690
        %v692 = vpop.xlane.xlu0 %691
        %v693 = vrcp.pop %v692
        %v694 = vmul.f32 %v689, %v693
        %v695 = vpack.c.bf16 %v694, %v694
        %696 = vrot.lane.b32.xlu0 %v585, 112
        %v697 = vpop.permute.xlu0 %696
        %v700 = vsel %vm522, %v695, 0
        %702 = vmatprep.subr.bf16.mxu0 0
        %703 = vmatpush1.bf16.msra.mxu0 %v697
        %704 = vmatprep.subr.bf16.mxu0 0
        %705 = vmatpush1.bf16.msra.mxu0 0
        %706 = vmatprep.subr.bf16.mxu0 0
        %707 = vmatpush1.bf16.msra.mxu0 0
        %708 = vmatprep.subr.bf16.mxu0 0
        %709 = vmatpush1.bf16.msra.mxu0 0
        %710 = vmatprep.subr.bf16.mxu0 0
        %711 = vmatpush1.bf16.msra.mxu0 0
        %712 = vmatprep.subr.bf16.mxu0 0
        %713 = vmatpush1.bf16.msra.mxu0 0
        %714 = vmatprep.subr.bf16.mxu0 0
        %715 = vmatpush1.bf16.msra.mxu0 0
        %716 = vmatprep.subr.bf16.mxu0 0
        %717 = vmatpush1.bf16.msra.mxu0 0
        %718 = vmatprep.subr.bf16.mxu0 0
        %719 = vmatpush1.bf16.msra.mxu0 0
        %720 = vmatprep.subr.bf16.mxu0 0
        %721 = vmatpush1.bf16.msra.mxu0 0
        %722 = vmatprep.subr.bf16.mxu0 0
        %723 = vmatpush1.bf16.msra.mxu0 0
        %724 = vmatprep.subr.bf16.mxu0 0
        %725 = vmatpush1.bf16.msra.mxu0 0
        %726 = vmatprep.subr.bf16.mxu0 0
        %727 = vmatpush1.bf16.msra.mxu0 0
        %728 = vmatprep.subr.bf16.mxu0 0
        %729 = vmatpush1.bf16.msra.mxu0 0
        %730 = vmatprep.subr.bf16.mxu0 0
        %731 = vmatpush1.bf16.msra.mxu0 0
        %732 = vmatprep.subr.bf16.mxu0 0
        %733 = vmatpush1.bf16.msra.mxu0 0
        %734 = vmatprep.mubr.bf16.mxu0 0
        %735 = vmatmul.mubr.bf16.gmra.mrb[0].mxu0 %v700
        %v736 = vpop.f32.mrb[0].mxu0
        %v737 = vadd.f32 0.0, %v736
        %v738 = vpop.f32.mrb[0].mxu0
        %v739 = vpop.f32.mrb[0].mxu0
        %v740 = vpop.f32.mrb[0].mxu0
        %741 = vdwg.mxu0
        %v742 = vpack.c.bf16 %v737, %v737
        %v744 = vunpack.c.l.b16 %v742
        %v745 = vpack.c.b16 %v744, %v744
        %746 = vrot.lane.b32.xlu0 %v745, 16
        %v747 = vpop.permute.xlu0 %746
        %vm749 = vcmask 257152
        %750 = vst.msk [vmem:[%s424] sm:$0xf] %vm749, %v747
        %751 = vrot.lane.b32.xlu0 %v512, 96
        %v752 = vpop.permute.xlu0 %751
        %753 = vrot.lane.b32.xlu0 %v521, 96
        %v754 = vpop.permute.xlu0 %753
        %v756 = vsel %vm522, %v752, 0
        %v759 = vsel %vm522, %v754, 0
        %761 = vmatprep.subr.bf16.mxu0 0
        %762 = vmatpush1.bf16.xpose.msra.mxu0 %v759
        %763 = vmatprep.subr.bf16.mxu0 0
        %764 = vmatpush1.bf16.xpose.msra.mxu0 0
        %765 = vmatprep.subr.bf16.mxu0 0
        %766 = vmatpush1.bf16.xpose.msra.mxu0 0
        %767 = vmatprep.subr.bf16.mxu0 0
        %768 = vmatpush1.bf16.xpose.msra.mxu0 0
        %769 = vmatprep.subr.bf16.mxu0 0
        %770 = vmatpush1.bf16.xpose.msra.mxu0 0
        %771 = vmatprep.subr.bf16.mxu0 0
        %772 = vmatpush1.bf16.xpose.msra.mxu0 0
        %773 = vmatprep.subr.bf16.mxu0 0
        %774 = vmatpush1.bf16.xpose.msra.mxu0 0
        %775 = vmatprep.subr.bf16.mxu0 0
        %776 = vmatpush1.bf16.xpose.msra.mxu0 0
        %777 = vmatprep.subr.bf16.mxu0 0
        %778 = vmatpush1.bf16.xpose.msra.mxu0 0
        %779 = vmatprep.subr.bf16.mxu0 0
        %780 = vmatpush1.bf16.xpose.msra.mxu0 0
        %781 = vmatprep.subr.bf16.mxu0 0
        %782 = vmatpush1.bf16.xpose.msra.mxu0 0
        %783 = vmatprep.subr.bf16.mxu0 0
        %784 = vmatpush1.bf16.xpose.msra.mxu0 0
        %785 = vmatprep.subr.bf16.mxu0 0
        %786 = vmatpush1.bf16.xpose.msra.mxu0 0
        %787 = vmatprep.subr.bf16.mxu0 0
        %788 = vmatpush1.bf16.xpose.msra.mxu0 0
        %789 = vmatprep.subr.bf16.mxu0 0
        %790 = vmatpush1.bf16.xpose.msra.mxu0 0
        %791 = vmatprep.subr.bf16.mxu0 0
        %792 = vmatpush1.bf16.xpose.msra.mxu0 0
        %793 = vmatprep.mubr.bf16.mxu0 0
        %794 = vmatmul.mubr.bf16.gmra.mrb[0].mxu0 %v756
        %v795 = vpop.f32.mrb[0].mxu0
        %v796 = vadd.f32 0.0, %v795
        %v797 = vpop.f32.mrb[0].mxu0
        %v798 = vpop.f32.mrb[0].mxu0
        %v799 = vpop.f32.mrb[0].mxu0
        %800 = vdwg.mxu0
        %v801 = vsel %vm522, %v796, -inf
        %802 = vmax.xlane.f32.xlu0 %v801
        %v803 = vpop.xlane.xlu0 %802
        %v804 = vsub.f32 %v796, %v803
        %v805 = vmul.f32 %v804, 1.442695
        %v806 = vpow.pop %v805
        %v807 = vsel %vm522, %v806, 0.0
        %808 = vadd.xlane.f32.xlu0 %v807
        %v809 = vpop.xlane.xlu0 %808
        %v810 = vrcp.pop %v809
        %v811 = vmul.f32 %v806, %v810
        %v812 = vpack.c.bf16 %v811, %v811
        %813 = vrot.lane.b32.xlu0 %v585, 96
        %v814 = vpop.permute.xlu0 %813
        %v817 = vsel %vm522, %v812, 0
        %819 = vmatprep.subr.bf16.mxu0 0
        %820 = vmatpush1.bf16.msra.mxu0 %v814
        %821 = vmatprep.subr.bf16.mxu0 0
        %822 = vmatpush1.bf16.msra.mxu0 0
        %823 = vmatprep.subr.bf16.mxu0 0
        %824 = vmatpush1.bf16.msra.mxu0 0
        %825 = vmatprep.subr.bf16.mxu0 0
        %826 = vmatpush1.bf16.msra.mxu0 0
        %827 = vmatprep.subr.bf16.mxu0 0
        %828 = vmatpush1.bf16.msra.mxu0 0
        %829 = vmatprep.subr.bf16.mxu0 0
        %830 = vmatpush1.bf16.msra.mxu0 0
        %831 = vmatprep.subr.bf16.mxu0 0
        %832 = vmatpush1.bf16.msra.mxu0 0
        %833 = vmatprep.subr.bf16.mxu0 0
        %834 = vmatpush1.bf16.msra.mxu0 0
        %835 = vmatprep.subr.bf16.mxu0 0
        %836 = vmatpush1.bf16.msra.mxu0 0
        %837 = vmatprep.subr.bf16.mxu0 0
        %838 = vmatpush1.bf16.msra.mxu0 0
        %839 = vmatprep.subr.bf16.mxu0 0
        %840 = vmatpush1.bf16.msra.mxu0 0
        %841 = vmatprep.subr.bf16.mxu0 0
        %842 = vmatpush1.bf16.msra.mxu0 0
        %843 = vmatprep.subr.bf16.mxu0 0
        %844 = vmatpush1.bf16.msra.mxu0 0
        %845 = vmatprep.subr.bf16.mxu0 0
        %846 = vmatpush1.bf16.msra.mxu0 0
        %847 = vmatprep.subr.bf16.mxu0 0
        %848 = vmatpush1.bf16.msra.mxu0 0
        %849 = vmatprep.subr.bf16.mxu0 0
        %850 = vmatpush1.bf16.msra.mxu0 0
        %851 = vmatprep.mubr.bf16.mxu0 0
        %852 = vmatmul.mubr.bf16.gmra.mrb[0].mxu0 %v817
        %v853 = vpop.f32.mrb[0].mxu0
        %v854 = vadd.f32 0.0, %v853
        %v855 = vpop.f32.mrb[0].mxu0
        %v856 = vpop.f32.mrb[0].mxu0
        %v857 = vpop.f32.mrb[0].mxu0
        %858 = vdwg.mxu0
        %v859 = vpack.c.bf16 %v854, %v854
        %v861 = vunpack.c.l.b16 %v859
        %v862 = vpack.c.b16 %v861, %v861
        %863 = vrot.lane.b32.xlu0 %v862, 32
        %v864 = vpop.permute.xlu0 %863
        %vm866 = vcmask 388352
        %867 = vst.msk [vmem:[%s424] sm:$0xf] %vm866, %v864
        %868 = vrot.lane.b32.xlu0 %v512, 80
        %v869 = vpop.permute.xlu0 %868
        %870 = vrot.lane.b32.xlu0 %v521, 80
        %v871 = vpop.permute.xlu0 %870
        %v873 = vsel %vm522, %v869, 0
        %v876 = vsel %vm522, %v871, 0
        %878 = vmatprep.subr.bf16.mxu0 0
        %879 = vmatpush1.bf16.xpose.msra.mxu0 %v876
        %880 = vmatprep.subr.bf16.mxu0 0
        %881 = vmatpush1.bf16.xpose.msra.mxu0 0
        %882 = vmatprep.subr.bf16.mxu0 0
        %883 = vmatpush1.bf16.xpose.msra.mxu0 0
        %884 = vmatprep.subr.bf16.mxu0 0
        %885 = vmatpush1.bf16.xpose.msra.mxu0 0
        %886 = vmatprep.subr.bf16.mxu0 0
        %887 = vmatpush1.bf16.xpose.msra.mxu0 0
        %888 = vmatprep.subr.bf16.mxu0 0
        %889 = vmatpush1.bf16.xpose.msra.mxu0 0
        %890 = vmatprep.subr.bf16.mxu0 0
        %891 = vmatpush1.bf16.xpose.msra.mxu0 0
        %892 = vmatprep.subr.bf16.mxu0 0
        %893 = vmatpush1.bf16.xpose.msra.mxu0 0
        %894 = vmatprep.subr.bf16.mxu0 0
        %895 = vmatpush1.bf16.xpose.msra.mxu0 0
        %896 = vmatprep.subr.bf16.mxu0 0
        %897 = vmatpush1.bf16.xpose.msra.mxu0 0
        %898 = vmatprep.subr.bf16.mxu0 0
        %899 = vmatpush1.bf16.xpose.msra.mxu0 0
        %900 = vmatprep.subr.bf16.mxu0 0
        %901 = vmatpush1.bf16.xpose.msra.mxu0 0
        %902 = vmatprep.subr.bf16.mxu0 0
        %903 = vmatpush1.bf16.xpose.msra.mxu0 0
        %904 = vmatprep.subr.bf16.mxu0 0
        %905 = vmatpush1.bf16.xpose.msra.mxu0 0
        %906 = vmatprep.subr.bf16.mxu0 0
        %907 = vmatpush1.bf16.xpose.msra.mxu0 0
        %908 = vmatprep.subr.bf16.mxu0 0
        %909 = vmatpush1.bf16.xpose.msra.mxu0 0
        %910 = vmatprep.mubr.bf16.mxu0 0
        %911 = vmatmul.mubr.bf16.gmra.mrb[0].mxu0 %v873
        %v912 = vpop.f32.mrb[0].mxu0
        %v913 = vadd.f32 0.0, %v912
        %v914 = vpop.f32.mrb[0].mxu0
        %v915 = vpop.f32.mrb[0].mxu0
        %v916 = vpop.f32.mrb[0].mxu0
        %917 = vdwg.mxu0
        %v918 = vsel %vm522, %v913, -inf
        %919 = vmax.xlane.f32.xlu0 %v918
        %v920 = vpop.xlane.xlu0 %919
        %v921 = vsub.f32 %v913, %v920
        %v922 = vmul.f32 %v921, 1.442695
        %v923 = vpow.pop %v922
        %v924 = vsel %vm522, %v923, 0.0
        %925 = vadd.xlane.f32.xlu0 %v924
        %v926 = vpop.xlane.xlu0 %925
        %v927 = vrcp.pop %v926
        %v928 = vmul.f32 %v923, %v927
        %v929 = vpack.c.bf16 %v928, %v928
        %930 = vrot.lane.b32.xlu0 %v585, 80
        %v931 = vpop.permute.xlu0 %930
        %v934 = vsel %vm522, %v929, 0
        %936 = vmatprep.subr.bf16.mxu0 0
        %937 = vmatpush1.bf16.msra.mxu0 %v931
        %938 = vmatprep.subr.bf16.mxu0 0
        %939 = vmatpush1.bf16.msra.mxu0 0
        %940 = vmatprep.subr.bf16.mxu0 0
        %941 = vmatpush1.bf16.msra.mxu0 0
        %942 = vmatprep.subr.bf16.mxu0 0
        %943 = vmatpush1.bf16.msra.mxu0 0
        %944 = vmatprep.subr.bf16.mxu0 0
        %945 = vmatpush1.bf16.msra.mxu0 0
        %946 = vmatprep.subr.bf16.mxu0 0
        %947 = vmatpush1.bf16.msra.mxu0 0
        %948 = vmatprep.subr.bf16.mxu0 0
        %949 = vmatpush1.bf16.msra.mxu0 0
        %950 = vmatprep.subr.bf16.mxu0 0
        %951 = vmatpush1.bf16.msra.mxu0 0
        %952 = vmatprep.subr.bf16.mxu0 0
        %953 = vmatpush1.bf16.msra.mxu0 0
        %954 = vmatprep.subr.bf16.mxu0 0
        %955 = vmatpush1.bf16.msra.mxu0 0
        %956 = vmatprep.subr.bf16.mxu0 0
        %957 = vmatpush1.bf16.msra.mxu0 0
        %958 = vmatprep.subr.bf16.mxu0 0
        %959 = vmatpush1.bf16.msra.mxu0 0
        %960 = vmatprep.subr.bf16.mxu0 0
        %961 = vmatpush1.bf16.msra.mxu0 0
        %962 = vmatprep.subr.bf16.mxu0 0
        %963 = vmatpush1.bf16.msra.mxu0 0
        %964 = vmatprep.subr.bf16.mxu0 0
        %965 = vmatpush1.bf16.msra.mxu0 0
        %966 = vmatprep.subr.bf16.mxu0 0
        %967 = vmatpush1.bf16.msra.mxu0 0
        %968 = vmatprep.mubr.bf16.mxu0 0
        %969 = vmatmul.mubr.bf16.gmra.mrb[0].mxu0 %v934
        %v970 = vpop.f32.mrb[0].mxu0
        %v971 = vadd.f32 0.0, %v970
        %v972 = vpop.f32.mrb[0].mxu0
        %v973 = vpop.f32.mrb[0].mxu0
        %v974 = vpop.f32.mrb[0].mxu0
        %975 = vdwg.mxu0
        %v976 = vpack.c.bf16 %v971, %v971
        %v978 = vunpack.c.l.b16 %v976
        %v979 = vpack.c.b16 %v978, %v978
        %980 = vrot.lane.b32.xlu0 %v979, 48
        %v981 = vpop.permute.xlu0 %980
        %vm983 = vcmask 519552
        %984 = vst.msk [vmem:[%s424] sm:$0xf] %vm983, %v981
        %s985 = sand.u32 %s199, 1
        %s986 = scalar_lea.sflag [#allocation4], %s985
        %s987 = sand.u32 %s199, 1
        %s988 = smul.addr %s987, 4
        %s989 = scalar_lea.vmem [#allocation12], %s988
        // Predicated region
        $region69: #{group_detr_transformer_fwd.35} parent=43 // pred_check
          %p990 = pneg %p209
        $region70: #{group_detr_transformer_fwd.35} parent=43 // pred_check_branch
          %992 = sbr.rel (%p990) target = $region72
        $region71: #{group_detr_transformer_fwd.35} parent=43 // pred_region
          %s994 = ssub.s32 64, 64
          %995 = vsyncadd %s986, %s994
          %s996 = sadd.s32 %s32, %s31
          %s997 = smul.addr %s996, 64
          %s998 = scalar_lea.hbm %s6, %s997
          %s1000 = sshll.u32 %s989, 4
          %s1001 = int_to_ptr.vmem [resolvable:$true] %s1000
          %1003 = dma.vmem_to_hbm [thread:$0]  %s1001, 64, %s998, %s986
        $region72: #{group_detr_transformer_fwd.35} parent=43 // pred_fallthru
          _
      $region44: #{group_detr_transformer_fwd.35} parent=5 // pred_fallthru
        _
      %p1004 = scmp.le.s32.totalorder 2, %s22
      // Predicated region
      $region73: #{group_detr_transformer_fwd.35} parent=5 // pred_check
        %p1005 = pneg %p1004
      $region74: #{group_detr_transformer_fwd.35} parent=5 // pred_check_branch
        %1007 = sbr.rel (%p1005) target = $region76
      $region75: #{group_detr_transformer_fwd.35} parent=5 // pred_region
        %s1008 = ssub.s32 %s22, 2
        // Predicated region
        $region77: #{group_detr_transformer_fwd.35} parent=75 // pred_check
          %p1009 = pneg %p215
        $region78: #{group_detr_transformer_fwd.35} parent=75 // pred_check_branch
          %1011 = sbr.rel (%p1009) target = $region80
        $region79: #{group_detr_transformer_fwd.35} parent=75 // pred_region
          %s1012 = sand.u32 %s200, 1
          %s1013 = scalar_lea.sflag [#allocation4], %s1012
          %s1014 = sand.u32 %s200, 1
          %s1015 = smul.addr %s1014, 4
          %s1016 = scalar_lea.vmem [#allocation12], %s1015
          %1017 = dma.done %s1013, 64
        $region80: #{group_detr_transformer_fwd.35} parent=75 // pred_fallthru
          _
      $region76: #{group_detr_transformer_fwd.35} parent=5 // pred_fallthru
        _
    $region6: #{group_detr_transformer_fwd.35} parent=1 // loop_footer
      %s26 = sadd.s32 1, %s22
    $region7: #{group_detr_transformer_fwd.35} parent=1 // loop_footer_branch
      %21 = sbr.rel target = $region3
    $region8: #{group_detr_transformer_fwd.35} parent=1 // loop_exit
      _
    %1018 = vsyncpa [#allocation3], 1
    %s1019 = scalar_lea.sflag [#allocation3], 1
    %1020 = vsyncpa %s1019, 1
    %1021 = vsyncpa [#allocation6], 1
    %s1022 = scalar_lea.sflag [#allocation6], 1
    %1023 = vsyncpa %s1022, 1
    %1024 = vsyncpa [#allocation9], 1
    %1025 = vsyncpa [#allocation4], 1
    %s1026 = scalar_lea.sflag [#allocation4], 1
    %1027 = vsyncpa %s1026, 1

// kernel: group_detr_transformer_fwd.37
$region0: #{group_detr_transformer_fwd.37}
  #allocation0 [shape = 'u32[]', space=smem, size = 0x4, offset = 0x4, fixed_abs, tag = 'smem constant byte address 0x4 - core index']
  #allocation1 [shape = 'u32[144,128]{1,0:T(1,128)}', space=vmem, size = 0x12000, scoped, tag = 'internal scratch']
  %s0 = inlined_call_operand.hbm [shape: bf16[16,64], index: 0, kind: input, shape index: {}]
  %s1 = inlined_call_operand.hbm [shape: bf16[64,128], index: 1, kind: input, shape index: {}]
  %s2 = inlined_call_operand.hbm [shape: f32[1,128], index: 2, kind: input, shape index: {}]
  %s3 = inlined_call_operand.hbm [shape: bf16[128,64], index: 3, kind: input, shape index: {}]
  %s4 = inlined_call_operand.hbm [shape: f32[1,64], index: 4, kind: input, shape index: {}, may-alias: {4,6,8}]
  %s5 = inlined_call_operand.hbm [shape: f32[1,64], index: 5, kind: input, shape index: {}, may-alias: {5,7}]
  %s6 = inlined_call_operand.hbm [shape: f32[1,64], index: 6, kind: input, shape index: {}, may-alias: {4,6,8}]
  %s7 = inlined_call_operand.hbm [shape: f32[1,64], index: 7, kind: input, shape index: {}, may-alias: {5,7}]
  %s8 = inlined_call_operand.hbm [shape: f32[1,64], index: 8, kind: input, shape index: {}, may-alias: {4,6,8}]
  %s9 = inlined_call_operand.hbm [shape: bf16[16,64], index: 9, kind: output, shape index: {0}]
  %s10 = inlined_call_operand.hbm [shape: f32[16,64], index: 10, kind: output, shape index: {1}]
  %11 = xla_tuple %s9, %s10
  %s12 = sld [smem:[#allocation0]]
  $region90: #{group_detr_transformer_fwd.37} parent=0
    _
  %s14 = ssub.s32 1, %s12
  %s15 = scalar_select 0, %s14, %s12
  $region1: #{group_detr_transformer_fwd.37} parent=0
    #allocation2 [shape = 'u8[4096]{0}', space=vmem, size = 0x1000, scoped, tag = 'input window, operand 0, single buffered']
    #allocation3 [shape = 's32[1]{0}', space=sflag, size = 0x4, scoped, tag = 'scoped memory for group_detr_transformer_fwd.37']
    #allocation4 [shape = 's32[1]{0}', space=sflag, size = 0x4, scoped, tag = 'scoped memory for group_detr_transformer_fwd.37']
    #allocation5 [shape = 'u8[16384]{0}', space=vmem, size = 0x4000, scoped, tag = 'input window, operand 1, single buffered']
    #allocation6 [shape = 's32[1]{0}', space=sflag, size = 0x4, scoped, tag = 'scoped memory for group_detr_transformer_fwd.37']
    #allocation7 [shape = 'u8[512]{0}', space=vmem, size = 0x400, scoped, tag = 'input window, operand 2, single buffered']
    #allocation8 [shape = 'u8[32768]{0}', space=vmem, size = 0x8000, scoped, tag = 'input window, operand 3, single buffered']
    #allocation9 [shape = 's32[1]{0}', space=sflag, size = 0x4, scoped, tag = 'scoped memory for group_detr_transformer_fwd.37']
    #allocation10 [shape = 'u8[512]{0}', space=vmem, size = 0x400, scoped, tag = 'input window, operand 4, single buffered']
    #allocation11 [shape = 'u8[512]{0}', space=vmem, size = 0x400, scoped, tag = 'input window, operand 5, single buffered']
    #allocation12 [shape = 's32[1]{0}', space=sflag, size = 0x4, scoped, tag = 'scoped memory for group_detr_transformer_fwd.37']
    #allocation13 [shape = 'u8[512]{0}', space=vmem, size = 0x400, scoped, tag = 'input window, operand 6, single buffered']
    #allocation14 [shape = 'u8[512]{0}', space=vmem, size = 0x400, scoped, tag = 'input window, operand 7, single buffered']
    #allocation15 [shape = 's32[1]{0}', space=sflag, size = 0x4, scoped, tag = 'scoped memory for group_detr_transformer_fwd.37']
    #allocation16 [shape = 'u8[512]{0}', space=vmem, size = 0x400, scoped, tag = 'input window, operand 8, single buffered']
    #allocation17 [shape = 'u8[4096]{0}', space=vmem, size = 0x1000, scoped, tag = 'output window, operand 0, single buffered']
    #allocation18 [shape = 'u8[8192]{0}', space=vmem, size = 0x2000, scoped, tag = 'output window, operand 1, single buffered']
    #allocation19 [shape = 's32[1]{0}', space=sflag, size = 0x4, scoped, tag = 'scoped memory for group_detr_transformer_fwd.37']
    %16 = vsyncpa [#allocation3], 0
    %17 = vsyncpa [#allocation6], 0
    %18 = vsyncpa [#allocation9], 0
    %19 = vsyncpa [#allocation12], 0
    %20 = vsyncpa [#allocation15], 0
    %21 = vsyncpa [#allocation4], 0
    %22 = vsyncpa [#allocation19], 0
    // Predicated region
    $region2: #{group_detr_transformer_fwd.37} parent=1 // pred_check
      _
    $region3: #{group_detr_transformer_fwd.37} parent=1 // pred_check_branch
      %24 = sbr.rel (0) target = $region5
    $region4: #{group_detr_transformer_fwd.37} parent=1 // pred_region
      %s26 = ssub.s32 128, 128
      %27 = vsyncadd [#allocation3], %s26
      %s28 = sshll.u32 [#allocation2], 4
      %s29 = int_to_ptr.vmem [resolvable:$true] %s28
      %34 = dma.hbm_to_vmem [thread:$0]  %s0, 128, %s29, [#allocation3], 64, 64, 4
    $region5: #{group_detr_transformer_fwd.37} parent=1 // pred_fallthru
      _
    // Predicated region
    $region6: #{group_detr_transformer_fwd.37} parent=1 // pred_check
      _
    $region7: #{group_detr_transformer_fwd.37} parent=1 // pred_check_branch
      %36 = sbr.rel (0) target = $region9
    $region8: #{group_detr_transformer_fwd.37} parent=1 // pred_region
      %s38 = ssub.s32 512, 512
      %39 = vsyncadd [#allocation6], %s38
      %s40 = sshll.u32 [#allocation5], 4
      %s41 = int_to_ptr.vmem [resolvable:$true] %s40
      %46 = dma.hbm_to_vmem [thread:$0]  %s1, 512, %s41, [#allocation6], 64, 64, 4
    $region9: #{group_detr_transformer_fwd.37} parent=1 // pred_fallthru
      _
    // Predicated region
    $region10: #{group_detr_transformer_fwd.37} parent=1 // pred_check
      _
    $region11: #{group_detr_transformer_fwd.37} parent=1 // pred_check_branch
      %48 = sbr.rel (0) target = $region13
    $region12: #{group_detr_transformer_fwd.37} parent=1 // pred_region
      %s50 = ssub.s32 16, 16
      %51 = vsyncadd [#allocation6], %s50
      %s53 = sshll.u32 [#allocation7], 4
      %s54 = int_to_ptr.vmem [resolvable:$true] %s53
      %56 = dma.hbm_to_vmem [thread:$0]  %s2, 16, %s54, [#allocation6]
    $region13: #{group_detr_transformer_fwd.37} parent=1 // pred_fallthru
      _
    // Predicated region
    $region14: #{group_detr_transformer_fwd.37} parent=1 // pred_check
      _
    $region15: #{group_detr_transformer_fwd.37} parent=1 // pred_check_branch
      %58 = sbr.rel (0) target = $region17
    $region16: #{group_detr_transformer_fwd.37} parent=1 // pred_region
      %s60 = ssub.s32 1024, 1024
      %61 = vsyncadd [#allocation9], %s60
      %s62 = sshll.u32 [#allocation8], 4
      %s63 = int_to_ptr.vmem [resolvable:$true] %s62
      %68 = dma.hbm_to_vmem [thread:$0]  %s3, 1024, %s63, [#allocation9], 64, 64, 4
    $region17: #{group_detr_transformer_fwd.37} parent=1 // pred_fallthru
      _
    // Predicated region
    $region18: #{group_detr_transformer_fwd.37} parent=1 // pred_check
      _
    $region19: #{group_detr_transformer_fwd.37} parent=1 // pred_check_branch
      %70 = sbr.rel (0) target = $region21
    $region20: #{group_detr_transformer_fwd.37} parent=1 // pred_region
      %s72 = ssub.s32 16, 16
      %73 = vsyncadd [#allocation9], %s72
      %s75 = sshll.u32 [#allocation10], 4
      %s76 = int_to_ptr.vmem [resolvable:$true] %s75
      %78 = dma.hbm_to_vmem [thread:$0]  %s4, 16, %s76, [#allocation9]
    $region21: #{group_detr_transformer_fwd.37} parent=1 // pred_fallthru
      _
    // Predicated region
    $region22: #{group_detr_transformer_fwd.37} parent=1 // pred_check
      _
    $region23: #{group_detr_transformer_fwd.37} parent=1 // pred_check_branch
      %80 = sbr.rel (0) target = $region25
    $region24: #{group_detr_transformer_fwd.37} parent=1 // pred_region
      %s82 = ssub.s32 16, 16
      %83 = vsyncadd [#allocation12], %s82
      %s85 = sshll.u32 [#allocation11], 4
      %s86 = int_to_ptr.vmem [resolvable:$true] %s85
      %88 = dma.hbm_to_vmem [thread:$0]  %s5, 16, %s86, [#allocation12]
    $region25: #{group_detr_transformer_fwd.37} parent=1 // pred_fallthru
      _
    // Predicated region
    $region26: #{group_detr_transformer_fwd.37} parent=1 // pred_check
      _
    $region27: #{group_detr_transformer_fwd.37} parent=1 // pred_check_branch
      %90 = sbr.rel (0) target = $region29
    $region28: #{group_detr_transformer_fwd.37} parent=1 // pred_region
      %s92 = ssub.s32 16, 16
      %93 = vsyncadd [#allocation12], %s92
      %s95 = sshll.u32 [#allocation13], 4
      %s96 = int_to_ptr.vmem [resolvable:$true] %s95
      %98 = dma.hbm_to_vmem [thread:$0]  %s6, 16, %s96, [#allocation12]
    $region29: #{group_detr_transformer_fwd.37} parent=1 // pred_fallthru
      _
    // Predicated region
    $region30: #{group_detr_transformer_fwd.37} parent=1 // pred_check
      _
    $region31: #{group_detr_transformer_fwd.37} parent=1 // pred_check_branch
      %100 = sbr.rel (0) target = $region33
    $region32: #{group_detr_transformer_fwd.37} parent=1 // pred_region
      %s102 = ssub.s32 16, 16
      %103 = vsyncadd [#allocation15], %s102
      %s105 = sshll.u32 [#allocation14], 4
      %s106 = int_to_ptr.vmem [resolvable:$true] %s105
      %108 = dma.hbm_to_vmem [thread:$0]  %s7, 16, %s106, [#allocation15]
    $region33: #{group_detr_transformer_fwd.37} parent=1 // pred_fallthru
      _
    // Predicated region
    $region34: #{group_detr_transformer_fwd.37} parent=1 // pred_check
      _
    $region35: #{group_detr_transformer_fwd.37} parent=1 // pred_check_branch
      %110 = sbr.rel (0) target = $region37
    $region36: #{group_detr_transformer_fwd.37} parent=1 // pred_region
      %s112 = ssub.s32 16, 16
      %113 = vsyncadd [#allocation15], %s112
      %s115 = sshll.u32 [#allocation16], 4
      %s116 = int_to_ptr.vmem [resolvable:$true] %s115
      %118 = dma.hbm_to_vmem [thread:$0]  %s8, 16, %s116, [#allocation15]
    $region37: #{group_detr_transformer_fwd.37} parent=1 // pred_fallthru
      _
    // Predicated region
    $region38: #{group_detr_transformer_fwd.37} parent=1 // pred_check
      _
    $region39: #{group_detr_transformer_fwd.37} parent=1 // pred_check_branch
      %120 = sbr.rel (0) target = $region41
    $region40: #{group_detr_transformer_fwd.37} parent=1 // pred_region
      %121 = dma.done [#allocation3], 128
    $region41: #{group_detr_transformer_fwd.37} parent=1 // pred_fallthru
      _
    // Predicated region
    $region42: #{group_detr_transformer_fwd.37} parent=1 // pred_check
      _
    $region43: #{group_detr_transformer_fwd.37} parent=1 // pred_check_branch
      %123 = sbr.rel (0) target = $region45
    $region44: #{group_detr_transformer_fwd.37} parent=1 // pred_region
      %124 = dma.done [#allocation6], 512
    $region45: #{group_detr_transformer_fwd.37} parent=1 // pred_fallthru
      _
    // Predicated region
    $region46: #{group_detr_transformer_fwd.37} parent=1 // pred_check
      _
    $region47: #{group_detr_transformer_fwd.37} parent=1 // pred_check_branch
      %126 = sbr.rel (0) target = $region49
    $region48: #{group_detr_transformer_fwd.37} parent=1 // pred_region
      %127 = dma.done [#allocation6], 16
    $region49: #{group_detr_transformer_fwd.37} parent=1 // pred_fallthru
      _
    // Predicated region
    $region50: #{group_detr_transformer_fwd.37} parent=1 // pred_check
      _
    $region51: #{group_detr_transformer_fwd.37} parent=1 // pred_check_branch
      %129 = sbr.rel (0) target = $region53
    $region52: #{group_detr_transformer_fwd.37} parent=1 // pred_region
      %130 = dma.done [#allocation9], 1024
    $region53: #{group_detr_transformer_fwd.37} parent=1 // pred_fallthru
      _
    // Predicated region
    $region54: #{group_detr_transformer_fwd.37} parent=1 // pred_check
      _
    $region55: #{group_detr_transformer_fwd.37} parent=1 // pred_check_branch
      %132 = sbr.rel (0) target = $region57
    $region56: #{group_detr_transformer_fwd.37} parent=1 // pred_region
      %133 = dma.done [#allocation9], 16
    $region57: #{group_detr_transformer_fwd.37} parent=1 // pred_fallthru
      _
    // Predicated region
    $region58: #{group_detr_transformer_fwd.37} parent=1 // pred_check
      _
    $region59: #{group_detr_transformer_fwd.37} parent=1 // pred_check_branch
      %135 = sbr.rel (0) target = $region61
    $region60: #{group_detr_transformer_fwd.37} parent=1 // pred_region
      %136 = dma.done [#allocation12], 16
    $region61: #{group_detr_transformer_fwd.37} parent=1 // pred_fallthru
      _
    // Predicated region
    $region62: #{group_detr_transformer_fwd.37} parent=1 // pred_check
      _
    $region63: #{group_detr_transformer_fwd.37} parent=1 // pred_check_branch
      %138 = sbr.rel (0) target = $region65
    $region64: #{group_detr_transformer_fwd.37} parent=1 // pred_region
      %139 = dma.done [#allocation12], 16
    $region65: #{group_detr_transformer_fwd.37} parent=1 // pred_fallthru
      _
    // Predicated region
    $region66: #{group_detr_transformer_fwd.37} parent=1 // pred_check
      _
    $region67: #{group_detr_transformer_fwd.37} parent=1 // pred_check_branch
      %141 = sbr.rel (0) target = $region69
    $region68: #{group_detr_transformer_fwd.37} parent=1 // pred_region
      %142 = dma.done [#allocation15], 16
    $region69: #{group_detr_transformer_fwd.37} parent=1 // pred_fallthru
      _
    // Predicated region
    $region70: #{group_detr_transformer_fwd.37} parent=1 // pred_check
      _
    $region71: #{group_detr_transformer_fwd.37} parent=1 // pred_check_branch
      %144 = sbr.rel (0) target = $region73
    $region72: #{group_detr_transformer_fwd.37} parent=1 // pred_region
      %145 = dma.done [#allocation15], 16
    $region73: #{group_detr_transformer_fwd.37} parent=1 // pred_fallthru
      _
    %v147 = vld [vmem:[#allocation2] sm:$0xf]
    %v148 = vld [vmem:[#allocation2 + $0x4] sm:$0xf]
    %v149 = vld [vmem:[#allocation5] sm:$0xf]
    %v150 = vld [vmem:[#allocation5 + $0x4] sm:$0xf]
    %v151 = vld [vmem:[#allocation5 + $0x8] sm:$0xf]
    %v152 = vld [vmem:[#allocation5 + $0xc] sm:$0xf]
    %v153 = vld [vmem:[#allocation5 + $0x10] sm:$0xf]
    %v154 = vld [vmem:[#allocation5 + $0x14] sm:$0xf]
    %v155 = vld [vmem:[#allocation5 + $0x18] sm:$0xf]
    %v156 = vld [vmem:[#allocation5 + $0x1c] sm:$0xf]
    %v157 = vld [vmem:[#allocation7] sm:$0x1]
    %v159 = vlaneseq
    %v160 = vshrl.u32 %v159, 7
    %v161 = vsub.s32 0, %v160
    %v162 = vrot.slane %v157, %v161
    %v166 = vunpack.c.l.b16 %v147
    %v167 = vunpack.c.l.b16 %v148
    %v168 = vpack.c.b16 %v167, %v166
    %v177 = vunpack.c.l.b16 %v149
    %v178 = vunpack.c.l.b16 %v150
    %v179 = vunpack.c.l.b16 %v151
    %v180 = vunpack.c.l.b16 %v152
    %v181 = vunpack.c.l.b16 %v153
    %v182 = vunpack.c.l.b16 %v154
    %v183 = vunpack.c.l.b16 %v155
    %v184 = vunpack.c.l.b16 %v156
    %v185 = vpack.c.b16 %v178, %v177
    %v186 = vpack.c.b16 %v180, %v179
    %v187 = vpack.c.b16 %v182, %v181
    %v188 = vpack.c.b16 %v184, %v183
    %vm193 = vcmask 523264
    %v195 = vsel %vm193, %v168, 0
    %197 = vmatprep.subr.bf16.mxu0 0
    %198 = vmatpush1.bf16.msra.mxu0 %v185
    %199 = vmatprep.subr.bf16.mxu0 0
    %200 = vmatpush1.bf16.msra.mxu0 %v186
    %201 = vmatprep.subr.bf16.mxu0 0
    %202 = vmatpush1.bf16.msra.mxu0 %v187
    %203 = vmatprep.subr.bf16.mxu0 0
    %204 = vmatpush1.bf16.msra.mxu0 %v188
    %205 = vmatprep.subr.bf16.mxu0 0
    %206 = vmatpush1.bf16.msra.mxu0 0
    %207 = vmatprep.subr.bf16.mxu0 0
    %208 = vmatpush1.bf16.msra.mxu0 0
    %209 = vmatprep.subr.bf16.mxu0 0
    %210 = vmatpush1.bf16.msra.mxu0 0
    %211 = vmatprep.subr.bf16.mxu0 0
    %212 = vmatpush1.bf16.msra.mxu0 0
    %213 = vmatprep.subr.bf16.mxu0 0
    %214 = vmatpush1.bf16.msra.mxu0 0
    %215 = vmatprep.subr.bf16.mxu0 0
    %216 = vmatpush1.bf16.msra.mxu0 0
    %217 = vmatprep.subr.bf16.mxu0 0
    %218 = vmatpush1.bf16.msra.mxu0 0
    %219 = vmatprep.subr.bf16.mxu0 0
    %220 = vmatpush1.bf16.msra.mxu0 0
    %221 = vmatprep.subr.bf16.mxu0 0
    %222 = vmatpush1.bf16.msra.mxu0 0
    %223 = vmatprep.subr.bf16.mxu0 0
    %224 = vmatpush1.bf16.msra.mxu0 0
    %225 = vmatprep.subr.bf16.mxu0 0
    %226 = vmatpush1.bf16.msra.mxu0 0
    %227 = vmatprep.subr.bf16.mxu0 0
    %228 = vmatpush1.bf16.msra.mxu0 0
    %229 = vmatprep.mubr.bf16.mxu0 0
    %230 = vmatmul.mubr.bf16.gmra.mrb[0].mxu0 %v195
    %v231 = vpop.f32.mrb[0].mxu0
    %v232 = vadd.f32 %v162, %v231
    %v233 = vpop.f32.mrb[0].mxu0
    %v234 = vpop.f32.mrb[0].mxu0
    %v235 = vadd.f32 %v162, %v234
    %v236 = vpop.f32.mrb[0].mxu0
    %237 = vdwg.mxu0
    %v238 = vmax.f32 %v232, 0.0
    %v239 = vmax.f32 %v235, 0.0
    %v240 = vpack.c.bf16 %v239, %v238
    %v241 = vld [vmem:[#allocation8] sm:$0xf]
    %v242 = vld [vmem:[#allocation8 + $0x4] sm:$0xf]
    %v243 = vld [vmem:[#allocation8 + $0x8] sm:$0xf]
    %v244 = vld [vmem:[#allocation8 + $0xc] sm:$0xf]
    %v245 = vld [vmem:[#allocation8 + $0x10] sm:$0xf]
    %v246 = vld [vmem:[#allocation8 + $0x14] sm:$0xf]
    %v247 = vld [vmem:[#allocation8 + $0x18] sm:$0xf]
    %v248 = vld [vmem:[#allocation8 + $0x1c] sm:$0xf]
    %v249 = vld [vmem:[#allocation8 + $0x20] sm:$0xf]
    %v250 = vld [vmem:[#allocation8 + $0x24] sm:$0xf]
    %v251 = vld [vmem:[#allocation8 + $0x28] sm:$0xf]
    %v252 = vld [vmem:[#allocation8 + $0x2c] sm:$0xf]
    %v253 = vld [vmem:[#allocation8 + $0x30] sm:$0xf]
    %v254 = vld [vmem:[#allocation8 + $0x34] sm:$0xf]
    %v255 = vld [vmem:[#allocation8 + $0x38] sm:$0xf]
    %v256 = vld [vmem:[#allocation8 + $0x3c] sm:$0xf]
    %v257 = vld [vmem:[#allocation10] sm:$0x1]
    %v259 = vlaneseq
    %v260 = vshrl.u32 %v259, 7
    %v261 = vsub.s32 0, %v260
    %v262 = vrot.slane %v257, %v261
    %v280 = vunpack.c.l.b16 %v241
    %v281 = vunpack.c.l.b16 %v242
    %v282 = vunpack.c.l.b16 %v243
    %v283 = vunpack.c.l.b16 %v244
    %v284 = vunpack.c.l.b16 %v245
    %v285 = vunpack.c.l.b16 %v246
    %v286 = vunpack.c.l.b16 %v247
    %v287 = vunpack.c.l.b16 %v248
    %v288 = vunpack.c.l.b16 %v249
    %v289 = vunpack.c.l.b16 %v250
    %v290 = vunpack.c.l.b16 %v251
    %v291 = vunpack.c.l.b16 %v252
    %v292 = vunpack.c.l.b16 %v253
    %v293 = vunpack.c.l.b16 %v254
    %v294 = vunpack.c.l.b16 %v255
    %v295 = vunpack.c.l.b16 %v256
    %v296 = vpack.c.b16 %v281, %v280
    %v297 = vpack.c.b16 %v283, %v282
    %v298 = vpack.c.b16 %v285, %v284
    %v299 = vpack.c.b16 %v287, %v286
    %v300 = vpack.c.b16 %v289, %v288
    %v301 = vpack.c.b16 %v291, %v290
    %v302 = vpack.c.b16 %v293, %v292
    %v303 = vpack.c.b16 %v295, %v294
    %312 = vmatprep.subr.bf16.mxu0 0
    %313 = vmatpush1.bf16.msra.mxu0 %v296
    %314 = vmatprep.subr.bf16.mxu0 0
    %315 = vmatpush1.bf16.msra.mxu0 %v297
    %316 = vmatprep.subr.bf16.mxu0 0
    %317 = vmatpush1.bf16.msra.mxu0 %v298
    %318 = vmatprep.subr.bf16.mxu0 0
    %319 = vmatpush1.bf16.msra.mxu0 %v299
    %320 = vmatprep.subr.bf16.mxu0 0
    %321 = vmatpush1.bf16.msra.mxu0 %v300
    %322 = vmatprep.subr.bf16.mxu0 0
    %323 = vmatpush1.bf16.msra.mxu0 %v301
    %324 = vmatprep.subr.bf16.mxu0 0
    %325 = vmatpush1.bf16.msra.mxu0 %v302
    %326 = vmatprep.subr.bf16.mxu0 0
    %327 = vmatpush1.bf16.msra.mxu0 %v303
    %328 = vmatprep.subr.bf16.mxu0 0
    %329 = vmatpush1.bf16.msra.mxu0 0
    %330 = vmatprep.subr.bf16.mxu0 0
    %331 = vmatpush1.bf16.msra.mxu0 0
    %332 = vmatprep.subr.bf16.mxu0 0
    %333 = vmatpush1.bf16.msra.mxu0 0
    %334 = vmatprep.subr.bf16.mxu0 0
    %335 = vmatpush1.bf16.msra.mxu0 0
    %336 = vmatprep.subr.bf16.mxu0 0
    %337 = vmatpush1.bf16.msra.mxu0 0
    %338 = vmatprep.subr.bf16.mxu0 0
    %339 = vmatpush1.bf16.msra.mxu0 0
    %340 = vmatprep.subr.bf16.mxu0 0
    %341 = vmatpush1.bf16.msra.mxu0 0
    %342 = vmatprep.subr.bf16.mxu0 0
    %343 = vmatpush1.bf16.msra.mxu0 0
    %344 = vmatprep.mubr.bf16.mxu0 0
    %345 = vmatmul.mubr.bf16.gmra.mrb[0].mxu0 %v240
    %v346 = vpop.f32.mrb[0].mxu0
    %v347 = vadd.f32 %v262, %v346
    %v348 = vpop.f32.mrb[0].mxu0
    %v349 = vpop.f32.mrb[0].mxu0
    %v350 = vadd.f32 %v262, %v349
    %v351 = vpop.f32.mrb[0].mxu0
    %352 = vdwg.mxu0
    %v353 = vunpack.c.l.bf16 %v147
    %v354 = vunpack.c.l.bf16 %v148
    %v355 = vadd.f32 %v347, %v353
    %v356 = vadd.f32 %v350, %v354
    %v357 = vld [vmem:[#allocation11] sm:$0x1]
    %v358 = vld [vmem:[#allocation13] sm:$0x1]
    %v359 = vsel %vm193, %v355, 0.0
    %360 = vadd.xlane.f32.xlu0 %v359
    %v361 = vpop.xlane.xlu0 %360
    %v362 = vsel %vm193, %v356, 0.0
    %363 = vadd.xlane.f32.xlu0 %v362
    %v364 = vpop.xlane.xlu0 %363
    %v365 = vrcp.pop 64.0
    %v366 = vmul.f32 %v361, %v365
    %v367 = vmul.f32 %v364, %v365
    %v368 = vsub.f32 %v355, %v366
    %v369 = vsub.f32 %v356, %v367
    %v370 = vmul.f32 %v368, %v368
    %v371 = vmul.f32 %v369, %v369
    %v372 = vsel %vm193, %v370, 0.0
    %373 = vadd.xlane.f32.xlu0 %v372
    %v374 = vpop.xlane.xlu0 %373
    %v375 = vsel %vm193, %v371, 0.0
    %376 = vadd.xlane.f32.xlu0 %v375
    %v377 = vpop.xlane.xlu0 %376
    %v378 = vmul.f32 %v374, %v365
    %v379 = vmul.f32 %v377, %v365
    %v380 = vadd.f32 %v378, 1e-05
    %v381 = vadd.f32 %v379, 1e-05
    %v382 = vrsqrt.pop %v380
    %v383 = vrsqrt.pop %v381
    %v384 = vmul.f32 %v368, %v382
    %v385 = vmul.f32 %v369, %v383
    %v387 = vlaneseq
    %v388 = vshrl.u32 %v387, 7
    %v389 = vsub.s32 0, %v388
    %v390 = vrot.slane %v357, %v389
    %v392 = vmul.f32 %v384, %v390
    %v393 = vmul.f32 %v385, %v390
    %v395 = vlaneseq
    %v396 = vshrl.u32 %v395, 7
    %v397 = vsub.s32 0, %v396
    %v398 = vrot.slane %v358, %v397
    %v400 = vadd.f32 %v392, %v398
    %v401 = vadd.f32 %v393, %v398
    %v402 = vpack.c.bf16 %v401, %v400
    %v404 = vunpack.c.l.b16 %v402
    %v405 = vunpack.c.h.b16 %v402
    %v406 = vpack.c.b16 %v404, %v404
    %v407 = vpack.c.b16 %v405, %v405
    %vm410 = vcmask 519168
    %411 = vst.msk [vmem:[#allocation17] sm:$0xf] %vm410, %v406
    %412 = vst.msk [vmem:[#allocation17 + $0x4] sm:$0xf] %vm410, %v407
    %v413 = vld [vmem:[#allocation14] sm:$0x1]
    %v414 = vld [vmem:[#allocation16] sm:$0x1]
    %v415 = vsel %vm193, %v400, 0.0
    %416 = vadd.xlane.f32.xlu0 %v415
    %v417 = vpop.xlane.xlu0 %416
    %v418 = vsel %vm193, %v401, 0.0
    %419 = vadd.xlane.f32.xlu0 %v418
    %v420 = vpop.xlane.xlu0 %419
    %v421 = vmul.f32 %v417, %v365
    %v422 = vmul.f32 %v420, %v365
    %v423 = vsub.f32 %v400, %v421
    %v424 = vsub.f32 %v401, %v422
    %v425 = vmul.f32 %v423, %v423
    %v426 = vmul.f32 %v424, %v424
    %v427 = vsel %vm193, %v425, 0.0
    %428 = vadd.xlane.f32.xlu0 %v427
    %v429 = vpop.xlane.xlu0 %428
    %v430 = vsel %vm193, %v426, 0.0
    %431 = vadd.xlane.f32.xlu0 %v430
    %v432 = vpop.xlane.xlu0 %431
    %v433 = vmul.f32 %v429, %v365
    %v434 = vmul.f32 %v432, %v365
    %v435 = vadd.f32 %v433, 1e-05
    %v436 = vadd.f32 %v434, 1e-05
    %v437 = vrsqrt.pop %v435
    %v438 = vrsqrt.pop %v436
    %v439 = vmul.f32 %v423, %v437
    %v440 = vmul.f32 %v424, %v438
    %v442 = vlaneseq
    %v443 = vshrl.u32 %v442, 7
    %v444 = vsub.s32 0, %v443
    %v445 = vrot.slane %v413, %v444
    %v447 = vmul.f32 %v439, %v445
    %v448 = vmul.f32 %v440, %v445
    %v450 = vlaneseq
    %v451 = vshrl.u32 %v450, 7
    %v452 = vsub.s32 0, %v451
    %v453 = vrot.slane %v414, %v452
    %v455 = vadd.f32 %v447, %v453
    %v456 = vadd.f32 %v448, %v453
    %457 = vst.msk [vmem:[#allocation18] sm:$0xff] %vm193, %v455
    %458 = vst.msk [vmem:[#allocation18 + $0x8] sm:$0xff] %vm193, %v456
    // Predicated region
    $region74: #{group_detr_transformer_fwd.37} parent=1 // pred_check
      _
    $region75: #{group_detr_transformer_fwd.37} parent=1 // pred_check_branch
      %460 = sbr.rel (0) target = $region77
    $region76: #{group_detr_transformer_fwd.37} parent=1 // pred_region
      %s462 = ssub.s32 128, 128
      %463 = vsyncadd [#allocation4], %s462
      %s464 = sshll.u32 [#allocation17], 4
      %s465 = int_to_ptr.vmem [resolvable:$true] %s464
      %470 = dma.vmem_to_hbm [thread:$0]  %s465, 128, %s9, [#allocation4], 64, 64, 4
    $region77: #{group_detr_transformer_fwd.37} parent=1 // pred_fallthru
      _
    // Predicated region
    $region78: #{group_detr_transformer_fwd.37} parent=1 // pred_check
      _
    $region79: #{group_detr_transformer_fwd.37} parent=1 // pred_check_branch
      %472 = sbr.rel (0) target = $region81
    $region80: #{group_detr_transformer_fwd.37} parent=1 // pred_region
      %s474 = ssub.s32 256, 256
      %475 = vsyncadd [#allocation19], %s474
      %s476 = sshll.u32 [#allocation18], 4
      %s477 = int_to_ptr.vmem [resolvable:$true] %s476
      %482 = dma.vmem_to_hbm [thread:$0]  %s477, 256, %s10, [#allocation19], 128, 128, 8
    $region81: #{group_detr_transformer_fwd.37} parent=1 // pred_fallthru
      _
    // Predicated region
    $region82: #{group_detr_transformer_fwd.37} parent=1 // pred_check
      _
    $region83: #{group_detr_transformer_fwd.37} parent=1 // pred_check_branch
      %484 = sbr.rel (0) target = $region85
    $region84: #{group_detr_transformer_fwd.37} parent=1 // pred_region
      %485 = dma.done [#allocation4], 128
    $region85: #{group_detr_transformer_fwd.37} parent=1 // pred_fallthru
      _
    // Predicated region
    $region86: #{group_detr_transformer_fwd.37} parent=1 // pred_check
      _
    $region87: #{group_detr_transformer_fwd.37} parent=1 // pred_check_branch
      %487 = sbr.rel (0) target = $region89
    $region88: #{group_detr_transformer_fwd.37} parent=1 // pred_region
      %488 = dma.done [#allocation19], 256
    $region89: #{group_detr_transformer_fwd.37} parent=1 // pred_fallthru
      _
    %489 = vsyncpa [#allocation3], 1
    %490 = vsyncpa [#allocation6], 1
    %491 = vsyncpa [#allocation9], 1
    %492 = vsyncpa [#allocation12], 1
    %493 = vsyncpa [#allocation15], 1
    %494 = vsyncpa [#allocation4], 1
    %495 = vsyncpa [#allocation19], 1

</llo_original>
